<compile_context>
chip_gen: v7x
topology: tpu7x:2x2x1
jax: 0.10.0
libtpu: 0.0.40
codegen_flags: <defaults>
</compile_context>

<pallas_src>
import jax
import jax.numpy as jnp
from jax.experimental import pallas as pl
from jax.experimental.pallas import tpu as pltpu


# ----------------------------------------------------------------------------- kernel
def _make_fcn_kernel(nk):
    """Build the fused kernel. nk = number of K chunks for layer 1.

    Returns (kernel, needs_acc_scratch)."""

    def epilogue(acc, b1, w2, b2, w3, b3, w4, b4, w5, b5, o_ref):
        # acc: (TM, 1024) f32 layer-1 pre-activation (no bias yet).
        def layer(h, w_ref, b_ref, relu=True):
            y = jnp.dot(h, w_ref[...], preferred_element_type=jnp.float32)
            y = y + b_ref[...]
            # Keep inter-layer activations bf16 (halves VMEM traffic of the
            # wide intermediates); next matmul consumes bf16 anyway.
            return jnp.maximum(y, 0.0).astype(jnp.bfloat16) if relu else y

        h = jnp.maximum(acc + b1[...], 0.0).astype(jnp.bfloat16)   # (TM, 1024)
        h = layer(h, w2, b2)                                       # (TM, 256)
        h = layer(h, w3, b3)                                       # (TM, 128) (64 padded)
        h = layer(h, w4, b4)                                       # (TM, 128) (16 padded)
        o_ref[...] = layer(h, w5, b5, relu=False).astype(o_ref.dtype)

    if nk == 1:
        def kernel(x_ref, w1, b1, w2, b2, w3, b3, w4, b4, w5, b5, o_ref):
            acc = jnp.dot(x_ref[...].astype(jnp.bfloat16), w1[...],
                          preferred_element_type=jnp.float32)
            epilogue(acc, b1, w2, b2, w3, b3, w4, b4, w5, b5, o_ref)
        return kernel, False

    def kernel(x_ref, w1, b1, w2, b2, w3, b3, w4, b4, w5, b5, o_ref, acc_ref):
        k = pl.program_id(1)

        @pl.when(k == 0)
        def _():
            acc_ref[...] = jnp.zeros_like(acc_ref)

        # Layer-1 partial matmul over this K chunk; overlaps the next w1-chunk DMA.
        acc_ref[...] += jnp.dot(x_ref[...].astype(jnp.bfloat16), w1[...],
                                preferred_element_type=jnp.float32)

        @pl.when(k == nk - 1)
        def _():
            epilogue(acc_ref[...], b1, w2, b2, w3, b3, w4, b4, w5, b5, o_ref)

    return kernel, True


# ----------------------------------------------------------------------------- params
_DIMS = [2048, 1024, 256, 64, 16]        # + [outputs] appended at init


def _round_up(n, m):
    return ((n + m - 1) // m) * m


def init_params(key, outputs, eps=1e-5):
    """Synthetic parameters matching get_model(outputs): raw Linear + BN stats."""
    dims = _DIMS + [outputs]
    params = []
    for i in range(5):
        fan_in, fan_out = dims[i], dims[i + 1]
        key, kw, kb, kg, kbe, km, kv = jax.random.split(key, 7)
        # nn.Linear weight is (out, in); we store the transpose (in, out).
        w = jax.random.normal(kw, (fan_in, fan_out), jnp.float32) / jnp.sqrt(fan_in)
        b = jax.random.normal(kb, (1, fan_out), jnp.float32) * 0.01
        layer = {"w": w, "b": b}
        if i < 4:  # layers followed by BatchNorm1d
            layer["gamma"] = 1.0 + 0.1 * jax.random.normal(kg, (1, fan_out), jnp.float32)
            layer["beta"] = 0.1 * jax.random.normal(kbe, (1, fan_out), jnp.float32)
            layer["mean"] = 0.1 * jax.random.normal(km, (1, fan_out), jnp.float32)
            layer["var"] = jax.random.uniform(kv, (1, fan_out), jnp.float32,
                                              minval=0.5, maxval=1.5)
            layer["eps"] = eps
        params.append(layer)
    return params


def prepare_params(params, outputs):
    """Fold BN into Linear, zero-pad narrow dims to 128 lanes, cast weights to bf16."""
    dims = _DIMS + [outputs]
    dims_pad = [d if d % 128 == 0 else _round_up(d, 128) for d in dims]
    prepared = []
    for i, p in enumerate(params):
        w, b = p["w"], p["b"]
        if "gamma" in p:  # fold inference-mode BatchNorm
            scale = p["gamma"] / jnp.sqrt(p["var"] + p["eps"])     # (1, out)
            shift = p["beta"] - p["mean"] * scale
            w = w * scale
            b = b * scale + shift
        in_p, out_p = dims_pad[i], dims_pad[i + 1]
        w = jnp.pad(w, ((0, in_p - w.shape[0]), (0, out_p - w.shape[1])))
        b = jnp.pad(b, ((0, 0), (0, out_p - b.shape[1])))
        prepared.append({"w": w.astype(jnp.bfloat16), "b": b.astype(jnp.float32)})
    return prepared, dims_pad


# ----------------------------------------------------------------------------- wrapper
def _pick_tm(B):
    if B >= 1024:
        return 512
    if B >= 256:
        return 256
    return _round_up(B, 8)


def fcn_forward(x, prepared, outputs, dims_pad, *, single_buffer_weights=True,
                out_dtype=jnp.float32):
    B = x.shape[0]
    d_in, d1 = dims_pad[0], dims_pad[1]
    out_pad = dims_pad[-1]

    TM = _pick_tm(B)
    B_pad = _round_up(B, TM)
    if B_pad != B:
        x = jnp.pad(x, ((0, B_pad - B), (0, 0)))
    n_tiles = B_pad // TM

    # Single batch tile -> stream w1 over K chunks (overlap its DMA with compute);
    # multi-tile -> keep w1 fully resident (fetched exactly once).
    nk = 4 if n_tiles == 1 else 1
    KC = d_in // nk

    kernel, needs_acc = _make_fcn_kernel(nk)

    def const_spec(arr):
        # Resident across all grid steps; single buffer saves ~4.7 MiB VMEM.
        if single_buffer_weights:
            return pl.BlockSpec(arr.shape, lambda i, k: (0, 0),
                                pipeline_mode=pl.Buffered(1))
        return pl.BlockSpec(arr.shape, lambda i, k: (0, 0))

    in_specs = [pl.BlockSpec((TM, KC), lambda i, k: (i, k))]   # x (accepts f32 or bf16)
    if nk == 1:
        in_specs.append(const_spec(prepared[0]["w"]))
    else:
        in_specs.append(pl.BlockSpec((KC, d1), lambda i, k: (k, 0)))  # streamed w1 chunks
    in_specs.append(const_spec(prepared[0]["b"]))
    for p in prepared[1:]:
        in_specs += [const_spec(p["w"]), const_spec(p["b"])]

    out_spec = pl.BlockSpec((TM, out_pad), lambda i, k: (i, 0))

    flat_args = [x]
    for p in prepared:
        flat_args += [p["w"], p["b"]]

    scratch = [pltpu.VMEM((TM, d1), jnp.float32)] if needs_acc else []

    flops = 2 * B_pad * sum(dims_pad[i] * dims_pad[i + 1] for i in range(5))
    bytes_accessed = (
        x.size * x.dtype.itemsize
        + B_pad * out_pad * jnp.dtype(out_dtype).itemsize
        + sum(p["w"].size * p["w"].dtype.itemsize
              + p["b"].size * p["b"].dtype.itemsize for p in prepared)
    )

    out = pl.pallas_call(
        kernel,
        out_shape=jax.ShapeDtypeStruct((B_pad, out_pad), out_dtype),
        grid_spec=pltpu.PrefetchScalarGridSpec(
            num_scalar_prefetch=0,
            grid=(n_tiles, nk),                 # reduction (K) axis last
            in_specs=in_specs,
            out_specs=out_spec,
            scratch_shapes=scratch,
        ),
        compiler_params=pltpu.CompilerParams(
            dimension_semantics=("parallel", "arbitrary"),
            vmem_limit_bytes=32 << 20,          # fits v5e/v6e/v7x (usage <~20 MiB @ TM=512)
        ),
        cost_estimate=pl.CostEstimate(
            flops=flops, transcendentals=0, bytes_accessed=bytes_accessed),
    )(*flat_args)

    return out[:B, :outputs]


def fcn_forward_safe(x, prepared, outputs, dims_pad, **kw):
    """Try single-buffered resident weights; fall back to default double-buffering
    if this JAX build rejects pipeline_mode=pl.Buffered(1)."""
    try:
        return fcn_forward(x, prepared, outputs, dims_pad,
                           single_buffer_weights=True, **kw)
    except Exception:
        return fcn_forward(x, prepared, outputs, dims_pad,
                           single_buffer_weights=False, **kw)


# ----------------------------------------------------------------------------- references
def fcn_reference_f32(x, params):
    """Original-module math (Linear -> BN(running stats) -> ReLU; Dropout=id), f32."""
    h = x
    for i in range(4):
        p = params[i]
        y = h @ p["w"] + p["b"]
        y = (y - p["mean"]) / jnp.sqrt(p["var"] + p["eps"]) * p["gamma"] + p["beta"]
        h = jnp.maximum(y, 0.0)
    p = params[4]
    return h @ p["w"] + p["b"]


def fcn_reference_prepared(x, prepared, outputs):
    """Same math as the kernel (bf16 weights/activations, f32 accumulation)."""
    h = x.astype(jnp.bfloat16)
    for p in prepared[:4]:
        y = jnp.dot(h, p["w"], preferred_element_type=jnp.float32) + p["b"]
        h = jnp.maximum(y, 0.0).astype(jnp.bfloat16)
    p = prepared[4]
    y = jnp.dot(h, p["w"], preferred_element_type=jnp.float32) + p["b"]
    return y[:, :outputs]


# ----------------------------------------------------------------------------- main
if __name__ == "__main__":
    key = jax.random.PRNGKey(0)
    key, kx1, kx2 = jax.random.split(key, 3)

    OUTPUTS = 4
    params = init_params(key, OUTPUTS)
    prepared, dims_pad = prepare_params(params, OUTPUTS)

    # --- small batch: single batch tile, w1 streamed over a K-chunk axis ---
    B1 = 8
    x1 = jax.random.normal(kx1, (B1, 2048), jnp.float32)
    out1 = jax.block_until_ready(fcn_forward_safe(x1, prepared, OUTPUTS, dims_pad))
    assert out1.shape == (B1, OUTPUTS)
    ref1_bf16 = fcn_reference_prepared(x1, prepared, OUTPUTS)
    assert jnp.allclose(out1, ref1_bf16, atol=1e-2, rtol=1e-2), \
        "mismatch vs bf16 reference (B=8)"
    ref1_f32 = fcn_reference_f32(x1, params)
    assert jnp.allclose(out1, ref1_f32, atol=0.15, rtol=0.15), \
        "mismatch vs f32 reference (B=8)"

    # --- larger batch: multi-tile grid, weights resident across batch tiles ---
    B2 = 384
    x2 = jax.random.normal(kx2, (B2, 2048), jnp.float32)
    out2 = jax.block_until_ready(fcn_forward_safe(x2, prepared, OUTPUTS, dims_pad))
    assert out2.shape == (B2, OUTPUTS)
    ref2_bf16 = fcn_reference_prepared(x2, prepared, OUTPUTS)
    assert jnp.allclose(out2, ref2_bf16, atol=1e-2, rtol=1e-2), \
        "mismatch vs bf16 reference (B=384)"

    # TODO(synk): Dropout(0.4) is treated as identity (inference mode); training-mode
    # dropout would need pltpu.prng_seed + pltpu.prng_random_bits masks.
    print("KERNEL_OK")
</pallas_src>

<mosaic_0001>
module attributes {stable_mosaic.version = 11 : i64} {
  func.func @kernel(%arg0: i32, %arg1: i32, %arg2: memref<8x512xf32, #tpu.memory_space<vmem>>, %arg3: memref<512x1024xbf16, #tpu.memory_space<vmem>>, %arg4: memref<1x1024xf32, #tpu.memory_space<vmem>>, %arg5: memref<1024x256xbf16, #tpu.memory_space<vmem>>, %arg6: memref<1x256xf32, #tpu.memory_space<vmem>>, %arg7: memref<256x128xbf16, #tpu.memory_space<vmem>>, %arg8: memref<1x128xf32, #tpu.memory_space<vmem>>, %arg9: memref<128x128xbf16, #tpu.memory_space<vmem>>, %arg10: memref<1x128xf32, #tpu.memory_space<vmem>>, %arg11: memref<128x128xbf16, #tpu.memory_space<vmem>>, %arg12: memref<1x128xf32, #tpu.memory_space<vmem>>, %arg13: memref<8x128xf32, #tpu.memory_space<vmem>>, %arg14: memref<8x1024xf32, #tpu.memory_space<vmem>>) attributes {dimension_semantics = [#tpu.dimension_semantics<parallel>, #tpu.dimension_semantics<arbitrary>], iteration_bounds = array<i64: 1, 4>, scalar_prefetch = 0 : i64, scratch_operands = 1 : i64, tpu.core_type = #tpu.core_type<tc>, window_params = [{transform_indices = @transform_0, window_bounds = array<i64: 8, 512>}, {transform_indices = @transform_1, window_bounds = array<i64: 512, 1024>}, {pipeline_mode = #tpu.pipeline_mode<synchronous>, transform_indices = @transform_2, window_bounds = array<i64: 1, 1024>}, {pipeline_mode = #tpu.pipeline_mode<synchronous>, transform_indices = @transform_3, window_bounds = array<i64: 1024, 256>}, {pipeline_mode = #tpu.pipeline_mode<synchronous>, transform_indices = @transform_4, window_bounds = array<i64: 1, 256>}, {pipeline_mode = #tpu.pipeline_mode<synchronous>, transform_indices = @transform_5, window_bounds = array<i64: 256, 128>}, {pipeline_mode = #tpu.pipeline_mode<synchronous>, transform_indices = @transform_6, window_bounds = array<i64: 1, 128>}, {pipeline_mode = #tpu.pipeline_mode<synchronous>, transform_indices = @transform_7, window_bounds = array<i64: 128, 128>}, {pipeline_mode = #tpu.pipeline_mode<synchronous>, transform_indices = @transform_8, window_bounds = array<i64: 1, 128>}, {pipeline_mode = #tpu.pipeline_mode<synchronous>, transform_indices = @transform_9, window_bounds = array<i64: 128, 128>}, {pipeline_mode = #tpu.pipeline_mode<synchronous>, transform_indices = @transform_10, window_bounds = array<i64: 1, 128>}, {transform_indices = @transform_11, window_bounds = array<i64: 8, 128>}]} {
    %c0_i32 = arith.constant 0 : i32
    %0 = arith.cmpi eq, %arg1, %c0_i32 : i32
    %1 = arith.extui %0 : i1 to i32
    %c0_i32_0 = arith.constant 0 : i32
    %2 = arith.cmpi ne, %1, %c0_i32_0 : i32
    scf.if %2 {
      %cst_9 = arith.constant 0.000000e+00 : f32
      %13 = vector.broadcast %cst_9 : f32 to vector<8x1024xf32>
      %c0_10 = arith.constant 0 : index
      %c0_11 = arith.constant 0 : index
      %14 = vector.load %arg14[%c0_10, %c0_11] : memref<8x1024xf32, #tpu.memory_space<vmem>>, vector<8x1024xf32>
      tpu.vector_store %arg14[%c0_10, %c0_11], %13 {strides = array<i32>} : memref<8x1024xf32, #tpu.memory_space<vmem>>, vector<8x1024xf32>,
    } else {
    }
    %c0 = arith.constant 0 : index
    %c0_1 = arith.constant 0 : index
    %3 = vector.load %arg14[%c0, %c0_1] : memref<8x1024xf32, #tpu.memory_space<vmem>>, vector<8x1024xf32>
    %c0_2 = arith.constant 0 : index
    %c0_3 = arith.constant 0 : index
    %4 = vector.load %arg2[%c0_2, %c0_3] : memref<8x512xf32, #tpu.memory_space<vmem>>, vector<8x512xf32>
    %5 = arith.truncf %4 : vector<8x512xf32> to vector<8x512xbf16>
    %c0_4 = arith.constant 0 : index
    %c0_5 = arith.constant 0 : index
    %6 = vector.load %arg3[%c0_4, %c0_5] : memref<512x1024xbf16, #tpu.memory_space<vmem>>, vector<512x1024xbf16>
    %cst = arith.constant dense<0.000000e+00> : vector<8x1024xf32>
    %7 = tpu.matmul %5, %6, %cst {dimension_numbers = #tpu.dot_dimension_numbers<[1], [0], [0], [1], [0, 0, 1, 1], [], []>} : vector<8x512xbf16>, vector<512x1024xbf16>, vector<8x1024xf32> -> vector<8x1024xf32>
    %8 = arith.addf %3, %7 : vector<8x1024xf32>
    %c0_6 = arith.constant 0 : index
    %c0_7 = arith.constant 0 : index
    %9 = vector.load %arg14[%c0_6, %c0_7] : memref<8x1024xf32, #tpu.memory_space<vmem>>, vector<8x1024xf32>
    tpu.vector_store %arg14[%c0_6, %c0_7], %8 {strides = array<i32>} : memref<8x1024xf32, #tpu.memory_space<vmem>>, vector<8x1024xf32>,
    %c3_i32 = arith.constant 3 : i32
    %10 = arith.cmpi eq, %arg1, %c3_i32 : i32
    %11 = arith.extui %10 : i1 to i32
    %c0_i32_8 = arith.constant 0 : i32
    %12 = arith.cmpi ne, %11, %c0_i32_8 : i32
    scf.if %12 {
      %c0_9 = arith.constant 0 : index
      %c0_10 = arith.constant 0 : index
      %13 = vector.load %arg14[%c0_9, %c0_10] : memref<8x1024xf32, #tpu.memory_space<vmem>>, vector<8x1024xf32>
      %c0_11 = arith.constant 0 : index
      %c0_12 = arith.constant 0 : index
      %14 = vector.load %arg4[%c0_11, %c0_12] : memref<1x1024xf32, #tpu.memory_space<vmem>>, vector<1x1024xf32>
      %15 = vector.broadcast %14 : vector<1x1024xf32> to vector<8x1024xf32>
      %16 = arith.addf %13, %15 : vector<8x1024xf32>
      %cst_13 = arith.constant 0.000000e+00 : f32
      %17 = vector.broadcast %cst_13 : f32 to vector<8x1024xf32>
      %18 = arith.maximumf %16, %17 : vector<8x1024xf32>
      %19 = arith.truncf %18 : vector<8x1024xf32> to vector<8x1024xbf16>
      %c0_14 = arith.constant 0 : index
      %c0_15 = arith.constant 0 : index
      %20 = vector.load %arg5[%c0_14, %c0_15] : memref<1024x256xbf16, #tpu.memory_space<vmem>>, vector<1024x256xbf16>
      %cst_16 = arith.constant dense<0.000000e+00> : vector<8x256xf32>
      %21 = tpu.matmul %19, %20, %cst_16 {dimension_numbers = #tpu.dot_dimension_numbers<[1], [0], [0], [1], [0, 0, 1, 1], [], []>} : vector<8x1024xbf16>, vector<1024x256xbf16>, vector<8x256xf32> -> vector<8x256xf32>
      %c0_17 = arith.constant 0 : index
      %c0_18 = arith.constant 0 : index
      %22 = vector.load %arg6[%c0_17, %c0_18] : memref<1x256xf32, #tpu.memory_space<vmem>>, vector<1x256xf32>
      %23 = vector.broadcast %22 : vector<1x256xf32> to vector<8x256xf32>
      %24 = arith.addf %21, %23 : vector<8x256xf32>
      %cst_19 = arith.constant 0.000000e+00 : f32
      %25 = vector.broadcast %cst_19 : f32 to vector<8x256xf32>
      %26 = arith.maximumf %24, %25 : vector<8x256xf32>
      %27 = arith.truncf %26 : vector<8x256xf32> to vector<8x256xbf16>
      %c0_20 = arith.constant 0 : index
      %c0_21 = arith.constant 0 : index
      %28 = vector.load %arg7[%c0_20, %c0_21] : memref<256x128xbf16, #tpu.memory_space<vmem>>, vector<256x128xbf16>
      %cst_22 = arith.constant dense<0.000000e+00> : vector<8x128xf32>
      %29 = tpu.matmul %27, %28, %cst_22 {dimension_numbers = #tpu.dot_dimension_numbers<[1], [0], [0], [1], [0, 0, 1, 1], [], []>} : vector<8x256xbf16>, vector<256x128xbf16>, vector<8x128xf32> -> vector<8x128xf32>
      %c0_23 = arith.constant 0 : index
      %c0_24 = arith.constant 0 : index
      %30 = vector.load %arg8[%c0_23, %c0_24] : memref<1x128xf32, #tpu.memory_space<vmem>>, vector<1x128xf32>
      %31 = vector.broadcast %30 : vector<1x128xf32> to vector<8x128xf32>
      %32 = arith.addf %29, %31 : vector<8x128xf32>
      %cst_25 = arith.constant 0.000000e+00 : f32
      %33 = vector.broadcast %cst_25 : f32 to vector<8x128xf32>
      %34 = arith.maximumf %32, %33 : vector<8x128xf32>
      %35 = arith.truncf %34 : vector<8x128xf32> to vector<8x128xbf16>
      %c0_26 = arith.constant 0 : index
      %c0_27 = arith.constant 0 : index
      %36 = vector.load %arg9[%c0_26, %c0_27] : memref<128x128xbf16, #tpu.memory_space<vmem>>, vector<128x128xbf16>
      %cst_28 = arith.constant dense<0.000000e+00> : vector<8x128xf32>
      %37 = tpu.matmul %35, %36, %cst_28 {dimension_numbers = #tpu.dot_dimension_numbers<[1], [0], [0], [1], [0, 0, 1, 1], [], []>} : vector<8x128xbf16>, vector<128x128xbf16>, vector<8x128xf32> -> vector<8x128xf32>
      %c0_29 = arith.constant 0 : index
      %c0_30 = arith.constant 0 : index
      %38 = vector.load %arg10[%c0_29, %c0_30] : memref<1x128xf32, #tpu.memory_space<vmem>>, vector<1x128xf32>
      %39 = vector.broadcast %38 : vector<1x128xf32> to vector<8x128xf32>
      %40 = arith.addf %37, %39 : vector<8x128xf32>
      %cst_31 = arith.constant 0.000000e+00 : f32
      %41 = vector.broadcast %cst_31 : f32 to vector<8x128xf32>
      %42 = arith.maximumf %40, %41 : vector<8x128xf32>
      %43 = arith.truncf %42 : vector<8x128xf32> to vector<8x128xbf16>
      %c0_32 = arith.constant 0 : index
      %c0_33 = arith.constant 0 : index
      %44 = vector.load %arg11[%c0_32, %c0_33] : memref<128x128xbf16, #tpu.memory_space<vmem>>, vector<128x128xbf16>
      %cst_34 = arith.constant dense<0.000000e+00> : vector<8x128xf32>
      %45 = tpu.matmul %43, %44, %cst_34 {dimension_numbers = #tpu.dot_dimension_numbers<[1], [0], [0], [1], [0, 0, 1, 1], [], []>} : vector<8x128xbf16>, vector<128x128xbf16>, vector<8x128xf32> -> vector<8x128xf32>
      %c0_35 = arith.constant 0 : index
      %c0_36 = arith.constant 0 : index
      %46 = vector.load %arg12[%c0_35, %c0_36] : memref<1x128xf32, #tpu.memory_space<vmem>>, vector<1x128xf32>
      %47 = vector.broadcast %46 : vector<1x128xf32> to vector<8x128xf32>
      %48 = arith.addf %45, %47 : vector<8x128xf32>
      %c0_37 = arith.constant 0 : index
      %c0_38 = arith.constant 0 : index
      %49 = vector.load %arg13[%c0_37, %c0_38] : memref<8x128xf32, #tpu.memory_space<vmem>>, vector<8x128xf32>
      tpu.vector_store %arg13[%c0_37, %c0_38], %48 {strides = array<i32>} : memref<8x128xf32, #tpu.memory_space<vmem>>, vector<8x128xf32>,
    } else {
    }
    return
  }
  func.func @transform_0(%arg0: i32, %arg1: i32) -> (i32, i32) {
    %c0_i32 = arith.constant 0 : i32
    return %arg0, %arg1 : i32, i32
  }
  func.func @transform_1(%arg0: i32, %arg1: i32) -> (i32, i32) {
    %c0_i32 = arith.constant 0 : i32
    %c0_i32_0 = arith.constant 0 : i32
    return %arg1, %c0_i32 : i32, i32
  }
  func.func @transform_2(%arg0: i32, %arg1: i32) -> (i32, i32) {
    %c0_i32 = arith.constant 0 : i32
    %c0_i32_0 = arith.constant 0 : i32
    %c0_i32_1 = arith.constant 0 : i32
    return %c0_i32, %c0_i32_0 : i32, i32
  }
  func.func @transform_3(%arg0: i32, %arg1: i32) -> (i32, i32) {
    %c0_i32 = arith.constant 0 : i32
    %c0_i32_0 = arith.constant 0 : i32
    %c0_i32_1 = arith.constant 0 : i32
    return %c0_i32, %c0_i32_0 : i32, i32
  }
  func.func @transform_4(%arg0: i32, %arg1: i32) -> (i32, i32) {
    %c0_i32 = arith.constant 0 : i32
    %c0_i32_0 = arith.constant 0 : i32
    %c0_i32_1 = arith.constant 0 : i32
    return %c0_i32, %c0_i32_0 : i32, i32
  }
  func.func @transform_5(%arg0: i32, %arg1: i32) -> (i32, i32) {
    %c0_i32 = arith.constant 0 : i32
    %c0_i32_0 = arith.constant 0 : i32
    %c0_i32_1 = arith.constant 0 : i32
    return %c0_i32, %c0_i32_0 : i32, i32
  }
  func.func @transform_6(%arg0: i32, %arg1: i32) -> (i32, i32) {
    %c0_i32 = arith.constant 0 : i32
    %c0_i32_0 = arith.constant 0 : i32
    %c0_i32_1 = arith.constant 0 : i32
    return %c0_i32, %c0_i32_0 : i32, i32
  }
  func.func @transform_7(%arg0: i32, %arg1: i32) -> (i32, i32) {
    %c0_i32 = arith.constant 0 : i32
    %c0_i32_0 = arith.constant 0 : i32
    %c0_i32_1 = arith.constant 0 : i32
    return %c0_i32, %c0_i32_0 : i32, i32
  }
  func.func @transform_8(%arg0: i32, %arg1: i32) -> (i32, i32) {
    %c0_i32 = arith.constant 0 : i32
    %c0_i32_0 = arith.constant 0 : i32
    %c0_i32_1 = arith.constant 0 : i32
    return %c0_i32, %c0_i32_0 : i32, i32
  }
  func.func @transform_9(%arg0: i32, %arg1: i32) -> (i32, i32) {
    %c0_i32 = arith.constant 0 : i32
    %c0_i32_0 = arith.constant 0 : i32
    %c0_i32_1 = arith.constant 0 : i32
    return %c0_i32, %c0_i32_0 : i32, i32
  }
  func.func @transform_10(%arg0: i32, %arg1: i32) -> (i32, i32) {
    %c0_i32 = arith.constant 0 : i32
    %c0_i32_0 = arith.constant 0 : i32
    %c0_i32_1 = arith.constant 0 : i32
    return %c0_i32, %c0_i32_0 : i32, i32
  }
  func.func @transform_11(%arg0: i32, %arg1: i32) -> (i32, i32) {
    %c0_i32 = arith.constant 0 : i32
    %c0_i32_0 = arith.constant 0 : i32
    return %arg0, %c0_i32 : i32, i32
  }
}

module attributes {stable_mosaic.version = 11 : i64} {
  func.func @kernel(%arg0: i32, %arg1: i32, %arg2: memref<8x512xf32, #tpu.memory_space<vmem>>, %arg3: memref<512x1024xbf16, #tpu.memory_space<vmem>>, %arg4: memref<1x1024xf32, #tpu.memory_space<vmem>>, %arg5: memref<1024x256xbf16, #tpu.memory_space<vmem>>, %arg6: memref<1x256xf32, #tpu.memory_space<vmem>>, %arg7: memref<256x128xbf16, #tpu.memory_space<vmem>>, %arg8: memref<1x128xf32, #tpu.memory_space<vmem>>, %arg9: memref<128x128xbf16, #tpu.memory_space<vmem>>, %arg10: memref<1x128xf32, #tpu.memory_space<vmem>>, %arg11: memref<128x128xbf16, #tpu.memory_space<vmem>>, %arg12: memref<1x128xf32, #tpu.memory_space<vmem>>, %arg13: memref<8x128xf32, #tpu.memory_space<vmem>>, %arg14: memref<8x1024xf32, #tpu.memory_space<vmem>>) attributes {dimension_semantics = [#tpu.dimension_semantics<parallel>, #tpu.dimension_semantics<arbitrary>], iteration_bounds = array<i64: 1, 4>, scalar_prefetch = 0 : i64, scratch_operands = 1 : i64, tpu.core_type = #tpu.core_type<tc>, window_params = [{transform_indices = @transform_0, window_bounds = array<i64: 8, 512>}, {transform_indices = @transform_1, window_bounds = array<i64: 512, 1024>}, {pipeline_mode = #tpu.pipeline_mode<synchronous>, transform_indices = @transform_2, window_bounds = array<i64: 1, 1024>}, {pipeline_mode = #tpu.pipeline_mode<synchronous>, transform_indices = @transform_3, window_bounds = array<i64: 1024, 256>}, {pipeline_mode = #tpu.pipeline_mode<synchronous>, transform_indices = @transform_4, window_bounds = array<i64: 1, 256>}, {pipeline_mode = #tpu.pipeline_mode<synchronous>, transform_indices = @transform_5, window_bounds = array<i64: 256, 128>}, {pipeline_mode = #tpu.pipeline_mode<synchronous>, transform_indices = @transform_6, window_bounds = array<i64: 1, 128>}, {pipeline_mode = #tpu.pipeline_mode<synchronous>, transform_indices = @transform_7, window_bounds = array<i64: 128, 128>}, {pipeline_mode = #tpu.pipeline_mode<synchronous>, transform_indices = @transform_8, window_bounds = array<i64: 1, 128>}, {pipeline_mode = #tpu.pipeline_mode<synchronous>, transform_indices = @transform_9, window_bounds = array<i64: 128, 128>}, {pipeline_mode = #tpu.pipeline_mode<synchronous>, transform_indices = @transform_10, window_bounds = array<i64: 1, 128>}, {transform_indices = @transform_11, window_bounds = array<i64: 8, 128>}]} {
    %c0_i32 = arith.constant 0 : i32
    %0 = arith.cmpi eq, %arg1, %c0_i32 : i32
    %1 = arith.extui %0 : i1 to i32
    %c0_i32_0 = arith.constant 0 : i32
    %2 = arith.cmpi ne, %1, %c0_i32_0 : i32
    scf.if %2 {
      %cst_9 = arith.constant 0.000000e+00 : f32
      %13 = vector.broadcast %cst_9 : f32 to vector<8x1024xf32>
      %c0_10 = arith.constant 0 : index
      %c0_11 = arith.constant 0 : index
      %14 = vector.load %arg14[%c0_10, %c0_11] : memref<8x1024xf32, #tpu.memory_space<vmem>>, vector<8x1024xf32>
      tpu.vector_store %arg14[%c0_10, %c0_11], %13 {strides = array<i32>} : memref<8x1024xf32, #tpu.memory_space<vmem>>, vector<8x1024xf32>,
    } else {
    }
    %c0 = arith.constant 0 : index
    %c0_1 = arith.constant 0 : index
    %3 = vector.load %arg14[%c0, %c0_1] : memref<8x1024xf32, #tpu.memory_space<vmem>>, vector<8x1024xf32>
    %c0_2 = arith.constant 0 : index
    %c0_3 = arith.constant 0 : index
    %4 = vector.load %arg2[%c0_2, %c0_3] : memref<8x512xf32, #tpu.memory_space<vmem>>, vector<8x512xf32>
    %5 = arith.truncf %4 : vector<8x512xf32> to vector<8x512xbf16>
    %c0_4 = arith.constant 0 : index
    %c0_5 = arith.constant 0 : index
    %6 = vector.load %arg3[%c0_4, %c0_5] : memref<512x1024xbf16, #tpu.memory_space<vmem>>, vector<512x1024xbf16>
    %cst = arith.constant dense<0.000000e+00> : vector<8x1024xf32>
    %7 = tpu.matmul %5, %6, %cst {dimension_numbers = #tpu.dot_dimension_numbers<[1], [0], [0], [1], [0, 0, 1, 1], [], []>} : vector<8x512xbf16>, vector<512x1024xbf16>, vector<8x1024xf32> -> vector<8x1024xf32>
    %8 = arith.addf %3, %7 : vector<8x1024xf32>
    %c0_6 = arith.constant 0 : index
    %c0_7 = arith.constant 0 : index
    %9 = vector.load %arg14[%c0_6, %c0_7] : memref<8x1024xf32, #tpu.memory_space<vmem>>, vector<8x1024xf32>
    tpu.vector_store %arg14[%c0_6, %c0_7], %8 {strides = array<i32>} : memref<8x1024xf32, #tpu.memory_space<vmem>>, vector<8x1024xf32>,
    %c3_i32 = arith.constant 3 : i32
    %10 = arith.cmpi eq, %arg1, %c3_i32 : i32
    %11 = arith.extui %10 : i1 to i32
    %c0_i32_8 = arith.constant 0 : i32
    %12 = arith.cmpi ne, %11, %c0_i32_8 : i32
    scf.if %12 {
      %c0_9 = arith.constant 0 : index
      %c0_10 = arith.constant 0 : index
      %13 = vector.load %arg14[%c0_9, %c0_10] : memref<8x1024xf32, #tpu.memory_space<vmem>>, vector<8x1024xf32>
      %c0_11 = arith.constant 0 : index
      %c0_12 = arith.constant 0 : index
      %14 = vector.load %arg4[%c0_11, %c0_12] : memref<1x1024xf32, #tpu.memory_space<vmem>>, vector<1x1024xf32>
      %15 = vector.broadcast %14 : vector<1x1024xf32> to vector<8x1024xf32>
      %16 = arith.addf %13, %15 : vector<8x1024xf32>
      %cst_13 = arith.constant 0.000000e+00 : f32
      %17 = vector.broadcast %cst_13 : f32 to vector<8x1024xf32>
      %18 = arith.maximumf %16, %17 : vector<8x1024xf32>
      %19 = arith.truncf %18 : vector<8x1024xf32> to vector<8x1024xbf16>
      %c0_14 = arith.constant 0 : index
      %c0_15 = arith.constant 0 : index
      %20 = vector.load %arg5[%c0_14, %c0_15] : memref<1024x256xbf16, #tpu.memory_space<vmem>>, vector<1024x256xbf16>
      %cst_16 = arith.constant dense<0.000000e+00> : vector<8x256xf32>
      %21 = tpu.matmul %19, %20, %cst_16 {dimension_numbers = #tpu.dot_dimension_numbers<[1], [0], [0], [1], [0, 0, 1, 1], [], []>} : vector<8x1024xbf16>, vector<1024x256xbf16>, vector<8x256xf32> -> vector<8x256xf32>
      %c0_17 = arith.constant 0 : index
      %c0_18 = arith.constant 0 : index
      %22 = vector.load %arg6[%c0_17, %c0_18] : memref<1x256xf32, #tpu.memory_space<vmem>>, vector<1x256xf32>
      %23 = vector.broadcast %22 : vector<1x256xf32> to vector<8x256xf32>
      %24 = arith.addf %21, %23 : vector<8x256xf32>
      %cst_19 = arith.constant 0.000000e+00 : f32
      %25 = vector.broadcast %cst_19 : f32 to vector<8x256xf32>
      %26 = arith.maximumf %24, %25 : vector<8x256xf32>
      %27 = arith.truncf %26 : vector<8x256xf32> to vector<8x256xbf16>
      %c0_20 = arith.constant 0 : index
      %c0_21 = arith.constant 0 : index
      %28 = vector.load %arg7[%c0_20, %c0_21] : memref<256x128xbf16, #tpu.memory_space<vmem>>, vector<256x128xbf16>
      %cst_22 = arith.constant dense<0.000000e+00> : vector<8x128xf32>
      %29 = tpu.matmul %27, %28, %cst_22 {dimension_numbers = #tpu.dot_dimension_numbers<[1], [0], [0], [1], [0, 0, 1, 1], [], []>} : vector<8x256xbf16>, vector<256x128xbf16>, vector<8x128xf32> -> vector<8x128xf32>
      %c0_23 = arith.constant 0 : index
      %c0_24 = arith.constant 0 : index
      %30 = vector.load %arg8[%c0_23, %c0_24] : memref<1x128xf32, #tpu.memory_space<vmem>>, vector<1x128xf32>
      %31 = vector.broadcast %30 : vector<1x128xf32> to vector<8x128xf32>
      %32 = arith.addf %29, %31 : vector<8x128xf32>
      %cst_25 = arith.constant 0.000000e+00 : f32
      %33 = vector.broadcast %cst_25 : f32 to vector<8x128xf32>
      %34 = arith.maximumf %32, %33 : vector<8x128xf32>
      %35 = arith.truncf %34 : vector<8x128xf32> to vector<8x128xbf16>
      %c0_26 = arith.constant 0 : index
      %c0_27 = arith.constant 0 : index
      %36 = vector.load %arg9[%c0_26, %c0_27] : memref<128x128xbf16, #tpu.memory_space<vmem>>, vector<128x128xbf16>
      %cst_28 = arith.constant dense<0.000000e+00> : vector<8x128xf32>
      %37 = tpu.matmul %35, %36, %cst_28 {dimension_numbers = #tpu.dot_dimension_numbers<[1], [0], [0], [1], [0, 0, 1, 1], [], []>} : vector<8x128xbf16>, vector<128x128xbf16>, vector<8x128xf32> -> vector<8x128xf32>
      %c0_29 = arith.constant 0 : index
      %c0_30 = arith.constant 0 : index
      %38 = vector.load %arg10[%c0_29, %c0_30] : memref<1x128xf32, #tpu.memory_space<vmem>>, vector<1x128xf32>
      %39 = vector.broadcast %38 : vector<1x128xf32> to vector<8x128xf32>
      %40 = arith.addf %37, %39 : vector<8x128xf32>
      %cst_31 = arith.constant 0.000000e+00 : f32
      %41 = vector.broadcast %cst_31 : f32 to vector<8x128xf32>
      %42 = arith.maximumf %40, %41 : vector<8x128xf32>
      %43 = arith.truncf %42 : vector<8x128xf32> to vector<8x128xbf16>
      %c0_32 = arith.constant 0 : index
      %c0_33 = arith.constant 0 : index
      %44 = vector.load %arg11[%c0_32, %c0_33] : memref<128x128xbf16, #tpu.memory_space<vmem>>, vector<128x128xbf16>
      %cst_34 = arith.constant dense<0.000000e+00> : vector<8x128xf32>
      %45 = tpu.matmul %43, %44, %cst_34 {dimension_numbers = #tpu.dot_dimension_numbers<[1], [0], [0], [1], [0, 0, 1, 1], [], []>} : vector<8x128xbf16>, vector<128x128xbf16>, vector<8x128xf32> -> vector<8x128xf32>
      %c0_35 = arith.constant 0 : index
      %c0_36 = arith.constant 0 : index
      %46 = vector.load %arg12[%c0_35, %c0_36] : memref<1x128xf32, #tpu.memory_space<vmem>>, vector<1x128xf32>
      %47 = vector.broadcast %46 : vector<1x128xf32> to vector<8x128xf32>
      %48 = arith.addf %45, %47 : vector<8x128xf32>
      %c0_37 = arith.constant 0 : index
      %c0_38 = arith.constant 0 : index
      %49 = vector.load %arg13[%c0_37, %c0_38] : memref<8x128xf32, #tpu.memory_space<vmem>>, vector<8x128xf32>
      tpu.vector_store %arg13[%c0_37, %c0_38], %48 {strides = array<i32>} : memref<8x128xf32, #tpu.memory_space<vmem>>, vector<8x128xf32>,
    } else {
    }
    return
  }
  func.func @transform_0(%arg0: i32, %arg1: i32) -> (i32, i32) {
    %c0_i32 = arith.constant 0 : i32
    return %arg0, %arg1 : i32, i32
  }
  func.func @transform_1(%arg0: i32, %arg1: i32) -> (i32, i32) {
    %c0_i32 = arith.constant 0 : i32
    %c0_i32_0 = arith.constant 0 : i32
    return %arg1, %c0_i32 : i32, i32
  }
  func.func @transform_2(%arg0: i32, %arg1: i32) -> (i32, i32) {
    %c0_i32 = arith.constant 0 : i32
    %c0_i32_0 = arith.constant 0 : i32
    %c0_i32_1 = arith.constant 0 : i32
    return %c0_i32, %c0_i32_0 : i32, i32
  }
  func.func @transform_3(%arg0: i32, %arg1: i32) -> (i32, i32) {
    %c0_i32 = arith.constant 0 : i32
    %c0_i32_0 = arith.constant 0 : i32
    %c0_i32_1 = arith.constant 0 : i32
    return %c0_i32, %c0_i32_0 : i32, i32
  }
  func.func @transform_4(%arg0: i32, %arg1: i32) -> (i32, i32) {
    %c0_i32 = arith.constant 0 : i32
    %c0_i32_0 = arith.constant 0 : i32
    %c0_i32_1 = arith.constant 0 : i32
    return %c0_i32, %c0_i32_0 : i32, i32
  }
  func.func @transform_5(%arg0: i32, %arg1: i32) -> (i32, i32) {
    %c0_i32 = arith.constant 0 : i32
    %c0_i32_0 = arith.constant 0 : i32
    %c0_i32_1 = arith.constant 0 : i32
    return %c0_i32, %c0_i32_0 : i32, i32
  }
  func.func @transform_6(%arg0: i32, %arg1: i32) -> (i32, i32) {
    %c0_i32 = arith.constant 0 : i32
    %c0_i32_0 = arith.constant 0 : i32
    %c0_i32_1 = arith.constant 0 : i32
    return %c0_i32, %c0_i32_0 : i32, i32
  }
  func.func @transform_7(%arg0: i32, %arg1: i32) -> (i32, i32) {
    %c0_i32 = arith.constant 0 : i32
    %c0_i32_0 = arith.constant 0 : i32
    %c0_i32_1 = arith.constant 0 : i32
    return %c0_i32, %c0_i32_0 : i32, i32
  }
  func.func @transform_8(%arg0: i32, %arg1: i32) -> (i32, i32) {
    %c0_i32 = arith.constant 0 : i32
    %c0_i32_0 = arith.constant 0 : i32
    %c0_i32_1 = arith.constant 0 : i32
    return %c0_i32, %c0_i32_0 : i32, i32
  }
  func.func @transform_9(%arg0: i32, %arg1: i32) -> (i32, i32) {
    %c0_i32 = arith.constant 0 : i32
    %c0_i32_0 = arith.constant 0 : i32
    %c0_i32_1 = arith.constant 0 : i32
    return %c0_i32, %c0_i32_0 : i32, i32
  }
  func.func @transform_10(%arg0: i32, %arg1: i32) -> (i32, i32) {
    %c0_i32 = arith.constant 0 : i32
    %c0_i32_0 = arith.constant 0 : i32
    %c0_i32_1 = arith.constant 0 : i32
    return %c0_i32, %c0_i32_0 : i32, i32
  }
  func.func @transform_11(%arg0: i32, %arg1: i32) -> (i32, i32) {
    %c0_i32 = arith.constant 0 : i32
    %c0_i32_0 = arith.constant 0 : i32
    return %arg0, %c0_i32 : i32, i32
  }
}

</mosaic_0001>

<llo_original>
// kernel: tpu_custom_call.1
$region0: #{tpu_custom_call.1}
  #allocation0 [shape = 'u32[]', space=smem, size = 0x4, offset = 0x4, fixed_abs, tag = 'smem constant byte address 0x4 - core index']
  #allocation1 [shape = 'u32[144,128]{1,0:T(1,128)}', space=vmem, size = 0x12000, scoped, tag = 'internal scratch']
  #allocation2 [shape = 'f32[8,1024]{1,0:T(8,128)}', space=vmem, size = 0x8000, scoped, tag = 'scratch operand']
  %s0 = inlined_call_operand.hbm [shape: f32[8,2048], index: 0, kind: input, shape index: {}]
  %s1 = inlined_call_operand.hbm [shape: bf16[2048,1024], index: 1, kind: input, shape index: {}]
  %s2 = inlined_call_operand.hbm [shape: f32[1,1024], index: 2, kind: input, shape index: {}]
  %s3 = inlined_call_operand.hbm [shape: bf16[1024,256], index: 3, kind: input, shape index: {}]
  %s4 = inlined_call_operand.hbm [shape: f32[1,256], index: 4, kind: input, shape index: {}]
  %s5 = inlined_call_operand.hbm [shape: bf16[256,128], index: 5, kind: input, shape index: {}]
  %s6 = inlined_call_operand.hbm [shape: f32[1,128], index: 6, kind: input, shape index: {}]
  %s7 = inlined_call_operand.hbm [shape: bf16[128,128], index: 7, kind: input, shape index: {}]
  %s8 = inlined_call_operand.hbm [shape: f32[1,128], index: 8, kind: input, shape index: {}]
  %s9 = inlined_call_operand.hbm [shape: bf16[128,128], index: 9, kind: input, shape index: {}]
  %s10 = inlined_call_operand.hbm [shape: f32[1,128], index: 10, kind: input, shape index: {}]
  %s11 = inlined_call_operand.hbm [shape: f32[8,128], index: 11, kind: output, shape index: {}]
  %s12 = sld [smem:[#allocation0]]
  $region129: #{tpu_custom_call.1} parent=0
    _
  %s14 = ssub.s32 1, %s12
  %s15 = scalar_select 0, %s14, %s12
  $region1: #{tpu_custom_call.1} parent=0
    #allocation3 [shape = 'u8[32768]{0}', space=vmem, size = 0x8000, scoped, tag = 'input window, operand 0']
    #allocation4 [shape = 's32[2]{0}', space=sflag, size = 0x8, scoped, tag = 'scoped memory for tpu_custom_call.1']
    #allocation5 [shape = 's32[2]{0}', space=sflag, size = 0x8, scoped, tag = 'scoped memory for tpu_custom_call.1']
    #allocation6 [shape = 'u8[2097152]{0}', space=vmem, size = 0x200000, scoped, tag = 'input window, operand 1']
    #allocation7 [shape = 's32[2]{0}', space=sflag, size = 0x8, scoped, tag = 'scoped memory for tpu_custom_call.1']
    #allocation8 [shape = 'u8[4096]{0}', space=vmem, size = 0x1000, scoped, tag = 'input window, operand 2, single buffered']
    #allocation9 [shape = 'u8[524288]{0}', space=vmem, size = 0x80000, scoped, tag = 'input window, operand 3, single buffered']
    #allocation10 [shape = 's32[1]{0}', space=sflag, size = 0x4, scoped, tag = 'scoped memory for tpu_custom_call.1']
    #allocation11 [shape = 'u8[1024]{0}', space=vmem, size = 0x400, scoped, tag = 'input window, operand 4, single buffered']
    #allocation12 [shape = 'u8[65536]{0}', space=vmem, size = 0x10000, scoped, tag = 'input window, operand 5, single buffered']
    #allocation13 [shape = 's32[1]{0}', space=sflag, size = 0x4, scoped, tag = 'scoped memory for tpu_custom_call.1']
    #allocation14 [shape = 'u8[512]{0}', space=vmem, size = 0x400, scoped, tag = 'input window, operand 6, single buffered']
    #allocation15 [shape = 'u8[32768]{0}', space=vmem, size = 0x8000, scoped, tag = 'input window, operand 7, single buffered']
    #allocation16 [shape = 's32[1]{0}', space=sflag, size = 0x4, scoped, tag = 'scoped memory for tpu_custom_call.1']
    #allocation17 [shape = 'u8[512]{0}', space=vmem, size = 0x400, scoped, tag = 'input window, operand 8, single buffered']
    #allocation18 [shape = 'u8[32768]{0}', space=vmem, size = 0x8000, scoped, tag = 'input window, operand 9, single buffered']
    #allocation19 [shape = 's32[1]{0}', space=sflag, size = 0x4, scoped, tag = 'scoped memory for tpu_custom_call.1']
    #allocation20 [shape = 'u8[512]{0}', space=vmem, size = 0x400, scoped, tag = 'input window, operand 10, single buffered']
    #allocation21 [shape = 'u8[4096]{0}', space=vmem, size = 0x1000, scoped, tag = 'output window, operand 0, single buffered']
    %16 = vsyncpa [#allocation4], 0
    %s17 = scalar_lea.sflag [#allocation4], 1
    %18 = vsyncpa %s17, 0
    %19 = vsyncpa [#allocation7], 0
    %s20 = scalar_lea.sflag [#allocation7], 1
    %21 = vsyncpa %s20, 0
    %22 = vsyncpa [#allocation10], 0
    %23 = vsyncpa [#allocation13], 0
    %24 = vsyncpa [#allocation16], 0
    %25 = vsyncpa [#allocation19], 0
    %26 = vsyncpa [#allocation5], 0
    loop: start=0, step=1, limit=6
    $region2: #{tpu_custom_call.1} parent=1 // loop_pre_header
      _
    $region3: #{tpu_custom_call.1} parent=1 // loop_header
      %s28 = sphi 0, %s32
      %p29 = scmp.ge.s32.totalorder %s28, 6
      %s35 = sphi 0, %s47
      %s36 = sphi 0, %s43
      %s37 = sphi 0, %s35
      %s38 = sphi 0, %s36
      %s39 = sphi 0, %s37
      %s40 = sphi 0, %s38
      %s52 = sphi 0, %s54
      %s55 = sphi 0, %s52
      %s56 = sphi 0, %s55
      %s72 = sphi 0, %s56
      %s78 = sphi 0, %s80
      %s81 = sphi 0, %s78
      %s82 = sphi 0, %s81
      %s98 = sphi 0, %s82
      %s102 = sphi 0, %s102
      %s104 = sphi 0, %s102
      %s105 = sphi 0, %s104
      %s119 = sphi 0, %s105
      %s123 = sphi 0, %s123
      %s125 = sphi 0, %s123
      %s126 = sphi 0, %s125
      %s140 = sphi 0, %s126
      %s144 = sphi 0, %s144
      %s146 = sphi 0, %s144
      %s147 = sphi 0, %s146
      %s161 = sphi 0, %s147
      %s165 = sphi 0, %s165
      %s167 = sphi 0, %s165
      %s168 = sphi 0, %s167
      %s182 = sphi 0, %s168
      %s186 = sphi 0, %s186
      %s188 = sphi 0, %s186
      %s189 = sphi 0, %s188
      %s203 = sphi 0, %s189
      %s207 = sphi 0, %s207
      %s209 = sphi 0, %s207
      %s210 = sphi 0, %s209
      %s224 = sphi 0, %s210
      %s228 = sphi 0, %s228
      %s230 = sphi 0, %s228
      %s231 = sphi 0, %s230
      %s245 = sphi 0, %s231
      %s249 = sphi 0, %s249
      %s251 = sphi 0, %s249
      %s252 = sphi 0, %s251
      %s266 = sphi 0, %s252
      %s270 = sphi 0, %s270
      %s272 = sphi 0, %s270
      %s273 = sphi 0, %s272
      %s287 = sphi 0, %s273
      %s293 = sphi 0, %s295
      %s296 = sphi 0, %s293
      %s297 = sphi 0, %s296
      %s313 = sphi 0, %s297
    $region4: #{tpu_custom_call.1} parent=1 // loop_header_branch
      %31 = sbr.rel (%p29) target = $region8
    $region5: #{tpu_custom_call.1} parent=1 // loop_body
      %s33 = ssub.s32 %s28, 1
      %s34 = ssub.s32 %s28, 2
      %s41 = sadd.s32 1, %s36
      %p42 = scmp.ge.s32.totalorder %s41, 4
      %s43 = scalar_select %p42, 0, %s41
      %s44 = sadd.s32 1, %s35
      %s45 = scalar_select %p42, %s44, %s35
      %p46 = scmp.ge.s32.totalorder %s45, 1
      %s47 = scalar_select %p46, 0, %s45
      %s48 = ssub.s32 %s35, %s47
      %s49 = ssub.s32 %s36, %s43
      %s50 = sor.u32 %s48, %s49
      %p51 = scmp.eq.s32.totalorder %s50, 0
      %s53 = sadd.s32 %s52, 1
      %s54 = scalar_select %p51, %s52, %s53
      %p57 = pneg %p51
      %p58 = scmp.eq.s32.totalorder %s28, 3
      %p59 = por %p57, %p58
      %p60 = scmp.ne.s32.totalorder %s52, %s55
      %p61 = scmp.eq.s32.totalorder %s28, 0
      %p62 = por %p60, %p61
      %p63 = scmp.ne.s32.totalorder %s52, %s55
      %p64 = scmp.eq.s32.totalorder %s33, 3
      %p65 = por %p63, %p64
      %p66 = scmp.ne.s32.totalorder %s55, %s56
      %p67 = scmp.eq.s32.totalorder %s33, 0
      %p68 = por %p66, %p67
      %p69 = scmp.ne.s32.totalorder %s55, %s56
      %p70 = scmp.eq.s32.totalorder %s34, 3
      %p71 = por %p69, %p70
      %p73 = scmp.ne.s32.totalorder %s56, %s72
      %p74 = scmp.eq.s32.totalorder %s34, 0
      %p75 = por %p73, %p74
      %s76 = ssub.s32 %s36, %s43
      %p77 = scmp.eq.s32.totalorder %s76, 0
      %s79 = sadd.s32 %s78, 1
      %s80 = scalar_select %p77, %s78, %s79
      %p83 = pneg %p77
      %p84 = scmp.eq.s32.totalorder %s28, 3
      %p85 = por %p83, %p84
      %p86 = scmp.ne.s32.totalorder %s78, %s81
      %p87 = scmp.eq.s32.totalorder %s28, 0
      %p88 = por %p86, %p87
      %p89 = scmp.ne.s32.totalorder %s78, %s81
      %p90 = scmp.eq.s32.totalorder %s33, 3
      %p91 = por %p89, %p90
      %p92 = scmp.ne.s32.totalorder %s81, %s82
      %p93 = scmp.eq.s32.totalorder %s33, 0
      %p94 = por %p92, %p93
      %p95 = scmp.ne.s32.totalorder %s81, %s82
      %p96 = scmp.eq.s32.totalorder %s34, 3
      %p97 = por %p95, %p96
      %p99 = scmp.ne.s32.totalorder %s82, %s98
      %p100 = scmp.eq.s32.totalorder %s34, 0
      %p101 = por %p99, %p100
      %s103 = sadd.s32 %s102, 1
      %p106 = scmp.eq.s32.totalorder %s28, 3
      %p107 = scmp.ne.s32.totalorder %s102, %s104
      %p108 = scmp.eq.s32.totalorder %s28, 0
      %p109 = por %p107, %p108
      %p110 = scmp.ne.s32.totalorder %s102, %s104
      %p111 = scmp.eq.s32.totalorder %s33, 3
      %p112 = por %p110, %p111
      %p113 = scmp.ne.s32.totalorder %s104, %s105
      %p114 = scmp.eq.s32.totalorder %s33, 0
      %p115 = por %p113, %p114
      %p116 = scmp.ne.s32.totalorder %s104, %s105
      %p117 = scmp.eq.s32.totalorder %s34, 3
      %p118 = por %p116, %p117
      %p120 = scmp.ne.s32.totalorder %s105, %s119
      %p121 = scmp.eq.s32.totalorder %s34, 0
      %p122 = por %p120, %p121
      %s124 = sadd.s32 %s123, 1
      %p127 = scmp.eq.s32.totalorder %s28, 3
      %p128 = scmp.ne.s32.totalorder %s123, %s125
      %p129 = scmp.eq.s32.totalorder %s28, 0
      %p130 = por %p128, %p129
      %p131 = scmp.ne.s32.totalorder %s123, %s125
      %p132 = scmp.eq.s32.totalorder %s33, 3
      %p133 = por %p131, %p132
      %p134 = scmp.ne.s32.totalorder %s125, %s126
      %p135 = scmp.eq.s32.totalorder %s33, 0
      %p136 = por %p134, %p135
      %p137 = scmp.ne.s32.totalorder %s125, %s126
      %p138 = scmp.eq.s32.totalorder %s34, 3
      %p139 = por %p137, %p138
      %p141 = scmp.ne.s32.totalorder %s126, %s140
      %p142 = scmp.eq.s32.totalorder %s34, 0
      %p143 = por %p141, %p142
      %s145 = sadd.s32 %s144, 1
      %p148 = scmp.eq.s32.totalorder %s28, 3
      %p149 = scmp.ne.s32.totalorder %s144, %s146
      %p150 = scmp.eq.s32.totalorder %s28, 0
      %p151 = por %p149, %p150
      %p152 = scmp.ne.s32.totalorder %s144, %s146
      %p153 = scmp.eq.s32.totalorder %s33, 3
      %p154 = por %p152, %p153
      %p155 = scmp.ne.s32.totalorder %s146, %s147
      %p156 = scmp.eq.s32.totalorder %s33, 0
      %p157 = por %p155, %p156
      %p158 = scmp.ne.s32.totalorder %s146, %s147
      %p159 = scmp.eq.s32.totalorder %s34, 3
      %p160 = por %p158, %p159
      %p162 = scmp.ne.s32.totalorder %s147, %s161
      %p163 = scmp.eq.s32.totalorder %s34, 0
      %p164 = por %p162, %p163
      %s166 = sadd.s32 %s165, 1
      %p169 = scmp.eq.s32.totalorder %s28, 3
      %p170 = scmp.ne.s32.totalorder %s165, %s167
      %p171 = scmp.eq.s32.totalorder %s28, 0
      %p172 = por %p170, %p171
      %p173 = scmp.ne.s32.totalorder %s165, %s167
      %p174 = scmp.eq.s32.totalorder %s33, 3
      %p175 = por %p173, %p174
      %p176 = scmp.ne.s32.totalorder %s167, %s168
      %p177 = scmp.eq.s32.totalorder %s33, 0
      %p178 = por %p176, %p177
      %p179 = scmp.ne.s32.totalorder %s167, %s168
      %p180 = scmp.eq.s32.totalorder %s34, 3
      %p181 = por %p179, %p180
      %p183 = scmp.ne.s32.totalorder %s168, %s182
      %p184 = scmp.eq.s32.totalorder %s34, 0
      %p185 = por %p183, %p184
      %s187 = sadd.s32 %s186, 1
      %p190 = scmp.eq.s32.totalorder %s28, 3
      %p191 = scmp.ne.s32.totalorder %s186, %s188
      %p192 = scmp.eq.s32.totalorder %s28, 0
      %p193 = por %p191, %p192
      %p194 = scmp.ne.s32.totalorder %s186, %s188
      %p195 = scmp.eq.s32.totalorder %s33, 3
      %p196 = por %p194, %p195
      %p197 = scmp.ne.s32.totalorder %s188, %s189
      %p198 = scmp.eq.s32.totalorder %s33, 0
      %p199 = por %p197, %p198
      %p200 = scmp.ne.s32.totalorder %s188, %s189
      %p201 = scmp.eq.s32.totalorder %s34, 3
      %p202 = por %p200, %p201
      %p204 = scmp.ne.s32.totalorder %s189, %s203
      %p205 = scmp.eq.s32.totalorder %s34, 0
      %p206 = por %p204, %p205
      %s208 = sadd.s32 %s207, 1
      %p211 = scmp.eq.s32.totalorder %s28, 3
      %p212 = scmp.ne.s32.totalorder %s207, %s209
      %p213 = scmp.eq.s32.totalorder %s28, 0
      %p214 = por %p212, %p213
      %p215 = scmp.ne.s32.totalorder %s207, %s209
      %p216 = scmp.eq.s32.totalorder %s33, 3
      %p217 = por %p215, %p216
      %p218 = scmp.ne.s32.totalorder %s209, %s210
      %p219 = scmp.eq.s32.totalorder %s33, 0
      %p220 = por %p218, %p219
      %p221 = scmp.ne.s32.totalorder %s209, %s210
      %p222 = scmp.eq.s32.totalorder %s34, 3
      %p223 = por %p221, %p222
      %p225 = scmp.ne.s32.totalorder %s210, %s224
      %p226 = scmp.eq.s32.totalorder %s34, 0
      %p227 = por %p225, %p226
      %s229 = sadd.s32 %s228, 1
      %p232 = scmp.eq.s32.totalorder %s28, 3
      %p233 = scmp.ne.s32.totalorder %s228, %s230
      %p234 = scmp.eq.s32.totalorder %s28, 0
      %p235 = por %p233, %p234
      %p236 = scmp.ne.s32.totalorder %s228, %s230
      %p237 = scmp.eq.s32.totalorder %s33, 3
      %p238 = por %p236, %p237
      %p239 = scmp.ne.s32.totalorder %s230, %s231
      %p240 = scmp.eq.s32.totalorder %s33, 0
      %p241 = por %p239, %p240
      %p242 = scmp.ne.s32.totalorder %s230, %s231
      %p243 = scmp.eq.s32.totalorder %s34, 3
      %p244 = por %p242, %p243
      %p246 = scmp.ne.s32.totalorder %s231, %s245
      %p247 = scmp.eq.s32.totalorder %s34, 0
      %p248 = por %p246, %p247
      %s250 = sadd.s32 %s249, 1
      %p253 = scmp.eq.s32.totalorder %s28, 3
      %p254 = scmp.ne.s32.totalorder %s249, %s251
      %p255 = scmp.eq.s32.totalorder %s28, 0
      %p256 = por %p254, %p255
      %p257 = scmp.ne.s32.totalorder %s249, %s251
      %p258 = scmp.eq.s32.totalorder %s33, 3
      %p259 = por %p257, %p258
      %p260 = scmp.ne.s32.totalorder %s251, %s252
      %p261 = scmp.eq.s32.totalorder %s33, 0
      %p262 = por %p260, %p261
      %p263 = scmp.ne.s32.totalorder %s251, %s252
      %p264 = scmp.eq.s32.totalorder %s34, 3
      %p265 = por %p263, %p264
      %p267 = scmp.ne.s32.totalorder %s252, %s266
      %p268 = scmp.eq.s32.totalorder %s34, 0
      %p269 = por %p267, %p268
      %s271 = sadd.s32 %s270, 1
      %p274 = scmp.eq.s32.totalorder %s28, 3
      %p275 = scmp.ne.s32.totalorder %s270, %s272
      %p276 = scmp.eq.s32.totalorder %s28, 0
      %p277 = por %p275, %p276
      %p278 = scmp.ne.s32.totalorder %s270, %s272
      %p279 = scmp.eq.s32.totalorder %s33, 3
      %p280 = por %p278, %p279
      %p281 = scmp.ne.s32.totalorder %s272, %s273
      %p282 = scmp.eq.s32.totalorder %s33, 0
      %p283 = por %p281, %p282
      %p284 = scmp.ne.s32.totalorder %s272, %s273
      %p285 = scmp.eq.s32.totalorder %s34, 3
      %p286 = por %p284, %p285
      %p288 = scmp.ne.s32.totalorder %s273, %s287
      %p289 = scmp.eq.s32.totalorder %s34, 0
      %p290 = por %p288, %p289
      %s291 = ssub.s32 %s35, %s47
      %p292 = scmp.eq.s32.totalorder %s291, 0
      %s294 = sadd.s32 %s293, 1
      %s295 = scalar_select %p292, %s293, %s294
      %p298 = pneg %p292
      %p299 = scmp.eq.s32.totalorder %s28, 3
      %p300 = por %p298, %p299
      %p301 = scmp.ne.s32.totalorder %s293, %s296
      %p302 = scmp.eq.s32.totalorder %s28, 0
      %p303 = por %p301, %p302
      %p304 = scmp.ne.s32.totalorder %s293, %s296
      %p305 = scmp.eq.s32.totalorder %s33, 3
      %p306 = por %p304, %p305
      %p307 = scmp.ne.s32.totalorder %s296, %s297
      %p308 = scmp.eq.s32.totalorder %s33, 0
      %p309 = por %p307, %p308
      %p310 = scmp.ne.s32.totalorder %s296, %s297
      %p311 = scmp.eq.s32.totalorder %s34, 3
      %p312 = por %p310, %p311
      %p314 = scmp.ne.s32.totalorder %s297, %s313
      %p315 = scmp.eq.s32.totalorder %s34, 0
      %p316 = por %p314, %p315
      %p317 = scmp.le.s32.totalorder 1, %s28
      %p318 = scmp.lt.s32.totalorder %s28, 5
      %p319 = pnand %p317, %p318
      %p320 = pneg %p319
      // Predicated region
      $region9: #{tpu_custom_call.1} parent=5 // pred_check
        _
      $region10: #{tpu_custom_call.1} parent=5 // pred_check_branch
        %322 = sbr.rel (%p319) target = $region12
      $region11: #{tpu_custom_call.1} parent=5 // pred_region
        %s323 = ssub.s32 %s28, 1
        // Predicated region
        $region13: #{tpu_custom_call.1} parent=11 // pred_check
          %p324 = pneg %p115
        $region14: #{tpu_custom_call.1} parent=11 // pred_check_branch
          %326 = sbr.rel (%p324) target = $region16
        $region15: #{tpu_custom_call.1} parent=11 // pred_region
          %s328 = ssub.s32 128, 128
          %329 = vsyncadd [#allocation7], %s328
          %s331 = sshll.u32 [#allocation8], 4
          %s332 = int_to_ptr.vmem [resolvable:$true] %s331
          %334 = dma.hbm_to_vmem [thread:$0]  %s2, 128, %s332, [#allocation7]
        $region16: #{tpu_custom_call.1} parent=11 // pred_fallthru
          _
        // Predicated region
        $region17: #{tpu_custom_call.1} parent=11 // pred_check
          %p335 = pneg %p136
        $region18: #{tpu_custom_call.1} parent=11 // pred_check_branch
          %337 = sbr.rel (%p335) target = $region20
        $region19: #{tpu_custom_call.1} parent=11 // pred_region
          %s339 = ssub.s32 16384, 16384
          %340 = vsyncadd [#allocation10], %s339
          %s341 = sshll.u32 [#allocation9], 4
          %s342 = int_to_ptr.vmem [resolvable:$true] %s341
          %347 = dma.hbm_to_vmem [thread:$0]  %s3, 16384, %s342, [#allocation10], 128, 128, 8
        $region20: #{tpu_custom_call.1} parent=11 // pred_fallthru
          _
        // Predicated region
        $region21: #{tpu_custom_call.1} parent=11 // pred_check
          %p348 = pneg %p157
        $region22: #{tpu_custom_call.1} parent=11 // pred_check_branch
          %350 = sbr.rel (%p348) target = $region24
        $region23: #{tpu_custom_call.1} parent=11 // pred_region
          %s352 = ssub.s32 32, 32
          %353 = vsyncadd [#allocation10], %s352
          %s355 = sshll.u32 [#allocation11], 4
          %s356 = int_to_ptr.vmem [resolvable:$true] %s355
          %358 = dma.hbm_to_vmem [thread:$0]  %s4, 32, %s356, [#allocation10]
        $region24: #{tpu_custom_call.1} parent=11 // pred_fallthru
          _
        // Predicated region
        $region25: #{tpu_custom_call.1} parent=11 // pred_check
          %p359 = pneg %p178
        $region26: #{tpu_custom_call.1} parent=11 // pred_check_branch
          %361 = sbr.rel (%p359) target = $region28
        $region27: #{tpu_custom_call.1} parent=11 // pred_region
          %s363 = ssub.s32 2048, 2048
          %364 = vsyncadd [#allocation13], %s363
          %s365 = sshll.u32 [#allocation12], 4
          %s366 = int_to_ptr.vmem [resolvable:$true] %s365
          %371 = dma.hbm_to_vmem [thread:$0]  %s5, 2048, %s366, [#allocation13], 64, 64, 4
        $region28: #{tpu_custom_call.1} parent=11 // pred_fallthru
          _
        // Predicated region
        $region29: #{tpu_custom_call.1} parent=11 // pred_check
          %p372 = pneg %p199
        $region30: #{tpu_custom_call.1} parent=11 // pred_check_branch
          %374 = sbr.rel (%p372) target = $region32
        $region31: #{tpu_custom_call.1} parent=11 // pred_region
          %s376 = ssub.s32 16, 16
          %377 = vsyncadd [#allocation13], %s376
          %s379 = sshll.u32 [#allocation14], 4
          %s380 = int_to_ptr.vmem [resolvable:$true] %s379
          %382 = dma.hbm_to_vmem [thread:$0]  %s6, 16, %s380, [#allocation13]
        $region32: #{tpu_custom_call.1} parent=11 // pred_fallthru
          _
        // Predicated region
        $region33: #{tpu_custom_call.1} parent=11 // pred_check
          %p383 = pneg %p220
        $region34: #{tpu_custom_call.1} parent=11 // pred_check_branch
          %385 = sbr.rel (%p383) target = $region36
        $region35: #{tpu_custom_call.1} parent=11 // pred_region
          %s387 = ssub.s32 1024, 1024
          %388 = vsyncadd [#allocation16], %s387
          %s389 = sshll.u32 [#allocation15], 4
          %s390 = int_to_ptr.vmem [resolvable:$true] %s389
          %395 = dma.hbm_to_vmem [thread:$0]  %s7, 1024, %s390, [#allocation16], 64, 64, 4
        $region36: #{tpu_custom_call.1} parent=11 // pred_fallthru
          _
        // Predicated region
        $region37: #{tpu_custom_call.1} parent=11 // pred_check
          %p396 = pneg %p241
        $region38: #{tpu_custom_call.1} parent=11 // pred_check_branch
          %398 = sbr.rel (%p396) target = $region40
        $region39: #{tpu_custom_call.1} parent=11 // pred_region
          %s400 = ssub.s32 16, 16
          %401 = vsyncadd [#allocation16], %s400
          %s403 = sshll.u32 [#allocation17], 4
          %s404 = int_to_ptr.vmem [resolvable:$true] %s403
          %406 = dma.hbm_to_vmem [thread:$0]  %s8, 16, %s404, [#allocation16]
        $region40: #{tpu_custom_call.1} parent=11 // pred_fallthru
          _
        // Predicated region
        $region41: #{tpu_custom_call.1} parent=11 // pred_check
          %p407 = pneg %p262
        $region42: #{tpu_custom_call.1} parent=11 // pred_check_branch
          %409 = sbr.rel (%p407) target = $region44
        $region43: #{tpu_custom_call.1} parent=11 // pred_region
          %s411 = ssub.s32 1024, 1024
          %412 = vsyncadd [#allocation19], %s411
          %s413 = sshll.u32 [#allocation18], 4
          %s414 = int_to_ptr.vmem [resolvable:$true] %s413
          %419 = dma.hbm_to_vmem [thread:$0]  %s9, 1024, %s414, [#allocation19], 64, 64, 4
        $region44: #{tpu_custom_call.1} parent=11 // pred_fallthru
          _
        // Predicated region
        $region45: #{tpu_custom_call.1} parent=11 // pred_check
          %p420 = pneg %p283
        $region46: #{tpu_custom_call.1} parent=11 // pred_check_branch
          %422 = sbr.rel (%p420) target = $region48
        $region47: #{tpu_custom_call.1} parent=11 // pred_region
          %s424 = ssub.s32 16, 16
          %425 = vsyncadd [#allocation19], %s424
          %s427 = sshll.u32 [#allocation20], 4
          %s428 = int_to_ptr.vmem [resolvable:$true] %s427
          %430 = dma.hbm_to_vmem [thread:$0]  %s10, 16, %s428, [#allocation19]
        $region48: #{tpu_custom_call.1} parent=11 // pred_fallthru
          _
      $region12: #{tpu_custom_call.1} parent=5 // pred_fallthru
        _
      %p431 = scmp.lt.s32.totalorder %s28, 4
      // Predicated region
      $region49: #{tpu_custom_call.1} parent=5 // pred_check
        %p432 = pneg %p431
      $region50: #{tpu_custom_call.1} parent=5 // pred_check_branch
        %434 = sbr.rel (%p432) target = $region52
      $region51: #{tpu_custom_call.1} parent=5 // pred_region
        // Predicated region
        $region53: #{tpu_custom_call.1} parent=51 // pred_check
          %p435 = pneg %p62
        $region54: #{tpu_custom_call.1} parent=51 // pred_check_branch
          %437 = sbr.rel (%p435) target = $region56
        $region55: #{tpu_custom_call.1} parent=51 // pred_region
          %s438 = sand.u32 %s52, 1
          %s439 = scalar_lea.sflag [#allocation4], %s438
          %s440 = sand.u32 %s52, 1
          %s441 = smul.addr %s440, 32
          %s442 = scalar_lea.vmem [#allocation3], %s441
          %s443 = smul.u32 4, %s36
          %s445 = ssub.s32 512, 512
          %446 = vsyncadd %s439, %s445
          %s447 = smul.addr %s35, 16
          %s448 = sadd.s32 %s443, %s447
          %s449 = smul.addr %s448, 128
          %s450 = scalar_lea.hbm %s0, %s449
          %s452 = sshll.u32 %s442, 4
          %s453 = int_to_ptr.vmem [resolvable:$true] %s452
          %455 = dma.hbm_to_vmem [thread:$0]  %s450, 512, %s453, %s439
        $region56: #{tpu_custom_call.1} parent=51 // pred_fallthru
          _
        // Predicated region
        $region57: #{tpu_custom_call.1} parent=51 // pred_check
          %p456 = pneg %p88
        $region58: #{tpu_custom_call.1} parent=51 // pred_check_branch
          %458 = sbr.rel (%p456) target = $region60
        $region59: #{tpu_custom_call.1} parent=51 // pred_region
          %s459 = sand.u32 %s28, 1
          %s460 = scalar_lea.sflag [#allocation7], %s459
          %s461 = sand.u32 %s78, 1
          %s462 = smul.addr %s461, 2048
          %s463 = scalar_lea.vmem [#allocation6], %s462
          %s464 = smul.u32 64, %s36
          %s466 = ssub.s32 32768, 32768
          %467 = vsyncadd %s460, %s466
          %s468 = smul.addr %s464, 8
          %s469 = smul.addr %s468, 64
          %s470 = scalar_lea.hbm %s1, %s469
          %s471 = sshll.u32 %s463, 4
          %s472 = int_to_ptr.vmem [resolvable:$true] %s471
          %477 = dma.hbm_to_vmem [thread:$0]  %s470, 32768, %s472, %s460, 512, 512, 32
        $region60: #{tpu_custom_call.1} parent=51 // pred_fallthru
          _
      $region52: #{tpu_custom_call.1} parent=5 // pred_fallthru
        _
      %p478 = scmp.le.s32.totalorder 1, %s28
      %p479 = scmp.lt.s32.totalorder %s28, 5
      %p480 = pnand %p478, %p479
      %p481 = pneg %p480
      // Predicated region
      $region61: #{tpu_custom_call.1} parent=5 // pred_check
        _
      $region62: #{tpu_custom_call.1} parent=5 // pred_check_branch
        %483 = sbr.rel (%p480) target = $region64
      $region63: #{tpu_custom_call.1} parent=5 // pred_region
        %s484 = ssub.s32 %s28, 1
        %s485 = sand.u32 %s55, 1
        %s486 = scalar_lea.sflag [#allocation4], %s485
        %s487 = sand.u32 %s55, 1
        %s488 = smul.addr %s487, 32
        %s489 = scalar_lea.vmem [#allocation3], %s488
        // Predicated region
        $region65: #{tpu_custom_call.1} parent=63 // pred_check
          %p490 = pneg %p68
        $region66: #{tpu_custom_call.1} parent=63 // pred_check_branch
          %492 = sbr.rel (%p490) target = $region68
        $region67: #{tpu_custom_call.1} parent=63 // pred_region
          %493 = dma.done %s486, 512
        $region68: #{tpu_custom_call.1} parent=63 // pred_fallthru
          _
        %s494 = sand.u32 %s33, 1
        %s495 = scalar_lea.sflag [#allocation7], %s494
        %s496 = sand.u32 %s81, 1
        %s497 = smul.addr %s496, 2048
        %s498 = scalar_lea.vmem [#allocation6], %s497
        // Predicated region
        $region69: #{tpu_custom_call.1} parent=63 // pred_check
          %p499 = pneg %p94
        $region70: #{tpu_custom_call.1} parent=63 // pred_check_branch
          %501 = sbr.rel (%p499) target = $region72
        $region71: #{tpu_custom_call.1} parent=63 // pred_region
          %502 = dma.done %s495, 32768
        $region72: #{tpu_custom_call.1} parent=63 // pred_fallthru
          _
        // Predicated region
        $region73: #{tpu_custom_call.1} parent=63 // pred_check
          %p503 = pneg %p115
        $region74: #{tpu_custom_call.1} parent=63 // pred_check_branch
          %505 = sbr.rel (%p503) target = $region76
        $region75: #{tpu_custom_call.1} parent=63 // pred_region
          %506 = dma.done [#allocation7], 128
        $region76: #{tpu_custom_call.1} parent=63 // pred_fallthru
          _
        // Predicated region
        $region77: #{tpu_custom_call.1} parent=63 // pred_check
          %p507 = pneg %p136
        $region78: #{tpu_custom_call.1} parent=63 // pred_check_branch
          %509 = sbr.rel (%p507) target = $region80
        $region79: #{tpu_custom_call.1} parent=63 // pred_region
          %510 = dma.done [#allocation10], 16384
        $region80: #{tpu_custom_call.1} parent=63 // pred_fallthru
          _
        // Predicated region
        $region81: #{tpu_custom_call.1} parent=63 // pred_check
          %p511 = pneg %p157
        $region82: #{tpu_custom_call.1} parent=63 // pred_check_branch
          %513 = sbr.rel (%p511) target = $region84
        $region83: #{tpu_custom_call.1} parent=63 // pred_region
          %514 = dma.done [#allocation10], 32
        $region84: #{tpu_custom_call.1} parent=63 // pred_fallthru
          _
        // Predicated region
        $region85: #{tpu_custom_call.1} parent=63 // pred_check
          %p515 = pneg %p178
        $region86: #{tpu_custom_call.1} parent=63 // pred_check_branch
          %517 = sbr.rel (%p515) target = $region88
        $region87: #{tpu_custom_call.1} parent=63 // pred_region
          %518 = dma.done [#allocation13], 2048
        $region88: #{tpu_custom_call.1} parent=63 // pred_fallthru
          _
        // Predicated region
        $region89: #{tpu_custom_call.1} parent=63 // pred_check
          %p519 = pneg %p199
        $region90: #{tpu_custom_call.1} parent=63 // pred_check_branch
          %521 = sbr.rel (%p519) target = $region92
        $region91: #{tpu_custom_call.1} parent=63 // pred_region
          %522 = dma.done [#allocation13], 16
        $region92: #{tpu_custom_call.1} parent=63 // pred_fallthru
          _
        // Predicated region
        $region93: #{tpu_custom_call.1} parent=63 // pred_check
          %p523 = pneg %p220
        $region94: #{tpu_custom_call.1} parent=63 // pred_check_branch
          %525 = sbr.rel (%p523) target = $region96
        $region95: #{tpu_custom_call.1} parent=63 // pred_region
          %526 = dma.done [#allocation16], 1024
        $region96: #{tpu_custom_call.1} parent=63 // pred_fallthru
          _
        // Predicated region
        $region97: #{tpu_custom_call.1} parent=63 // pred_check
          %p527 = pneg %p241
        $region98: #{tpu_custom_call.1} parent=63 // pred_check_branch
          %529 = sbr.rel (%p527) target = $region100
        $region99: #{tpu_custom_call.1} parent=63 // pred_region
          %530 = dma.done [#allocation16], 16
        $region100: #{tpu_custom_call.1} parent=63 // pred_fallthru
          _
        // Predicated region
        $region101: #{tpu_custom_call.1} parent=63 // pred_check
          %p531 = pneg %p262
        $region102: #{tpu_custom_call.1} parent=63 // pred_check_branch
          %533 = sbr.rel (%p531) target = $region104
        $region103: #{tpu_custom_call.1} parent=63 // pred_region
          %534 = dma.done [#allocation19], 1024
        $region104: #{tpu_custom_call.1} parent=63 // pred_fallthru
          _
        // Predicated region
        $region105: #{tpu_custom_call.1} parent=63 // pred_check
          %p535 = pneg %p283
        $region106: #{tpu_custom_call.1} parent=63 // pred_check_branch
          %537 = sbr.rel (%p535) target = $region108
        $region107: #{tpu_custom_call.1} parent=63 // pred_region
          %538 = dma.done [#allocation19], 16
        $region108: #{tpu_custom_call.1} parent=63 // pred_fallthru
          _
        %s539 = sand.u32 %s55, 1
        %s540 = scalar_lea.sflag [#allocation4], %s539
        %s541 = sand.u32 %s55, 1
        %s542 = smul.addr %s541, 32
        %s543 = scalar_lea.vmem [#allocation3], %s542
        %p544 = pneg %p68
        %p545 = pneg %p65
        %s546 = sand.u32 %s33, 1
        %s547 = scalar_lea.sflag [#allocation7], %s546
        %s548 = sand.u32 %s81, 1
        %s549 = smul.addr %s548, 2048
        %s550 = scalar_lea.vmem [#allocation6], %s549
        %p551 = pneg %p94
        %p552 = pneg %p91
        %p553 = pneg %p115
        %p554 = pneg %p112
        %p555 = pneg %p136
        %p556 = pneg %p133
        %p557 = pneg %p157
        %p558 = pneg %p154
        %p559 = pneg %p178
        %p560 = pneg %p175
        %p561 = pneg %p199
        %p562 = pneg %p196
        %p563 = pneg %p220
        %p564 = pneg %p217
        %p565 = pneg %p241
        %p566 = pneg %p238
        %p567 = pneg %p262
        %p568 = pneg %p259
        %p569 = pneg %p283
        %p570 = pneg %p280
        %p571 = pneg %p309
        %p572 = pneg %p306
        %s573 = smul.u32 4, %s38
        %s574 = smul.u32 64, %s38
        %p576 = scmp.eq.s32.totalorder %s38, 0
        // Predicated region
        $region109: #{tpu_custom_call.1} parent=63 // pred_check
          %p577 = pneg %p576
        $region110: #{tpu_custom_call.1} parent=63 // pred_check_branch
          %579 = sbr.rel (%p577) target = $region112
        $region111: #{tpu_custom_call.1} parent=63 // pred_region
          %580 = vst [vmem:[#allocation2] sm:$0xff] 0.0
          %581 = vst [vmem:[#allocation2 + $0x8] sm:$0xff] 0.0
          %582 = vst [vmem:[#allocation2 + $0x10] sm:$0xff] 0.0
          %583 = vst [vmem:[#allocation2 + $0x18] sm:$0xff] 0.0
          %584 = vst [vmem:[#allocation2 + $0x20] sm:$0xff] 0.0
          %585 = vst [vmem:[#allocation2 + $0x28] sm:$0xff] 0.0
          %586 = vst [vmem:[#allocation2 + $0x30] sm:$0xff] 0.0
          %587 = vst [vmem:[#allocation2 + $0x38] sm:$0xff] 0.0
        $region112: #{tpu_custom_call.1} parent=63 // pred_fallthru
          _
        %v588 = vld [vmem:[#allocation2] sm:$0xff]
        %v589 = vld [vmem:[#allocation2 + $0x8] sm:$0xff]
        %v590 = vld [vmem:[#allocation2 + $0x10] sm:$0xff]
        %v591 = vld [vmem:[#allocation2 + $0x18] sm:$0xff]
        %v592 = vld [vmem:[#allocation2 + $0x20] sm:$0xff]
        %v593 = vld [vmem:[#allocation2 + $0x28] sm:$0xff]
        %v594 = vld [vmem:[#allocation2 + $0x30] sm:$0xff]
        %v595 = vld [vmem:[#allocation2 + $0x38] sm:$0xff]
        %v596 = vld [vmem:[%s489] sm:$0xff]
        %v597 = vld [vmem:[%s489 + $0x8] sm:$0xff]
        %v598 = vld [vmem:[%s489 + $0x10] sm:$0xff]
        %v599 = vld [vmem:[%s489 + $0x18] sm:$0xff]
        %v600 = vpack.c.bf16 %v596, %v596
        %v601 = vpack.c.bf16 %v597, %v597
        %v602 = vpack.c.bf16 %v598, %v598
        %v603 = vpack.c.bf16 %v599, %v599
        %v604 = vld [vmem:[%s498] sm:$0xff]
        %v605 = vld [vmem:[%s498 + $0x8] sm:$0xff]
        %v606 = vld [vmem:[%s498 + $0x10] sm:$0xff]
        %v607 = vld [vmem:[%s498 + $0x18] sm:$0xff]
        %v608 = vld [vmem:[%s498 + $0x20] sm:$0xff]
        %v609 = vld [vmem:[%s498 + $0x28] sm:$0xff]
        %v610 = vld [vmem:[%s498 + $0x30] sm:$0xff]
        %v611 = vld [vmem:[%s498 + $0x38] sm:$0xff]
        %v612 = vld [vmem:[%s498 + $0x40] sm:$0xff]
        %v613 = vld [vmem:[%s498 + $0x48] sm:$0xff]
        %v614 = vld [vmem:[%s498 + $0x50] sm:$0xff]
        %v615 = vld [vmem:[%s498 + $0x58] sm:$0xff]
        %v616 = vld [vmem:[%s498 + $0x60] sm:$0xff]
        %v617 = vld [vmem:[%s498 + $0x68] sm:$0xff]
        %v618 = vld [vmem:[%s498 + $0x70] sm:$0xff]
        %v619 = vld [vmem:[%s498 + $0x78] sm:$0xff]
        %v620 = vld [vmem:[%s498 + $0x80] sm:$0xff]
        %v621 = vld [vmem:[%s498 + $0x88] sm:$0xff]
        %v622 = vld [vmem:[%s498 + $0x90] sm:$0xff]
        %v623 = vld [vmem:[%s498 + $0x98] sm:$0xff]
        %v624 = vld [vmem:[%s498 + $0xa0] sm:$0xff]
        %v625 = vld [vmem:[%s498 + $0xa8] sm:$0xff]
        %v626 = vld [vmem:[%s498 + $0xb0] sm:$0xff]
        %v627 = vld [vmem:[%s498 + $0xb8] sm:$0xff]
        %v628 = vld [vmem:[%s498 + $0xc0] sm:$0xff]
        %v629 = vld [vmem:[%s498 + $0xc8] sm:$0xff]
        %v630 = vld [vmem:[%s498 + $0xd0] sm:$0xff]
        %v631 = vld [vmem:[%s498 + $0xd8] sm:$0xff]
        %v632 = vld [vmem:[%s498 + $0xe0] sm:$0xff]
        %v633 = vld [vmem:[%s498 + $0xe8] sm:$0xff]
        %v634 = vld [vmem:[%s498 + $0xf0] sm:$0xff]
        %v635 = vld [vmem:[%s498 + $0xf8] sm:$0xff]
        %v636 = vld [vmem:[%s498 + $0x100] sm:$0xff]
        %v637 = vld [vmem:[%s498 + $0x108] sm:$0xff]
        %v638 = vld [vmem:[%s498 + $0x110] sm:$0xff]
        %v639 = vld [vmem:[%s498 + $0x118] sm:$0xff]
        %v640 = vld [vmem:[%s498 + $0x120] sm:$0xff]
        %v641 = vld [vmem:[%s498 + $0x128] sm:$0xff]
        %v642 = vld [vmem:[%s498 + $0x130] sm:$0xff]
        %v643 = vld [vmem:[%s498 + $0x138] sm:$0xff]
        %v644 = vld [vmem:[%s498 + $0x140] sm:$0xff]
        %v645 = vld [vmem:[%s498 + $0x148] sm:$0xff]
        %v646 = vld [vmem:[%s498 + $0x150] sm:$0xff]
        %v647 = vld [vmem:[%s498 + $0x158] sm:$0xff]
        %v648 = vld [vmem:[%s498 + $0x160] sm:$0xff]
        %v649 = vld [vmem:[%s498 + $0x168] sm:$0xff]
        %v650 = vld [vmem:[%s498 + $0x170] sm:$0xff]
        %v651 = vld [vmem:[%s498 + $0x178] sm:$0xff]
        %v652 = vld [vmem:[%s498 + $0x180] sm:$0xff]
        %v653 = vld [vmem:[%s498 + $0x188] sm:$0xff]
        %v654 = vld [vmem:[%s498 + $0x190] sm:$0xff]
        %v655 = vld [vmem:[%s498 + $0x198] sm:$0xff]
        %v656 = vld [vmem:[%s498 + $0x1a0] sm:$0xff]
        %v657 = vld [vmem:[%s498 + $0x1a8] sm:$0xff]
        %v658 = vld [vmem:[%s498 + $0x1b0] sm:$0xff]
        %v659 = vld [vmem:[%s498 + $0x1b8] sm:$0xff]
        %v660 = vld [vmem:[%s498 + $0x1c0] sm:$0xff]
        %v661 = vld [vmem:[%s498 + $0x1c8] sm:$0xff]
        %v662 = vld [vmem:[%s498 + $0x1d0] sm:$0xff]
        %v663 = vld [vmem:[%s498 + $0x1d8] sm:$0xff]
        %v664 = vld [vmem:[%s498 + $0x1e0] sm:$0xff]
        %v665 = vld [vmem:[%s498 + $0x1e8] sm:$0xff]
        %v666 = vld [vmem:[%s498 + $0x1f0] sm:$0xff]
        %v667 = vld [vmem:[%s498 + $0x1f8] sm:$0xff]
        %v668 = vld [vmem:[%s498 + $0x200] sm:$0xff]
        %v669 = vld [vmem:[%s498 + $0x208] sm:$0xff]
        %v670 = vld [vmem:[%s498 + $0x210] sm:$0xff]
        %v671 = vld [vmem:[%s498 + $0x218] sm:$0xff]
        %v672 = vld [vmem:[%s498 + $0x220] sm:$0xff]
        %v673 = vld [vmem:[%s498 + $0x228] sm:$0xff]
        %v674 = vld [vmem:[%s498 + $0x230] sm:$0xff]
        %v675 = vld [vmem:[%s498 + $0x238] sm:$0xff]
        %v676 = vld [vmem:[%s498 + $0x240] sm:$0xff]
        %v677 = vld [vmem:[%s498 + $0x248] sm:$0xff]
        %v678 = vld [vmem:[%s498 + $0x250] sm:$0xff]
        %v679 = vld [vmem:[%s498 + $0x258] sm:$0xff]
        %v680 = vld [vmem:[%s498 + $0x260] sm:$0xff]
        %v681 = vld [vmem:[%s498 + $0x268] sm:$0xff]
        %v682 = vld [vmem:[%s498 + $0x270] sm:$0xff]
        %v683 = vld [vmem:[%s498 + $0x278] sm:$0xff]
        %v684 = vld [vmem:[%s498 + $0x280] sm:$0xff]
        %v685 = vld [vmem:[%s498 + $0x288] sm:$0xff]
        %v686 = vld [vmem:[%s498 + $0x290] sm:$0xff]
        %v687 = vld [vmem:[%s498 + $0x298] sm:$0xff]
        %v688 = vld [vmem:[%s498 + $0x2a0] sm:$0xff]
        %v689 = vld [vmem:[%s498 + $0x2a8] sm:$0xff]
        %v690 = vld [vmem:[%s498 + $0x2b0] sm:$0xff]
        %v691 = vld [vmem:[%s498 + $0x2b8] sm:$0xff]
        %v692 = vld [vmem:[%s498 + $0x2c0] sm:$0xff]
        %v693 = vld [vmem:[%s498 + $0x2c8] sm:$0xff]
        %v694 = vld [vmem:[%s498 + $0x2d0] sm:$0xff]
        %v695 = vld [vmem:[%s498 + $0x2d8] sm:$0xff]
        %v696 = vld [vmem:[%s498 + $0x2e0] sm:$0xff]
        %v697 = vld [vmem:[%s498 + $0x2e8] sm:$0xff]
        %v698 = vld [vmem:[%s498 + $0x2f0] sm:$0xff]
        %v699 = vld [vmem:[%s498 + $0x2f8] sm:$0xff]
        %v700 = vld [vmem:[%s498 + $0x300] sm:$0xff]
        %v701 = vld [vmem:[%s498 + $0x308] sm:$0xff]
        %v702 = vld [vmem:[%s498 + $0x310] sm:$0xff]
        %v703 = vld [vmem:[%s498 + $0x318] sm:$0xff]
        %v704 = vld [vmem:[%s498 + $0x320] sm:$0xff]
        %v705 = vld [vmem:[%s498 + $0x328] sm:$0xff]
        %v706 = vld [vmem:[%s498 + $0x330] sm:$0xff]
        %v707 = vld [vmem:[%s498 + $0x338] sm:$0xff]
        %v708 = vld [vmem:[%s498 + $0x340] sm:$0xff]
        %v709 = vld [vmem:[%s498 + $0x348] sm:$0xff]
        %v710 = vld [vmem:[%s498 + $0x350] sm:$0xff]
        %v711 = vld [vmem:[%s498 + $0x358] sm:$0xff]
        %v712 = vld [vmem:[%s498 + $0x360] sm:$0xff]
        %v713 = vld [vmem:[%s498 + $0x368] sm:$0xff]
        %v714 = vld [vmem:[%s498 + $0x370] sm:$0xff]
        %v715 = vld [vmem:[%s498 + $0x378] sm:$0xff]
        %v716 = vld [vmem:[%s498 + $0x380] sm:$0xff]
        %v717 = vld [vmem:[%s498 + $0x388] sm:$0xff]
        %v718 = vld [vmem:[%s498 + $0x390] sm:$0xff]
        %v719 = vld [vmem:[%s498 + $0x398] sm:$0xff]
        %v720 = vld [vmem:[%s498 + $0x3a0] sm:$0xff]
        %v721 = vld [vmem:[%s498 + $0x3a8] sm:$0xff]
        %v722 = vld [vmem:[%s498 + $0x3b0] sm:$0xff]
        %v723 = vld [vmem:[%s498 + $0x3b8] sm:$0xff]
        %v724 = vld [vmem:[%s498 + $0x3c0] sm:$0xff]
        %v725 = vld [vmem:[%s498 + $0x3c8] sm:$0xff]
        %v726 = vld [vmem:[%s498 + $0x3d0] sm:$0xff]
        %v727 = vld [vmem:[%s498 + $0x3d8] sm:$0xff]
        %v728 = vld [vmem:[%s498 + $0x3e0] sm:$0xff]
        %v729 = vld [vmem:[%s498 + $0x3e8] sm:$0xff]
        %v730 = vld [vmem:[%s498 + $0x3f0] sm:$0xff]
        %v731 = vld [vmem:[%s498 + $0x3f8] sm:$0xff]
        %v732 = vld [vmem:[%s498 + $0x400] sm:$0xff]
        %v733 = vld [vmem:[%s498 + $0x408] sm:$0xff]
        %v734 = vld [vmem:[%s498 + $0x410] sm:$0xff]
        %v735 = vld [vmem:[%s498 + $0x418] sm:$0xff]
        %v736 = vld [vmem:[%s498 + $0x420] sm:$0xff]
        %v737 = vld [vmem:[%s498 + $0x428] sm:$0xff]
        %v738 = vld [vmem:[%s498 + $0x430] sm:$0xff]
        %v739 = vld [vmem:[%s498 + $0x438] sm:$0xff]
        %v740 = vld [vmem:[%s498 + $0x440] sm:$0xff]
        %v741 = vld [vmem:[%s498 + $0x448] sm:$0xff]
        %v742 = vld [vmem:[%s498 + $0x450] sm:$0xff]
        %v743 = vld [vmem:[%s498 + $0x458] sm:$0xff]
        %v744 = vld [vmem:[%s498 + $0x460] sm:$0xff]
        %v745 = vld [vmem:[%s498 + $0x468] sm:$0xff]
        %v746 = vld [vmem:[%s498 + $0x470] sm:$0xff]
        %v747 = vld [vmem:[%s498 + $0x478] sm:$0xff]
        %v748 = vld [vmem:[%s498 + $0x480] sm:$0xff]
        %v749 = vld [vmem:[%s498 + $0x488] sm:$0xff]
        %v750 = vld [vmem:[%s498 + $0x490] sm:$0xff]
        %v751 = vld [vmem:[%s498 + $0x498] sm:$0xff]
        %v752 = vld [vmem:[%s498 + $0x4a0] sm:$0xff]
        %v753 = vld [vmem:[%s498 + $0x4a8] sm:$0xff]
        %v754 = vld [vmem:[%s498 + $0x4b0] sm:$0xff]
        %v755 = vld [vmem:[%s498 + $0x4b8] sm:$0xff]
        %v756 = vld [vmem:[%s498 + $0x4c0] sm:$0xff]
        %v757 = vld [vmem:[%s498 + $0x4c8] sm:$0xff]
        %v758 = vld [vmem:[%s498 + $0x4d0] sm:$0xff]
        %v759 = vld [vmem:[%s498 + $0x4d8] sm:$0xff]
        %v760 = vld [vmem:[%s498 + $0x4e0] sm:$0xff]
        %v761 = vld [vmem:[%s498 + $0x4e8] sm:$0xff]
        %v762 = vld [vmem:[%s498 + $0x4f0] sm:$0xff]
        %v763 = vld [vmem:[%s498 + $0x4f8] sm:$0xff]
        %v764 = vld [vmem:[%s498 + $0x500] sm:$0xff]
        %v765 = vld [vmem:[%s498 + $0x508] sm:$0xff]
        %v766 = vld [vmem:[%s498 + $0x510] sm:$0xff]
        %v767 = vld [vmem:[%s498 + $0x518] sm:$0xff]
        %v768 = vld [vmem:[%s498 + $0x520] sm:$0xff]
        %v769 = vld [vmem:[%s498 + $0x528] sm:$0xff]
        %v770 = vld [vmem:[%s498 + $0x530] sm:$0xff]
        %v771 = vld [vmem:[%s498 + $0x538] sm:$0xff]
        %v772 = vld [vmem:[%s498 + $0x540] sm:$0xff]
        %v773 = vld [vmem:[%s498 + $0x548] sm:$0xff]
        %v774 = vld [vmem:[%s498 + $0x550] sm:$0xff]
        %v775 = vld [vmem:[%s498 + $0x558] sm:$0xff]
        %v776 = vld [vmem:[%s498 + $0x560] sm:$0xff]
        %v777 = vld [vmem:[%s498 + $0x568] sm:$0xff]
        %v778 = vld [vmem:[%s498 + $0x570] sm:$0xff]
        %v779 = vld [vmem:[%s498 + $0x578] sm:$0xff]
        %v780 = vld [vmem:[%s498 + $0x580] sm:$0xff]
        %v781 = vld [vmem:[%s498 + $0x588] sm:$0xff]
        %v782 = vld [vmem:[%s498 + $0x590] sm:$0xff]
        %v783 = vld [vmem:[%s498 + $0x598] sm:$0xff]
        %v784 = vld [vmem:[%s498 + $0x5a0] sm:$0xff]
        %v785 = vld [vmem:[%s498 + $0x5a8] sm:$0xff]
        %v786 = vld [vmem:[%s498 + $0x5b0] sm:$0xff]
        %v787 = vld [vmem:[%s498 + $0x5b8] sm:$0xff]
        %v788 = vld [vmem:[%s498 + $0x5c0] sm:$0xff]
        %v789 = vld [vmem:[%s498 + $0x5c8] sm:$0xff]
        %v790 = vld [vmem:[%s498 + $0x5d0] sm:$0xff]
        %v791 = vld [vmem:[%s498 + $0x5d8] sm:$0xff]
        %v792 = vld [vmem:[%s498 + $0x5e0] sm:$0xff]
        %v793 = vld [vmem:[%s498 + $0x5e8] sm:$0xff]
        %v794 = vld [vmem:[%s498 + $0x5f0] sm:$0xff]
        %v795 = vld [vmem:[%s498 + $0x5f8] sm:$0xff]
        %v796 = vld [vmem:[%s498 + $0x600] sm:$0xff]
        %v797 = vld [vmem:[%s498 + $0x608] sm:$0xff]
        %v798 = vld [vmem:[%s498 + $0x610] sm:$0xff]
        %v799 = vld [vmem:[%s498 + $0x618] sm:$0xff]
        %v800 = vld [vmem:[%s498 + $0x620] sm:$0xff]
        %v801 = vld [vmem:[%s498 + $0x628] sm:$0xff]
        %v802 = vld [vmem:[%s498 + $0x630] sm:$0xff]
        %v803 = vld [vmem:[%s498 + $0x638] sm:$0xff]
        %v804 = vld [vmem:[%s498 + $0x640] sm:$0xff]
        %v805 = vld [vmem:[%s498 + $0x648] sm:$0xff]
        %v806 = vld [vmem:[%s498 + $0x650] sm:$0xff]
        %v807 = vld [vmem:[%s498 + $0x658] sm:$0xff]
        %v808 = vld [vmem:[%s498 + $0x660] sm:$0xff]
        %v809 = vld [vmem:[%s498 + $0x668] sm:$0xff]
        %v810 = vld [vmem:[%s498 + $0x670] sm:$0xff]
        %v811 = vld [vmem:[%s498 + $0x678] sm:$0xff]
        %v812 = vld [vmem:[%s498 + $0x680] sm:$0xff]
        %v813 = vld [vmem:[%s498 + $0x688] sm:$0xff]
        %v814 = vld [vmem:[%s498 + $0x690] sm:$0xff]
        %v815 = vld [vmem:[%s498 + $0x698] sm:$0xff]
        %v816 = vld [vmem:[%s498 + $0x6a0] sm:$0xff]
        %v817 = vld [vmem:[%s498 + $0x6a8] sm:$0xff]
        %v818 = vld [vmem:[%s498 + $0x6b0] sm:$0xff]
        %v819 = vld [vmem:[%s498 + $0x6b8] sm:$0xff]
        %v820 = vld [vmem:[%s498 + $0x6c0] sm:$0xff]
        %v821 = vld [vmem:[%s498 + $0x6c8] sm:$0xff]
        %v822 = vld [vmem:[%s498 + $0x6d0] sm:$0xff]
        %v823 = vld [vmem:[%s498 + $0x6d8] sm:$0xff]
        %v824 = vld [vmem:[%s498 + $0x6e0] sm:$0xff]
        %v825 = vld [vmem:[%s498 + $0x6e8] sm:$0xff]
        %v826 = vld [vmem:[%s498 + $0x6f0] sm:$0xff]
        %v827 = vld [vmem:[%s498 + $0x6f8] sm:$0xff]
        %v828 = vld [vmem:[%s498 + $0x700] sm:$0xff]
        %v829 = vld [vmem:[%s498 + $0x708] sm:$0xff]
        %v830 = vld [vmem:[%s498 + $0x710] sm:$0xff]
        %v831 = vld [vmem:[%s498 + $0x718] sm:$0xff]
        %v832 = vld [vmem:[%s498 + $0x720] sm:$0xff]
        %v833 = vld [vmem:[%s498 + $0x728] sm:$0xff]
        %v834 = vld [vmem:[%s498 + $0x730] sm:$0xff]
        %v835 = vld [vmem:[%s498 + $0x738] sm:$0xff]
        %v836 = vld [vmem:[%s498 + $0x740] sm:$0xff]
        %v837 = vld [vmem:[%s498 + $0x748] sm:$0xff]
        %v838 = vld [vmem:[%s498 + $0x750] sm:$0xff]
        %v839 = vld [vmem:[%s498 + $0x758] sm:$0xff]
        %v840 = vld [vmem:[%s498 + $0x760] sm:$0xff]
        %v841 = vld [vmem:[%s498 + $0x768] sm:$0xff]
        %v842 = vld [vmem:[%s498 + $0x770] sm:$0xff]
        %v843 = vld [vmem:[%s498 + $0x778] sm:$0xff]
        %v844 = vld [vmem:[%s498 + $0x780] sm:$0xff]
        %v845 = vld [vmem:[%s498 + $0x788] sm:$0xff]
        %v846 = vld [vmem:[%s498 + $0x790] sm:$0xff]
        %v847 = vld [vmem:[%s498 + $0x798] sm:$0xff]
        %v848 = vld [vmem:[%s498 + $0x7a0] sm:$0xff]
        %v849 = vld [vmem:[%s498 + $0x7a8] sm:$0xff]
        %v850 = vld [vmem:[%s498 + $0x7b0] sm:$0xff]
        %v851 = vld [vmem:[%s498 + $0x7b8] sm:$0xff]
        %v852 = vld [vmem:[%s498 + $0x7c0] sm:$0xff]
        %v853 = vld [vmem:[%s498 + $0x7c8] sm:$0xff]
        %v854 = vld [vmem:[%s498 + $0x7d0] sm:$0xff]
        %v855 = vld [vmem:[%s498 + $0x7d8] sm:$0xff]
        %v856 = vld [vmem:[%s498 + $0x7e0] sm:$0xff]
        %v857 = vld [vmem:[%s498 + $0x7e8] sm:$0xff]
        %v858 = vld [vmem:[%s498 + $0x7f0] sm:$0xff]
        %v859 = vld [vmem:[%s498 + $0x7f8] sm:$0xff]
        %v1116 = vunpack.c.l.b16 %v604
        %v1117 = vunpack.c.h.b16 %v604
        %v1118 = vunpack.c.l.b16 %v605
        %v1119 = vunpack.c.h.b16 %v605
        %v1120 = vunpack.c.l.b16 %v606
        %v1121 = vunpack.c.h.b16 %v606
        %v1122 = vunpack.c.l.b16 %v607
        %v1123 = vunpack.c.h.b16 %v607
        %v1124 = vunpack.c.l.b16 %v608
        %v1125 = vunpack.c.h.b16 %v608
        %v1126 = vunpack.c.l.b16 %v609
        %v1127 = vunpack.c.h.b16 %v609
        %v1128 = vunpack.c.l.b16 %v610
        %v1129 = vunpack.c.h.b16 %v610
        %v1130 = vunpack.c.l.b16 %v611
        %v1131 = vunpack.c.h.b16 %v611
        %v1132 = vunpack.c.l.b16 %v612
        %v1133 = vunpack.c.h.b16 %v612
        %v1134 = vunpack.c.l.b16 %v613
        %v1135 = vunpack.c.h.b16 %v613
        %v1136 = vunpack.c.l.b16 %v614
        %v1137 = vunpack.c.h.b16 %v614
        %v1138 = vunpack.c.l.b16 %v615
        %v1139 = vunpack.c.h.b16 %v615
        %v1140 = vunpack.c.l.b16 %v616
        %v1141 = vunpack.c.h.b16 %v616
        %v1142 = vunpack.c.l.b16 %v617
        %v1143 = vunpack.c.h.b16 %v617
        %v1144 = vunpack.c.l.b16 %v618
        %v1145 = vunpack.c.h.b16 %v618
        %v1146 = vunpack.c.l.b16 %v619
        %v1147 = vunpack.c.h.b16 %v619
        %v1148 = vunpack.c.l.b16 %v620
        %v1149 = vunpack.c.h.b16 %v620
        %v1150 = vunpack.c.l.b16 %v621
        %v1151 = vunpack.c.h.b16 %v621
        %v1152 = vunpack.c.l.b16 %v622
        %v1153 = vunpack.c.h.b16 %v622
        %v1154 = vunpack.c.l.b16 %v623
        %v1155 = vunpack.c.h.b16 %v623
        %v1156 = vunpack.c.l.b16 %v624
        %v1157 = vunpack.c.h.b16 %v624
        %v1158 = vunpack.c.l.b16 %v625
        %v1159 = vunpack.c.h.b16 %v625
        %v1160 = vunpack.c.l.b16 %v626
        %v1161 = vunpack.c.h.b16 %v626
        %v1162 = vunpack.c.l.b16 %v627
        %v1163 = vunpack.c.h.b16 %v627
        %v1164 = vunpack.c.l.b16 %v628
        %v1165 = vunpack.c.h.b16 %v628
        %v1166 = vunpack.c.l.b16 %v629
        %v1167 = vunpack.c.h.b16 %v629
        %v1168 = vunpack.c.l.b16 %v630
        %v1169 = vunpack.c.h.b16 %v630
        %v1170 = vunpack.c.l.b16 %v631
        %v1171 = vunpack.c.h.b16 %v631
        %v1172 = vunpack.c.l.b16 %v632
        %v1173 = vunpack.c.h.b16 %v632
        %v1174 = vunpack.c.l.b16 %v633
        %v1175 = vunpack.c.h.b16 %v633
        %v1176 = vunpack.c.l.b16 %v634
        %v1177 = vunpack.c.h.b16 %v634
        %v1178 = vunpack.c.l.b16 %v635
        %v1179 = vunpack.c.h.b16 %v635
        %v1180 = vunpack.c.l.b16 %v636
        %v1181 = vunpack.c.h.b16 %v636
        %v1182 = vunpack.c.l.b16 %v637
        %v1183 = vunpack.c.h.b16 %v637
        %v1184 = vunpack.c.l.b16 %v638
        %v1185 = vunpack.c.h.b16 %v638
        %v1186 = vunpack.c.l.b16 %v639
        %v1187 = vunpack.c.h.b16 %v639
        %v1188 = vunpack.c.l.b16 %v640
        %v1189 = vunpack.c.h.b16 %v640
        %v1190 = vunpack.c.l.b16 %v641
        %v1191 = vunpack.c.h.b16 %v641
        %v1192 = vunpack.c.l.b16 %v642
        %v1193 = vunpack.c.h.b16 %v642
        %v1194 = vunpack.c.l.b16 %v643
        %v1195 = vunpack.c.h.b16 %v643
        %v1196 = vunpack.c.l.b16 %v644
        %v1197 = vunpack.c.h.b16 %v644
        %v1198 = vunpack.c.l.b16 %v645
        %v1199 = vunpack.c.h.b16 %v645
        %v1200 = vunpack.c.l.b16 %v646
        %v1201 = vunpack.c.h.b16 %v646
        %v1202 = vunpack.c.l.b16 %v647
        %v1203 = vunpack.c.h.b16 %v647
        %v1204 = vunpack.c.l.b16 %v648
        %v1205 = vunpack.c.h.b16 %v648
        %v1206 = vunpack.c.l.b16 %v649
        %v1207 = vunpack.c.h.b16 %v649
        %v1208 = vunpack.c.l.b16 %v650
        %v1209 = vunpack.c.h.b16 %v650
        %v1210 = vunpack.c.l.b16 %v651
        %v1211 = vunpack.c.h.b16 %v651
        %v1212 = vunpack.c.l.b16 %v652
        %v1213 = vunpack.c.h.b16 %v652
        %v1214 = vunpack.c.l.b16 %v653
        %v1215 = vunpack.c.h.b16 %v653
        %v1216 = vunpack.c.l.b16 %v654
        %v1217 = vunpack.c.h.b16 %v654
        %v1218 = vunpack.c.l.b16 %v655
        %v1219 = vunpack.c.h.b16 %v655
        %v1220 = vunpack.c.l.b16 %v656
        %v1221 = vunpack.c.h.b16 %v656
        %v1222 = vunpack.c.l.b16 %v657
        %v1223 = vunpack.c.h.b16 %v657
        %v1224 = vunpack.c.l.b16 %v658
        %v1225 = vunpack.c.h.b16 %v658
        %v1226 = vunpack.c.l.b16 %v659
        %v1227 = vunpack.c.h.b16 %v659
        %v1228 = vunpack.c.l.b16 %v660
        %v1229 = vunpack.c.h.b16 %v660
        %v1230 = vunpack.c.l.b16 %v661
        %v1231 = vunpack.c.h.b16 %v661
        %v1232 = vunpack.c.l.b16 %v662
        %v1233 = vunpack.c.h.b16 %v662
        %v1234 = vunpack.c.l.b16 %v663
        %v1235 = vunpack.c.h.b16 %v663
        %v1236 = vunpack.c.l.b16 %v664
        %v1237 = vunpack.c.h.b16 %v664
        %v1238 = vunpack.c.l.b16 %v665
        %v1239 = vunpack.c.h.b16 %v665
        %v1240 = vunpack.c.l.b16 %v666
        %v1241 = vunpack.c.h.b16 %v666
        %v1242 = vunpack.c.l.b16 %v667
        %v1243 = vunpack.c.h.b16 %v667
        %v1244 = vunpack.c.l.b16 %v668
        %v1245 = vunpack.c.h.b16 %v668
        %v1246 = vunpack.c.l.b16 %v669
        %v1247 = vunpack.c.h.b16 %v669
        %v1248 = vunpack.c.l.b16 %v670
        %v1249 = vunpack.c.h.b16 %v670
        %v1250 = vunpack.c.l.b16 %v671
        %v1251 = vunpack.c.h.b16 %v671
        %v1252 = vunpack.c.l.b16 %v672
        %v1253 = vunpack.c.h.b16 %v672
        %v1254 = vunpack.c.l.b16 %v673
        %v1255 = vunpack.c.h.b16 %v673
        %v1256 = vunpack.c.l.b16 %v674
        %v1257 = vunpack.c.h.b16 %v674
        %v1258 = vunpack.c.l.b16 %v675
        %v1259 = vunpack.c.h.b16 %v675
        %v1260 = vunpack.c.l.b16 %v676
        %v1261 = vunpack.c.h.b16 %v676
        %v1262 = vunpack.c.l.b16 %v677
        %v1263 = vunpack.c.h.b16 %v677
        %v1264 = vunpack.c.l.b16 %v678
        %v1265 = vunpack.c.h.b16 %v678
        %v1266 = vunpack.c.l.b16 %v679
        %v1267 = vunpack.c.h.b16 %v679
        %v1268 = vunpack.c.l.b16 %v680
        %v1269 = vunpack.c.h.b16 %v680
        %v1270 = vunpack.c.l.b16 %v681
        %v1271 = vunpack.c.h.b16 %v681
        %v1272 = vunpack.c.l.b16 %v682
        %v1273 = vunpack.c.h.b16 %v682
        %v1274 = vunpack.c.l.b16 %v683
        %v1275 = vunpack.c.h.b16 %v683
        %v1276 = vunpack.c.l.b16 %v684
        %v1277 = vunpack.c.h.b16 %v684
        %v1278 = vunpack.c.l.b16 %v685
        %v1279 = vunpack.c.h.b16 %v685
        %v1280 = vunpack.c.l.b16 %v686
        %v1281 = vunpack.c.h.b16 %v686
        %v1282 = vunpack.c.l.b16 %v687
        %v1283 = vunpack.c.h.b16 %v687
        %v1284 = vunpack.c.l.b16 %v688
        %v1285 = vunpack.c.h.b16 %v688
        %v1286 = vunpack.c.l.b16 %v689
        %v1287 = vunpack.c.h.b16 %v689
        %v1288 = vunpack.c.l.b16 %v690
        %v1289 = vunpack.c.h.b16 %v690
        %v1290 = vunpack.c.l.b16 %v691
        %v1291 = vunpack.c.h.b16 %v691
        %v1292 = vunpack.c.l.b16 %v692
        %v1293 = vunpack.c.h.b16 %v692
        %v1294 = vunpack.c.l.b16 %v693
        %v1295 = vunpack.c.h.b16 %v693
        %v1296 = vunpack.c.l.b16 %v694
        %v1297 = vunpack.c.h.b16 %v694
        %v1298 = vunpack.c.l.b16 %v695
        %v1299 = vunpack.c.h.b16 %v695
        %v1300 = vunpack.c.l.b16 %v696
        %v1301 = vunpack.c.h.b16 %v696
        %v1302 = vunpack.c.l.b16 %v697
        %v1303 = vunpack.c.h.b16 %v697
        %v1304 = vunpack.c.l.b16 %v698
        %v1305 = vunpack.c.h.b16 %v698
        %v1306 = vunpack.c.l.b16 %v699
        %v1307 = vunpack.c.h.b16 %v699
        %v1308 = vunpack.c.l.b16 %v700
        %v1309 = vunpack.c.h.b16 %v700
        %v1310 = vunpack.c.l.b16 %v701
        %v1311 = vunpack.c.h.b16 %v701
        %v1312 = vunpack.c.l.b16 %v702
        %v1313 = vunpack.c.h.b16 %v702
        %v1314 = vunpack.c.l.b16 %v703
        %v1315 = vunpack.c.h.b16 %v703
        %v1316 = vunpack.c.l.b16 %v704
        %v1317 = vunpack.c.h.b16 %v704
        %v1318 = vunpack.c.l.b16 %v705
        %v1319 = vunpack.c.h.b16 %v705
        %v1320 = vunpack.c.l.b16 %v706
        %v1321 = vunpack.c.h.b16 %v706
        %v1322 = vunpack.c.l.b16 %v707
        %v1323 = vunpack.c.h.b16 %v707
        %v1324 = vunpack.c.l.b16 %v708
        %v1325 = vunpack.c.h.b16 %v708
        %v1326 = vunpack.c.l.b16 %v709
        %v1327 = vunpack.c.h.b16 %v709
        %v1328 = vunpack.c.l.b16 %v710
        %v1329 = vunpack.c.h.b16 %v710
        %v1330 = vunpack.c.l.b16 %v711
        %v1331 = vunpack.c.h.b16 %v711
        %v1332 = vunpack.c.l.b16 %v712
        %v1333 = vunpack.c.h.b16 %v712
        %v1334 = vunpack.c.l.b16 %v713
        %v1335 = vunpack.c.h.b16 %v713
        %v1336 = vunpack.c.l.b16 %v714
        %v1337 = vunpack.c.h.b16 %v714
        %v1338 = vunpack.c.l.b16 %v715
        %v1339 = vunpack.c.h.b16 %v715
        %v1340 = vunpack.c.l.b16 %v716
        %v1341 = vunpack.c.h.b16 %v716
        %v1342 = vunpack.c.l.b16 %v717
        %v1343 = vunpack.c.h.b16 %v717
        %v1344 = vunpack.c.l.b16 %v718
        %v1345 = vunpack.c.h.b16 %v718
        %v1346 = vunpack.c.l.b16 %v719
        %v1347 = vunpack.c.h.b16 %v719
        %v1348 = vunpack.c.l.b16 %v720
        %v1349 = vunpack.c.h.b16 %v720
        %v1350 = vunpack.c.l.b16 %v721
        %v1351 = vunpack.c.h.b16 %v721
        %v1352 = vunpack.c.l.b16 %v722
        %v1353 = vunpack.c.h.b16 %v722
        %v1354 = vunpack.c.l.b16 %v723
        %v1355 = vunpack.c.h.b16 %v723
        %v1356 = vunpack.c.l.b16 %v724
        %v1357 = vunpack.c.h.b16 %v724
        %v1358 = vunpack.c.l.b16 %v725
        %v1359 = vunpack.c.h.b16 %v725
        %v1360 = vunpack.c.l.b16 %v726
        %v1361 = vunpack.c.h.b16 %v726
        %v1362 = vunpack.c.l.b16 %v727
        %v1363 = vunpack.c.h.b16 %v727
        %v1364 = vunpack.c.l.b16 %v728
        %v1365 = vunpack.c.h.b16 %v728
        %v1366 = vunpack.c.l.b16 %v729
        %v1367 = vunpack.c.h.b16 %v729
        %v1368 = vunpack.c.l.b16 %v730
        %v1369 = vunpack.c.h.b16 %v730
        %v1370 = vunpack.c.l.b16 %v731
        %v1371 = vunpack.c.h.b16 %v731
        %v1372 = vunpack.c.l.b16 %v732
        %v1373 = vunpack.c.h.b16 %v732
        %v1374 = vunpack.c.l.b16 %v733
        %v1375 = vunpack.c.h.b16 %v733
        %v1376 = vunpack.c.l.b16 %v734
        %v1377 = vunpack.c.h.b16 %v734
        %v1378 = vunpack.c.l.b16 %v735
        %v1379 = vunpack.c.h.b16 %v735
        %v1380 = vunpack.c.l.b16 %v736
        %v1381 = vunpack.c.h.b16 %v736
        %v1382 = vunpack.c.l.b16 %v737
        %v1383 = vunpack.c.h.b16 %v737
        %v1384 = vunpack.c.l.b16 %v738
        %v1385 = vunpack.c.h.b16 %v738
        %v1386 = vunpack.c.l.b16 %v739
        %v1387 = vunpack.c.h.b16 %v739
        %v1388 = vunpack.c.l.b16 %v740
        %v1389 = vunpack.c.h.b16 %v740
        %v1390 = vunpack.c.l.b16 %v741
        %v1391 = vunpack.c.h.b16 %v741
        %v1392 = vunpack.c.l.b16 %v742
        %v1393 = vunpack.c.h.b16 %v742
        %v1394 = vunpack.c.l.b16 %v743
        %v1395 = vunpack.c.h.b16 %v743
        %v1396 = vunpack.c.l.b16 %v744
        %v1397 = vunpack.c.h.b16 %v744
        %v1398 = vunpack.c.l.b16 %v745
        %v1399 = vunpack.c.h.b16 %v745
        %v1400 = vunpack.c.l.b16 %v746
        %v1401 = vunpack.c.h.b16 %v746
        %v1402 = vunpack.c.l.b16 %v747
        %v1403 = vunpack.c.h.b16 %v747
        %v1404 = vunpack.c.l.b16 %v748
        %v1405 = vunpack.c.h.b16 %v748
        %v1406 = vunpack.c.l.b16 %v749
        %v1407 = vunpack.c.h.b16 %v749
        %v1408 = vunpack.c.l.b16 %v750
        %v1409 = vunpack.c.h.b16 %v750
        %v1410 = vunpack.c.l.b16 %v751
        %v1411 = vunpack.c.h.b16 %v751
        %v1412 = vunpack.c.l.b16 %v752
        %v1413 = vunpack.c.h.b16 %v752
        %v1414 = vunpack.c.l.b16 %v753
        %v1415 = vunpack.c.h.b16 %v753
        %v1416 = vunpack.c.l.b16 %v754
        %v1417 = vunpack.c.h.b16 %v754
        %v1418 = vunpack.c.l.b16 %v755
        %v1419 = vunpack.c.h.b16 %v755
        %v1420 = vunpack.c.l.b16 %v756
        %v1421 = vunpack.c.h.b16 %v756
        %v1422 = vunpack.c.l.b16 %v757
        %v1423 = vunpack.c.h.b16 %v757
        %v1424 = vunpack.c.l.b16 %v758
        %v1425 = vunpack.c.h.b16 %v758
        %v1426 = vunpack.c.l.b16 %v759
        %v1427 = vunpack.c.h.b16 %v759
        %v1428 = vunpack.c.l.b16 %v760
        %v1429 = vunpack.c.h.b16 %v760
        %v1430 = vunpack.c.l.b16 %v761
        %v1431 = vunpack.c.h.b16 %v761
        %v1432 = vunpack.c.l.b16 %v762
        %v1433 = vunpack.c.h.b16 %v762
        %v1434 = vunpack.c.l.b16 %v763
        %v1435 = vunpack.c.h.b16 %v763
        %v1436 = vunpack.c.l.b16 %v764
        %v1437 = vunpack.c.h.b16 %v764
        %v1438 = vunpack.c.l.b16 %v765
        %v1439 = vunpack.c.h.b16 %v765
        %v1440 = vunpack.c.l.b16 %v766
        %v1441 = vunpack.c.h.b16 %v766
        %v1442 = vunpack.c.l.b16 %v767
        %v1443 = vunpack.c.h.b16 %v767
        %v1444 = vunpack.c.l.b16 %v768
        %v1445 = vunpack.c.h.b16 %v768
        %v1446 = vunpack.c.l.b16 %v769
        %v1447 = vunpack.c.h.b16 %v769
        %v1448 = vunpack.c.l.b16 %v770
        %v1449 = vunpack.c.h.b16 %v770
        %v1450 = vunpack.c.l.b16 %v771
        %v1451 = vunpack.c.h.b16 %v771
        %v1452 = vunpack.c.l.b16 %v772
        %v1453 = vunpack.c.h.b16 %v772
        %v1454 = vunpack.c.l.b16 %v773
        %v1455 = vunpack.c.h.b16 %v773
        %v1456 = vunpack.c.l.b16 %v774
        %v1457 = vunpack.c.h.b16 %v774
        %v1458 = vunpack.c.l.b16 %v775
        %v1459 = vunpack.c.h.b16 %v775
        %v1460 = vunpack.c.l.b16 %v776
        %v1461 = vunpack.c.h.b16 %v776
        %v1462 = vunpack.c.l.b16 %v777
        %v1463 = vunpack.c.h.b16 %v777
        %v1464 = vunpack.c.l.b16 %v778
        %v1465 = vunpack.c.h.b16 %v778
        %v1466 = vunpack.c.l.b16 %v779
        %v1467 = vunpack.c.h.b16 %v779
        %v1468 = vunpack.c.l.b16 %v780
        %v1469 = vunpack.c.h.b16 %v780
        %v1470 = vunpack.c.l.b16 %v781
        %v1471 = vunpack.c.h.b16 %v781
        %v1472 = vunpack.c.l.b16 %v782
        %v1473 = vunpack.c.h.b16 %v782
        %v1474 = vunpack.c.l.b16 %v783
        %v1475 = vunpack.c.h.b16 %v783
        %v1476 = vunpack.c.l.b16 %v784
        %v1477 = vunpack.c.h.b16 %v784
        %v1478 = vunpack.c.l.b16 %v785
        %v1479 = vunpack.c.h.b16 %v785
        %v1480 = vunpack.c.l.b16 %v786
        %v1481 = vunpack.c.h.b16 %v786
        %v1482 = vunpack.c.l.b16 %v787
        %v1483 = vunpack.c.h.b16 %v787
        %v1484 = vunpack.c.l.b16 %v788
        %v1485 = vunpack.c.h.b16 %v788
        %v1486 = vunpack.c.l.b16 %v789
        %v1487 = vunpack.c.h.b16 %v789
        %v1488 = vunpack.c.l.b16 %v790
        %v1489 = vunpack.c.h.b16 %v790
        %v1490 = vunpack.c.l.b16 %v791
        %v1491 = vunpack.c.h.b16 %v791
        %v1492 = vunpack.c.l.b16 %v792
        %v1493 = vunpack.c.h.b16 %v792
        %v1494 = vunpack.c.l.b16 %v793
        %v1495 = vunpack.c.h.b16 %v793
        %v1496 = vunpack.c.l.b16 %v794
        %v1497 = vunpack.c.h.b16 %v794
        %v1498 = vunpack.c.l.b16 %v795
        %v1499 = vunpack.c.h.b16 %v795
        %v1500 = vunpack.c.l.b16 %v796
        %v1501 = vunpack.c.h.b16 %v796
        %v1502 = vunpack.c.l.b16 %v797
        %v1503 = vunpack.c.h.b16 %v797
        %v1504 = vunpack.c.l.b16 %v798
        %v1505 = vunpack.c.h.b16 %v798
        %v1506 = vunpack.c.l.b16 %v799
        %v1507 = vunpack.c.h.b16 %v799
        %v1508 = vunpack.c.l.b16 %v800
        %v1509 = vunpack.c.h.b16 %v800
        %v1510 = vunpack.c.l.b16 %v801
        %v1511 = vunpack.c.h.b16 %v801
        %v1512 = vunpack.c.l.b16 %v802
        %v1513 = vunpack.c.h.b16 %v802
        %v1514 = vunpack.c.l.b16 %v803
        %v1515 = vunpack.c.h.b16 %v803
        %v1516 = vunpack.c.l.b16 %v804
        %v1517 = vunpack.c.h.b16 %v804
        %v1518 = vunpack.c.l.b16 %v805
        %v1519 = vunpack.c.h.b16 %v805
        %v1520 = vunpack.c.l.b16 %v806
        %v1521 = vunpack.c.h.b16 %v806
        %v1522 = vunpack.c.l.b16 %v807
        %v1523 = vunpack.c.h.b16 %v807
        %v1524 = vunpack.c.l.b16 %v808
        %v1525 = vunpack.c.h.b16 %v808
        %v1526 = vunpack.c.l.b16 %v809
        %v1527 = vunpack.c.h.b16 %v809
        %v1528 = vunpack.c.l.b16 %v810
        %v1529 = vunpack.c.h.b16 %v810
        %v1530 = vunpack.c.l.b16 %v811
        %v1531 = vunpack.c.h.b16 %v811
        %v1532 = vunpack.c.l.b16 %v812
        %v1533 = vunpack.c.h.b16 %v812
        %v1534 = vunpack.c.l.b16 %v813
        %v1535 = vunpack.c.h.b16 %v813
        %v1536 = vunpack.c.l.b16 %v814
        %v1537 = vunpack.c.h.b16 %v814
        %v1538 = vunpack.c.l.b16 %v815
        %v1539 = vunpack.c.h.b16 %v815
        %v1540 = vunpack.c.l.b16 %v816
        %v1541 = vunpack.c.h.b16 %v816
        %v1542 = vunpack.c.l.b16 %v817
        %v1543 = vunpack.c.h.b16 %v817
        %v1544 = vunpack.c.l.b16 %v818
        %v1545 = vunpack.c.h.b16 %v818
        %v1546 = vunpack.c.l.b16 %v819
        %v1547 = vunpack.c.h.b16 %v819
        %v1548 = vunpack.c.l.b16 %v820
        %v1549 = vunpack.c.h.b16 %v820
        %v1550 = vunpack.c.l.b16 %v821
        %v1551 = vunpack.c.h.b16 %v821
        %v1552 = vunpack.c.l.b16 %v822
        %v1553 = vunpack.c.h.b16 %v822
        %v1554 = vunpack.c.l.b16 %v823
        %v1555 = vunpack.c.h.b16 %v823
        %v1556 = vunpack.c.l.b16 %v824
        %v1557 = vunpack.c.h.b16 %v824
        %v1558 = vunpack.c.l.b16 %v825
        %v1559 = vunpack.c.h.b16 %v825
        %v1560 = vunpack.c.l.b16 %v826
        %v1561 = vunpack.c.h.b16 %v826
        %v1562 = vunpack.c.l.b16 %v827
        %v1563 = vunpack.c.h.b16 %v827
        %v1564 = vunpack.c.l.b16 %v828
        %v1565 = vunpack.c.h.b16 %v828
        %v1566 = vunpack.c.l.b16 %v829
        %v1567 = vunpack.c.h.b16 %v829
        %v1568 = vunpack.c.l.b16 %v830
        %v1569 = vunpack.c.h.b16 %v830
        %v1570 = vunpack.c.l.b16 %v831
        %v1571 = vunpack.c.h.b16 %v831
        %v1572 = vunpack.c.l.b16 %v832
        %v1573 = vunpack.c.h.b16 %v832
        %v1574 = vunpack.c.l.b16 %v833
        %v1575 = vunpack.c.h.b16 %v833
        %v1576 = vunpack.c.l.b16 %v834
        %v1577 = vunpack.c.h.b16 %v834
        %v1578 = vunpack.c.l.b16 %v835
        %v1579 = vunpack.c.h.b16 %v835
        %v1580 = vunpack.c.l.b16 %v836
        %v1581 = vunpack.c.h.b16 %v836
        %v1582 = vunpack.c.l.b16 %v837
        %v1583 = vunpack.c.h.b16 %v837
        %v1584 = vunpack.c.l.b16 %v838
        %v1585 = vunpack.c.h.b16 %v838
        %v1586 = vunpack.c.l.b16 %v839
        %v1587 = vunpack.c.h.b16 %v839
        %v1588 = vunpack.c.l.b16 %v840
        %v1589 = vunpack.c.h.b16 %v840
        %v1590 = vunpack.c.l.b16 %v841
        %v1591 = vunpack.c.h.b16 %v841
        %v1592 = vunpack.c.l.b16 %v842
        %v1593 = vunpack.c.h.b16 %v842
        %v1594 = vunpack.c.l.b16 %v843
        %v1595 = vunpack.c.h.b16 %v843
        %v1596 = vunpack.c.l.b16 %v844
        %v1597 = vunpack.c.h.b16 %v844
        %v1598 = vunpack.c.l.b16 %v845
        %v1599 = vunpack.c.h.b16 %v845
        %v1600 = vunpack.c.l.b16 %v846
        %v1601 = vunpack.c.h.b16 %v846
        %v1602 = vunpack.c.l.b16 %v847
        %v1603 = vunpack.c.h.b16 %v847
        %v1604 = vunpack.c.l.b16 %v848
        %v1605 = vunpack.c.h.b16 %v848
        %v1606 = vunpack.c.l.b16 %v849
        %v1607 = vunpack.c.h.b16 %v849
        %v1608 = vunpack.c.l.b16 %v850
        %v1609 = vunpack.c.h.b16 %v850
        %v1610 = vunpack.c.l.b16 %v851
        %v1611 = vunpack.c.h.b16 %v851
        %v1612 = vunpack.c.l.b16 %v852
        %v1613 = vunpack.c.h.b16 %v852
        %v1614 = vunpack.c.l.b16 %v853
        %v1615 = vunpack.c.h.b16 %v853
        %v1616 = vunpack.c.l.b16 %v854
        %v1617 = vunpack.c.h.b16 %v854
        %v1618 = vunpack.c.l.b16 %v855
        %v1619 = vunpack.c.h.b16 %v855
        %v1620 = vunpack.c.l.b16 %v856
        %v1621 = vunpack.c.h.b16 %v856
        %v1622 = vunpack.c.l.b16 %v857
        %v1623 = vunpack.c.h.b16 %v857
        %v1624 = vunpack.c.l.b16 %v858
        %v1625 = vunpack.c.h.b16 %v858
        %v1626 = vunpack.c.l.b16 %v859
        %v1627 = vunpack.c.h.b16 %v859
        %v1628 = vpack.c.b16 %v1124, %v1116
        %v1629 = vpack.c.b16 %v1125, %v1117
        %v1630 = vpack.c.b16 %v1126, %v1118
        %v1631 = vpack.c.b16 %v1127, %v1119
        %v1632 = vpack.c.b16 %v1128, %v1120
        %v1633 = vpack.c.b16 %v1129, %v1121
        %v1634 = vpack.c.b16 %v1130, %v1122
        %v1635 = vpack.c.b16 %v1131, %v1123
        %v1636 = vpack.c.b16 %v1140, %v1132
        %v1637 = vpack.c.b16 %v1141, %v1133
        %v1638 = vpack.c.b16 %v1142, %v1134
        %v1639 = vpack.c.b16 %v1143, %v1135
        %v1640 = vpack.c.b16 %v1144, %v1136
        %v1641 = vpack.c.b16 %v1145, %v1137
        %v1642 = vpack.c.b16 %v1146, %v1138
        %v1643 = vpack.c.b16 %v1147, %v1139
        %v1644 = vpack.c.b16 %v1156, %v1148
        %v1645 = vpack.c.b16 %v1157, %v1149
        %v1646 = vpack.c.b16 %v1158, %v1150
        %v1647 = vpack.c.b16 %v1159, %v1151
        %v1648 = vpack.c.b16 %v1160, %v1152
        %v1649 = vpack.c.b16 %v1161, %v1153
        %v1650 = vpack.c.b16 %v1162, %v1154
        %v1651 = vpack.c.b16 %v1163, %v1155
        %v1652 = vpack.c.b16 %v1172, %v1164
        %v1653 = vpack.c.b16 %v1173, %v1165
        %v1654 = vpack.c.b16 %v1174, %v1166
        %v1655 = vpack.c.b16 %v1175, %v1167
        %v1656 = vpack.c.b16 %v1176, %v1168
        %v1657 = vpack.c.b16 %v1177, %v1169
        %v1658 = vpack.c.b16 %v1178, %v1170
        %v1659 = vpack.c.b16 %v1179, %v1171
        %v1660 = vpack.c.b16 %v1188, %v1180
        %v1661 = vpack.c.b16 %v1189, %v1181
        %v1662 = vpack.c.b16 %v1190, %v1182
        %v1663 = vpack.c.b16 %v1191, %v1183
        %v1664 = vpack.c.b16 %v1192, %v1184
        %v1665 = vpack.c.b16 %v1193, %v1185
        %v1666 = vpack.c.b16 %v1194, %v1186
        %v1667 = vpack.c.b16 %v1195, %v1187
        %v1668 = vpack.c.b16 %v1204, %v1196
        %v1669 = vpack.c.b16 %v1205, %v1197
        %v1670 = vpack.c.b16 %v1206, %v1198
        %v1671 = vpack.c.b16 %v1207, %v1199
        %v1672 = vpack.c.b16 %v1208, %v1200
        %v1673 = vpack.c.b16 %v1209, %v1201
        %v1674 = vpack.c.b16 %v1210, %v1202
        %v1675 = vpack.c.b16 %v1211, %v1203
        %v1676 = vpack.c.b16 %v1220, %v1212
        %v1677 = vpack.c.b16 %v1221, %v1213
        %v1678 = vpack.c.b16 %v1222, %v1214
        %v1679 = vpack.c.b16 %v1223, %v1215
        %v1680 = vpack.c.b16 %v1224, %v1216
        %v1681 = vpack.c.b16 %v1225, %v1217
        %v1682 = vpack.c.b16 %v1226, %v1218
        %v1683 = vpack.c.b16 %v1227, %v1219
        %v1684 = vpack.c.b16 %v1236, %v1228
        %v1685 = vpack.c.b16 %v1237, %v1229
        %v1686 = vpack.c.b16 %v1238, %v1230
        %v1687 = vpack.c.b16 %v1239, %v1231
        %v1688 = vpack.c.b16 %v1240, %v1232
        %v1689 = vpack.c.b16 %v1241, %v1233
        %v1690 = vpack.c.b16 %v1242, %v1234
        %v1691 = vpack.c.b16 %v1243, %v1235
        %v1692 = vpack.c.b16 %v1252, %v1244
        %v1693 = vpack.c.b16 %v1253, %v1245
        %v1694 = vpack.c.b16 %v1254, %v1246
        %v1695 = vpack.c.b16 %v1255, %v1247
        %v1696 = vpack.c.b16 %v1256, %v1248
        %v1697 = vpack.c.b16 %v1257, %v1249
        %v1698 = vpack.c.b16 %v1258, %v1250
        %v1699 = vpack.c.b16 %v1259, %v1251
        %v1700 = vpack.c.b16 %v1268, %v1260
        %v1701 = vpack.c.b16 %v1269, %v1261
        %v1702 = vpack.c.b16 %v1270, %v1262
        %v1703 = vpack.c.b16 %v1271, %v1263
        %v1704 = vpack.c.b16 %v1272, %v1264
        %v1705 = vpack.c.b16 %v1273, %v1265
        %v1706 = vpack.c.b16 %v1274, %v1266
        %v1707 = vpack.c.b16 %v1275, %v1267
        %v1708 = vpack.c.b16 %v1284, %v1276
        %v1709 = vpack.c.b16 %v1285, %v1277
        %v1710 = vpack.c.b16 %v1286, %v1278
        %v1711 = vpack.c.b16 %v1287, %v1279
        %v1712 = vpack.c.b16 %v1288, %v1280
        %v1713 = vpack.c.b16 %v1289, %v1281
        %v1714 = vpack.c.b16 %v1290, %v1282
        %v1715 = vpack.c.b16 %v1291, %v1283
        %v1716 = vpack.c.b16 %v1300, %v1292
        %v1717 = vpack.c.b16 %v1301, %v1293
        %v1718 = vpack.c.b16 %v1302, %v1294
        %v1719 = vpack.c.b16 %v1303, %v1295
        %v1720 = vpack.c.b16 %v1304, %v1296
        %v1721 = vpack.c.b16 %v1305, %v1297
        %v1722 = vpack.c.b16 %v1306, %v1298
        %v1723 = vpack.c.b16 %v1307, %v1299
        %v1724 = vpack.c.b16 %v1316, %v1308
        %v1725 = vpack.c.b16 %v1317, %v1309
        %v1726 = vpack.c.b16 %v1318, %v1310
        %v1727 = vpack.c.b16 %v1319, %v1311
        %v1728 = vpack.c.b16 %v1320, %v1312
        %v1729 = vpack.c.b16 %v1321, %v1313
        %v1730 = vpack.c.b16 %v1322, %v1314
        %v1731 = vpack.c.b16 %v1323, %v1315
        %v1732 = vpack.c.b16 %v1332, %v1324
        %v1733 = vpack.c.b16 %v1333, %v1325
        %v1734 = vpack.c.b16 %v1334, %v1326
        %v1735 = vpack.c.b16 %v1335, %v1327
        %v1736 = vpack.c.b16 %v1336, %v1328
        %v1737 = vpack.c.b16 %v1337, %v1329
        %v1738 = vpack.c.b16 %v1338, %v1330
        %v1739 = vpack.c.b16 %v1339, %v1331
        %v1740 = vpack.c.b16 %v1348, %v1340
        %v1741 = vpack.c.b16 %v1349, %v1341
        %v1742 = vpack.c.b16 %v1350, %v1342
        %v1743 = vpack.c.b16 %v1351, %v1343
        %v1744 = vpack.c.b16 %v1352, %v1344
        %v1745 = vpack.c.b16 %v1353, %v1345
        %v1746 = vpack.c.b16 %v1354, %v1346
        %v1747 = vpack.c.b16 %v1355, %v1347
        %v1748 = vpack.c.b16 %v1364, %v1356
        %v1749 = vpack.c.b16 %v1365, %v1357
        %v1750 = vpack.c.b16 %v1366, %v1358
        %v1751 = vpack.c.b16 %v1367, %v1359
        %v1752 = vpack.c.b16 %v1368, %v1360
        %v1753 = vpack.c.b16 %v1369, %v1361
        %v1754 = vpack.c.b16 %v1370, %v1362
        %v1755 = vpack.c.b16 %v1371, %v1363
        %v1756 = vpack.c.b16 %v1380, %v1372
        %v1757 = vpack.c.b16 %v1381, %v1373
        %v1758 = vpack.c.b16 %v1382, %v1374
        %v1759 = vpack.c.b16 %v1383, %v1375
        %v1760 = vpack.c.b16 %v1384, %v1376
        %v1761 = vpack.c.b16 %v1385, %v1377
        %v1762 = vpack.c.b16 %v1386, %v1378
        %v1763 = vpack.c.b16 %v1387, %v1379
        %v1764 = vpack.c.b16 %v1396, %v1388
        %v1765 = vpack.c.b16 %v1397, %v1389
        %v1766 = vpack.c.b16 %v1398, %v1390
        %v1767 = vpack.c.b16 %v1399, %v1391
        %v1768 = vpack.c.b16 %v1400, %v1392
        %v1769 = vpack.c.b16 %v1401, %v1393
        %v1770 = vpack.c.b16 %v1402, %v1394
        %v1771 = vpack.c.b16 %v1403, %v1395
        %v1772 = vpack.c.b16 %v1412, %v1404
        %v1773 = vpack.c.b16 %v1413, %v1405
        %v1774 = vpack.c.b16 %v1414, %v1406
        %v1775 = vpack.c.b16 %v1415, %v1407
        %v1776 = vpack.c.b16 %v1416, %v1408
        %v1777 = vpack.c.b16 %v1417, %v1409
        %v1778 = vpack.c.b16 %v1418, %v1410
        %v1779 = vpack.c.b16 %v1419, %v1411
        %v1780 = vpack.c.b16 %v1428, %v1420
        %v1781 = vpack.c.b16 %v1429, %v1421
        %v1782 = vpack.c.b16 %v1430, %v1422
        %v1783 = vpack.c.b16 %v1431, %v1423
        %v1784 = vpack.c.b16 %v1432, %v1424
        %v1785 = vpack.c.b16 %v1433, %v1425
        %v1786 = vpack.c.b16 %v1434, %v1426
        %v1787 = vpack.c.b16 %v1435, %v1427
        %v1788 = vpack.c.b16 %v1444, %v1436
        %v1789 = vpack.c.b16 %v1445, %v1437
        %v1790 = vpack.c.b16 %v1446, %v1438
        %v1791 = vpack.c.b16 %v1447, %v1439
        %v1792 = vpack.c.b16 %v1448, %v1440
        %v1793 = vpack.c.b16 %v1449, %v1441
        %v1794 = vpack.c.b16 %v1450, %v1442
        %v1795 = vpack.c.b16 %v1451, %v1443
        %v1796 = vpack.c.b16 %v1460, %v1452
        %v1797 = vpack.c.b16 %v1461, %v1453
        %v1798 = vpack.c.b16 %v1462, %v1454
        %v1799 = vpack.c.b16 %v1463, %v1455
        %v1800 = vpack.c.b16 %v1464, %v1456
        %v1801 = vpack.c.b16 %v1465, %v1457
        %v1802 = vpack.c.b16 %v1466, %v1458
        %v1803 = vpack.c.b16 %v1467, %v1459
        %v1804 = vpack.c.b16 %v1476, %v1468
        %v1805 = vpack.c.b16 %v1477, %v1469
        %v1806 = vpack.c.b16 %v1478, %v1470
        %v1807 = vpack.c.b16 %v1479, %v1471
        %v1808 = vpack.c.b16 %v1480, %v1472
        %v1809 = vpack.c.b16 %v1481, %v1473
        %v1810 = vpack.c.b16 %v1482, %v1474
        %v1811 = vpack.c.b16 %v1483, %v1475
        %v1812 = vpack.c.b16 %v1492, %v1484
        %v1813 = vpack.c.b16 %v1493, %v1485
        %v1814 = vpack.c.b16 %v1494, %v1486
        %v1815 = vpack.c.b16 %v1495, %v1487
        %v1816 = vpack.c.b16 %v1496, %v1488
        %v1817 = vpack.c.b16 %v1497, %v1489
        %v1818 = vpack.c.b16 %v1498, %v1490
        %v1819 = vpack.c.b16 %v1499, %v1491
        %v1820 = vpack.c.b16 %v1508, %v1500
        %v1821 = vpack.c.b16 %v1509, %v1501
        %v1822 = vpack.c.b16 %v1510, %v1502
        %v1823 = vpack.c.b16 %v1511, %v1503
        %v1824 = vpack.c.b16 %v1512, %v1504
        %v1825 = vpack.c.b16 %v1513, %v1505
        %v1826 = vpack.c.b16 %v1514, %v1506
        %v1827 = vpack.c.b16 %v1515, %v1507
        %v1828 = vpack.c.b16 %v1524, %v1516
        %v1829 = vpack.c.b16 %v1525, %v1517
        %v1830 = vpack.c.b16 %v1526, %v1518
        %v1831 = vpack.c.b16 %v1527, %v1519
        %v1832 = vpack.c.b16 %v1528, %v1520
        %v1833 = vpack.c.b16 %v1529, %v1521
        %v1834 = vpack.c.b16 %v1530, %v1522
        %v1835 = vpack.c.b16 %v1531, %v1523
        %v1836 = vpack.c.b16 %v1540, %v1532
        %v1837 = vpack.c.b16 %v1541, %v1533
        %v1838 = vpack.c.b16 %v1542, %v1534
        %v1839 = vpack.c.b16 %v1543, %v1535
        %v1840 = vpack.c.b16 %v1544, %v1536
        %v1841 = vpack.c.b16 %v1545, %v1537
        %v1842 = vpack.c.b16 %v1546, %v1538
        %v1843 = vpack.c.b16 %v1547, %v1539
        %v1844 = vpack.c.b16 %v1556, %v1548
        %v1845 = vpack.c.b16 %v1557, %v1549
        %v1846 = vpack.c.b16 %v1558, %v1550
        %v1847 = vpack.c.b16 %v1559, %v1551
        %v1848 = vpack.c.b16 %v1560, %v1552
        %v1849 = vpack.c.b16 %v1561, %v1553
        %v1850 = vpack.c.b16 %v1562, %v1554
        %v1851 = vpack.c.b16 %v1563, %v1555
        %v1852 = vpack.c.b16 %v1572, %v1564
        %v1853 = vpack.c.b16 %v1573, %v1565
        %v1854 = vpack.c.b16 %v1574, %v1566
        %v1855 = vpack.c.b16 %v1575, %v1567
        %v1856 = vpack.c.b16 %v1576, %v1568
        %v1857 = vpack.c.b16 %v1577, %v1569
        %v1858 = vpack.c.b16 %v1578, %v1570
        %v1859 = vpack.c.b16 %v1579, %v1571
        %v1860 = vpack.c.b16 %v1588, %v1580
        %v1861 = vpack.c.b16 %v1589, %v1581
        %v1862 = vpack.c.b16 %v1590, %v1582
        %v1863 = vpack.c.b16 %v1591, %v1583
        %v1864 = vpack.c.b16 %v1592, %v1584
        %v1865 = vpack.c.b16 %v1593, %v1585
        %v1866 = vpack.c.b16 %v1594, %v1586
        %v1867 = vpack.c.b16 %v1595, %v1587
        %v1868 = vpack.c.b16 %v1604, %v1596
        %v1869 = vpack.c.b16 %v1605, %v1597
        %v1870 = vpack.c.b16 %v1606, %v1598
        %v1871 = vpack.c.b16 %v1607, %v1599
        %v1872 = vpack.c.b16 %v1608, %v1600
        %v1873 = vpack.c.b16 %v1609, %v1601
        %v1874 = vpack.c.b16 %v1610, %v1602
        %v1875 = vpack.c.b16 %v1611, %v1603
        %v1876 = vpack.c.b16 %v1620, %v1612
        %v1877 = vpack.c.b16 %v1621, %v1613
        %v1878 = vpack.c.b16 %v1622, %v1614
        %v1879 = vpack.c.b16 %v1623, %v1615
        %v1880 = vpack.c.b16 %v1624, %v1616
        %v1881 = vpack.c.b16 %v1625, %v1617
        %v1882 = vpack.c.b16 %v1626, %v1618
        %v1883 = vpack.c.b16 %v1627, %v1619
        %2140 = vmatprep.subr.bf16.mxu0 %v1629
        %2141 = vmatpush1.bf16.msra.mxu0 %v1628
        %2142 = vmatprep.subr.bf16.mxu0 %v1637
        %2143 = vmatpush1.bf16.msra.mxu0 %v1636
        %2144 = vmatprep.subr.bf16.mxu0 %v1645
        %2145 = vmatpush1.bf16.msra.mxu0 %v1644
        %2146 = vmatprep.subr.bf16.mxu0 %v1653
        %2147 = vmatpush1.bf16.msra.mxu0 %v1652
        %2148 = vmatprep.subr.bf16.mxu0 %v1661
        %2149 = vmatpush1.bf16.msra.mxu0 %v1660
        %2150 = vmatprep.subr.bf16.mxu0 %v1669
        %2151 = vmatpush1.bf16.msra.mxu0 %v1668
        %2152 = vmatprep.subr.bf16.mxu0 %v1677
        %2153 = vmatpush1.bf16.msra.mxu0 %v1676
        %2154 = vmatprep.subr.bf16.mxu0 %v1685
        %2155 = vmatpush1.bf16.msra.mxu0 %v1684
        %2156 = vmatprep.subr.bf16.mxu0 %v1693
        %2157 = vmatpush1.bf16.msra.mxu0 %v1692
        %2158 = vmatprep.subr.bf16.mxu0 %v1701
        %2159 = vmatpush1.bf16.msra.mxu0 %v1700
        %2160 = vmatprep.subr.bf16.mxu0 %v1709
        %2161 = vmatpush1.bf16.msra.mxu0 %v1708
        %2162 = vmatprep.subr.bf16.mxu0 %v1717
        %2163 = vmatpush1.bf16.msra.mxu0 %v1716
        %2164 = vmatprep.subr.bf16.mxu0 %v1725
        %2165 = vmatpush1.bf16.msra.mxu0 %v1724
        %2166 = vmatprep.subr.bf16.mxu0 %v1733
        %2167 = vmatpush1.bf16.msra.mxu0 %v1732
        %2168 = vmatprep.subr.bf16.mxu0 %v1741
        %2169 = vmatpush1.bf16.msra.mxu0 %v1740
        %2170 = vmatprep.subr.bf16.mxu0 %v1749
        %2171 = vmatpush1.bf16.msra.mxu0 %v1748
        %2172 = vmatprep.mubr.bf16.mxu0 %v601
        %2173 = vmatmul.mubr.bf16.gmra.mrb[0].mxu0 %v600
        %v2174 = vpop.f32.mrb[0].mxu0
        %v2175 = vadd.f32 0.0, %v2174
        %v2176 = vpop.f32.mrb[0].mxu0
        %v2177 = vadd.f32 0.0, %v2176
        %v2178 = vpop.f32.mrb[0].mxu0
        %v2179 = vpop.f32.mrb[0].mxu0
        %2180 = vdwg.mxu0
        %2181 = vmatprep.subr.bf16.mxu0 %v1757
        %2182 = vmatpush1.bf16.msra.mxu0 %v1756
        %2183 = vmatprep.subr.bf16.mxu0 %v1765
        %2184 = vmatpush1.bf16.msra.mxu0 %v1764
        %2185 = vmatprep.subr.bf16.mxu0 %v1773
        %2186 = vmatpush1.bf16.msra.mxu0 %v1772
        %2187 = vmatprep.subr.bf16.mxu0 %v1781
        %2188 = vmatpush1.bf16.msra.mxu0 %v1780
        %2189 = vmatprep.subr.bf16.mxu0 %v1789
        %2190 = vmatpush1.bf16.msra.mxu0 %v1788
        %2191 = vmatprep.subr.bf16.mxu0 %v1797
        %2192 = vmatpush1.bf16.msra.mxu0 %v1796
        %2193 = vmatprep.subr.bf16.mxu0 %v1805
        %2194 = vmatpush1.bf16.msra.mxu0 %v1804
        %2195 = vmatprep.subr.bf16.mxu0 %v1813
        %2196 = vmatpush1.bf16.msra.mxu0 %v1812
        %2197 = vmatprep.subr.bf16.mxu0 %v1821
        %2198 = vmatpush1.bf16.msra.mxu0 %v1820
        %2199 = vmatprep.subr.bf16.mxu0 %v1829
        %2200 = vmatpush1.bf16.msra.mxu0 %v1828
        %2201 = vmatprep.subr.bf16.mxu0 %v1837
        %2202 = vmatpush1.bf16.msra.mxu0 %v1836
        %2203 = vmatprep.subr.bf16.mxu0 %v1845
        %2204 = vmatpush1.bf16.msra.mxu0 %v1844
        %2205 = vmatprep.subr.bf16.mxu0 %v1853
        %2206 = vmatpush1.bf16.msra.mxu0 %v1852
        %2207 = vmatprep.subr.bf16.mxu0 %v1861
        %2208 = vmatpush1.bf16.msra.mxu0 %v1860
        %2209 = vmatprep.subr.bf16.mxu0 %v1869
        %2210 = vmatpush1.bf16.msra.mxu0 %v1868
        %2211 = vmatprep.subr.bf16.mxu0 %v1877
        %2212 = vmatpush1.bf16.msra.mxu0 %v1876
        %2213 = vmatprep.mubr.bf16.mxu0 %v603
        %2214 = vmatmul.mubr.bf16.gmra.mrb[0].mxu0 %v602
        %v2215 = vpop.f32.mrb[0].mxu0
        %v2216 = vadd.f32 %v2175, %v2215
        %v2217 = vpop.f32.mrb[0].mxu0
        %v2218 = vadd.f32 %v2177, %v2217
        %v2219 = vpop.f32.mrb[0].mxu0
        %v2220 = vpop.f32.mrb[0].mxu0
        %2221 = vdwg.mxu0
        %2222 = vmatprep.subr.bf16.mxu0 %v1631
        %2223 = vmatpush1.bf16.msra.mxu0 %v1630
        %2224 = vmatprep.subr.bf16.mxu0 %v1639
        %2225 = vmatpush1.bf16.msra.mxu0 %v1638
        %2226 = vmatprep.subr.bf16.mxu0 %v1647
        %2227 = vmatpush1.bf16.msra.mxu0 %v1646
        %2228 = vmatprep.subr.bf16.mxu0 %v1655
        %2229 = vmatpush1.bf16.msra.mxu0 %v1654
        %2230 = vmatprep.subr.bf16.mxu0 %v1663
        %2231 = vmatpush1.bf16.msra.mxu0 %v1662
        %2232 = vmatprep.subr.bf16.mxu0 %v1671
        %2233 = vmatpush1.bf16.msra.mxu0 %v1670
        %2234 = vmatprep.subr.bf16.mxu0 %v1679
        %2235 = vmatpush1.bf16.msra.mxu0 %v1678
        %2236 = vmatprep.subr.bf16.mxu0 %v1687
        %2237 = vmatpush1.bf16.msra.mxu0 %v1686
        %2238 = vmatprep.subr.bf16.mxu0 %v1695
        %2239 = vmatpush1.bf16.msra.mxu0 %v1694
        %2240 = vmatprep.subr.bf16.mxu0 %v1703
        %2241 = vmatpush1.bf16.msra.mxu0 %v1702
        %2242 = vmatprep.subr.bf16.mxu0 %v1711
        %2243 = vmatpush1.bf16.msra.mxu0 %v1710
        %2244 = vmatprep.subr.bf16.mxu0 %v1719
        %2245 = vmatpush1.bf16.msra.mxu0 %v1718
        %2246 = vmatprep.subr.bf16.mxu0 %v1727
        %2247 = vmatpush1.bf16.msra.mxu0 %v1726
        %2248 = vmatprep.subr.bf16.mxu0 %v1735
        %2249 = vmatpush1.bf16.msra.mxu0 %v1734
        %2250 = vmatprep.subr.bf16.mxu0 %v1743
        %2251 = vmatpush1.bf16.msra.mxu0 %v1742
        %2252 = vmatprep.subr.bf16.mxu0 %v1751
        %2253 = vmatpush1.bf16.msra.mxu0 %v1750
        %2254 = vmatprep.mubr.bf16.mxu0 %v601
        %2255 = vmatmul.mubr.bf16.gmra.mrb[0].mxu0 %v600
        %v2256 = vpop.f32.mrb[0].mxu0
        %v2257 = vadd.f32 0.0, %v2256
        %v2258 = vpop.f32.mrb[0].mxu0
        %v2259 = vadd.f32 0.0, %v2258
        %v2260 = vpop.f32.mrb[0].mxu0
        %v2261 = vpop.f32.mrb[0].mxu0
        %2262 = vdwg.mxu0
        %2263 = vmatprep.subr.bf16.mxu0 %v1759
        %2264 = vmatpush1.bf16.msra.mxu0 %v1758
        %2265 = vmatprep.subr.bf16.mxu0 %v1767
        %2266 = vmatpush1.bf16.msra.mxu0 %v1766
        %2267 = vmatprep.subr.bf16.mxu0 %v1775
        %2268 = vmatpush1.bf16.msra.mxu0 %v1774
        %2269 = vmatprep.subr.bf16.mxu0 %v1783
        %2270 = vmatpush1.bf16.msra.mxu0 %v1782
        %2271 = vmatprep.subr.bf16.mxu0 %v1791
        %2272 = vmatpush1.bf16.msra.mxu0 %v1790
        %2273 = vmatprep.subr.bf16.mxu0 %v1799
        %2274 = vmatpush1.bf16.msra.mxu0 %v1798
        %2275 = vmatprep.subr.bf16.mxu0 %v1807
        %2276 = vmatpush1.bf16.msra.mxu0 %v1806
        %2277 = vmatprep.subr.bf16.mxu0 %v1815
        %2278 = vmatpush1.bf16.msra.mxu0 %v1814
        %2279 = vmatprep.subr.bf16.mxu0 %v1823
        %2280 = vmatpush1.bf16.msra.mxu0 %v1822
        %2281 = vmatprep.subr.bf16.mxu0 %v1831
        %2282 = vmatpush1.bf16.msra.mxu0 %v1830
        %2283 = vmatprep.subr.bf16.mxu0 %v1839
        %2284 = vmatpush1.bf16.msra.mxu0 %v1838
        %2285 = vmatprep.subr.bf16.mxu0 %v1847
        %2286 = vmatpush1.bf16.msra.mxu0 %v1846
        %2287 = vmatprep.subr.bf16.mxu0 %v1855
        %2288 = vmatpush1.bf16.msra.mxu0 %v1854
        %2289 = vmatprep.subr.bf16.mxu0 %v1863
        %2290 = vmatpush1.bf16.msra.mxu0 %v1862
        %2291 = vmatprep.subr.bf16.mxu0 %v1871
        %2292 = vmatpush1.bf16.msra.mxu0 %v1870
        %2293 = vmatprep.subr.bf16.mxu0 %v1879
        %2294 = vmatpush1.bf16.msra.mxu0 %v1878
        %2295 = vmatprep.mubr.bf16.mxu0 %v603
        %2296 = vmatmul.mubr.bf16.gmra.mrb[0].mxu0 %v602
        %v2297 = vpop.f32.mrb[0].mxu0
        %v2298 = vadd.f32 %v2257, %v2297
        %v2299 = vpop.f32.mrb[0].mxu0
        %v2300 = vadd.f32 %v2259, %v2299
        %v2301 = vpop.f32.mrb[0].mxu0
        %v2302 = vpop.f32.mrb[0].mxu0
        %2303 = vdwg.mxu0
        %2304 = vmatprep.subr.bf16.mxu0 %v1633
        %2305 = vmatpush1.bf16.msra.mxu0 %v1632
        %2306 = vmatprep.subr.bf16.mxu0 %v1641
        %2307 = vmatpush1.bf16.msra.mxu0 %v1640
        %2308 = vmatprep.subr.bf16.mxu0 %v1649
        %2309 = vmatpush1.bf16.msra.mxu0 %v1648
        %2310 = vmatprep.subr.bf16.mxu0 %v1657
        %2311 = vmatpush1.bf16.msra.mxu0 %v1656
        %2312 = vmatprep.subr.bf16.mxu0 %v1665
        %2313 = vmatpush1.bf16.msra.mxu0 %v1664
        %2314 = vmatprep.subr.bf16.mxu0 %v1673
        %2315 = vmatpush1.bf16.msra.mxu0 %v1672
        %2316 = vmatprep.subr.bf16.mxu0 %v1681
        %2317 = vmatpush1.bf16.msra.mxu0 %v1680
        %2318 = vmatprep.subr.bf16.mxu0 %v1689
        %2319 = vmatpush1.bf16.msra.mxu0 %v1688
        %2320 = vmatprep.subr.bf16.mxu0 %v1697
        %2321 = vmatpush1.bf16.msra.mxu0 %v1696
        %2322 = vmatprep.subr.bf16.mxu0 %v1705
        %2323 = vmatpush1.bf16.msra.mxu0 %v1704
        %2324 = vmatprep.subr.bf16.mxu0 %v1713
        %2325 = vmatpush1.bf16.msra.mxu0 %v1712
        %2326 = vmatprep.subr.bf16.mxu0 %v1721
        %2327 = vmatpush1.bf16.msra.mxu0 %v1720
        %2328 = vmatprep.subr.bf16.mxu0 %v1729
        %2329 = vmatpush1.bf16.msra.mxu0 %v1728
        %2330 = vmatprep.subr.bf16.mxu0 %v1737
        %2331 = vmatpush1.bf16.msra.mxu0 %v1736
        %2332 = vmatprep.subr.bf16.mxu0 %v1745
        %2333 = vmatpush1.bf16.msra.mxu0 %v1744
        %2334 = vmatprep.subr.bf16.mxu0 %v1753
        %2335 = vmatpush1.bf16.msra.mxu0 %v1752
        %2336 = vmatprep.mubr.bf16.mxu0 %v601
        %2337 = vmatmul.mubr.bf16.gmra.mrb[0].mxu0 %v600
        %v2338 = vpop.f32.mrb[0].mxu0
        %v2339 = vadd.f32 0.0, %v2338
        %v2340 = vpop.f32.mrb[0].mxu0
        %v2341 = vadd.f32 0.0, %v2340
        %v2342 = vpop.f32.mrb[0].mxu0
        %v2343 = vpop.f32.mrb[0].mxu0
        %2344 = vdwg.mxu0
        %2345 = vmatprep.subr.bf16.mxu0 %v1761
        %2346 = vmatpush1.bf16.msra.mxu0 %v1760
        %2347 = vmatprep.subr.bf16.mxu0 %v1769
        %2348 = vmatpush1.bf16.msra.mxu0 %v1768
        %2349 = vmatprep.subr.bf16.mxu0 %v1777
        %2350 = vmatpush1.bf16.msra.mxu0 %v1776
        %2351 = vmatprep.subr.bf16.mxu0 %v1785
        %2352 = vmatpush1.bf16.msra.mxu0 %v1784
        %2353 = vmatprep.subr.bf16.mxu0 %v1793
        %2354 = vmatpush1.bf16.msra.mxu0 %v1792
        %2355 = vmatprep.subr.bf16.mxu0 %v1801
        %2356 = vmatpush1.bf16.msra.mxu0 %v1800
        %2357 = vmatprep.subr.bf16.mxu0 %v1809
        %2358 = vmatpush1.bf16.msra.mxu0 %v1808
        %2359 = vmatprep.subr.bf16.mxu0 %v1817
        %2360 = vmatpush1.bf16.msra.mxu0 %v1816
        %2361 = vmatprep.subr.bf16.mxu0 %v1825
        %2362 = vmatpush1.bf16.msra.mxu0 %v1824
        %2363 = vmatprep.subr.bf16.mxu0 %v1833
        %2364 = vmatpush1.bf16.msra.mxu0 %v1832
        %2365 = vmatprep.subr.bf16.mxu0 %v1841
        %2366 = vmatpush1.bf16.msra.mxu0 %v1840
        %2367 = vmatprep.subr.bf16.mxu0 %v1849
        %2368 = vmatpush1.bf16.msra.mxu0 %v1848
        %2369 = vmatprep.subr.bf16.mxu0 %v1857
        %2370 = vmatpush1.bf16.msra.mxu0 %v1856
        %2371 = vmatprep.subr.bf16.mxu0 %v1865
        %2372 = vmatpush1.bf16.msra.mxu0 %v1864
        %2373 = vmatprep.subr.bf16.mxu0 %v1873
        %2374 = vmatpush1.bf16.msra.mxu0 %v1872
        %2375 = vmatprep.subr.bf16.mxu0 %v1881
        %2376 = vmatpush1.bf16.msra.mxu0 %v1880
        %2377 = vmatprep.mubr.bf16.mxu0 %v603
        %2378 = vmatmul.mubr.bf16.gmra.mrb[0].mxu0 %v602
        %v2379 = vpop.f32.mrb[0].mxu0
        %v2380 = vadd.f32 %v2339, %v2379
        %v2381 = vpop.f32.mrb[0].mxu0
        %v2382 = vadd.f32 %v2341, %v2381
        %v2383 = vpop.f32.mrb[0].mxu0
        %v2384 = vpop.f32.mrb[0].mxu0
        %2385 = vdwg.mxu0
        %2386 = vmatprep.subr.bf16.mxu0 %v1635
        %2387 = vmatpush1.bf16.msra.mxu0 %v1634
        %2388 = vmatprep.subr.bf16.mxu0 %v1643
        %2389 = vmatpush1.bf16.msra.mxu0 %v1642
        %2390 = vmatprep.subr.bf16.mxu0 %v1651
        %2391 = vmatpush1.bf16.msra.mxu0 %v1650
        %2392 = vmatprep.subr.bf16.mxu0 %v1659
        %2393 = vmatpush1.bf16.msra.mxu0 %v1658
        %2394 = vmatprep.subr.bf16.mxu0 %v1667
        %2395 = vmatpush1.bf16.msra.mxu0 %v1666
        %2396 = vmatprep.subr.bf16.mxu0 %v1675
        %2397 = vmatpush1.bf16.msra.mxu0 %v1674
        %2398 = vmatprep.subr.bf16.mxu0 %v1683
        %2399 = vmatpush1.bf16.msra.mxu0 %v1682
        %2400 = vmatprep.subr.bf16.mxu0 %v1691
        %2401 = vmatpush1.bf16.msra.mxu0 %v1690
        %2402 = vmatprep.subr.bf16.mxu0 %v1699
        %2403 = vmatpush1.bf16.msra.mxu0 %v1698
        %2404 = vmatprep.subr.bf16.mxu0 %v1707
        %2405 = vmatpush1.bf16.msra.mxu0 %v1706
        %2406 = vmatprep.subr.bf16.mxu0 %v1715
        %2407 = vmatpush1.bf16.msra.mxu0 %v1714
        %2408 = vmatprep.subr.bf16.mxu0 %v1723
        %2409 = vmatpush1.bf16.msra.mxu0 %v1722
        %2410 = vmatprep.subr.bf16.mxu0 %v1731
        %2411 = vmatpush1.bf16.msra.mxu0 %v1730
        %2412 = vmatprep.subr.bf16.mxu0 %v1739
        %2413 = vmatpush1.bf16.msra.mxu0 %v1738
        %2414 = vmatprep.subr.bf16.mxu0 %v1747
        %2415 = vmatpush1.bf16.msra.mxu0 %v1746
        %2416 = vmatprep.subr.bf16.mxu0 %v1755
        %2417 = vmatpush1.bf16.msra.mxu0 %v1754
        %2418 = vmatprep.mubr.bf16.mxu0 %v601
        %2419 = vmatmul.mubr.bf16.gmra.mrb[0].mxu0 %v600
        %v2420 = vpop.f32.mrb[0].mxu0
        %v2421 = vadd.f32 0.0, %v2420
        %v2422 = vpop.f32.mrb[0].mxu0
        %v2423 = vadd.f32 0.0, %v2422
        %v2424 = vpop.f32.mrb[0].mxu0
        %v2425 = vpop.f32.mrb[0].mxu0
        %2426 = vdwg.mxu0
        %2427 = vmatprep.subr.bf16.mxu0 %v1763
        %2428 = vmatpush1.bf16.msra.mxu0 %v1762
        %2429 = vmatprep.subr.bf16.mxu0 %v1771
        %2430 = vmatpush1.bf16.msra.mxu0 %v1770
        %2431 = vmatprep.subr.bf16.mxu0 %v1779
        %2432 = vmatpush1.bf16.msra.mxu0 %v1778
        %2433 = vmatprep.subr.bf16.mxu0 %v1787
        %2434 = vmatpush1.bf16.msra.mxu0 %v1786
        %2435 = vmatprep.subr.bf16.mxu0 %v1795
        %2436 = vmatpush1.bf16.msra.mxu0 %v1794
        %2437 = vmatprep.subr.bf16.mxu0 %v1803
        %2438 = vmatpush1.bf16.msra.mxu0 %v1802
        %2439 = vmatprep.subr.bf16.mxu0 %v1811
        %2440 = vmatpush1.bf16.msra.mxu0 %v1810
        %2441 = vmatprep.subr.bf16.mxu0 %v1819
        %2442 = vmatpush1.bf16.msra.mxu0 %v1818
        %2443 = vmatprep.subr.bf16.mxu0 %v1827
        %2444 = vmatpush1.bf16.msra.mxu0 %v1826
        %2445 = vmatprep.subr.bf16.mxu0 %v1835
        %2446 = vmatpush1.bf16.msra.mxu0 %v1834
        %2447 = vmatprep.subr.bf16.mxu0 %v1843
        %2448 = vmatpush1.bf16.msra.mxu0 %v1842
        %2449 = vmatprep.subr.bf16.mxu0 %v1851
        %2450 = vmatpush1.bf16.msra.mxu0 %v1850
        %2451 = vmatprep.subr.bf16.mxu0 %v1859
        %2452 = vmatpush1.bf16.msra.mxu0 %v1858
        %2453 = vmatprep.subr.bf16.mxu0 %v1867
        %2454 = vmatpush1.bf16.msra.mxu0 %v1866
        %2455 = vmatprep.subr.bf16.mxu0 %v1875
        %2456 = vmatpush1.bf16.msra.mxu0 %v1874
        %2457 = vmatprep.subr.bf16.mxu0 %v1883
        %2458 = vmatpush1.bf16.msra.mxu0 %v1882
        %2459 = vmatprep.mubr.bf16.mxu0 %v603
        %2460 = vmatmul.mubr.bf16.gmra.mrb[0].mxu0 %v602
        %v2461 = vpop.f32.mrb[0].mxu0
        %v2462 = vadd.f32 %v2421, %v2461
        %v2463 = vpop.f32.mrb[0].mxu0
        %v2464 = vadd.f32 %v2423, %v2463
        %v2465 = vpop.f32.mrb[0].mxu0
        %v2466 = vpop.f32.mrb[0].mxu0
        %2467 = vdwg.mxu0
        %v2468 = vadd.f32 %v588, %v2216
        %v2469 = vadd.f32 %v589, %v2218
        %v2470 = vadd.f32 %v590, %v2298
        %v2471 = vadd.f32 %v591, %v2300
        %v2472 = vadd.f32 %v592, %v2380
        %v2473 = vadd.f32 %v593, %v2382
        %v2474 = vadd.f32 %v594, %v2462
        %v2475 = vadd.f32 %v595, %v2464
        %2476 = vst [vmem:[#allocation2] sm:$0xff] %v2468
        %2477 = vst [vmem:[#allocation2 + $0x8] sm:$0xff] %v2469
        %2478 = vst [vmem:[#allocation2 + $0x10] sm:$0xff] %v2470
        %2479 = vst [vmem:[#allocation2 + $0x18] sm:$0xff] %v2471
        %2480 = vst [vmem:[#allocation2 + $0x20] sm:$0xff] %v2472
        %2481 = vst [vmem:[#allocation2 + $0x28] sm:$0xff] %v2473
        %2482 = vst [vmem:[#allocation2 + $0x30] sm:$0xff] %v2474
        %2483 = vst [vmem:[#allocation2 + $0x38] sm:$0xff] %v2475
        %p2484 = scmp.eq.s32.totalorder %s38, 3
        // Predicated region
        $region113: #{tpu_custom_call.1} parent=63 // pred_check
          %p2485 = pneg %p2484
        $region114: #{tpu_custom_call.1} parent=63 // pred_check_branch
          %2487 = sbr.rel (%p2485) target = $region116
        $region115: #{tpu_custom_call.1} parent=63 // pred_region
          %v2488 = vld [vmem:[#allocation2] sm:$0xff]
          %v2489 = vld [vmem:[#allocation2 + $0x8] sm:$0xff]
          %v2490 = vld [vmem:[#allocation2 + $0x10] sm:$0xff]
          %v2491 = vld [vmem:[#allocation2 + $0x18] sm:$0xff]
          %v2492 = vld [vmem:[#allocation2 + $0x20] sm:$0xff]
          %v2493 = vld [vmem:[#allocation2 + $0x28] sm:$0xff]
          %v2494 = vld [vmem:[#allocation2 + $0x30] sm:$0xff]
          %v2495 = vld [vmem:[#allocation2 + $0x38] sm:$0xff]
          %v2496 = vld [vmem:[#allocation8] sm:$0xff]
          %v2498 = vlaneseq
          %v2499 = vshrl.u32 %v2498, 7
          %v2500 = vsub.s32 0, %v2499
          %v2501 = vrot.slane %v2496, %v2500
          %v2502 = vlaneseq
          %v2503 = vshrl.u32 %v2502, 7
          %v2504 = vsub.s32 1, %v2503
          %v2505 = vrot.slane %v2496, %v2504
          %v2506 = vlaneseq
          %v2507 = vshrl.u32 %v2506, 7
          %v2508 = vsub.s32 2, %v2507
          %v2509 = vrot.slane %v2496, %v2508
          %v2510 = vlaneseq
          %v2511 = vshrl.u32 %v2510, 7
          %v2512 = vsub.s32 3, %v2511
          %v2513 = vrot.slane %v2496, %v2512
          %v2514 = vlaneseq
          %v2515 = vshrl.u32 %v2514, 7
          %v2516 = vsub.s32 4, %v2515
          %v2517 = vrot.slane %v2496, %v2516
          %v2518 = vlaneseq
          %v2519 = vshrl.u32 %v2518, 7
          %v2520 = vsub.s32 5, %v2519
          %v2521 = vrot.slane %v2496, %v2520
          %v2522 = vlaneseq
          %v2523 = vshrl.u32 %v2522, 7
          %v2524 = vsub.s32 6, %v2523
          %v2525 = vrot.slane %v2496, %v2524
          %v2526 = vlaneseq
          %v2527 = vshrl.u32 %v2526, 7
          %v2528 = vsub.s32 7, %v2527
          %v2529 = vrot.slane %v2496, %v2528
          %v2538 = vadd.f32 %v2488, %v2501
          %v2539 = vadd.f32 %v2489, %v2505
          %v2540 = vadd.f32 %v2490, %v2509
          %v2541 = vadd.f32 %v2491, %v2513
          %v2542 = vadd.f32 %v2492, %v2517
          %v2543 = vadd.f32 %v2493, %v2521
          %v2544 = vadd.f32 %v2494, %v2525
          %v2545 = vadd.f32 %v2495, %v2529
          %v2546 = vmax.f32 %v2538, 0.0
          %v2547 = vmax.f32 %v2539, 0.0
          %v2548 = vmax.f32 %v2540, 0.0
          %v2549 = vmax.f32 %v2541, 0.0
          %v2550 = vmax.f32 %v2542, 0.0
          %v2551 = vmax.f32 %v2543, 0.0
          %v2552 = vmax.f32 %v2544, 0.0
          %v2553 = vmax.f32 %v2545, 0.0
          %v2554 = vpack.c.bf16 %v2546, %v2546
          %v2555 = vpack.c.bf16 %v2547, %v2547
          %v2556 = vpack.c.bf16 %v2548, %v2548
          %v2557 = vpack.c.bf16 %v2549, %v2549
          %v2558 = vpack.c.bf16 %v2550, %v2550
          %v2559 = vpack.c.bf16 %v2551, %v2551
          %v2560 = vpack.c.bf16 %v2552, %v2552
          %v2561 = vpack.c.bf16 %v2553, %v2553
          %v2562 = vld [vmem:[#allocation9] sm:$0xff]
          %v2563 = vld [vmem:[#allocation9 + $0x8] sm:$0xff]
          %v2564 = vld [vmem:[#allocation9 + $0x10] sm:$0xff]
          %v2565 = vld [vmem:[#allocation9 + $0x18] sm:$0xff]
          %v2566 = vld [vmem:[#allocation9 + $0x20] sm:$0xff]
          %v2567 = vld [vmem:[#allocation9 + $0x28] sm:$0xff]
          %v2568 = vld [vmem:[#allocation9 + $0x30] sm:$0xff]
          %v2569 = vld [vmem:[#allocation9 + $0x38] sm:$0xff]
          %v2570 = vld [vmem:[#allocation9 + $0x40] sm:$0xff]
          %v2571 = vld [vmem:[#allocation9 + $0x48] sm:$0xff]
          %v2572 = vld [vmem:[#allocation9 + $0x50] sm:$0xff]
          %v2573 = vld [vmem:[#allocation9 + $0x58] sm:$0xff]
          %v2574 = vld [vmem:[#allocation9 + $0x60] sm:$0xff]
          %v2575 = vld [vmem:[#allocation9 + $0x68] sm:$0xff]
          %v2576 = vld [vmem:[#allocation9 + $0x70] sm:$0xff]
          %v2577 = vld [vmem:[#allocation9 + $0x78] sm:$0xff]
          %v2578 = vld [vmem:[#allocation9 + $0x80] sm:$0xff]
          %v2579 = vld [vmem:[#allocation9 + $0x88] sm:$0xff]
          %v2580 = vld [vmem:[#allocation9 + $0x90] sm:$0xff]
          %v2581 = vld [vmem:[#allocation9 + $0x98] sm:$0xff]
          %v2582 = vld [vmem:[#allocation9 + $0xa0] sm:$0xff]
          %v2583 = vld [vmem:[#allocation9 + $0xa8] sm:$0xff]
          %v2584 = vld [vmem:[#allocation9 + $0xb0] sm:$0xff]
          %v2585 = vld [vmem:[#allocation9 + $0xb8] sm:$0xff]
          %v2586 = vld [vmem:[#allocation9 + $0xc0] sm:$0xff]
          %v2587 = vld [vmem:[#allocation9 + $0xc8] sm:$0xff]
          %v2588 = vld [vmem:[#allocation9 + $0xd0] sm:$0xff]
          %v2589 = vld [vmem:[#allocation9 + $0xd8] sm:$0xff]
          %v2590 = vld [vmem:[#allocation9 + $0xe0] sm:$0xff]
          %v2591 = vld [vmem:[#allocation9 + $0xe8] sm:$0xff]
          %v2592 = vld [vmem:[#allocation9 + $0xf0] sm:$0xff]
          %v2593 = vld [vmem:[#allocation9 + $0xf8] sm:$0xff]
          %v2594 = vld [vmem:[#allocation9 + $0x100] sm:$0xff]
          %v2595 = vld [vmem:[#allocation9 + $0x108] sm:$0xff]
          %v2596 = vld [vmem:[#allocation9 + $0x110] sm:$0xff]
          %v2597 = vld [vmem:[#allocation9 + $0x118] sm:$0xff]
          %v2598 = vld [vmem:[#allocation9 + $0x120] sm:$0xff]
          %v2599 = vld [vmem:[#allocation9 + $0x128] sm:$0xff]
          %v2600 = vld [vmem:[#allocation9 + $0x130] sm:$0xff]
          %v2601 = vld [vmem:[#allocation9 + $0x138] sm:$0xff]
          %v2602 = vld [vmem:[#allocation9 + $0x140] sm:$0xff]
          %v2603 = vld [vmem:[#allocation9 + $0x148] sm:$0xff]
          %v2604 = vld [vmem:[#allocation9 + $0x150] sm:$0xff]
          %v2605 = vld [vmem:[#allocation9 + $0x158] sm:$0xff]
          %v2606 = vld [vmem:[#allocation9 + $0x160] sm:$0xff]
          %v2607 = vld [vmem:[#allocation9 + $0x168] sm:$0xff]
          %v2608 = vld [vmem:[#allocation9 + $0x170] sm:$0xff]
          %v2609 = vld [vmem:[#allocation9 + $0x178] sm:$0xff]
          %v2610 = vld [vmem:[#allocation9 + $0x180] sm:$0xff]
          %v2611 = vld [vmem:[#allocation9 + $0x188] sm:$0xff]
          %v2612 = vld [vmem:[#allocation9 + $0x190] sm:$0xff]
          %v2613 = vld [vmem:[#allocation9 + $0x198] sm:$0xff]
          %v2614 = vld [vmem:[#allocation9 + $0x1a0] sm:$0xff]
          %v2615 = vld [vmem:[#allocation9 + $0x1a8] sm:$0xff]
          %v2616 = vld [vmem:[#allocation9 + $0x1b0] sm:$0xff]
          %v2617 = vld [vmem:[#allocation9 + $0x1b8] sm:$0xff]
          %v2618 = vld [vmem:[#allocation9 + $0x1c0] sm:$0xff]
          %v2619 = vld [vmem:[#allocation9 + $0x1c8] sm:$0xff]
          %v2620 = vld [vmem:[#allocation9 + $0x1d0] sm:$0xff]
          %v2621 = vld [vmem:[#allocation9 + $0x1d8] sm:$0xff]
          %v2622 = vld [vmem:[#allocation9 + $0x1e0] sm:$0xff]
          %v2623 = vld [vmem:[#allocation9 + $0x1e8] sm:$0xff]
          %v2624 = vld [vmem:[#allocation9 + $0x1f0] sm:$0xff]
          %v2625 = vld [vmem:[#allocation9 + $0x1f8] sm:$0xff]
          %v2626 = vld [vmem:[#allocation9 + $0x200] sm:$0xff]
          %v2627 = vld [vmem:[#allocation9 + $0x208] sm:$0xff]
          %v2628 = vld [vmem:[#allocation9 + $0x210] sm:$0xff]
          %v2629 = vld [vmem:[#allocation9 + $0x218] sm:$0xff]
          %v2630 = vld [vmem:[#allocation9 + $0x220] sm:$0xff]
          %v2631 = vld [vmem:[#allocation9 + $0x228] sm:$0xff]
          %v2632 = vld [vmem:[#allocation9 + $0x230] sm:$0xff]
          %v2633 = vld [vmem:[#allocation9 + $0x238] sm:$0xff]
          %v2634 = vld [vmem:[#allocation9 + $0x240] sm:$0xff]
          %v2635 = vld [vmem:[#allocation9 + $0x248] sm:$0xff]
          %v2636 = vld [vmem:[#allocation9 + $0x250] sm:$0xff]
          %v2637 = vld [vmem:[#allocation9 + $0x258] sm:$0xff]
          %v2638 = vld [vmem:[#allocation9 + $0x260] sm:$0xff]
          %v2639 = vld [vmem:[#allocation9 + $0x268] sm:$0xff]
          %v2640 = vld [vmem:[#allocation9 + $0x270] sm:$0xff]
          %v2641 = vld [vmem:[#allocation9 + $0x278] sm:$0xff]
          %v2642 = vld [vmem:[#allocation9 + $0x280] sm:$0xff]
          %v2643 = vld [vmem:[#allocation9 + $0x288] sm:$0xff]
          %v2644 = vld [vmem:[#allocation9 + $0x290] sm:$0xff]
          %v2645 = vld [vmem:[#allocation9 + $0x298] sm:$0xff]
          %v2646 = vld [vmem:[#allocation9 + $0x2a0] sm:$0xff]
          %v2647 = vld [vmem:[#allocation9 + $0x2a8] sm:$0xff]
          %v2648 = vld [vmem:[#allocation9 + $0x2b0] sm:$0xff]
          %v2649 = vld [vmem:[#allocation9 + $0x2b8] sm:$0xff]
          %v2650 = vld [vmem:[#allocation9 + $0x2c0] sm:$0xff]
          %v2651 = vld [vmem:[#allocation9 + $0x2c8] sm:$0xff]
          %v2652 = vld [vmem:[#allocation9 + $0x2d0] sm:$0xff]
          %v2653 = vld [vmem:[#allocation9 + $0x2d8] sm:$0xff]
          %v2654 = vld [vmem:[#allocation9 + $0x2e0] sm:$0xff]
          %v2655 = vld [vmem:[#allocation9 + $0x2e8] sm:$0xff]
          %v2656 = vld [vmem:[#allocation9 + $0x2f0] sm:$0xff]
          %v2657 = vld [vmem:[#allocation9 + $0x2f8] sm:$0xff]
          %v2658 = vld [vmem:[#allocation9 + $0x300] sm:$0xff]
          %v2659 = vld [vmem:[#allocation9 + $0x308] sm:$0xff]
          %v2660 = vld [vmem:[#allocation9 + $0x310] sm:$0xff]
          %v2661 = vld [vmem:[#allocation9 + $0x318] sm:$0xff]
          %v2662 = vld [vmem:[#allocation9 + $0x320] sm:$0xff]
          %v2663 = vld [vmem:[#allocation9 + $0x328] sm:$0xff]
          %v2664 = vld [vmem:[#allocation9 + $0x330] sm:$0xff]
          %v2665 = vld [vmem:[#allocation9 + $0x338] sm:$0xff]
          %v2666 = vld [vmem:[#allocation9 + $0x340] sm:$0xff]
          %v2667 = vld [vmem:[#allocation9 + $0x348] sm:$0xff]
          %v2668 = vld [vmem:[#allocation9 + $0x350] sm:$0xff]
          %v2669 = vld [vmem:[#allocation9 + $0x358] sm:$0xff]
          %v2670 = vld [vmem:[#allocation9 + $0x360] sm:$0xff]
          %v2671 = vld [vmem:[#allocation9 + $0x368] sm:$0xff]
          %v2672 = vld [vmem:[#allocation9 + $0x370] sm:$0xff]
          %v2673 = vld [vmem:[#allocation9 + $0x378] sm:$0xff]
          %v2674 = vld [vmem:[#allocation9 + $0x380] sm:$0xff]
          %v2675 = vld [vmem:[#allocation9 + $0x388] sm:$0xff]
          %v2676 = vld [vmem:[#allocation9 + $0x390] sm:$0xff]
          %v2677 = vld [vmem:[#allocation9 + $0x398] sm:$0xff]
          %v2678 = vld [vmem:[#allocation9 + $0x3a0] sm:$0xff]
          %v2679 = vld [vmem:[#allocation9 + $0x3a8] sm:$0xff]
          %v2680 = vld [vmem:[#allocation9 + $0x3b0] sm:$0xff]
          %v2681 = vld [vmem:[#allocation9 + $0x3b8] sm:$0xff]
          %v2682 = vld [vmem:[#allocation9 + $0x3c0] sm:$0xff]
          %v2683 = vld [vmem:[#allocation9 + $0x3c8] sm:$0xff]
          %v2684 = vld [vmem:[#allocation9 + $0x3d0] sm:$0xff]
          %v2685 = vld [vmem:[#allocation9 + $0x3d8] sm:$0xff]
          %v2686 = vld [vmem:[#allocation9 + $0x3e0] sm:$0xff]
          %v2687 = vld [vmem:[#allocation9 + $0x3e8] sm:$0xff]
          %v2688 = vld [vmem:[#allocation9 + $0x3f0] sm:$0xff]
          %v2689 = vld [vmem:[#allocation9 + $0x3f8] sm:$0xff]
          %v2690 = vld [vmem:[#allocation11] sm:$0x3]
          %v2692 = vlaneseq
          %v2693 = vshrl.u32 %v2692, 7
          %v2694 = vsub.s32 0, %v2693
          %v2695 = vrot.slane %v2690, %v2694
          %v2696 = vlaneseq
          %v2697 = vshrl.u32 %v2696, 7
          %v2698 = vsub.s32 1, %v2697
          %v2699 = vrot.slane %v2690, %v2698
          %v2830 = vunpack.c.l.b16 %v2562
          %v2831 = vunpack.c.h.b16 %v2562
          %v2832 = vunpack.c.l.b16 %v2563
          %v2833 = vunpack.c.h.b16 %v2563
          %v2834 = vunpack.c.l.b16 %v2564
          %v2835 = vunpack.c.h.b16 %v2564
          %v2836 = vunpack.c.l.b16 %v2565
          %v2837 = vunpack.c.h.b16 %v2565
          %v2838 = vunpack.c.l.b16 %v2566
          %v2839 = vunpack.c.h.b16 %v2566
          %v2840 = vunpack.c.l.b16 %v2567
          %v2841 = vunpack.c.h.b16 %v2567
          %v2842 = vunpack.c.l.b16 %v2568
          %v2843 = vunpack.c.h.b16 %v2568
          %v2844 = vunpack.c.l.b16 %v2569
          %v2845 = vunpack.c.h.b16 %v2569
          %v2846 = vunpack.c.l.b16 %v2570
          %v2847 = vunpack.c.h.b16 %v2570
          %v2848 = vunpack.c.l.b16 %v2571
          %v2849 = vunpack.c.h.b16 %v2571
          %v2850 = vunpack.c.l.b16 %v2572
          %v2851 = vunpack.c.h.b16 %v2572
          %v2852 = vunpack.c.l.b16 %v2573
          %v2853 = vunpack.c.h.b16 %v2573
          %v2854 = vunpack.c.l.b16 %v2574
          %v2855 = vunpack.c.h.b16 %v2574
          %v2856 = vunpack.c.l.b16 %v2575
          %v2857 = vunpack.c.h.b16 %v2575
          %v2858 = vunpack.c.l.b16 %v2576
          %v2859 = vunpack.c.h.b16 %v2576
          %v2860 = vunpack.c.l.b16 %v2577
          %v2861 = vunpack.c.h.b16 %v2577
          %v2862 = vunpack.c.l.b16 %v2578
          %v2863 = vunpack.c.h.b16 %v2578
          %v2864 = vunpack.c.l.b16 %v2579
          %v2865 = vunpack.c.h.b16 %v2579
          %v2866 = vunpack.c.l.b16 %v2580
          %v2867 = vunpack.c.h.b16 %v2580
          %v2868 = vunpack.c.l.b16 %v2581
          %v2869 = vunpack.c.h.b16 %v2581
          %v2870 = vunpack.c.l.b16 %v2582
          %v2871 = vunpack.c.h.b16 %v2582
          %v2872 = vunpack.c.l.b16 %v2583
          %v2873 = vunpack.c.h.b16 %v2583
          %v2874 = vunpack.c.l.b16 %v2584
          %v2875 = vunpack.c.h.b16 %v2584
          %v2876 = vunpack.c.l.b16 %v2585
          %v2877 = vunpack.c.h.b16 %v2585
          %v2878 = vunpack.c.l.b16 %v2586
          %v2879 = vunpack.c.h.b16 %v2586
          %v2880 = vunpack.c.l.b16 %v2587
          %v2881 = vunpack.c.h.b16 %v2587
          %v2882 = vunpack.c.l.b16 %v2588
          %v2883 = vunpack.c.h.b16 %v2588
          %v2884 = vunpack.c.l.b16 %v2589
          %v2885 = vunpack.c.h.b16 %v2589
          %v2886 = vunpack.c.l.b16 %v2590
          %v2887 = vunpack.c.h.b16 %v2590
          %v2888 = vunpack.c.l.b16 %v2591
          %v2889 = vunpack.c.h.b16 %v2591
          %v2890 = vunpack.c.l.b16 %v2592
          %v2891 = vunpack.c.h.b16 %v2592
          %v2892 = vunpack.c.l.b16 %v2593
          %v2893 = vunpack.c.h.b16 %v2593
          %v2894 = vunpack.c.l.b16 %v2594
          %v2895 = vunpack.c.h.b16 %v2594
          %v2896 = vunpack.c.l.b16 %v2595
          %v2897 = vunpack.c.h.b16 %v2595
          %v2898 = vunpack.c.l.b16 %v2596
          %v2899 = vunpack.c.h.b16 %v2596
          %v2900 = vunpack.c.l.b16 %v2597
          %v2901 = vunpack.c.h.b16 %v2597
          %v2902 = vunpack.c.l.b16 %v2598
          %v2903 = vunpack.c.h.b16 %v2598
          %v2904 = vunpack.c.l.b16 %v2599
          %v2905 = vunpack.c.h.b16 %v2599
          %v2906 = vunpack.c.l.b16 %v2600
          %v2907 = vunpack.c.h.b16 %v2600
          %v2908 = vunpack.c.l.b16 %v2601
          %v2909 = vunpack.c.h.b16 %v2601
          %v2910 = vunpack.c.l.b16 %v2602
          %v2911 = vunpack.c.h.b16 %v2602
          %v2912 = vunpack.c.l.b16 %v2603
          %v2913 = vunpack.c.h.b16 %v2603
          %v2914 = vunpack.c.l.b16 %v2604
          %v2915 = vunpack.c.h.b16 %v2604
          %v2916 = vunpack.c.l.b16 %v2605
          %v2917 = vunpack.c.h.b16 %v2605
          %v2918 = vunpack.c.l.b16 %v2606
          %v2919 = vunpack.c.h.b16 %v2606
          %v2920 = vunpack.c.l.b16 %v2607
          %v2921 = vunpack.c.h.b16 %v2607
          %v2922 = vunpack.c.l.b16 %v2608
          %v2923 = vunpack.c.h.b16 %v2608
          %v2924 = vunpack.c.l.b16 %v2609
          %v2925 = vunpack.c.h.b16 %v2609
          %v2926 = vunpack.c.l.b16 %v2610
          %v2927 = vunpack.c.h.b16 %v2610
          %v2928 = vunpack.c.l.b16 %v2611
          %v2929 = vunpack.c.h.b16 %v2611
          %v2930 = vunpack.c.l.b16 %v2612
          %v2931 = vunpack.c.h.b16 %v2612
          %v2932 = vunpack.c.l.b16 %v2613
          %v2933 = vunpack.c.h.b16 %v2613
          %v2934 = vunpack.c.l.b16 %v2614
          %v2935 = vunpack.c.h.b16 %v2614
          %v2936 = vunpack.c.l.b16 %v2615
          %v2937 = vunpack.c.h.b16 %v2615
          %v2938 = vunpack.c.l.b16 %v2616
          %v2939 = vunpack.c.h.b16 %v2616
          %v2940 = vunpack.c.l.b16 %v2617
          %v2941 = vunpack.c.h.b16 %v2617
          %v2942 = vunpack.c.l.b16 %v2618
          %v2943 = vunpack.c.h.b16 %v2618
          %v2944 = vunpack.c.l.b16 %v2619
          %v2945 = vunpack.c.h.b16 %v2619
          %v2946 = vunpack.c.l.b16 %v2620
          %v2947 = vunpack.c.h.b16 %v2620
          %v2948 = vunpack.c.l.b16 %v2621
          %v2949 = vunpack.c.h.b16 %v2621
          %v2950 = vunpack.c.l.b16 %v2622
          %v2951 = vunpack.c.h.b16 %v2622
          %v2952 = vunpack.c.l.b16 %v2623
          %v2953 = vunpack.c.h.b16 %v2623
          %v2954 = vunpack.c.l.b16 %v2624
          %v2955 = vunpack.c.h.b16 %v2624
          %v2956 = vunpack.c.l.b16 %v2625
          %v2957 = vunpack.c.h.b16 %v2625
          %v2958 = vunpack.c.l.b16 %v2626
          %v2959 = vunpack.c.h.b16 %v2626
          %v2960 = vunpack.c.l.b16 %v2627
          %v2961 = vunpack.c.h.b16 %v2627
          %v2962 = vunpack.c.l.b16 %v2628
          %v2963 = vunpack.c.h.b16 %v2628
          %v2964 = vunpack.c.l.b16 %v2629
          %v2965 = vunpack.c.h.b16 %v2629
          %v2966 = vunpack.c.l.b16 %v2630
          %v2967 = vunpack.c.h.b16 %v2630
          %v2968 = vunpack.c.l.b16 %v2631
          %v2969 = vunpack.c.h.b16 %v2631
          %v2970 = vunpack.c.l.b16 %v2632
          %v2971 = vunpack.c.h.b16 %v2632
          %v2972 = vunpack.c.l.b16 %v2633
          %v2973 = vunpack.c.h.b16 %v2633
          %v2974 = vunpack.c.l.b16 %v2634
          %v2975 = vunpack.c.h.b16 %v2634
          %v2976 = vunpack.c.l.b16 %v2635
          %v2977 = vunpack.c.h.b16 %v2635
          %v2978 = vunpack.c.l.b16 %v2636
          %v2979 = vunpack.c.h.b16 %v2636
          %v2980 = vunpack.c.l.b16 %v2637
          %v2981 = vunpack.c.h.b16 %v2637
          %v2982 = vunpack.c.l.b16 %v2638
          %v2983 = vunpack.c.h.b16 %v2638
          %v2984 = vunpack.c.l.b16 %v2639
          %v2985 = vunpack.c.h.b16 %v2639
          %v2986 = vunpack.c.l.b16 %v2640
          %v2987 = vunpack.c.h.b16 %v2640
          %v2988 = vunpack.c.l.b16 %v2641
          %v2989 = vunpack.c.h.b16 %v2641
          %v2990 = vunpack.c.l.b16 %v2642
          %v2991 = vunpack.c.h.b16 %v2642
          %v2992 = vunpack.c.l.b16 %v2643
          %v2993 = vunpack.c.h.b16 %v2643
          %v2994 = vunpack.c.l.b16 %v2644
          %v2995 = vunpack.c.h.b16 %v2644
          %v2996 = vunpack.c.l.b16 %v2645
          %v2997 = vunpack.c.h.b16 %v2645
          %v2998 = vunpack.c.l.b16 %v2646
          %v2999 = vunpack.c.h.b16 %v2646
          %v3000 = vunpack.c.l.b16 %v2647
          %v3001 = vunpack.c.h.b16 %v2647
          %v3002 = vunpack.c.l.b16 %v2648
          %v3003 = vunpack.c.h.b16 %v2648
          %v3004 = vunpack.c.l.b16 %v2649
          %v3005 = vunpack.c.h.b16 %v2649
          %v3006 = vunpack.c.l.b16 %v2650
          %v3007 = vunpack.c.h.b16 %v2650
          %v3008 = vunpack.c.l.b16 %v2651
          %v3009 = vunpack.c.h.b16 %v2651
          %v3010 = vunpack.c.l.b16 %v2652
          %v3011 = vunpack.c.h.b16 %v2652
          %v3012 = vunpack.c.l.b16 %v2653
          %v3013 = vunpack.c.h.b16 %v2653
          %v3014 = vunpack.c.l.b16 %v2654
          %v3015 = vunpack.c.h.b16 %v2654
          %v3016 = vunpack.c.l.b16 %v2655
          %v3017 = vunpack.c.h.b16 %v2655
          %v3018 = vunpack.c.l.b16 %v2656
          %v3019 = vunpack.c.h.b16 %v2656
          %v3020 = vunpack.c.l.b16 %v2657
          %v3021 = vunpack.c.h.b16 %v2657
          %v3022 = vunpack.c.l.b16 %v2658
          %v3023 = vunpack.c.h.b16 %v2658
          %v3024 = vunpack.c.l.b16 %v2659
          %v3025 = vunpack.c.h.b16 %v2659
          %v3026 = vunpack.c.l.b16 %v2660
          %v3027 = vunpack.c.h.b16 %v2660
          %v3028 = vunpack.c.l.b16 %v2661
          %v3029 = vunpack.c.h.b16 %v2661
          %v3030 = vunpack.c.l.b16 %v2662
          %v3031 = vunpack.c.h.b16 %v2662
          %v3032 = vunpack.c.l.b16 %v2663
          %v3033 = vunpack.c.h.b16 %v2663
          %v3034 = vunpack.c.l.b16 %v2664
          %v3035 = vunpack.c.h.b16 %v2664
          %v3036 = vunpack.c.l.b16 %v2665
          %v3037 = vunpack.c.h.b16 %v2665
          %v3038 = vunpack.c.l.b16 %v2666
          %v3039 = vunpack.c.h.b16 %v2666
          %v3040 = vunpack.c.l.b16 %v2667
          %v3041 = vunpack.c.h.b16 %v2667
          %v3042 = vunpack.c.l.b16 %v2668
          %v3043 = vunpack.c.h.b16 %v2668
          %v3044 = vunpack.c.l.b16 %v2669
          %v3045 = vunpack.c.h.b16 %v2669
          %v3046 = vunpack.c.l.b16 %v2670
          %v3047 = vunpack.c.h.b16 %v2670
          %v3048 = vunpack.c.l.b16 %v2671
          %v3049 = vunpack.c.h.b16 %v2671
          %v3050 = vunpack.c.l.b16 %v2672
          %v3051 = vunpack.c.h.b16 %v2672
          %v3052 = vunpack.c.l.b16 %v2673
          %v3053 = vunpack.c.h.b16 %v2673
          %v3054 = vunpack.c.l.b16 %v2674
          %v3055 = vunpack.c.h.b16 %v2674
          %v3056 = vunpack.c.l.b16 %v2675
          %v3057 = vunpack.c.h.b16 %v2675
          %v3058 = vunpack.c.l.b16 %v2676
          %v3059 = vunpack.c.h.b16 %v2676
          %v3060 = vunpack.c.l.b16 %v2677
          %v3061 = vunpack.c.h.b16 %v2677
          %v3062 = vunpack.c.l.b16 %v2678
          %v3063 = vunpack.c.h.b16 %v2678
          %v3064 = vunpack.c.l.b16 %v2679
          %v3065 = vunpack.c.h.b16 %v2679
          %v3066 = vunpack.c.l.b16 %v2680
          %v3067 = vunpack.c.h.b16 %v2680
          %v3068 = vunpack.c.l.b16 %v2681
          %v3069 = vunpack.c.h.b16 %v2681
          %v3070 = vunpack.c.l.b16 %v2682
          %v3071 = vunpack.c.h.b16 %v2682
          %v3072 = vunpack.c.l.b16 %v2683
          %v3073 = vunpack.c.h.b16 %v2683
          %v3074 = vunpack.c.l.b16 %v2684
          %v3075 = vunpack.c.h.b16 %v2684
          %v3076 = vunpack.c.l.b16 %v2685
          %v3077 = vunpack.c.h.b16 %v2685
          %v3078 = vunpack.c.l.b16 %v2686
          %v3079 = vunpack.c.h.b16 %v2686
          %v3080 = vunpack.c.l.b16 %v2687
          %v3081 = vunpack.c.h.b16 %v2687
          %v3082 = vunpack.c.l.b16 %v2688
          %v3083 = vunpack.c.h.b16 %v2688
          %v3084 = vunpack.c.l.b16 %v2689
          %v3085 = vunpack.c.h.b16 %v2689
          %v3086 = vpack.c.b16 %v2832, %v2830
          %v3087 = vpack.c.b16 %v2833, %v2831
          %v3088 = vpack.c.b16 %v2836, %v2834
          %v3089 = vpack.c.b16 %v2837, %v2835
          %v3090 = vpack.c.b16 %v2840, %v2838
          %v3091 = vpack.c.b16 %v2841, %v2839
          %v3092 = vpack.c.b16 %v2844, %v2842
          %v3093 = vpack.c.b16 %v2845, %v2843
          %v3094 = vpack.c.b16 %v2848, %v2846
          %v3095 = vpack.c.b16 %v2849, %v2847
          %v3096 = vpack.c.b16 %v2852, %v2850
          %v3097 = vpack.c.b16 %v2853, %v2851
          %v3098 = vpack.c.b16 %v2856, %v2854
          %v3099 = vpack.c.b16 %v2857, %v2855
          %v3100 = vpack.c.b16 %v2860, %v2858
          %v3101 = vpack.c.b16 %v2861, %v2859
          %v3102 = vpack.c.b16 %v2864, %v2862
          %v3103 = vpack.c.b16 %v2865, %v2863
          %v3104 = vpack.c.b16 %v2868, %v2866
          %v3105 = vpack.c.b16 %v2869, %v2867
          %v3106 = vpack.c.b16 %v2872, %v2870
          %v3107 = vpack.c.b16 %v2873, %v2871
          %v3108 = vpack.c.b16 %v2876, %v2874
          %v3109 = vpack.c.b16 %v2877, %v2875
          %v3110 = vpack.c.b16 %v2880, %v2878
          %v3111 = vpack.c.b16 %v2881, %v2879
          %v3112 = vpack.c.b16 %v2884, %v2882
          %v3113 = vpack.c.b16 %v2885, %v2883
          %v3114 = vpack.c.b16 %v2888, %v2886
          %v3115 = vpack.c.b16 %v2889, %v2887
          %v3116 = vpack.c.b16 %v2892, %v2890
          %v3117 = vpack.c.b16 %v2893, %v2891
          %v3118 = vpack.c.b16 %v2896, %v2894
          %v3119 = vpack.c.b16 %v2897, %v2895
          %v3120 = vpack.c.b16 %v2900, %v2898
          %v3121 = vpack.c.b16 %v2901, %v2899
          %v3122 = vpack.c.b16 %v2904, %v2902
          %v3123 = vpack.c.b16 %v2905, %v2903
          %v3124 = vpack.c.b16 %v2908, %v2906
          %v3125 = vpack.c.b16 %v2909, %v2907
          %v3126 = vpack.c.b16 %v2912, %v2910
          %v3127 = vpack.c.b16 %v2913, %v2911
          %v3128 = vpack.c.b16 %v2916, %v2914
          %v3129 = vpack.c.b16 %v2917, %v2915
          %v3130 = vpack.c.b16 %v2920, %v2918
          %v3131 = vpack.c.b16 %v2921, %v2919
          %v3132 = vpack.c.b16 %v2924, %v2922
          %v3133 = vpack.c.b16 %v2925, %v2923
          %v3134 = vpack.c.b16 %v2928, %v2926
          %v3135 = vpack.c.b16 %v2929, %v2927
          %v3136 = vpack.c.b16 %v2932, %v2930
          %v3137 = vpack.c.b16 %v2933, %v2931
          %v3138 = vpack.c.b16 %v2936, %v2934
          %v3139 = vpack.c.b16 %v2937, %v2935
          %v3140 = vpack.c.b16 %v2940, %v2938
          %v3141 = vpack.c.b16 %v2941, %v2939
          %v3142 = vpack.c.b16 %v2944, %v2942
          %v3143 = vpack.c.b16 %v2945, %v2943
          %v3144 = vpack.c.b16 %v2948, %v2946
          %v3145 = vpack.c.b16 %v2949, %v2947
          %v3146 = vpack.c.b16 %v2952, %v2950
          %v3147 = vpack.c.b16 %v2953, %v2951
          %v3148 = vpack.c.b16 %v2956, %v2954
          %v3149 = vpack.c.b16 %v2957, %v2955
          %v3150 = vpack.c.b16 %v2960, %v2958
          %v3151 = vpack.c.b16 %v2961, %v2959
          %v3152 = vpack.c.b16 %v2964, %v2962
          %v3153 = vpack.c.b16 %v2965, %v2963
          %v3154 = vpack.c.b16 %v2968, %v2966
          %v3155 = vpack.c.b16 %v2969, %v2967
          %v3156 = vpack.c.b16 %v2972, %v2970
          %v3157 = vpack.c.b16 %v2973, %v2971
          %v3158 = vpack.c.b16 %v2976, %v2974
          %v3159 = vpack.c.b16 %v2977, %v2975
          %v3160 = vpack.c.b16 %v2980, %v2978
          %v3161 = vpack.c.b16 %v2981, %v2979
          %v3162 = vpack.c.b16 %v2984, %v2982
          %v3163 = vpack.c.b16 %v2985, %v2983
          %v3164 = vpack.c.b16 %v2988, %v2986
          %v3165 = vpack.c.b16 %v2989, %v2987
          %v3166 = vpack.c.b16 %v2992, %v2990
          %v3167 = vpack.c.b16 %v2993, %v2991
          %v3168 = vpack.c.b16 %v2996, %v2994
          %v3169 = vpack.c.b16 %v2997, %v2995
          %v3170 = vpack.c.b16 %v3000, %v2998
          %v3171 = vpack.c.b16 %v3001, %v2999
          %v3172 = vpack.c.b16 %v3004, %v3002
          %v3173 = vpack.c.b16 %v3005, %v3003
          %v3174 = vpack.c.b16 %v3008, %v3006
          %v3175 = vpack.c.b16 %v3009, %v3007
          %v3176 = vpack.c.b16 %v3012, %v3010
          %v3177 = vpack.c.b16 %v3013, %v3011
          %v3178 = vpack.c.b16 %v3016, %v3014
          %v3179 = vpack.c.b16 %v3017, %v3015
          %v3180 = vpack.c.b16 %v3020, %v3018
          %v3181 = vpack.c.b16 %v3021, %v3019
          %v3182 = vpack.c.b16 %v3024, %v3022
          %v3183 = vpack.c.b16 %v3025, %v3023
          %v3184 = vpack.c.b16 %v3028, %v3026
          %v3185 = vpack.c.b16 %v3029, %v3027
          %v3186 = vpack.c.b16 %v3032, %v3030
          %v3187 = vpack.c.b16 %v3033, %v3031
          %v3188 = vpack.c.b16 %v3036, %v3034
          %v3189 = vpack.c.b16 %v3037, %v3035
          %v3190 = vpack.c.b16 %v3040, %v3038
          %v3191 = vpack.c.b16 %v3041, %v3039
          %v3192 = vpack.c.b16 %v3044, %v3042
          %v3193 = vpack.c.b16 %v3045, %v3043
          %v3194 = vpack.c.b16 %v3048, %v3046
          %v3195 = vpack.c.b16 %v3049, %v3047
          %v3196 = vpack.c.b16 %v3052, %v3050
          %v3197 = vpack.c.b16 %v3053, %v3051
          %v3198 = vpack.c.b16 %v3056, %v3054
          %v3199 = vpack.c.b16 %v3057, %v3055
          %v3200 = vpack.c.b16 %v3060, %v3058
          %v3201 = vpack.c.b16 %v3061, %v3059
          %v3202 = vpack.c.b16 %v3064, %v3062
          %v3203 = vpack.c.b16 %v3065, %v3063
          %v3204 = vpack.c.b16 %v3068, %v3066
          %v3205 = vpack.c.b16 %v3069, %v3067
          %v3206 = vpack.c.b16 %v3072, %v3070
          %v3207 = vpack.c.b16 %v3073, %v3071
          %v3208 = vpack.c.b16 %v3076, %v3074
          %v3209 = vpack.c.b16 %v3077, %v3075
          %v3210 = vpack.c.b16 %v3080, %v3078
          %v3211 = vpack.c.b16 %v3081, %v3079
          %v3212 = vpack.c.b16 %v3084, %v3082
          %v3213 = vpack.c.b16 %v3085, %v3083
          %3342 = vmatprep.subr.bf16.mxu0 %v3087
          %3343 = vmatpush1.bf16.msra.mxu0 %v3086
          %3344 = vmatprep.subr.bf16.mxu0 %v3089
          %3345 = vmatpush1.bf16.msra.mxu0 %v3088
          %3346 = vmatprep.subr.bf16.mxu0 %v3091
          %3347 = vmatpush1.bf16.msra.mxu0 %v3090
          %3348 = vmatprep.subr.bf16.mxu0 %v3093
          %3349 = vmatpush1.bf16.msra.mxu0 %v3092
          %3350 = vmatprep.subr.bf16.mxu0 %v3095
          %3351 = vmatpush1.bf16.msra.mxu0 %v3094
          %3352 = vmatprep.subr.bf16.mxu0 %v3097
          %3353 = vmatpush1.bf16.msra.mxu0 %v3096
          %3354 = vmatprep.subr.bf16.mxu0 %v3099
          %3355 = vmatpush1.bf16.msra.mxu0 %v3098
          %3356 = vmatprep.subr.bf16.mxu0 %v3101
          %3357 = vmatpush1.bf16.msra.mxu0 %v3100
          %3358 = vmatprep.subr.bf16.mxu0 %v3103
          %3359 = vmatpush1.bf16.msra.mxu0 %v3102
          %3360 = vmatprep.subr.bf16.mxu0 %v3105
          %3361 = vmatpush1.bf16.msra.mxu0 %v3104
          %3362 = vmatprep.subr.bf16.mxu0 %v3107
          %3363 = vmatpush1.bf16.msra.mxu0 %v3106
          %3364 = vmatprep.subr.bf16.mxu0 %v3109
          %3365 = vmatpush1.bf16.msra.mxu0 %v3108
          %3366 = vmatprep.subr.bf16.mxu0 %v3111
          %3367 = vmatpush1.bf16.msra.mxu0 %v3110
          %3368 = vmatprep.subr.bf16.mxu0 %v3113
          %3369 = vmatpush1.bf16.msra.mxu0 %v3112
          %3370 = vmatprep.subr.bf16.mxu0 %v3115
          %3371 = vmatpush1.bf16.msra.mxu0 %v3114
          %3372 = vmatprep.subr.bf16.mxu0 %v3117
          %3373 = vmatpush1.bf16.msra.mxu0 %v3116
          %3374 = vmatprep.mubr.bf16.mxu0 %v2555
          %3375 = vmatmul.mubr.bf16.gmra.mrb[0].mxu0 %v2554
          %v3376 = vpop.f32.mrb[0].mxu0
          %v3377 = vadd.f32 %v2695, %v3376
          %v3378 = vpop.f32.mrb[0].mxu0
          %v3379 = vadd.f32 %v2699, %v3378
          %v3380 = vpop.f32.mrb[0].mxu0
          %v3381 = vpop.f32.mrb[0].mxu0
          %3382 = vdwg.mxu0
          %3383 = vmatprep.subr.bf16.mxu0 %v3119
          %3384 = vmatpush1.bf16.msra.mxu0 %v3118
          %3385 = vmatprep.subr.bf16.mxu0 %v3121
          %3386 = vmatpush1.bf16.msra.mxu0 %v3120
          %3387 = vmatprep.subr.bf16.mxu0 %v3123
          %3388 = vmatpush1.bf16.msra.mxu0 %v3122
          %3389 = vmatprep.subr.bf16.mxu0 %v3125
          %3390 = vmatpush1.bf16.msra.mxu0 %v3124
          %3391 = vmatprep.subr.bf16.mxu0 %v3127
          %3392 = vmatpush1.bf16.msra.mxu0 %v3126
          %3393 = vmatprep.subr.bf16.mxu0 %v3129
          %3394 = vmatpush1.bf16.msra.mxu0 %v3128
          %3395 = vmatprep.subr.bf16.mxu0 %v3131
          %3396 = vmatpush1.bf16.msra.mxu0 %v3130
          %3397 = vmatprep.subr.bf16.mxu0 %v3133
          %3398 = vmatpush1.bf16.msra.mxu0 %v3132
          %3399 = vmatprep.subr.bf16.mxu0 %v3135
          %3400 = vmatpush1.bf16.msra.mxu0 %v3134
          %3401 = vmatprep.subr.bf16.mxu0 %v3137
          %3402 = vmatpush1.bf16.msra.mxu0 %v3136
          %3403 = vmatprep.subr.bf16.mxu0 %v3139
          %3404 = vmatpush1.bf16.msra.mxu0 %v3138
          %3405 = vmatprep.subr.bf16.mxu0 %v3141
          %3406 = vmatpush1.bf16.msra.mxu0 %v3140
          %3407 = vmatprep.subr.bf16.mxu0 %v3143
          %3408 = vmatpush1.bf16.msra.mxu0 %v3142
          %3409 = vmatprep.subr.bf16.mxu0 %v3145
          %3410 = vmatpush1.bf16.msra.mxu0 %v3144
          %3411 = vmatprep.subr.bf16.mxu0 %v3147
          %3412 = vmatpush1.bf16.msra.mxu0 %v3146
          %3413 = vmatprep.subr.bf16.mxu0 %v3149
          %3414 = vmatpush1.bf16.msra.mxu0 %v3148
          %3415 = vmatprep.mubr.bf16.mxu0 %v2557
          %3416 = vmatmul.mubr.bf16.gmra.mrb[0].mxu0 %v2556
          %v3417 = vpop.f32.mrb[0].mxu0
          %v3418 = vadd.f32 %v3377, %v3417
          %v3419 = vpop.f32.mrb[0].mxu0
          %v3420 = vadd.f32 %v3379, %v3419
          %v3421 = vpop.f32.mrb[0].mxu0
          %v3422 = vpop.f32.mrb[0].mxu0
          %3423 = vdwg.mxu0
          %3424 = vmatprep.subr.bf16.mxu0 %v3151
          %3425 = vmatpush1.bf16.msra.mxu0 %v3150
          %3426 = vmatprep.subr.bf16.mxu0 %v3153
          %3427 = vmatpush1.bf16.msra.mxu0 %v3152
          %3428 = vmatprep.subr.bf16.mxu0 %v3155
          %3429 = vmatpush1.bf16.msra.mxu0 %v3154
          %3430 = vmatprep.subr.bf16.mxu0 %v3157
          %3431 = vmatpush1.bf16.msra.mxu0 %v3156
          %3432 = vmatprep.subr.bf16.mxu0 %v3159
          %3433 = vmatpush1.bf16.msra.mxu0 %v3158
          %3434 = vmatprep.subr.bf16.mxu0 %v3161
          %3435 = vmatpush1.bf16.msra.mxu0 %v3160
          %3436 = vmatprep.subr.bf16.mxu0 %v3163
          %3437 = vmatpush1.bf16.msra.mxu0 %v3162
          %3438 = vmatprep.subr.bf16.mxu0 %v3165
          %3439 = vmatpush1.bf16.msra.mxu0 %v3164
          %3440 = vmatprep.subr.bf16.mxu0 %v3167
          %3441 = vmatpush1.bf16.msra.mxu0 %v3166
          %3442 = vmatprep.subr.bf16.mxu0 %v3169
          %3443 = vmatpush1.bf16.msra.mxu0 %v3168
          %3444 = vmatprep.subr.bf16.mxu0 %v3171
          %3445 = vmatpush1.bf16.msra.mxu0 %v3170
          %3446 = vmatprep.subr.bf16.mxu0 %v3173
          %3447 = vmatpush1.bf16.msra.mxu0 %v3172
          %3448 = vmatprep.subr.bf16.mxu0 %v3175
          %3449 = vmatpush1.bf16.msra.mxu0 %v3174
          %3450 = vmatprep.subr.bf16.mxu0 %v3177
          %3451 = vmatpush1.bf16.msra.mxu0 %v3176
          %3452 = vmatprep.subr.bf16.mxu0 %v3179
          %3453 = vmatpush1.bf16.msra.mxu0 %v3178
          %3454 = vmatprep.subr.bf16.mxu0 %v3181
          %3455 = vmatpush1.bf16.msra.mxu0 %v3180
          %3456 = vmatprep.mubr.bf16.mxu0 %v2559
          %3457 = vmatmul.mubr.bf16.gmra.mrb[0].mxu0 %v2558
          %v3458 = vpop.f32.mrb[0].mxu0
          %v3459 = vadd.f32 %v3418, %v3458
          %v3460 = vpop.f32.mrb[0].mxu0
          %v3461 = vadd.f32 %v3420, %v3460
          %v3462 = vpop.f32.mrb[0].mxu0
          %v3463 = vpop.f32.mrb[0].mxu0
          %3464 = vdwg.mxu0
          %3465 = vmatprep.subr.bf16.mxu0 %v3183
          %3466 = vmatpush1.bf16.msra.mxu0 %v3182
          %3467 = vmatprep.subr.bf16.mxu0 %v3185
          %3468 = vmatpush1.bf16.msra.mxu0 %v3184
          %3469 = vmatprep.subr.bf16.mxu0 %v3187
          %3470 = vmatpush1.bf16.msra.mxu0 %v3186
          %3471 = vmatprep.subr.bf16.mxu0 %v3189
          %3472 = vmatpush1.bf16.msra.mxu0 %v3188
          %3473 = vmatprep.subr.bf16.mxu0 %v3191
          %3474 = vmatpush1.bf16.msra.mxu0 %v3190
          %3475 = vmatprep.subr.bf16.mxu0 %v3193
          %3476 = vmatpush1.bf16.msra.mxu0 %v3192
          %3477 = vmatprep.subr.bf16.mxu0 %v3195
          %3478 = vmatpush1.bf16.msra.mxu0 %v3194
          %3479 = vmatprep.subr.bf16.mxu0 %v3197
          %3480 = vmatpush1.bf16.msra.mxu0 %v3196
          %3481 = vmatprep.subr.bf16.mxu0 %v3199
          %3482 = vmatpush1.bf16.msra.mxu0 %v3198
          %3483 = vmatprep.subr.bf16.mxu0 %v3201
          %3484 = vmatpush1.bf16.msra.mxu0 %v3200
          %3485 = vmatprep.subr.bf16.mxu0 %v3203
          %3486 = vmatpush1.bf16.msra.mxu0 %v3202
          %3487 = vmatprep.subr.bf16.mxu0 %v3205
          %3488 = vmatpush1.bf16.msra.mxu0 %v3204
          %3489 = vmatprep.subr.bf16.mxu0 %v3207
          %3490 = vmatpush1.bf16.msra.mxu0 %v3206
          %3491 = vmatprep.subr.bf16.mxu0 %v3209
          %3492 = vmatpush1.bf16.msra.mxu0 %v3208
          %3493 = vmatprep.subr.bf16.mxu0 %v3211
          %3494 = vmatpush1.bf16.msra.mxu0 %v3210
          %3495 = vmatprep.subr.bf16.mxu0 %v3213
          %3496 = vmatpush1.bf16.msra.mxu0 %v3212
          %3497 = vmatprep.mubr.bf16.mxu0 %v2561
          %3498 = vmatmul.mubr.bf16.gmra.mrb[0].mxu0 %v2560
          %v3499 = vpop.f32.mrb[0].mxu0
          %v3500 = vadd.f32 %v3459, %v3499
          %v3501 = vpop.f32.mrb[0].mxu0
          %v3502 = vadd.f32 %v3461, %v3501
          %v3503 = vpop.f32.mrb[0].mxu0
          %v3504 = vpop.f32.mrb[0].mxu0
          %3505 = vdwg.mxu0
          %v3506 = vmax.f32 %v3500, 0.0
          %v3507 = vmax.f32 %v3502, 0.0
          %v3508 = vpack.c.bf16 %v3506, %v3506
          %v3509 = vpack.c.bf16 %v3507, %v3507
          %v3510 = vld [vmem:[#allocation12] sm:$0xf]
          %v3511 = vld [vmem:[#allocation12 + $0x4] sm:$0xf]
          %v3512 = vld [vmem:[#allocation12 + $0x8] sm:$0xf]
          %v3513 = vld [vmem:[#allocation12 + $0xc] sm:$0xf]
          %v3514 = vld [vmem:[#allocation12 + $0x10] sm:$0xf]
          %v3515 = vld [vmem:[#allocation12 + $0x14] sm:$0xf]
          %v3516 = vld [vmem:[#allocation12 + $0x18] sm:$0xf]
          %v3517 = vld [vmem:[#allocation12 + $0x1c] sm:$0xf]
          %v3518 = vld [vmem:[#allocation12 + $0x20] sm:$0xf]
          %v3519 = vld [vmem:[#allocation12 + $0x24] sm:$0xf]
          %v3520 = vld [vmem:[#allocation12 + $0x28] sm:$0xf]
          %v3521 = vld [vmem:[#allocation12 + $0x2c] sm:$0xf]
          %v3522 = vld [vmem:[#allocation12 + $0x30] sm:$0xf]
          %v3523 = vld [vmem:[#allocation12 + $0x34] sm:$0xf]
          %v3524 = vld [vmem:[#allocation12 + $0x38] sm:$0xf]
          %v3525 = vld [vmem:[#allocation12 + $0x3c] sm:$0xf]
          %v3526 = vld [vmem:[#allocation12 + $0x40] sm:$0xf]
          %v3527 = vld [vmem:[#allocation12 + $0x44] sm:$0xf]
          %v3528 = vld [vmem:[#allocation12 + $0x48] sm:$0xf]
          %v3529 = vld [vmem:[#allocation12 + $0x4c] sm:$0xf]
          %v3530 = vld [vmem:[#allocation12 + $0x50] sm:$0xf]
          %v3531 = vld [vmem:[#allocation12 + $0x54] sm:$0xf]
          %v3532 = vld [vmem:[#allocation12 + $0x58] sm:$0xf]
          %v3533 = vld [vmem:[#allocation12 + $0x5c] sm:$0xf]
          %v3534 = vld [vmem:[#allocation12 + $0x60] sm:$0xf]
          %v3535 = vld [vmem:[#allocation12 + $0x64] sm:$0xf]
          %v3536 = vld [vmem:[#allocation12 + $0x68] sm:$0xf]
          %v3537 = vld [vmem:[#allocation12 + $0x6c] sm:$0xf]
          %v3538 = vld [vmem:[#allocation12 + $0x70] sm:$0xf]
          %v3539 = vld [vmem:[#allocation12 + $0x74] sm:$0xf]
          %v3540 = vld [vmem:[#allocation12 + $0x78] sm:$0xf]
          %v3541 = vld [vmem:[#allocation12 + $0x7c] sm:$0xf]
          %v3542 = vld [vmem:[#allocation14] sm:$0x1]
          %v3544 = vlaneseq
          %v3545 = vshrl.u32 %v3544, 7
          %v3546 = vsub.s32 0, %v3545
          %v3547 = vrot.slane %v3542, %v3546
          %v3581 = vunpack.c.l.b16 %v3510
          %v3582 = vunpack.c.l.b16 %v3511
          %v3583 = vunpack.c.l.b16 %v3512
          %v3584 = vunpack.c.l.b16 %v3513
          %v3585 = vunpack.c.l.b16 %v3514
          %v3586 = vunpack.c.l.b16 %v3515
          %v3587 = vunpack.c.l.b16 %v3516
          %v3588 = vunpack.c.l.b16 %v3517
          %v3589 = vunpack.c.l.b16 %v3518
          %v3590 = vunpack.c.l.b16 %v3519
          %v3591 = vunpack.c.l.b16 %v3520
          %v3592 = vunpack.c.l.b16 %v3521
          %v3593 = vunpack.c.l.b16 %v3522
          %v3594 = vunpack.c.l.b16 %v3523
          %v3595 = vunpack.c.l.b16 %v3524
          %v3596 = vunpack.c.l.b16 %v3525
          %v3597 = vunpack.c.l.b16 %v3526
          %v3598 = vunpack.c.l.b16 %v3527
          %v3599 = vunpack.c.l.b16 %v3528
          %v3600 = vunpack.c.l.b16 %v3529
          %v3601 = vunpack.c.l.b16 %v3530
          %v3602 = vunpack.c.l.b16 %v3531
          %v3603 = vunpack.c.l.b16 %v3532
          %v3604 = vunpack.c.l.b16 %v3533
          %v3605 = vunpack.c.l.b16 %v3534
          %v3606 = vunpack.c.l.b16 %v3535
          %v3607 = vunpack.c.l.b16 %v3536
          %v3608 = vunpack.c.l.b16 %v3537
          %v3609 = vunpack.c.l.b16 %v3538
          %v3610 = vunpack.c.l.b16 %v3539
          %v3611 = vunpack.c.l.b16 %v3540
          %v3612 = vunpack.c.l.b16 %v3541
          %v3613 = vpack.c.b16 %v3582, %v3581
          %v3614 = vpack.c.b16 %v3584, %v3583
          %v3615 = vpack.c.b16 %v3586, %v3585
          %v3616 = vpack.c.b16 %v3588, %v3587
          %v3617 = vpack.c.b16 %v3590, %v3589
          %v3618 = vpack.c.b16 %v3592, %v3591
          %v3619 = vpack.c.b16 %v3594, %v3593
          %v3620 = vpack.c.b16 %v3596, %v3595
          %v3621 = vpack.c.b16 %v3598, %v3597
          %v3622 = vpack.c.b16 %v3600, %v3599
          %v3623 = vpack.c.b16 %v3602, %v3601
          %v3624 = vpack.c.b16 %v3604, %v3603
          %v3625 = vpack.c.b16 %v3606, %v3605
          %v3626 = vpack.c.b16 %v3608, %v3607
          %v3627 = vpack.c.b16 %v3610, %v3609
          %v3628 = vpack.c.b16 %v3612, %v3611
          %3645 = vmatprep.subr.bf16.mxu0 0
          %3646 = vmatpush1.bf16.msra.mxu0 %v3613
          %3647 = vmatprep.subr.bf16.mxu0 0
          %3648 = vmatpush1.bf16.msra.mxu0 %v3614
          %3649 = vmatprep.subr.bf16.mxu0 0
          %3650 = vmatpush1.bf16.msra.mxu0 %v3615
          %3651 = vmatprep.subr.bf16.mxu0 0
          %3652 = vmatpush1.bf16.msra.mxu0 %v3616
          %3653 = vmatprep.subr.bf16.mxu0 0
          %3654 = vmatpush1.bf16.msra.mxu0 %v3617
          %3655 = vmatprep.subr.bf16.mxu0 0
          %3656 = vmatpush1.bf16.msra.mxu0 %v3618
          %3657 = vmatprep.subr.bf16.mxu0 0
          %3658 = vmatpush1.bf16.msra.mxu0 %v3619
          %3659 = vmatprep.subr.bf16.mxu0 0
          %3660 = vmatpush1.bf16.msra.mxu0 %v3620
          %3661 = vmatprep.subr.bf16.mxu0 0
          %3662 = vmatpush1.bf16.msra.mxu0 %v3621
          %3663 = vmatprep.subr.bf16.mxu0 0
          %3664 = vmatpush1.bf16.msra.mxu0 %v3622
          %3665 = vmatprep.subr.bf16.mxu0 0
          %3666 = vmatpush1.bf16.msra.mxu0 %v3623
          %3667 = vmatprep.subr.bf16.mxu0 0
          %3668 = vmatpush1.bf16.msra.mxu0 %v3624
          %3669 = vmatprep.subr.bf16.mxu0 0
          %3670 = vmatpush1.bf16.msra.mxu0 %v3625
          %3671 = vmatprep.subr.bf16.mxu0 0
          %3672 = vmatpush1.bf16.msra.mxu0 %v3626
          %3673 = vmatprep.subr.bf16.mxu0 0
          %3674 = vmatpush1.bf16.msra.mxu0 %v3627
          %3675 = vmatprep.subr.bf16.mxu0 0
          %3676 = vmatpush1.bf16.msra.mxu0 %v3628
          %3677 = vmatprep.mubr.bf16.mxu0 %v3509
          %3678 = vmatmul.mubr.bf16.gmra.mrb[0].mxu0 %v3508
          %v3679 = vpop.f32.mrb[0].mxu0
          %v3680 = vadd.f32 %v3547, %v3679
          %v3681 = vpop.f32.mrb[0].mxu0
          %v3682 = vpop.f32.mrb[0].mxu0
          %v3683 = vpop.f32.mrb[0].mxu0
          %3684 = vdwg.mxu0
          %v3685 = vmax.f32 %v3680, 0.0
          %v3686 = vpack.c.bf16 %v3685, %v3685
          %v3687 = vld [vmem:[#allocation15] sm:$0xf]
          %v3688 = vld [vmem:[#allocation15 + $0x4] sm:$0xf]
          %v3689 = vld [vmem:[#allocation15 + $0x8] sm:$0xf]
          %v3690 = vld [vmem:[#allocation15 + $0xc] sm:$0xf]
          %v3691 = vld [vmem:[#allocation15 + $0x10] sm:$0xf]
          %v3692 = vld [vmem:[#allocation15 + $0x14] sm:$0xf]
          %v3693 = vld [vmem:[#allocation15 + $0x18] sm:$0xf]
          %v3694 = vld [vmem:[#allocation15 + $0x1c] sm:$0xf]
          %v3695 = vld [vmem:[#allocation15 + $0x20] sm:$0xf]
          %v3696 = vld [vmem:[#allocation15 + $0x24] sm:$0xf]
          %v3697 = vld [vmem:[#allocation15 + $0x28] sm:$0xf]
          %v3698 = vld [vmem:[#allocation15 + $0x2c] sm:$0xf]
          %v3699 = vld [vmem:[#allocation15 + $0x30] sm:$0xf]
          %v3700 = vld [vmem:[#allocation15 + $0x34] sm:$0xf]
          %v3701 = vld [vmem:[#allocation15 + $0x38] sm:$0xf]
          %v3702 = vld [vmem:[#allocation15 + $0x3c] sm:$0xf]
          %v3703 = vld [vmem:[#allocation17] sm:$0x1]
          %v3705 = vlaneseq
          %v3706 = vshrl.u32 %v3705, 7
          %v3707 = vsub.s32 0, %v3706
          %v3708 = vrot.slane %v3703, %v3707
          %v3726 = vunpack.c.l.b16 %v3687
          %v3727 = vunpack.c.l.b16 %v3688
          %v3728 = vunpack.c.l.b16 %v3689
          %v3729 = vunpack.c.l.b16 %v3690
          %v3730 = vunpack.c.l.b16 %v3691
          %v3731 = vunpack.c.l.b16 %v3692
          %v3732 = vunpack.c.l.b16 %v3693
          %v3733 = vunpack.c.l.b16 %v3694
          %v3734 = vunpack.c.l.b16 %v3695
          %v3735 = vunpack.c.l.b16 %v3696
          %v3736 = vunpack.c.l.b16 %v3697
          %v3737 = vunpack.c.l.b16 %v3698
          %v3738 = vunpack.c.l.b16 %v3699
          %v3739 = vunpack.c.l.b16 %v3700
          %v3740 = vunpack.c.l.b16 %v3701
          %v3741 = vunpack.c.l.b16 %v3702
          %v3742 = vpack.c.b16 %v3727, %v3726
          %v3743 = vpack.c.b16 %v3729, %v3728
          %v3744 = vpack.c.b16 %v3731, %v3730
          %v3745 = vpack.c.b16 %v3733, %v3732
          %v3746 = vpack.c.b16 %v3735, %v3734
          %v3747 = vpack.c.b16 %v3737, %v3736
          %v3748 = vpack.c.b16 %v3739, %v3738
          %v3749 = vpack.c.b16 %v3741, %v3740
          %3758 = vmatprep.subr.bf16.mxu0 0
          %3759 = vmatpush1.bf16.msra.mxu0 %v3742
          %3760 = vmatprep.subr.bf16.mxu0 0
          %3761 = vmatpush1.bf16.msra.mxu0 %v3743
          %3762 = vmatprep.subr.bf16.mxu0 0
          %3763 = vmatpush1.bf16.msra.mxu0 %v3744
          %3764 = vmatprep.subr.bf16.mxu0 0
          %3765 = vmatpush1.bf16.msra.mxu0 %v3745
          %3766 = vmatprep.subr.bf16.mxu0 0
          %3767 = vmatpush1.bf16.msra.mxu0 %v3746
          %3768 = vmatprep.subr.bf16.mxu0 0
          %3769 = vmatpush1.bf16.msra.mxu0 %v3747
          %3770 = vmatprep.subr.bf16.mxu0 0
          %3771 = vmatpush1.bf16.msra.mxu0 %v3748
          %3772 = vmatprep.subr.bf16.mxu0 0
          %3773 = vmatpush1.bf16.msra.mxu0 %v3749
          %3774 = vmatprep.subr.bf16.mxu0 0
          %3775 = vmatpush1.bf16.msra.mxu0 0
          %3776 = vmatprep.subr.bf16.mxu0 0
          %3777 = vmatpush1.bf16.msra.mxu0 0
          %3778 = vmatprep.subr.bf16.mxu0 0
          %3779 = vmatpush1.bf16.msra.mxu0 0
          %3780 = vmatprep.subr.bf16.mxu0 0
          %3781 = vmatpush1.bf16.msra.mxu0 0
          %3782 = vmatprep.subr.bf16.mxu0 0
          %3783 = vmatpush1.bf16.msra.mxu0 0
          %3784 = vmatprep.subr.bf16.mxu0 0
          %3785 = vmatpush1.bf16.msra.mxu0 0
          %3786 = vmatprep.subr.bf16.mxu0 0
          %3787 = vmatpush1.bf16.msra.mxu0 0
          %3788 = vmatprep.subr.bf16.mxu0 0
          %3789 = vmatpush1.bf16.msra.mxu0 0
          %3790 = vmatprep.mubr.bf16.mxu0 0
          %3791 = vmatmul.mubr.bf16.gmra.mrb[0].mxu0 %v3686
          %v3792 = vpop.f32.mrb[0].mxu0
          %v3793 = vadd.f32 %v3708, %v3792
          %v3794 = vpop.f32.mrb[0].mxu0
          %v3795 = vpop.f32.mrb[0].mxu0
          %v3796 = vpop.f32.mrb[0].mxu0
          %3797 = vdwg.mxu0
          %v3798 = vmax.f32 %v3793, 0.0
          %v3799 = vpack.c.bf16 %v3798, %v3798
          %v3800 = vld [vmem:[#allocation18] sm:$0xf]
          %v3801 = vld [vmem:[#allocation18 + $0x4] sm:$0xf]
          %v3802 = vld [vmem:[#allocation18 + $0x8] sm:$0xf]
          %v3803 = vld [vmem:[#allocation18 + $0xc] sm:$0xf]
          %v3804 = vld [vmem:[#allocation18 + $0x10] sm:$0xf]
          %v3805 = vld [vmem:[#allocation18 + $0x14] sm:$0xf]
          %v3806 = vld [vmem:[#allocation18 + $0x18] sm:$0xf]
          %v3807 = vld [vmem:[#allocation18 + $0x1c] sm:$0xf]
          %v3808 = vld [vmem:[#allocation18 + $0x20] sm:$0xf]
          %v3809 = vld [vmem:[#allocation18 + $0x24] sm:$0xf]
          %v3810 = vld [vmem:[#allocation18 + $0x28] sm:$0xf]
          %v3811 = vld [vmem:[#allocation18 + $0x2c] sm:$0xf]
          %v3812 = vld [vmem:[#allocation18 + $0x30] sm:$0xf]
          %v3813 = vld [vmem:[#allocation18 + $0x34] sm:$0xf]
          %v3814 = vld [vmem:[#allocation18 + $0x38] sm:$0xf]
          %v3815 = vld [vmem:[#allocation18 + $0x3c] sm:$0xf]
          %v3816 = vld [vmem:[#allocation20] sm:$0x1]
          %v3818 = vlaneseq
          %v3819 = vshrl.u32 %v3818, 7
          %v3820 = vsub.s32 0, %v3819
          %v3821 = vrot.slane %v3816, %v3820
          %v3839 = vunpack.c.l.b16 %v3800
          %v3840 = vunpack.c.l.b16 %v3801
          %v3841 = vunpack.c.l.b16 %v3802
          %v3842 = vunpack.c.l.b16 %v3803
          %v3843 = vunpack.c.l.b16 %v3804
          %v3844 = vunpack.c.l.b16 %v3805
          %v3845 = vunpack.c.l.b16 %v3806
          %v3846 = vunpack.c.l.b16 %v3807
          %v3847 = vunpack.c.l.b16 %v3808
          %v3848 = vunpack.c.l.b16 %v3809
          %v3849 = vunpack.c.l.b16 %v3810
          %v3850 = vunpack.c.l.b16 %v3811
          %v3851 = vunpack.c.l.b16 %v3812
          %v3852 = vunpack.c.l.b16 %v3813
          %v3853 = vunpack.c.l.b16 %v3814
          %v3854 = vunpack.c.l.b16 %v3815
          %v3855 = vpack.c.b16 %v3840, %v3839
          %v3856 = vpack.c.b16 %v3842, %v3841
          %v3857 = vpack.c.b16 %v3844, %v3843
          %v3858 = vpack.c.b16 %v3846, %v3845
          %v3859 = vpack.c.b16 %v3848, %v3847
          %v3860 = vpack.c.b16 %v3850, %v3849
          %v3861 = vpack.c.b16 %v3852, %v3851
          %v3862 = vpack.c.b16 %v3854, %v3853
          %3871 = vmatprep.subr.bf16.mxu0 0
          %3872 = vmatpush1.bf16.msra.mxu0 %v3855
          %3873 = vmatprep.subr.bf16.mxu0 0
          %3874 = vmatpush1.bf16.msra.mxu0 %v3856
          %3875 = vmatprep.subr.bf16.mxu0 0
          %3876 = vmatpush1.bf16.msra.mxu0 %v3857
          %3877 = vmatprep.subr.bf16.mxu0 0
          %3878 = vmatpush1.bf16.msra.mxu0 %v3858
          %3879 = vmatprep.subr.bf16.mxu0 0
          %3880 = vmatpush1.bf16.msra.mxu0 %v3859
          %3881 = vmatprep.subr.bf16.mxu0 0
          %3882 = vmatpush1.bf16.msra.mxu0 %v3860
          %3883 = vmatprep.subr.bf16.mxu0 0
          %3884 = vmatpush1.bf16.msra.mxu0 %v3861
          %3885 = vmatprep.subr.bf16.mxu0 0
          %3886 = vmatpush1.bf16.msra.mxu0 %v3862
          %3887 = vmatprep.subr.bf16.mxu0 0
          %3888 = vmatpush1.bf16.msra.mxu0 0
          %3889 = vmatprep.subr.bf16.mxu0 0
          %3890 = vmatpush1.bf16.msra.mxu0 0
          %3891 = vmatprep.subr.bf16.mxu0 0
          %3892 = vmatpush1.bf16.msra.mxu0 0
          %3893 = vmatprep.subr.bf16.mxu0 0
          %3894 = vmatpush1.bf16.msra.mxu0 0
          %3895 = vmatprep.subr.bf16.mxu0 0
          %3896 = vmatpush1.bf16.msra.mxu0 0
          %3897 = vmatprep.subr.bf16.mxu0 0
          %3898 = vmatpush1.bf16.msra.mxu0 0
          %3899 = vmatprep.subr.bf16.mxu0 0
          %3900 = vmatpush1.bf16.msra.mxu0 0
          %3901 = vmatprep.subr.bf16.mxu0 0
          %3902 = vmatpush1.bf16.msra.mxu0 0
          %3903 = vmatprep.mubr.bf16.mxu0 0
          %3904 = vmatmul.mubr.bf16.gmra.mrb[0].mxu0 %v3799
          %v3905 = vpop.f32.mrb[0].mxu0
          %v3906 = vadd.f32 %v3821, %v3905
          %v3907 = vpop.f32.mrb[0].mxu0
          %v3908 = vpop.f32.mrb[0].mxu0
          %v3909 = vpop.f32.mrb[0].mxu0
          %3910 = vdwg.mxu0
          %3911 = vst [vmem:[#allocation21] sm:$0xff] %v3906
        $region116: #{tpu_custom_call.1} parent=63 // pred_fallthru
          _
        // Predicated region
        $region117: #{tpu_custom_call.1} parent=63 // pred_check
          %p3912 = pneg %p306
        $region118: #{tpu_custom_call.1} parent=63 // pred_check_branch
          %3914 = sbr.rel (%p3912) target = $region120
        $region119: #{tpu_custom_call.1} parent=63 // pred_region
          %s3916 = ssub.s32 128, 128
          %3917 = vsyncadd [#allocation5], %s3916
          %s3918 = smul.addr %s37, 128
          %s3919 = scalar_lea.hbm %s11, %s3918
          %s3921 = sshll.u32 [#allocation21], 4
          %s3922 = int_to_ptr.vmem [resolvable:$true] %s3921
          %3924 = dma.vmem_to_hbm [thread:$0]  %s3922, 128, %s3919, [#allocation5]
        $region120: #{tpu_custom_call.1} parent=63 // pred_fallthru
          _
        // Predicated region
        $region121: #{tpu_custom_call.1} parent=63 // pred_check
          %p3925 = pneg %p306
        $region122: #{tpu_custom_call.1} parent=63 // pred_check_branch
          %3927 = sbr.rel (%p3925) target = $region124
        $region123: #{tpu_custom_call.1} parent=63 // pred_region
          %3928 = dma.done [#allocation5], 128
        $region124: #{tpu_custom_call.1} parent=63 // pred_fallthru
          _
      $region64: #{tpu_custom_call.1} parent=5 // pred_fallthru
        _
      %p3929 = scmp.le.s32.totalorder 2, %s28
      // Predicated region
      $region125: #{tpu_custom_call.1} parent=5 // pred_check
        %p3930 = pneg %p3929
      $region126: #{tpu_custom_call.1} parent=5 // pred_check_branch
        %3932 = sbr.rel (%p3930) target = $region128
      $region127: #{tpu_custom_call.1} parent=5 // pred_region
        %s3933 = ssub.s32 %s28, 2
      $region128: #{tpu_custom_call.1} parent=5 // pred_fallthru
        _
    $region6: #{tpu_custom_call.1} parent=1 // loop_footer
      %s32 = sadd.s32 1, %s28
    $region7: #{tpu_custom_call.1} parent=1 // loop_footer_branch
      %27 = sbr.rel target = $region3
    $region8: #{tpu_custom_call.1} parent=1 // loop_exit
      _
    %3934 = vsyncpa [#allocation4], 1
    %s3935 = scalar_lea.sflag [#allocation4], 1
    %3936 = vsyncpa %s3935, 1
    %3937 = vsyncpa [#allocation7], 1
    %s3938 = scalar_lea.sflag [#allocation7], 1
    %3939 = vsyncpa %s3938, 1
    %3940 = vsyncpa [#allocation10], 1
    %3941 = vsyncpa [#allocation13], 1
    %3942 = vsyncpa [#allocation16], 1
    %3943 = vsyncpa [#allocation19], 1
    %3944 = vsyncpa [#allocation5], 1
    %s3945 = scalar_lea.sflag [#allocation5], 1
    %3946 = vsyncpa %s3945, 1

// kernel: tpu_custom_call.1
$region0: #{tpu_custom_call.1}
  #allocation0 [shape = 'u32[]', space=smem, size = 0x4, offset = 0x4, fixed_abs, tag = 'smem constant byte address 0x4 - core index']
  #allocation1 [shape = 'u32[144,128]{1,0:T(1,128)}', space=vmem, size = 0x12000, scoped, tag = 'internal scratch']
  #allocation2 [shape = 'f32[8,1024]{1,0:T(8,128)}', space=vmem, size = 0x8000, scoped, tag = 'scratch operand']
  %s0 = inlined_call_operand.hbm [shape: f32[8,2048], index: 0, kind: input, shape index: {}]
  %s1 = inlined_call_operand.hbm [shape: bf16[2048,1024], index: 1, kind: input, shape index: {}]
  %s2 = inlined_call_operand.hbm [shape: f32[1,1024], index: 2, kind: input, shape index: {}]
  %s3 = inlined_call_operand.hbm [shape: bf16[1024,256], index: 3, kind: input, shape index: {}]
  %s4 = inlined_call_operand.hbm [shape: f32[1,256], index: 4, kind: input, shape index: {}]
  %s5 = inlined_call_operand.hbm [shape: bf16[256,128], index: 5, kind: input, shape index: {}]
  %s6 = inlined_call_operand.hbm [shape: f32[1,128], index: 6, kind: input, shape index: {}]
  %s7 = inlined_call_operand.hbm [shape: bf16[128,128], index: 7, kind: input, shape index: {}]
  %s8 = inlined_call_operand.hbm [shape: f32[1,128], index: 8, kind: input, shape index: {}]
  %s9 = inlined_call_operand.hbm [shape: bf16[128,128], index: 9, kind: input, shape index: {}]
  %s10 = inlined_call_operand.hbm [shape: f32[1,128], index: 10, kind: input, shape index: {}]
  %s11 = inlined_call_operand.hbm [shape: f32[8,128], index: 11, kind: output, shape index: {}]
  %s12 = sld [smem:[#allocation0]]
  $region129: #{tpu_custom_call.1} parent=0
    _
  %s14 = ssub.s32 1, %s12
  %s15 = scalar_select 0, %s14, %s12
  $region1: #{tpu_custom_call.1} parent=0
    #allocation3 [shape = 'u8[32768]{0}', space=vmem, size = 0x8000, scoped, tag = 'input window, operand 0']
    #allocation4 [shape = 's32[2]{0}', space=sflag, size = 0x8, scoped, tag = 'scoped memory for tpu_custom_call.1']
    #allocation5 [shape = 's32[2]{0}', space=sflag, size = 0x8, scoped, tag = 'scoped memory for tpu_custom_call.1']
    #allocation6 [shape = 'u8[2097152]{0}', space=vmem, size = 0x200000, scoped, tag = 'input window, operand 1']
    #allocation7 [shape = 's32[2]{0}', space=sflag, size = 0x8, scoped, tag = 'scoped memory for tpu_custom_call.1']
    #allocation8 [shape = 'u8[4096]{0}', space=vmem, size = 0x1000, scoped, tag = 'input window, operand 2, single buffered']
    #allocation9 [shape = 'u8[524288]{0}', space=vmem, size = 0x80000, scoped, tag = 'input window, operand 3, single buffered']
    #allocation10 [shape = 's32[1]{0}', space=sflag, size = 0x4, scoped, tag = 'scoped memory for tpu_custom_call.1']
    #allocation11 [shape = 'u8[1024]{0}', space=vmem, size = 0x400, scoped, tag = 'input window, operand 4, single buffered']
    #allocation12 [shape = 'u8[65536]{0}', space=vmem, size = 0x10000, scoped, tag = 'input window, operand 5, single buffered']
    #allocation13 [shape = 's32[1]{0}', space=sflag, size = 0x4, scoped, tag = 'scoped memory for tpu_custom_call.1']
    #allocation14 [shape = 'u8[512]{0}', space=vmem, size = 0x400, scoped, tag = 'input window, operand 6, single buffered']
    #allocation15 [shape = 'u8[32768]{0}', space=vmem, size = 0x8000, scoped, tag = 'input window, operand 7, single buffered']
    #allocation16 [shape = 's32[1]{0}', space=sflag, size = 0x4, scoped, tag = 'scoped memory for tpu_custom_call.1']
    #allocation17 [shape = 'u8[512]{0}', space=vmem, size = 0x400, scoped, tag = 'input window, operand 8, single buffered']
    #allocation18 [shape = 'u8[32768]{0}', space=vmem, size = 0x8000, scoped, tag = 'input window, operand 9, single buffered']
    #allocation19 [shape = 's32[1]{0}', space=sflag, size = 0x4, scoped, tag = 'scoped memory for tpu_custom_call.1']
    #allocation20 [shape = 'u8[512]{0}', space=vmem, size = 0x400, scoped, tag = 'input window, operand 10, single buffered']
    #allocation21 [shape = 'u8[4096]{0}', space=vmem, size = 0x1000, scoped, tag = 'output window, operand 0, single buffered']
    %16 = vsyncpa [#allocation4], 0
    %s17 = scalar_lea.sflag [#allocation4], 1
    %18 = vsyncpa %s17, 0
    %19 = vsyncpa [#allocation7], 0
    %s20 = scalar_lea.sflag [#allocation7], 1
    %21 = vsyncpa %s20, 0
    %22 = vsyncpa [#allocation10], 0
    %23 = vsyncpa [#allocation13], 0
    %24 = vsyncpa [#allocation16], 0
    %25 = vsyncpa [#allocation19], 0
    %26 = vsyncpa [#allocation5], 0
    loop: start=0, step=1, limit=6
    $region2: #{tpu_custom_call.1} parent=1 // loop_pre_header
      _
    $region3: #{tpu_custom_call.1} parent=1 // loop_header
      %s28 = sphi 0, %s32
      %p29 = scmp.ge.s32.totalorder %s28, 6
      %s35 = sphi 0, %s47
      %s36 = sphi 0, %s43
      %s37 = sphi 0, %s35
      %s38 = sphi 0, %s36
      %s39 = sphi 0, %s37
      %s40 = sphi 0, %s38
      %s52 = sphi 0, %s54
      %s55 = sphi 0, %s52
      %s56 = sphi 0, %s55
      %s72 = sphi 0, %s56
      %s78 = sphi 0, %s80
      %s81 = sphi 0, %s78
      %s82 = sphi 0, %s81
      %s98 = sphi 0, %s82
      %s102 = sphi 0, %s102
      %s104 = sphi 0, %s102
      %s105 = sphi 0, %s104
      %s119 = sphi 0, %s105
      %s123 = sphi 0, %s123
      %s125 = sphi 0, %s123
      %s126 = sphi 0, %s125
      %s140 = sphi 0, %s126
      %s144 = sphi 0, %s144
      %s146 = sphi 0, %s144
      %s147 = sphi 0, %s146
      %s161 = sphi 0, %s147
      %s165 = sphi 0, %s165
      %s167 = sphi 0, %s165
      %s168 = sphi 0, %s167
      %s182 = sphi 0, %s168
      %s186 = sphi 0, %s186
      %s188 = sphi 0, %s186
      %s189 = sphi 0, %s188
      %s203 = sphi 0, %s189
      %s207 = sphi 0, %s207
      %s209 = sphi 0, %s207
      %s210 = sphi 0, %s209
      %s224 = sphi 0, %s210
      %s228 = sphi 0, %s228
      %s230 = sphi 0, %s228
      %s231 = sphi 0, %s230
      %s245 = sphi 0, %s231
      %s249 = sphi 0, %s249
      %s251 = sphi 0, %s249
      %s252 = sphi 0, %s251
      %s266 = sphi 0, %s252
      %s270 = sphi 0, %s270
      %s272 = sphi 0, %s270
      %s273 = sphi 0, %s272
      %s287 = sphi 0, %s273
      %s293 = sphi 0, %s295
      %s296 = sphi 0, %s293
      %s297 = sphi 0, %s296
      %s313 = sphi 0, %s297
    $region4: #{tpu_custom_call.1} parent=1 // loop_header_branch
      %31 = sbr.rel (%p29) target = $region8
    $region5: #{tpu_custom_call.1} parent=1 // loop_body
      %s33 = ssub.s32 %s28, 1
      %s34 = ssub.s32 %s28, 2
      %s41 = sadd.s32 1, %s36
      %p42 = scmp.ge.s32.totalorder %s41, 4
      %s43 = scalar_select %p42, 0, %s41
      %s44 = sadd.s32 1, %s35
      %s45 = scalar_select %p42, %s44, %s35
      %p46 = scmp.ge.s32.totalorder %s45, 1
      %s47 = scalar_select %p46, 0, %s45
      %s48 = ssub.s32 %s35, %s47
      %s49 = ssub.s32 %s36, %s43
      %s50 = sor.u32 %s48, %s49
      %p51 = scmp.eq.s32.totalorder %s50, 0
      %s53 = sadd.s32 %s52, 1
      %s54 = scalar_select %p51, %s52, %s53
      %p57 = pneg %p51
      %p58 = scmp.eq.s32.totalorder %s28, 3
      %p59 = por %p57, %p58
      %p60 = scmp.ne.s32.totalorder %s52, %s55
      %p61 = scmp.eq.s32.totalorder %s28, 0
      %p62 = por %p60, %p61
      %p63 = scmp.ne.s32.totalorder %s52, %s55
      %p64 = scmp.eq.s32.totalorder %s33, 3
      %p65 = por %p63, %p64
      %p66 = scmp.ne.s32.totalorder %s55, %s56
      %p67 = scmp.eq.s32.totalorder %s33, 0
      %p68 = por %p66, %p67
      %p69 = scmp.ne.s32.totalorder %s55, %s56
      %p70 = scmp.eq.s32.totalorder %s34, 3
      %p71 = por %p69, %p70
      %p73 = scmp.ne.s32.totalorder %s56, %s72
      %p74 = scmp.eq.s32.totalorder %s34, 0
      %p75 = por %p73, %p74
      %s76 = ssub.s32 %s36, %s43
      %p77 = scmp.eq.s32.totalorder %s76, 0
      %s79 = sadd.s32 %s78, 1
      %s80 = scalar_select %p77, %s78, %s79
      %p83 = pneg %p77
      %p84 = scmp.eq.s32.totalorder %s28, 3
      %p85 = por %p83, %p84
      %p86 = scmp.ne.s32.totalorder %s78, %s81
      %p87 = scmp.eq.s32.totalorder %s28, 0
      %p88 = por %p86, %p87
      %p89 = scmp.ne.s32.totalorder %s78, %s81
      %p90 = scmp.eq.s32.totalorder %s33, 3
      %p91 = por %p89, %p90
      %p92 = scmp.ne.s32.totalorder %s81, %s82
      %p93 = scmp.eq.s32.totalorder %s33, 0
      %p94 = por %p92, %p93
      %p95 = scmp.ne.s32.totalorder %s81, %s82
      %p96 = scmp.eq.s32.totalorder %s34, 3
      %p97 = por %p95, %p96
      %p99 = scmp.ne.s32.totalorder %s82, %s98
      %p100 = scmp.eq.s32.totalorder %s34, 0
      %p101 = por %p99, %p100
      %s103 = sadd.s32 %s102, 1
      %p106 = scmp.eq.s32.totalorder %s28, 3
      %p107 = scmp.ne.s32.totalorder %s102, %s104
      %p108 = scmp.eq.s32.totalorder %s28, 0
      %p109 = por %p107, %p108
      %p110 = scmp.ne.s32.totalorder %s102, %s104
      %p111 = scmp.eq.s32.totalorder %s33, 3
      %p112 = por %p110, %p111
      %p113 = scmp.ne.s32.totalorder %s104, %s105
      %p114 = scmp.eq.s32.totalorder %s33, 0
      %p115 = por %p113, %p114
      %p116 = scmp.ne.s32.totalorder %s104, %s105
      %p117 = scmp.eq.s32.totalorder %s34, 3
      %p118 = por %p116, %p117
      %p120 = scmp.ne.s32.totalorder %s105, %s119
      %p121 = scmp.eq.s32.totalorder %s34, 0
      %p122 = por %p120, %p121
      %s124 = sadd.s32 %s123, 1
      %p127 = scmp.eq.s32.totalorder %s28, 3
      %p128 = scmp.ne.s32.totalorder %s123, %s125
      %p129 = scmp.eq.s32.totalorder %s28, 0
      %p130 = por %p128, %p129
      %p131 = scmp.ne.s32.totalorder %s123, %s125
      %p132 = scmp.eq.s32.totalorder %s33, 3
      %p133 = por %p131, %p132
      %p134 = scmp.ne.s32.totalorder %s125, %s126
      %p135 = scmp.eq.s32.totalorder %s33, 0
      %p136 = por %p134, %p135
      %p137 = scmp.ne.s32.totalorder %s125, %s126
      %p138 = scmp.eq.s32.totalorder %s34, 3
      %p139 = por %p137, %p138
      %p141 = scmp.ne.s32.totalorder %s126, %s140
      %p142 = scmp.eq.s32.totalorder %s34, 0
      %p143 = por %p141, %p142
      %s145 = sadd.s32 %s144, 1
      %p148 = scmp.eq.s32.totalorder %s28, 3
      %p149 = scmp.ne.s32.totalorder %s144, %s146
      %p150 = scmp.eq.s32.totalorder %s28, 0
      %p151 = por %p149, %p150
      %p152 = scmp.ne.s32.totalorder %s144, %s146
      %p153 = scmp.eq.s32.totalorder %s33, 3
      %p154 = por %p152, %p153
      %p155 = scmp.ne.s32.totalorder %s146, %s147
      %p156 = scmp.eq.s32.totalorder %s33, 0
      %p157 = por %p155, %p156
      %p158 = scmp.ne.s32.totalorder %s146, %s147
      %p159 = scmp.eq.s32.totalorder %s34, 3
      %p160 = por %p158, %p159
      %p162 = scmp.ne.s32.totalorder %s147, %s161
      %p163 = scmp.eq.s32.totalorder %s34, 0
      %p164 = por %p162, %p163
      %s166 = sadd.s32 %s165, 1
      %p169 = scmp.eq.s32.totalorder %s28, 3
      %p170 = scmp.ne.s32.totalorder %s165, %s167
      %p171 = scmp.eq.s32.totalorder %s28, 0
      %p172 = por %p170, %p171
      %p173 = scmp.ne.s32.totalorder %s165, %s167
      %p174 = scmp.eq.s32.totalorder %s33, 3
      %p175 = por %p173, %p174
      %p176 = scmp.ne.s32.totalorder %s167, %s168
      %p177 = scmp.eq.s32.totalorder %s33, 0
      %p178 = por %p176, %p177
      %p179 = scmp.ne.s32.totalorder %s167, %s168
      %p180 = scmp.eq.s32.totalorder %s34, 3
      %p181 = por %p179, %p180
      %p183 = scmp.ne.s32.totalorder %s168, %s182
      %p184 = scmp.eq.s32.totalorder %s34, 0
      %p185 = por %p183, %p184
      %s187 = sadd.s32 %s186, 1
      %p190 = scmp.eq.s32.totalorder %s28, 3
      %p191 = scmp.ne.s32.totalorder %s186, %s188
      %p192 = scmp.eq.s32.totalorder %s28, 0
      %p193 = por %p191, %p192
      %p194 = scmp.ne.s32.totalorder %s186, %s188
      %p195 = scmp.eq.s32.totalorder %s33, 3
      %p196 = por %p194, %p195
      %p197 = scmp.ne.s32.totalorder %s188, %s189
      %p198 = scmp.eq.s32.totalorder %s33, 0
      %p199 = por %p197, %p198
      %p200 = scmp.ne.s32.totalorder %s188, %s189
      %p201 = scmp.eq.s32.totalorder %s34, 3
      %p202 = por %p200, %p201
      %p204 = scmp.ne.s32.totalorder %s189, %s203
      %p205 = scmp.eq.s32.totalorder %s34, 0
      %p206 = por %p204, %p205
      %s208 = sadd.s32 %s207, 1
      %p211 = scmp.eq.s32.totalorder %s28, 3
      %p212 = scmp.ne.s32.totalorder %s207, %s209
      %p213 = scmp.eq.s32.totalorder %s28, 0
      %p214 = por %p212, %p213
      %p215 = scmp.ne.s32.totalorder %s207, %s209
      %p216 = scmp.eq.s32.totalorder %s33, 3
      %p217 = por %p215, %p216
      %p218 = scmp.ne.s32.totalorder %s209, %s210
      %p219 = scmp.eq.s32.totalorder %s33, 0
      %p220 = por %p218, %p219
      %p221 = scmp.ne.s32.totalorder %s209, %s210
      %p222 = scmp.eq.s32.totalorder %s34, 3
      %p223 = por %p221, %p222
      %p225 = scmp.ne.s32.totalorder %s210, %s224
      %p226 = scmp.eq.s32.totalorder %s34, 0
      %p227 = por %p225, %p226
      %s229 = sadd.s32 %s228, 1
      %p232 = scmp.eq.s32.totalorder %s28, 3
      %p233 = scmp.ne.s32.totalorder %s228, %s230
      %p234 = scmp.eq.s32.totalorder %s28, 0
      %p235 = por %p233, %p234
      %p236 = scmp.ne.s32.totalorder %s228, %s230
      %p237 = scmp.eq.s32.totalorder %s33, 3
      %p238 = por %p236, %p237
      %p239 = scmp.ne.s32.totalorder %s230, %s231
      %p240 = scmp.eq.s32.totalorder %s33, 0
      %p241 = por %p239, %p240
      %p242 = scmp.ne.s32.totalorder %s230, %s231
      %p243 = scmp.eq.s32.totalorder %s34, 3
      %p244 = por %p242, %p243
      %p246 = scmp.ne.s32.totalorder %s231, %s245
      %p247 = scmp.eq.s32.totalorder %s34, 0
      %p248 = por %p246, %p247
      %s250 = sadd.s32 %s249, 1
      %p253 = scmp.eq.s32.totalorder %s28, 3
      %p254 = scmp.ne.s32.totalorder %s249, %s251
      %p255 = scmp.eq.s32.totalorder %s28, 0
      %p256 = por %p254, %p255
      %p257 = scmp.ne.s32.totalorder %s249, %s251
      %p258 = scmp.eq.s32.totalorder %s33, 3
      %p259 = por %p257, %p258
      %p260 = scmp.ne.s32.totalorder %s251, %s252
      %p261 = scmp.eq.s32.totalorder %s33, 0
      %p262 = por %p260, %p261
      %p263 = scmp.ne.s32.totalorder %s251, %s252
      %p264 = scmp.eq.s32.totalorder %s34, 3
      %p265 = por %p263, %p264
      %p267 = scmp.ne.s32.totalorder %s252, %s266
      %p268 = scmp.eq.s32.totalorder %s34, 0
      %p269 = por %p267, %p268
      %s271 = sadd.s32 %s270, 1
      %p274 = scmp.eq.s32.totalorder %s28, 3
      %p275 = scmp.ne.s32.totalorder %s270, %s272
      %p276 = scmp.eq.s32.totalorder %s28, 0
      %p277 = por %p275, %p276
      %p278 = scmp.ne.s32.totalorder %s270, %s272
      %p279 = scmp.eq.s32.totalorder %s33, 3
      %p280 = por %p278, %p279
      %p281 = scmp.ne.s32.totalorder %s272, %s273
      %p282 = scmp.eq.s32.totalorder %s33, 0
      %p283 = por %p281, %p282
      %p284 = scmp.ne.s32.totalorder %s272, %s273
      %p285 = scmp.eq.s32.totalorder %s34, 3
      %p286 = por %p284, %p285
      %p288 = scmp.ne.s32.totalorder %s273, %s287
      %p289 = scmp.eq.s32.totalorder %s34, 0
      %p290 = por %p288, %p289
      %s291 = ssub.s32 %s35, %s47
      %p292 = scmp.eq.s32.totalorder %s291, 0
      %s294 = sadd.s32 %s293, 1
      %s295 = scalar_select %p292, %s293, %s294
      %p298 = pneg %p292
      %p299 = scmp.eq.s32.totalorder %s28, 3
      %p300 = por %p298, %p299
      %p301 = scmp.ne.s32.totalorder %s293, %s296
      %p302 = scmp.eq.s32.totalorder %s28, 0
      %p303 = por %p301, %p302
      %p304 = scmp.ne.s32.totalorder %s293, %s296
      %p305 = scmp.eq.s32.totalorder %s33, 3
      %p306 = por %p304, %p305
      %p307 = scmp.ne.s32.totalorder %s296, %s297
      %p308 = scmp.eq.s32.totalorder %s33, 0
      %p309 = por %p307, %p308
      %p310 = scmp.ne.s32.totalorder %s296, %s297
      %p311 = scmp.eq.s32.totalorder %s34, 3
      %p312 = por %p310, %p311
      %p314 = scmp.ne.s32.totalorder %s297, %s313
      %p315 = scmp.eq.s32.totalorder %s34, 0
      %p316 = por %p314, %p315
      %p317 = scmp.le.s32.totalorder 1, %s28
      %p318 = scmp.lt.s32.totalorder %s28, 5
      %p319 = pnand %p317, %p318
      %p320 = pneg %p319
      // Predicated region
      $region9: #{tpu_custom_call.1} parent=5 // pred_check
        _
      $region10: #{tpu_custom_call.1} parent=5 // pred_check_branch
        %322 = sbr.rel (%p319) target = $region12
      $region11: #{tpu_custom_call.1} parent=5 // pred_region
        %s323 = ssub.s32 %s28, 1
        // Predicated region
        $region13: #{tpu_custom_call.1} parent=11 // pred_check
          %p324 = pneg %p115
        $region14: #{tpu_custom_call.1} parent=11 // pred_check_branch
          %326 = sbr.rel (%p324) target = $region16
        $region15: #{tpu_custom_call.1} parent=11 // pred_region
          %s328 = ssub.s32 128, 128
          %329 = vsyncadd [#allocation7], %s328
          %s331 = sshll.u32 [#allocation8], 4
          %s332 = int_to_ptr.vmem [resolvable:$true] %s331
          %334 = dma.hbm_to_vmem [thread:$0]  %s2, 128, %s332, [#allocation7]
        $region16: #{tpu_custom_call.1} parent=11 // pred_fallthru
          _
        // Predicated region
        $region17: #{tpu_custom_call.1} parent=11 // pred_check
          %p335 = pneg %p136
        $region18: #{tpu_custom_call.1} parent=11 // pred_check_branch
          %337 = sbr.rel (%p335) target = $region20
        $region19: #{tpu_custom_call.1} parent=11 // pred_region
          %s339 = ssub.s32 16384, 16384
          %340 = vsyncadd [#allocation10], %s339
          %s341 = sshll.u32 [#allocation9], 4
          %s342 = int_to_ptr.vmem [resolvable:$true] %s341
          %347 = dma.hbm_to_vmem [thread:$0]  %s3, 16384, %s342, [#allocation10], 128, 128, 8
        $region20: #{tpu_custom_call.1} parent=11 // pred_fallthru
          _
        // Predicated region
        $region21: #{tpu_custom_call.1} parent=11 // pred_check
          %p348 = pneg %p157
        $region22: #{tpu_custom_call.1} parent=11 // pred_check_branch
          %350 = sbr.rel (%p348) target = $region24
        $region23: #{tpu_custom_call.1} parent=11 // pred_region
          %s352 = ssub.s32 32, 32
          %353 = vsyncadd [#allocation10], %s352
          %s355 = sshll.u32 [#allocation11], 4
          %s356 = int_to_ptr.vmem [resolvable:$true] %s355
          %358 = dma.hbm_to_vmem [thread:$0]  %s4, 32, %s356, [#allocation10]
        $region24: #{tpu_custom_call.1} parent=11 // pred_fallthru
          _
        // Predicated region
        $region25: #{tpu_custom_call.1} parent=11 // pred_check
          %p359 = pneg %p178
        $region26: #{tpu_custom_call.1} parent=11 // pred_check_branch
          %361 = sbr.rel (%p359) target = $region28
        $region27: #{tpu_custom_call.1} parent=11 // pred_region
          %s363 = ssub.s32 2048, 2048
          %364 = vsyncadd [#allocation13], %s363
          %s365 = sshll.u32 [#allocation12], 4
          %s366 = int_to_ptr.vmem [resolvable:$true] %s365
          %371 = dma.hbm_to_vmem [thread:$0]  %s5, 2048, %s366, [#allocation13], 64, 64, 4
        $region28: #{tpu_custom_call.1} parent=11 // pred_fallthru
          _
        // Predicated region
        $region29: #{tpu_custom_call.1} parent=11 // pred_check
          %p372 = pneg %p199
        $region30: #{tpu_custom_call.1} parent=11 // pred_check_branch
          %374 = sbr.rel (%p372) target = $region32
        $region31: #{tpu_custom_call.1} parent=11 // pred_region
          %s376 = ssub.s32 16, 16
          %377 = vsyncadd [#allocation13], %s376
          %s379 = sshll.u32 [#allocation14], 4
          %s380 = int_to_ptr.vmem [resolvable:$true] %s379
          %382 = dma.hbm_to_vmem [thread:$0]  %s6, 16, %s380, [#allocation13]
        $region32: #{tpu_custom_call.1} parent=11 // pred_fallthru
          _
        // Predicated region
        $region33: #{tpu_custom_call.1} parent=11 // pred_check
          %p383 = pneg %p220
        $region34: #{tpu_custom_call.1} parent=11 // pred_check_branch
          %385 = sbr.rel (%p383) target = $region36
        $region35: #{tpu_custom_call.1} parent=11 // pred_region
          %s387 = ssub.s32 1024, 1024
          %388 = vsyncadd [#allocation16], %s387
          %s389 = sshll.u32 [#allocation15], 4
          %s390 = int_to_ptr.vmem [resolvable:$true] %s389
          %395 = dma.hbm_to_vmem [thread:$0]  %s7, 1024, %s390, [#allocation16], 64, 64, 4
        $region36: #{tpu_custom_call.1} parent=11 // pred_fallthru
          _
        // Predicated region
        $region37: #{tpu_custom_call.1} parent=11 // pred_check
          %p396 = pneg %p241
        $region38: #{tpu_custom_call.1} parent=11 // pred_check_branch
          %398 = sbr.rel (%p396) target = $region40
        $region39: #{tpu_custom_call.1} parent=11 // pred_region
          %s400 = ssub.s32 16, 16
          %401 = vsyncadd [#allocation16], %s400
          %s403 = sshll.u32 [#allocation17], 4
          %s404 = int_to_ptr.vmem [resolvable:$true] %s403
          %406 = dma.hbm_to_vmem [thread:$0]  %s8, 16, %s404, [#allocation16]
        $region40: #{tpu_custom_call.1} parent=11 // pred_fallthru
          _
        // Predicated region
        $region41: #{tpu_custom_call.1} parent=11 // pred_check
          %p407 = pneg %p262
        $region42: #{tpu_custom_call.1} parent=11 // pred_check_branch
          %409 = sbr.rel (%p407) target = $region44
        $region43: #{tpu_custom_call.1} parent=11 // pred_region
          %s411 = ssub.s32 1024, 1024
          %412 = vsyncadd [#allocation19], %s411
          %s413 = sshll.u32 [#allocation18], 4
          %s414 = int_to_ptr.vmem [resolvable:$true] %s413
          %419 = dma.hbm_to_vmem [thread:$0]  %s9, 1024, %s414, [#allocation19], 64, 64, 4
        $region44: #{tpu_custom_call.1} parent=11 // pred_fallthru
          _
        // Predicated region
        $region45: #{tpu_custom_call.1} parent=11 // pred_check
          %p420 = pneg %p283
        $region46: #{tpu_custom_call.1} parent=11 // pred_check_branch
          %422 = sbr.rel (%p420) target = $region48
        $region47: #{tpu_custom_call.1} parent=11 // pred_region
          %s424 = ssub.s32 16, 16
          %425 = vsyncadd [#allocation19], %s424
          %s427 = sshll.u32 [#allocation20], 4
          %s428 = int_to_ptr.vmem [resolvable:$true] %s427
          %430 = dma.hbm_to_vmem [thread:$0]  %s10, 16, %s428, [#allocation19]
        $region48: #{tpu_custom_call.1} parent=11 // pred_fallthru
          _
      $region12: #{tpu_custom_call.1} parent=5 // pred_fallthru
        _
      %p431 = scmp.lt.s32.totalorder %s28, 4
      // Predicated region
      $region49: #{tpu_custom_call.1} parent=5 // pred_check
        %p432 = pneg %p431
      $region50: #{tpu_custom_call.1} parent=5 // pred_check_branch
        %434 = sbr.rel (%p432) target = $region52
      $region51: #{tpu_custom_call.1} parent=5 // pred_region
        // Predicated region
        $region53: #{tpu_custom_call.1} parent=51 // pred_check
          %p435 = pneg %p62
        $region54: #{tpu_custom_call.1} parent=51 // pred_check_branch
          %437 = sbr.rel (%p435) target = $region56
        $region55: #{tpu_custom_call.1} parent=51 // pred_region
          %s438 = sand.u32 %s52, 1
          %s439 = scalar_lea.sflag [#allocation4], %s438
          %s440 = sand.u32 %s52, 1
          %s441 = smul.addr %s440, 32
          %s442 = scalar_lea.vmem [#allocation3], %s441
          %s443 = smul.u32 4, %s36
          %s445 = ssub.s32 512, 512
          %446 = vsyncadd %s439, %s445
          %s447 = smul.addr %s35, 16
          %s448 = sadd.s32 %s443, %s447
          %s449 = smul.addr %s448, 128
          %s450 = scalar_lea.hbm %s0, %s449
          %s452 = sshll.u32 %s442, 4
          %s453 = int_to_ptr.vmem [resolvable:$true] %s452
          %455 = dma.hbm_to_vmem [thread:$0]  %s450, 512, %s453, %s439
        $region56: #{tpu_custom_call.1} parent=51 // pred_fallthru
          _
        // Predicated region
        $region57: #{tpu_custom_call.1} parent=51 // pred_check
          %p456 = pneg %p88
        $region58: #{tpu_custom_call.1} parent=51 // pred_check_branch
          %458 = sbr.rel (%p456) target = $region60
        $region59: #{tpu_custom_call.1} parent=51 // pred_region
          %s459 = sand.u32 %s28, 1
          %s460 = scalar_lea.sflag [#allocation7], %s459
          %s461 = sand.u32 %s78, 1
          %s462 = smul.addr %s461, 2048
          %s463 = scalar_lea.vmem [#allocation6], %s462
          %s464 = smul.u32 64, %s36
          %s466 = ssub.s32 32768, 32768
          %467 = vsyncadd %s460, %s466
          %s468 = smul.addr %s464, 8
          %s469 = smul.addr %s468, 64
          %s470 = scalar_lea.hbm %s1, %s469
          %s471 = sshll.u32 %s463, 4
          %s472 = int_to_ptr.vmem [resolvable:$true] %s471
          %477 = dma.hbm_to_vmem [thread:$0]  %s470, 32768, %s472, %s460, 512, 512, 32
        $region60: #{tpu_custom_call.1} parent=51 // pred_fallthru
          _
      $region52: #{tpu_custom_call.1} parent=5 // pred_fallthru
        _
      %p478 = scmp.le.s32.totalorder 1, %s28
      %p479 = scmp.lt.s32.totalorder %s28, 5
      %p480 = pnand %p478, %p479
      %p481 = pneg %p480
      // Predicated region
      $region61: #{tpu_custom_call.1} parent=5 // pred_check
        _
      $region62: #{tpu_custom_call.1} parent=5 // pred_check_branch
        %483 = sbr.rel (%p480) target = $region64
      $region63: #{tpu_custom_call.1} parent=5 // pred_region
        %s484 = ssub.s32 %s28, 1
        %s485 = sand.u32 %s55, 1
        %s486 = scalar_lea.sflag [#allocation4], %s485
        %s487 = sand.u32 %s55, 1
        %s488 = smul.addr %s487, 32
        %s489 = scalar_lea.vmem [#allocation3], %s488
        // Predicated region
        $region65: #{tpu_custom_call.1} parent=63 // pred_check
          %p490 = pneg %p68
        $region66: #{tpu_custom_call.1} parent=63 // pred_check_branch
          %492 = sbr.rel (%p490) target = $region68
        $region67: #{tpu_custom_call.1} parent=63 // pred_region
          %493 = dma.done %s486, 512
        $region68: #{tpu_custom_call.1} parent=63 // pred_fallthru
          _
        %s494 = sand.u32 %s33, 1
        %s495 = scalar_lea.sflag [#allocation7], %s494
        %s496 = sand.u32 %s81, 1
        %s497 = smul.addr %s496, 2048
        %s498 = scalar_lea.vmem [#allocation6], %s497
        // Predicated region
        $region69: #{tpu_custom_call.1} parent=63 // pred_check
          %p499 = pneg %p94
        $region70: #{tpu_custom_call.1} parent=63 // pred_check_branch
          %501 = sbr.rel (%p499) target = $region72
        $region71: #{tpu_custom_call.1} parent=63 // pred_region
          %502 = dma.done %s495, 32768
        $region72: #{tpu_custom_call.1} parent=63 // pred_fallthru
          _
        // Predicated region
        $region73: #{tpu_custom_call.1} parent=63 // pred_check
          %p503 = pneg %p115
        $region74: #{tpu_custom_call.1} parent=63 // pred_check_branch
          %505 = sbr.rel (%p503) target = $region76
        $region75: #{tpu_custom_call.1} parent=63 // pred_region
          %506 = dma.done [#allocation7], 128
        $region76: #{tpu_custom_call.1} parent=63 // pred_fallthru
          _
        // Predicated region
        $region77: #{tpu_custom_call.1} parent=63 // pred_check
          %p507 = pneg %p136
        $region78: #{tpu_custom_call.1} parent=63 // pred_check_branch
          %509 = sbr.rel (%p507) target = $region80
        $region79: #{tpu_custom_call.1} parent=63 // pred_region
          %510 = dma.done [#allocation10], 16384
        $region80: #{tpu_custom_call.1} parent=63 // pred_fallthru
          _
        // Predicated region
        $region81: #{tpu_custom_call.1} parent=63 // pred_check
          %p511 = pneg %p157
        $region82: #{tpu_custom_call.1} parent=63 // pred_check_branch
          %513 = sbr.rel (%p511) target = $region84
        $region83: #{tpu_custom_call.1} parent=63 // pred_region
          %514 = dma.done [#allocation10], 32
        $region84: #{tpu_custom_call.1} parent=63 // pred_fallthru
          _
        // Predicated region
        $region85: #{tpu_custom_call.1} parent=63 // pred_check
          %p515 = pneg %p178
        $region86: #{tpu_custom_call.1} parent=63 // pred_check_branch
          %517 = sbr.rel (%p515) target = $region88
        $region87: #{tpu_custom_call.1} parent=63 // pred_region
          %518 = dma.done [#allocation13], 2048
        $region88: #{tpu_custom_call.1} parent=63 // pred_fallthru
          _
        // Predicated region
        $region89: #{tpu_custom_call.1} parent=63 // pred_check
          %p519 = pneg %p199
        $region90: #{tpu_custom_call.1} parent=63 // pred_check_branch
          %521 = sbr.rel (%p519) target = $region92
        $region91: #{tpu_custom_call.1} parent=63 // pred_region
          %522 = dma.done [#allocation13], 16
        $region92: #{tpu_custom_call.1} parent=63 // pred_fallthru
          _
        // Predicated region
        $region93: #{tpu_custom_call.1} parent=63 // pred_check
          %p523 = pneg %p220
        $region94: #{tpu_custom_call.1} parent=63 // pred_check_branch
          %525 = sbr.rel (%p523) target = $region96
        $region95: #{tpu_custom_call.1} parent=63 // pred_region
          %526 = dma.done [#allocation16], 1024
        $region96: #{tpu_custom_call.1} parent=63 // pred_fallthru
          _
        // Predicated region
        $region97: #{tpu_custom_call.1} parent=63 // pred_check
          %p527 = pneg %p241
        $region98: #{tpu_custom_call.1} parent=63 // pred_check_branch
          %529 = sbr.rel (%p527) target = $region100
        $region99: #{tpu_custom_call.1} parent=63 // pred_region
          %530 = dma.done [#allocation16], 16
        $region100: #{tpu_custom_call.1} parent=63 // pred_fallthru
          _
        // Predicated region
        $region101: #{tpu_custom_call.1} parent=63 // pred_check
          %p531 = pneg %p262
        $region102: #{tpu_custom_call.1} parent=63 // pred_check_branch
          %533 = sbr.rel (%p531) target = $region104
        $region103: #{tpu_custom_call.1} parent=63 // pred_region
          %534 = dma.done [#allocation19], 1024
        $region104: #{tpu_custom_call.1} parent=63 // pred_fallthru
          _
        // Predicated region
        $region105: #{tpu_custom_call.1} parent=63 // pred_check
          %p535 = pneg %p283
        $region106: #{tpu_custom_call.1} parent=63 // pred_check_branch
          %537 = sbr.rel (%p535) target = $region108
        $region107: #{tpu_custom_call.1} parent=63 // pred_region
          %538 = dma.done [#allocation19], 16
        $region108: #{tpu_custom_call.1} parent=63 // pred_fallthru
          _
        %s539 = sand.u32 %s55, 1
        %s540 = scalar_lea.sflag [#allocation4], %s539
        %s541 = sand.u32 %s55, 1
        %s542 = smul.addr %s541, 32
        %s543 = scalar_lea.vmem [#allocation3], %s542
        %p544 = pneg %p68
        %p545 = pneg %p65
        %s546 = sand.u32 %s33, 1
        %s547 = scalar_lea.sflag [#allocation7], %s546
        %s548 = sand.u32 %s81, 1
        %s549 = smul.addr %s548, 2048
        %s550 = scalar_lea.vmem [#allocation6], %s549
        %p551 = pneg %p94
        %p552 = pneg %p91
        %p553 = pneg %p115
        %p554 = pneg %p112
        %p555 = pneg %p136
        %p556 = pneg %p133
        %p557 = pneg %p157
        %p558 = pneg %p154
        %p559 = pneg %p178
        %p560 = pneg %p175
        %p561 = pneg %p199
        %p562 = pneg %p196
        %p563 = pneg %p220
        %p564 = pneg %p217
        %p565 = pneg %p241
        %p566 = pneg %p238
        %p567 = pneg %p262
        %p568 = pneg %p259
        %p569 = pneg %p283
        %p570 = pneg %p280
        %p571 = pneg %p309
        %p572 = pneg %p306
        %s573 = smul.u32 4, %s38
        %s574 = smul.u32 64, %s38
        %p576 = scmp.eq.s32.totalorder %s38, 0
        // Predicated region
        $region109: #{tpu_custom_call.1} parent=63 // pred_check
          %p577 = pneg %p576
        $region110: #{tpu_custom_call.1} parent=63 // pred_check_branch
          %579 = sbr.rel (%p577) target = $region112
        $region111: #{tpu_custom_call.1} parent=63 // pred_region
          %580 = vst [vmem:[#allocation2] sm:$0xff] 0.0
          %581 = vst [vmem:[#allocation2 + $0x8] sm:$0xff] 0.0
          %582 = vst [vmem:[#allocation2 + $0x10] sm:$0xff] 0.0
          %583 = vst [vmem:[#allocation2 + $0x18] sm:$0xff] 0.0
          %584 = vst [vmem:[#allocation2 + $0x20] sm:$0xff] 0.0
          %585 = vst [vmem:[#allocation2 + $0x28] sm:$0xff] 0.0
          %586 = vst [vmem:[#allocation2 + $0x30] sm:$0xff] 0.0
          %587 = vst [vmem:[#allocation2 + $0x38] sm:$0xff] 0.0
        $region112: #{tpu_custom_call.1} parent=63 // pred_fallthru
          _
        %v588 = vld [vmem:[#allocation2] sm:$0xff]
        %v589 = vld [vmem:[#allocation2 + $0x8] sm:$0xff]
        %v590 = vld [vmem:[#allocation2 + $0x10] sm:$0xff]
        %v591 = vld [vmem:[#allocation2 + $0x18] sm:$0xff]
        %v592 = vld [vmem:[#allocation2 + $0x20] sm:$0xff]
        %v593 = vld [vmem:[#allocation2 + $0x28] sm:$0xff]
        %v594 = vld [vmem:[#allocation2 + $0x30] sm:$0xff]
        %v595 = vld [vmem:[#allocation2 + $0x38] sm:$0xff]
        %v596 = vld [vmem:[%s489] sm:$0xff]
        %v597 = vld [vmem:[%s489 + $0x8] sm:$0xff]
        %v598 = vld [vmem:[%s489 + $0x10] sm:$0xff]
        %v599 = vld [vmem:[%s489 + $0x18] sm:$0xff]
        %v600 = vpack.c.bf16 %v596, %v596
        %v601 = vpack.c.bf16 %v597, %v597
        %v602 = vpack.c.bf16 %v598, %v598
        %v603 = vpack.c.bf16 %v599, %v599
        %v604 = vld [vmem:[%s498] sm:$0xff]
        %v605 = vld [vmem:[%s498 + $0x8] sm:$0xff]
        %v606 = vld [vmem:[%s498 + $0x10] sm:$0xff]
        %v607 = vld [vmem:[%s498 + $0x18] sm:$0xff]
        %v608 = vld [vmem:[%s498 + $0x20] sm:$0xff]
        %v609 = vld [vmem:[%s498 + $0x28] sm:$0xff]
        %v610 = vld [vmem:[%s498 + $0x30] sm:$0xff]
        %v611 = vld [vmem:[%s498 + $0x38] sm:$0xff]
        %v612 = vld [vmem:[%s498 + $0x40] sm:$0xff]
        %v613 = vld [vmem:[%s498 + $0x48] sm:$0xff]
        %v614 = vld [vmem:[%s498 + $0x50] sm:$0xff]
        %v615 = vld [vmem:[%s498 + $0x58] sm:$0xff]
        %v616 = vld [vmem:[%s498 + $0x60] sm:$0xff]
        %v617 = vld [vmem:[%s498 + $0x68] sm:$0xff]
        %v618 = vld [vmem:[%s498 + $0x70] sm:$0xff]
        %v619 = vld [vmem:[%s498 + $0x78] sm:$0xff]
        %v620 = vld [vmem:[%s498 + $0x80] sm:$0xff]
        %v621 = vld [vmem:[%s498 + $0x88] sm:$0xff]
        %v622 = vld [vmem:[%s498 + $0x90] sm:$0xff]
        %v623 = vld [vmem:[%s498 + $0x98] sm:$0xff]
        %v624 = vld [vmem:[%s498 + $0xa0] sm:$0xff]
        %v625 = vld [vmem:[%s498 + $0xa8] sm:$0xff]
        %v626 = vld [vmem:[%s498 + $0xb0] sm:$0xff]
        %v627 = vld [vmem:[%s498 + $0xb8] sm:$0xff]
        %v628 = vld [vmem:[%s498 + $0xc0] sm:$0xff]
        %v629 = vld [vmem:[%s498 + $0xc8] sm:$0xff]
        %v630 = vld [vmem:[%s498 + $0xd0] sm:$0xff]
        %v631 = vld [vmem:[%s498 + $0xd8] sm:$0xff]
        %v632 = vld [vmem:[%s498 + $0xe0] sm:$0xff]
        %v633 = vld [vmem:[%s498 + $0xe8] sm:$0xff]
        %v634 = vld [vmem:[%s498 + $0xf0] sm:$0xff]
        %v635 = vld [vmem:[%s498 + $0xf8] sm:$0xff]
        %v636 = vld [vmem:[%s498 + $0x100] sm:$0xff]
        %v637 = vld [vmem:[%s498 + $0x108] sm:$0xff]
        %v638 = vld [vmem:[%s498 + $0x110] sm:$0xff]
        %v639 = vld [vmem:[%s498 + $0x118] sm:$0xff]
        %v640 = vld [vmem:[%s498 + $0x120] sm:$0xff]
        %v641 = vld [vmem:[%s498 + $0x128] sm:$0xff]
        %v642 = vld [vmem:[%s498 + $0x130] sm:$0xff]
        %v643 = vld [vmem:[%s498 + $0x138] sm:$0xff]
        %v644 = vld [vmem:[%s498 + $0x140] sm:$0xff]
        %v645 = vld [vmem:[%s498 + $0x148] sm:$0xff]
        %v646 = vld [vmem:[%s498 + $0x150] sm:$0xff]
        %v647 = vld [vmem:[%s498 + $0x158] sm:$0xff]
        %v648 = vld [vmem:[%s498 + $0x160] sm:$0xff]
        %v649 = vld [vmem:[%s498 + $0x168] sm:$0xff]
        %v650 = vld [vmem:[%s498 + $0x170] sm:$0xff]
        %v651 = vld [vmem:[%s498 + $0x178] sm:$0xff]
        %v652 = vld [vmem:[%s498 + $0x180] sm:$0xff]
        %v653 = vld [vmem:[%s498 + $0x188] sm:$0xff]
        %v654 = vld [vmem:[%s498 + $0x190] sm:$0xff]
        %v655 = vld [vmem:[%s498 + $0x198] sm:$0xff]
        %v656 = vld [vmem:[%s498 + $0x1a0] sm:$0xff]
        %v657 = vld [vmem:[%s498 + $0x1a8] sm:$0xff]
        %v658 = vld [vmem:[%s498 + $0x1b0] sm:$0xff]
        %v659 = vld [vmem:[%s498 + $0x1b8] sm:$0xff]
        %v660 = vld [vmem:[%s498 + $0x1c0] sm:$0xff]
        %v661 = vld [vmem:[%s498 + $0x1c8] sm:$0xff]
        %v662 = vld [vmem:[%s498 + $0x1d0] sm:$0xff]
        %v663 = vld [vmem:[%s498 + $0x1d8] sm:$0xff]
        %v664 = vld [vmem:[%s498 + $0x1e0] sm:$0xff]
        %v665 = vld [vmem:[%s498 + $0x1e8] sm:$0xff]
        %v666 = vld [vmem:[%s498 + $0x1f0] sm:$0xff]
        %v667 = vld [vmem:[%s498 + $0x1f8] sm:$0xff]
        %v668 = vld [vmem:[%s498 + $0x200] sm:$0xff]
        %v669 = vld [vmem:[%s498 + $0x208] sm:$0xff]
        %v670 = vld [vmem:[%s498 + $0x210] sm:$0xff]
        %v671 = vld [vmem:[%s498 + $0x218] sm:$0xff]
        %v672 = vld [vmem:[%s498 + $0x220] sm:$0xff]
        %v673 = vld [vmem:[%s498 + $0x228] sm:$0xff]
        %v674 = vld [vmem:[%s498 + $0x230] sm:$0xff]
        %v675 = vld [vmem:[%s498 + $0x238] sm:$0xff]
        %v676 = vld [vmem:[%s498 + $0x240] sm:$0xff]
        %v677 = vld [vmem:[%s498 + $0x248] sm:$0xff]
        %v678 = vld [vmem:[%s498 + $0x250] sm:$0xff]
        %v679 = vld [vmem:[%s498 + $0x258] sm:$0xff]
        %v680 = vld [vmem:[%s498 + $0x260] sm:$0xff]
        %v681 = vld [vmem:[%s498 + $0x268] sm:$0xff]
        %v682 = vld [vmem:[%s498 + $0x270] sm:$0xff]
        %v683 = vld [vmem:[%s498 + $0x278] sm:$0xff]
        %v684 = vld [vmem:[%s498 + $0x280] sm:$0xff]
        %v685 = vld [vmem:[%s498 + $0x288] sm:$0xff]
        %v686 = vld [vmem:[%s498 + $0x290] sm:$0xff]
        %v687 = vld [vmem:[%s498 + $0x298] sm:$0xff]
        %v688 = vld [vmem:[%s498 + $0x2a0] sm:$0xff]
        %v689 = vld [vmem:[%s498 + $0x2a8] sm:$0xff]
        %v690 = vld [vmem:[%s498 + $0x2b0] sm:$0xff]
        %v691 = vld [vmem:[%s498 + $0x2b8] sm:$0xff]
        %v692 = vld [vmem:[%s498 + $0x2c0] sm:$0xff]
        %v693 = vld [vmem:[%s498 + $0x2c8] sm:$0xff]
        %v694 = vld [vmem:[%s498 + $0x2d0] sm:$0xff]
        %v695 = vld [vmem:[%s498 + $0x2d8] sm:$0xff]
        %v696 = vld [vmem:[%s498 + $0x2e0] sm:$0xff]
        %v697 = vld [vmem:[%s498 + $0x2e8] sm:$0xff]
        %v698 = vld [vmem:[%s498 + $0x2f0] sm:$0xff]
        %v699 = vld [vmem:[%s498 + $0x2f8] sm:$0xff]
        %v700 = vld [vmem:[%s498 + $0x300] sm:$0xff]
        %v701 = vld [vmem:[%s498 + $0x308] sm:$0xff]
        %v702 = vld [vmem:[%s498 + $0x310] sm:$0xff]
        %v703 = vld [vmem:[%s498 + $0x318] sm:$0xff]
        %v704 = vld [vmem:[%s498 + $0x320] sm:$0xff]
        %v705 = vld [vmem:[%s498 + $0x328] sm:$0xff]
        %v706 = vld [vmem:[%s498 + $0x330] sm:$0xff]
        %v707 = vld [vmem:[%s498 + $0x338] sm:$0xff]
        %v708 = vld [vmem:[%s498 + $0x340] sm:$0xff]
        %v709 = vld [vmem:[%s498 + $0x348] sm:$0xff]
        %v710 = vld [vmem:[%s498 + $0x350] sm:$0xff]
        %v711 = vld [vmem:[%s498 + $0x358] sm:$0xff]
        %v712 = vld [vmem:[%s498 + $0x360] sm:$0xff]
        %v713 = vld [vmem:[%s498 + $0x368] sm:$0xff]
        %v714 = vld [vmem:[%s498 + $0x370] sm:$0xff]
        %v715 = vld [vmem:[%s498 + $0x378] sm:$0xff]
        %v716 = vld [vmem:[%s498 + $0x380] sm:$0xff]
        %v717 = vld [vmem:[%s498 + $0x388] sm:$0xff]
        %v718 = vld [vmem:[%s498 + $0x390] sm:$0xff]
        %v719 = vld [vmem:[%s498 + $0x398] sm:$0xff]
        %v720 = vld [vmem:[%s498 + $0x3a0] sm:$0xff]
        %v721 = vld [vmem:[%s498 + $0x3a8] sm:$0xff]
        %v722 = vld [vmem:[%s498 + $0x3b0] sm:$0xff]
        %v723 = vld [vmem:[%s498 + $0x3b8] sm:$0xff]
        %v724 = vld [vmem:[%s498 + $0x3c0] sm:$0xff]
        %v725 = vld [vmem:[%s498 + $0x3c8] sm:$0xff]
        %v726 = vld [vmem:[%s498 + $0x3d0] sm:$0xff]
        %v727 = vld [vmem:[%s498 + $0x3d8] sm:$0xff]
        %v728 = vld [vmem:[%s498 + $0x3e0] sm:$0xff]
        %v729 = vld [vmem:[%s498 + $0x3e8] sm:$0xff]
        %v730 = vld [vmem:[%s498 + $0x3f0] sm:$0xff]
        %v731 = vld [vmem:[%s498 + $0x3f8] sm:$0xff]
        %v732 = vld [vmem:[%s498 + $0x400] sm:$0xff]
        %v733 = vld [vmem:[%s498 + $0x408] sm:$0xff]
        %v734 = vld [vmem:[%s498 + $0x410] sm:$0xff]
        %v735 = vld [vmem:[%s498 + $0x418] sm:$0xff]
        %v736 = vld [vmem:[%s498 + $0x420] sm:$0xff]
        %v737 = vld [vmem:[%s498 + $0x428] sm:$0xff]
        %v738 = vld [vmem:[%s498 + $0x430] sm:$0xff]
        %v739 = vld [vmem:[%s498 + $0x438] sm:$0xff]
        %v740 = vld [vmem:[%s498 + $0x440] sm:$0xff]
        %v741 = vld [vmem:[%s498 + $0x448] sm:$0xff]
        %v742 = vld [vmem:[%s498 + $0x450] sm:$0xff]
        %v743 = vld [vmem:[%s498 + $0x458] sm:$0xff]
        %v744 = vld [vmem:[%s498 + $0x460] sm:$0xff]
        %v745 = vld [vmem:[%s498 + $0x468] sm:$0xff]
        %v746 = vld [vmem:[%s498 + $0x470] sm:$0xff]
        %v747 = vld [vmem:[%s498 + $0x478] sm:$0xff]
        %v748 = vld [vmem:[%s498 + $0x480] sm:$0xff]
        %v749 = vld [vmem:[%s498 + $0x488] sm:$0xff]
        %v750 = vld [vmem:[%s498 + $0x490] sm:$0xff]
        %v751 = vld [vmem:[%s498 + $0x498] sm:$0xff]
        %v752 = vld [vmem:[%s498 + $0x4a0] sm:$0xff]
        %v753 = vld [vmem:[%s498 + $0x4a8] sm:$0xff]
        %v754 = vld [vmem:[%s498 + $0x4b0] sm:$0xff]
        %v755 = vld [vmem:[%s498 + $0x4b8] sm:$0xff]
        %v756 = vld [vmem:[%s498 + $0x4c0] sm:$0xff]
        %v757 = vld [vmem:[%s498 + $0x4c8] sm:$0xff]
        %v758 = vld [vmem:[%s498 + $0x4d0] sm:$0xff]
        %v759 = vld [vmem:[%s498 + $0x4d8] sm:$0xff]
        %v760 = vld [vmem:[%s498 + $0x4e0] sm:$0xff]
        %v761 = vld [vmem:[%s498 + $0x4e8] sm:$0xff]
        %v762 = vld [vmem:[%s498 + $0x4f0] sm:$0xff]
        %v763 = vld [vmem:[%s498 + $0x4f8] sm:$0xff]
        %v764 = vld [vmem:[%s498 + $0x500] sm:$0xff]
        %v765 = vld [vmem:[%s498 + $0x508] sm:$0xff]
        %v766 = vld [vmem:[%s498 + $0x510] sm:$0xff]
        %v767 = vld [vmem:[%s498 + $0x518] sm:$0xff]
        %v768 = vld [vmem:[%s498 + $0x520] sm:$0xff]
        %v769 = vld [vmem:[%s498 + $0x528] sm:$0xff]
        %v770 = vld [vmem:[%s498 + $0x530] sm:$0xff]
        %v771 = vld [vmem:[%s498 + $0x538] sm:$0xff]
        %v772 = vld [vmem:[%s498 + $0x540] sm:$0xff]
        %v773 = vld [vmem:[%s498 + $0x548] sm:$0xff]
        %v774 = vld [vmem:[%s498 + $0x550] sm:$0xff]
        %v775 = vld [vmem:[%s498 + $0x558] sm:$0xff]
        %v776 = vld [vmem:[%s498 + $0x560] sm:$0xff]
        %v777 = vld [vmem:[%s498 + $0x568] sm:$0xff]
        %v778 = vld [vmem:[%s498 + $0x570] sm:$0xff]
        %v779 = vld [vmem:[%s498 + $0x578] sm:$0xff]
        %v780 = vld [vmem:[%s498 + $0x580] sm:$0xff]
        %v781 = vld [vmem:[%s498 + $0x588] sm:$0xff]
        %v782 = vld [vmem:[%s498 + $0x590] sm:$0xff]
        %v783 = vld [vmem:[%s498 + $0x598] sm:$0xff]
        %v784 = vld [vmem:[%s498 + $0x5a0] sm:$0xff]
        %v785 = vld [vmem:[%s498 + $0x5a8] sm:$0xff]
        %v786 = vld [vmem:[%s498 + $0x5b0] sm:$0xff]
        %v787 = vld [vmem:[%s498 + $0x5b8] sm:$0xff]
        %v788 = vld [vmem:[%s498 + $0x5c0] sm:$0xff]
        %v789 = vld [vmem:[%s498 + $0x5c8] sm:$0xff]
        %v790 = vld [vmem:[%s498 + $0x5d0] sm:$0xff]
        %v791 = vld [vmem:[%s498 + $0x5d8] sm:$0xff]
        %v792 = vld [vmem:[%s498 + $0x5e0] sm:$0xff]
        %v793 = vld [vmem:[%s498 + $0x5e8] sm:$0xff]
        %v794 = vld [vmem:[%s498 + $0x5f0] sm:$0xff]
        %v795 = vld [vmem:[%s498 + $0x5f8] sm:$0xff]
        %v796 = vld [vmem:[%s498 + $0x600] sm:$0xff]
        %v797 = vld [vmem:[%s498 + $0x608] sm:$0xff]
        %v798 = vld [vmem:[%s498 + $0x610] sm:$0xff]
        %v799 = vld [vmem:[%s498 + $0x618] sm:$0xff]
        %v800 = vld [vmem:[%s498 + $0x620] sm:$0xff]
        %v801 = vld [vmem:[%s498 + $0x628] sm:$0xff]
        %v802 = vld [vmem:[%s498 + $0x630] sm:$0xff]
        %v803 = vld [vmem:[%s498 + $0x638] sm:$0xff]
        %v804 = vld [vmem:[%s498 + $0x640] sm:$0xff]
        %v805 = vld [vmem:[%s498 + $0x648] sm:$0xff]
        %v806 = vld [vmem:[%s498 + $0x650] sm:$0xff]
        %v807 = vld [vmem:[%s498 + $0x658] sm:$0xff]
        %v808 = vld [vmem:[%s498 + $0x660] sm:$0xff]
        %v809 = vld [vmem:[%s498 + $0x668] sm:$0xff]
        %v810 = vld [vmem:[%s498 + $0x670] sm:$0xff]
        %v811 = vld [vmem:[%s498 + $0x678] sm:$0xff]
        %v812 = vld [vmem:[%s498 + $0x680] sm:$0xff]
        %v813 = vld [vmem:[%s498 + $0x688] sm:$0xff]
        %v814 = vld [vmem:[%s498 + $0x690] sm:$0xff]
        %v815 = vld [vmem:[%s498 + $0x698] sm:$0xff]
        %v816 = vld [vmem:[%s498 + $0x6a0] sm:$0xff]
        %v817 = vld [vmem:[%s498 + $0x6a8] sm:$0xff]
        %v818 = vld [vmem:[%s498 + $0x6b0] sm:$0xff]
        %v819 = vld [vmem:[%s498 + $0x6b8] sm:$0xff]
        %v820 = vld [vmem:[%s498 + $0x6c0] sm:$0xff]
        %v821 = vld [vmem:[%s498 + $0x6c8] sm:$0xff]
        %v822 = vld [vmem:[%s498 + $0x6d0] sm:$0xff]
        %v823 = vld [vmem:[%s498 + $0x6d8] sm:$0xff]
        %v824 = vld [vmem:[%s498 + $0x6e0] sm:$0xff]
        %v825 = vld [vmem:[%s498 + $0x6e8] sm:$0xff]
        %v826 = vld [vmem:[%s498 + $0x6f0] sm:$0xff]
        %v827 = vld [vmem:[%s498 + $0x6f8] sm:$0xff]
        %v828 = vld [vmem:[%s498 + $0x700] sm:$0xff]
        %v829 = vld [vmem:[%s498 + $0x708] sm:$0xff]
        %v830 = vld [vmem:[%s498 + $0x710] sm:$0xff]
        %v831 = vld [vmem:[%s498 + $0x718] sm:$0xff]
        %v832 = vld [vmem:[%s498 + $0x720] sm:$0xff]
        %v833 = vld [vmem:[%s498 + $0x728] sm:$0xff]
        %v834 = vld [vmem:[%s498 + $0x730] sm:$0xff]
        %v835 = vld [vmem:[%s498 + $0x738] sm:$0xff]
        %v836 = vld [vmem:[%s498 + $0x740] sm:$0xff]
        %v837 = vld [vmem:[%s498 + $0x748] sm:$0xff]
        %v838 = vld [vmem:[%s498 + $0x750] sm:$0xff]
        %v839 = vld [vmem:[%s498 + $0x758] sm:$0xff]
        %v840 = vld [vmem:[%s498 + $0x760] sm:$0xff]
        %v841 = vld [vmem:[%s498 + $0x768] sm:$0xff]
        %v842 = vld [vmem:[%s498 + $0x770] sm:$0xff]
        %v843 = vld [vmem:[%s498 + $0x778] sm:$0xff]
        %v844 = vld [vmem:[%s498 + $0x780] sm:$0xff]
        %v845 = vld [vmem:[%s498 + $0x788] sm:$0xff]
        %v846 = vld [vmem:[%s498 + $0x790] sm:$0xff]
        %v847 = vld [vmem:[%s498 + $0x798] sm:$0xff]
        %v848 = vld [vmem:[%s498 + $0x7a0] sm:$0xff]
        %v849 = vld [vmem:[%s498 + $0x7a8] sm:$0xff]
        %v850 = vld [vmem:[%s498 + $0x7b0] sm:$0xff]
        %v851 = vld [vmem:[%s498 + $0x7b8] sm:$0xff]
        %v852 = vld [vmem:[%s498 + $0x7c0] sm:$0xff]
        %v853 = vld [vmem:[%s498 + $0x7c8] sm:$0xff]
        %v854 = vld [vmem:[%s498 + $0x7d0] sm:$0xff]
        %v855 = vld [vmem:[%s498 + $0x7d8] sm:$0xff]
        %v856 = vld [vmem:[%s498 + $0x7e0] sm:$0xff]
        %v857 = vld [vmem:[%s498 + $0x7e8] sm:$0xff]
        %v858 = vld [vmem:[%s498 + $0x7f0] sm:$0xff]
        %v859 = vld [vmem:[%s498 + $0x7f8] sm:$0xff]
        %v1116 = vunpack.c.l.b16 %v604
        %v1117 = vunpack.c.h.b16 %v604
        %v1118 = vunpack.c.l.b16 %v605
        %v1119 = vunpack.c.h.b16 %v605
        %v1120 = vunpack.c.l.b16 %v606
        %v1121 = vunpack.c.h.b16 %v606
        %v1122 = vunpack.c.l.b16 %v607
        %v1123 = vunpack.c.h.b16 %v607
        %v1124 = vunpack.c.l.b16 %v608
        %v1125 = vunpack.c.h.b16 %v608
        %v1126 = vunpack.c.l.b16 %v609
        %v1127 = vunpack.c.h.b16 %v609
        %v1128 = vunpack.c.l.b16 %v610
        %v1129 = vunpack.c.h.b16 %v610
        %v1130 = vunpack.c.l.b16 %v611
        %v1131 = vunpack.c.h.b16 %v611
        %v1132 = vunpack.c.l.b16 %v612
        %v1133 = vunpack.c.h.b16 %v612
        %v1134 = vunpack.c.l.b16 %v613
        %v1135 = vunpack.c.h.b16 %v613
        %v1136 = vunpack.c.l.b16 %v614
        %v1137 = vunpack.c.h.b16 %v614
        %v1138 = vunpack.c.l.b16 %v615
        %v1139 = vunpack.c.h.b16 %v615
        %v1140 = vunpack.c.l.b16 %v616
        %v1141 = vunpack.c.h.b16 %v616
        %v1142 = vunpack.c.l.b16 %v617
        %v1143 = vunpack.c.h.b16 %v617
        %v1144 = vunpack.c.l.b16 %v618
        %v1145 = vunpack.c.h.b16 %v618
        %v1146 = vunpack.c.l.b16 %v619
        %v1147 = vunpack.c.h.b16 %v619
        %v1148 = vunpack.c.l.b16 %v620
        %v1149 = vunpack.c.h.b16 %v620
        %v1150 = vunpack.c.l.b16 %v621
        %v1151 = vunpack.c.h.b16 %v621
        %v1152 = vunpack.c.l.b16 %v622
        %v1153 = vunpack.c.h.b16 %v622
        %v1154 = vunpack.c.l.b16 %v623
        %v1155 = vunpack.c.h.b16 %v623
        %v1156 = vunpack.c.l.b16 %v624
        %v1157 = vunpack.c.h.b16 %v624
        %v1158 = vunpack.c.l.b16 %v625
        %v1159 = vunpack.c.h.b16 %v625
        %v1160 = vunpack.c.l.b16 %v626
        %v1161 = vunpack.c.h.b16 %v626
        %v1162 = vunpack.c.l.b16 %v627
        %v1163 = vunpack.c.h.b16 %v627
        %v1164 = vunpack.c.l.b16 %v628
        %v1165 = vunpack.c.h.b16 %v628
        %v1166 = vunpack.c.l.b16 %v629
        %v1167 = vunpack.c.h.b16 %v629
        %v1168 = vunpack.c.l.b16 %v630
        %v1169 = vunpack.c.h.b16 %v630
        %v1170 = vunpack.c.l.b16 %v631
        %v1171 = vunpack.c.h.b16 %v631
        %v1172 = vunpack.c.l.b16 %v632
        %v1173 = vunpack.c.h.b16 %v632
        %v1174 = vunpack.c.l.b16 %v633
        %v1175 = vunpack.c.h.b16 %v633
        %v1176 = vunpack.c.l.b16 %v634
        %v1177 = vunpack.c.h.b16 %v634
        %v1178 = vunpack.c.l.b16 %v635
        %v1179 = vunpack.c.h.b16 %v635
        %v1180 = vunpack.c.l.b16 %v636
        %v1181 = vunpack.c.h.b16 %v636
        %v1182 = vunpack.c.l.b16 %v637
        %v1183 = vunpack.c.h.b16 %v637
        %v1184 = vunpack.c.l.b16 %v638
        %v1185 = vunpack.c.h.b16 %v638
        %v1186 = vunpack.c.l.b16 %v639
        %v1187 = vunpack.c.h.b16 %v639
        %v1188 = vunpack.c.l.b16 %v640
        %v1189 = vunpack.c.h.b16 %v640
        %v1190 = vunpack.c.l.b16 %v641
        %v1191 = vunpack.c.h.b16 %v641
        %v1192 = vunpack.c.l.b16 %v642
        %v1193 = vunpack.c.h.b16 %v642
        %v1194 = vunpack.c.l.b16 %v643
        %v1195 = vunpack.c.h.b16 %v643
        %v1196 = vunpack.c.l.b16 %v644
        %v1197 = vunpack.c.h.b16 %v644
        %v1198 = vunpack.c.l.b16 %v645
        %v1199 = vunpack.c.h.b16 %v645
        %v1200 = vunpack.c.l.b16 %v646
        %v1201 = vunpack.c.h.b16 %v646
        %v1202 = vunpack.c.l.b16 %v647
        %v1203 = vunpack.c.h.b16 %v647
        %v1204 = vunpack.c.l.b16 %v648
        %v1205 = vunpack.c.h.b16 %v648
        %v1206 = vunpack.c.l.b16 %v649
        %v1207 = vunpack.c.h.b16 %v649
        %v1208 = vunpack.c.l.b16 %v650
        %v1209 = vunpack.c.h.b16 %v650
        %v1210 = vunpack.c.l.b16 %v651
        %v1211 = vunpack.c.h.b16 %v651
        %v1212 = vunpack.c.l.b16 %v652
        %v1213 = vunpack.c.h.b16 %v652
        %v1214 = vunpack.c.l.b16 %v653
        %v1215 = vunpack.c.h.b16 %v653
        %v1216 = vunpack.c.l.b16 %v654
        %v1217 = vunpack.c.h.b16 %v654
        %v1218 = vunpack.c.l.b16 %v655
        %v1219 = vunpack.c.h.b16 %v655
        %v1220 = vunpack.c.l.b16 %v656
        %v1221 = vunpack.c.h.b16 %v656
        %v1222 = vunpack.c.l.b16 %v657
        %v1223 = vunpack.c.h.b16 %v657
        %v1224 = vunpack.c.l.b16 %v658
        %v1225 = vunpack.c.h.b16 %v658
        %v1226 = vunpack.c.l.b16 %v659
        %v1227 = vunpack.c.h.b16 %v659
        %v1228 = vunpack.c.l.b16 %v660
        %v1229 = vunpack.c.h.b16 %v660
        %v1230 = vunpack.c.l.b16 %v661
        %v1231 = vunpack.c.h.b16 %v661
        %v1232 = vunpack.c.l.b16 %v662
        %v1233 = vunpack.c.h.b16 %v662
        %v1234 = vunpack.c.l.b16 %v663
        %v1235 = vunpack.c.h.b16 %v663
        %v1236 = vunpack.c.l.b16 %v664
        %v1237 = vunpack.c.h.b16 %v664
        %v1238 = vunpack.c.l.b16 %v665
        %v1239 = vunpack.c.h.b16 %v665
        %v1240 = vunpack.c.l.b16 %v666
        %v1241 = vunpack.c.h.b16 %v666
        %v1242 = vunpack.c.l.b16 %v667
        %v1243 = vunpack.c.h.b16 %v667
        %v1244 = vunpack.c.l.b16 %v668
        %v1245 = vunpack.c.h.b16 %v668
        %v1246 = vunpack.c.l.b16 %v669
        %v1247 = vunpack.c.h.b16 %v669
        %v1248 = vunpack.c.l.b16 %v670
        %v1249 = vunpack.c.h.b16 %v670
        %v1250 = vunpack.c.l.b16 %v671
        %v1251 = vunpack.c.h.b16 %v671
        %v1252 = vunpack.c.l.b16 %v672
        %v1253 = vunpack.c.h.b16 %v672
        %v1254 = vunpack.c.l.b16 %v673
        %v1255 = vunpack.c.h.b16 %v673
        %v1256 = vunpack.c.l.b16 %v674
        %v1257 = vunpack.c.h.b16 %v674
        %v1258 = vunpack.c.l.b16 %v675
        %v1259 = vunpack.c.h.b16 %v675
        %v1260 = vunpack.c.l.b16 %v676
        %v1261 = vunpack.c.h.b16 %v676
        %v1262 = vunpack.c.l.b16 %v677
        %v1263 = vunpack.c.h.b16 %v677
        %v1264 = vunpack.c.l.b16 %v678
        %v1265 = vunpack.c.h.b16 %v678
        %v1266 = vunpack.c.l.b16 %v679
        %v1267 = vunpack.c.h.b16 %v679
        %v1268 = vunpack.c.l.b16 %v680
        %v1269 = vunpack.c.h.b16 %v680
        %v1270 = vunpack.c.l.b16 %v681
        %v1271 = vunpack.c.h.b16 %v681
        %v1272 = vunpack.c.l.b16 %v682
        %v1273 = vunpack.c.h.b16 %v682
        %v1274 = vunpack.c.l.b16 %v683
        %v1275 = vunpack.c.h.b16 %v683
        %v1276 = vunpack.c.l.b16 %v684
        %v1277 = vunpack.c.h.b16 %v684
        %v1278 = vunpack.c.l.b16 %v685
        %v1279 = vunpack.c.h.b16 %v685
        %v1280 = vunpack.c.l.b16 %v686
        %v1281 = vunpack.c.h.b16 %v686
        %v1282 = vunpack.c.l.b16 %v687
        %v1283 = vunpack.c.h.b16 %v687
        %v1284 = vunpack.c.l.b16 %v688
        %v1285 = vunpack.c.h.b16 %v688
        %v1286 = vunpack.c.l.b16 %v689
        %v1287 = vunpack.c.h.b16 %v689
        %v1288 = vunpack.c.l.b16 %v690
        %v1289 = vunpack.c.h.b16 %v690
        %v1290 = vunpack.c.l.b16 %v691
        %v1291 = vunpack.c.h.b16 %v691
        %v1292 = vunpack.c.l.b16 %v692
        %v1293 = vunpack.c.h.b16 %v692
        %v1294 = vunpack.c.l.b16 %v693
        %v1295 = vunpack.c.h.b16 %v693
        %v1296 = vunpack.c.l.b16 %v694
        %v1297 = vunpack.c.h.b16 %v694
        %v1298 = vunpack.c.l.b16 %v695
        %v1299 = vunpack.c.h.b16 %v695
        %v1300 = vunpack.c.l.b16 %v696
        %v1301 = vunpack.c.h.b16 %v696
        %v1302 = vunpack.c.l.b16 %v697
        %v1303 = vunpack.c.h.b16 %v697
        %v1304 = vunpack.c.l.b16 %v698
        %v1305 = vunpack.c.h.b16 %v698
        %v1306 = vunpack.c.l.b16 %v699
        %v1307 = vunpack.c.h.b16 %v699
        %v1308 = vunpack.c.l.b16 %v700
        %v1309 = vunpack.c.h.b16 %v700
        %v1310 = vunpack.c.l.b16 %v701
        %v1311 = vunpack.c.h.b16 %v701
        %v1312 = vunpack.c.l.b16 %v702
        %v1313 = vunpack.c.h.b16 %v702
        %v1314 = vunpack.c.l.b16 %v703
        %v1315 = vunpack.c.h.b16 %v703
        %v1316 = vunpack.c.l.b16 %v704
        %v1317 = vunpack.c.h.b16 %v704
        %v1318 = vunpack.c.l.b16 %v705
        %v1319 = vunpack.c.h.b16 %v705
        %v1320 = vunpack.c.l.b16 %v706
        %v1321 = vunpack.c.h.b16 %v706
        %v1322 = vunpack.c.l.b16 %v707
        %v1323 = vunpack.c.h.b16 %v707
        %v1324 = vunpack.c.l.b16 %v708
        %v1325 = vunpack.c.h.b16 %v708
        %v1326 = vunpack.c.l.b16 %v709
        %v1327 = vunpack.c.h.b16 %v709
        %v1328 = vunpack.c.l.b16 %v710
        %v1329 = vunpack.c.h.b16 %v710
        %v1330 = vunpack.c.l.b16 %v711
        %v1331 = vunpack.c.h.b16 %v711
        %v1332 = vunpack.c.l.b16 %v712
        %v1333 = vunpack.c.h.b16 %v712
        %v1334 = vunpack.c.l.b16 %v713
        %v1335 = vunpack.c.h.b16 %v713
        %v1336 = vunpack.c.l.b16 %v714
        %v1337 = vunpack.c.h.b16 %v714
        %v1338 = vunpack.c.l.b16 %v715
        %v1339 = vunpack.c.h.b16 %v715
        %v1340 = vunpack.c.l.b16 %v716
        %v1341 = vunpack.c.h.b16 %v716
        %v1342 = vunpack.c.l.b16 %v717
        %v1343 = vunpack.c.h.b16 %v717
        %v1344 = vunpack.c.l.b16 %v718
        %v1345 = vunpack.c.h.b16 %v718
        %v1346 = vunpack.c.l.b16 %v719
        %v1347 = vunpack.c.h.b16 %v719
        %v1348 = vunpack.c.l.b16 %v720
        %v1349 = vunpack.c.h.b16 %v720
        %v1350 = vunpack.c.l.b16 %v721
        %v1351 = vunpack.c.h.b16 %v721
        %v1352 = vunpack.c.l.b16 %v722
        %v1353 = vunpack.c.h.b16 %v722
        %v1354 = vunpack.c.l.b16 %v723
        %v1355 = vunpack.c.h.b16 %v723
        %v1356 = vunpack.c.l.b16 %v724
        %v1357 = vunpack.c.h.b16 %v724
        %v1358 = vunpack.c.l.b16 %v725
        %v1359 = vunpack.c.h.b16 %v725
        %v1360 = vunpack.c.l.b16 %v726
        %v1361 = vunpack.c.h.b16 %v726
        %v1362 = vunpack.c.l.b16 %v727
        %v1363 = vunpack.c.h.b16 %v727
        %v1364 = vunpack.c.l.b16 %v728
        %v1365 = vunpack.c.h.b16 %v728
        %v1366 = vunpack.c.l.b16 %v729
        %v1367 = vunpack.c.h.b16 %v729
        %v1368 = vunpack.c.l.b16 %v730
        %v1369 = vunpack.c.h.b16 %v730
        %v1370 = vunpack.c.l.b16 %v731
        %v1371 = vunpack.c.h.b16 %v731
        %v1372 = vunpack.c.l.b16 %v732
        %v1373 = vunpack.c.h.b16 %v732
        %v1374 = vunpack.c.l.b16 %v733
        %v1375 = vunpack.c.h.b16 %v733
        %v1376 = vunpack.c.l.b16 %v734
        %v1377 = vunpack.c.h.b16 %v734
        %v1378 = vunpack.c.l.b16 %v735
        %v1379 = vunpack.c.h.b16 %v735
        %v1380 = vunpack.c.l.b16 %v736
        %v1381 = vunpack.c.h.b16 %v736
        %v1382 = vunpack.c.l.b16 %v737
        %v1383 = vunpack.c.h.b16 %v737
        %v1384 = vunpack.c.l.b16 %v738
        %v1385 = vunpack.c.h.b16 %v738
        %v1386 = vunpack.c.l.b16 %v739
        %v1387 = vunpack.c.h.b16 %v739
        %v1388 = vunpack.c.l.b16 %v740
        %v1389 = vunpack.c.h.b16 %v740
        %v1390 = vunpack.c.l.b16 %v741
        %v1391 = vunpack.c.h.b16 %v741
        %v1392 = vunpack.c.l.b16 %v742
        %v1393 = vunpack.c.h.b16 %v742
        %v1394 = vunpack.c.l.b16 %v743
        %v1395 = vunpack.c.h.b16 %v743
        %v1396 = vunpack.c.l.b16 %v744
        %v1397 = vunpack.c.h.b16 %v744
        %v1398 = vunpack.c.l.b16 %v745
        %v1399 = vunpack.c.h.b16 %v745
        %v1400 = vunpack.c.l.b16 %v746
        %v1401 = vunpack.c.h.b16 %v746
        %v1402 = vunpack.c.l.b16 %v747
        %v1403 = vunpack.c.h.b16 %v747
        %v1404 = vunpack.c.l.b16 %v748
        %v1405 = vunpack.c.h.b16 %v748
        %v1406 = vunpack.c.l.b16 %v749
        %v1407 = vunpack.c.h.b16 %v749
        %v1408 = vunpack.c.l.b16 %v750
        %v1409 = vunpack.c.h.b16 %v750
        %v1410 = vunpack.c.l.b16 %v751
        %v1411 = vunpack.c.h.b16 %v751
        %v1412 = vunpack.c.l.b16 %v752
        %v1413 = vunpack.c.h.b16 %v752
        %v1414 = vunpack.c.l.b16 %v753
        %v1415 = vunpack.c.h.b16 %v753
        %v1416 = vunpack.c.l.b16 %v754
        %v1417 = vunpack.c.h.b16 %v754
        %v1418 = vunpack.c.l.b16 %v755
        %v1419 = vunpack.c.h.b16 %v755
        %v1420 = vunpack.c.l.b16 %v756
        %v1421 = vunpack.c.h.b16 %v756
        %v1422 = vunpack.c.l.b16 %v757
        %v1423 = vunpack.c.h.b16 %v757
        %v1424 = vunpack.c.l.b16 %v758
        %v1425 = vunpack.c.h.b16 %v758
        %v1426 = vunpack.c.l.b16 %v759
        %v1427 = vunpack.c.h.b16 %v759
        %v1428 = vunpack.c.l.b16 %v760
        %v1429 = vunpack.c.h.b16 %v760
        %v1430 = vunpack.c.l.b16 %v761
        %v1431 = vunpack.c.h.b16 %v761
        %v1432 = vunpack.c.l.b16 %v762
        %v1433 = vunpack.c.h.b16 %v762
        %v1434 = vunpack.c.l.b16 %v763
        %v1435 = vunpack.c.h.b16 %v763
        %v1436 = vunpack.c.l.b16 %v764
        %v1437 = vunpack.c.h.b16 %v764
        %v1438 = vunpack.c.l.b16 %v765
        %v1439 = vunpack.c.h.b16 %v765
        %v1440 = vunpack.c.l.b16 %v766
        %v1441 = vunpack.c.h.b16 %v766
        %v1442 = vunpack.c.l.b16 %v767
        %v1443 = vunpack.c.h.b16 %v767
        %v1444 = vunpack.c.l.b16 %v768
        %v1445 = vunpack.c.h.b16 %v768
        %v1446 = vunpack.c.l.b16 %v769
        %v1447 = vunpack.c.h.b16 %v769
        %v1448 = vunpack.c.l.b16 %v770
        %v1449 = vunpack.c.h.b16 %v770
        %v1450 = vunpack.c.l.b16 %v771
        %v1451 = vunpack.c.h.b16 %v771
        %v1452 = vunpack.c.l.b16 %v772
        %v1453 = vunpack.c.h.b16 %v772
        %v1454 = vunpack.c.l.b16 %v773
        %v1455 = vunpack.c.h.b16 %v773
        %v1456 = vunpack.c.l.b16 %v774
        %v1457 = vunpack.c.h.b16 %v774
        %v1458 = vunpack.c.l.b16 %v775
        %v1459 = vunpack.c.h.b16 %v775
        %v1460 = vunpack.c.l.b16 %v776
        %v1461 = vunpack.c.h.b16 %v776
        %v1462 = vunpack.c.l.b16 %v777
        %v1463 = vunpack.c.h.b16 %v777
        %v1464 = vunpack.c.l.b16 %v778
        %v1465 = vunpack.c.h.b16 %v778
        %v1466 = vunpack.c.l.b16 %v779
        %v1467 = vunpack.c.h.b16 %v779
        %v1468 = vunpack.c.l.b16 %v780
        %v1469 = vunpack.c.h.b16 %v780
        %v1470 = vunpack.c.l.b16 %v781
        %v1471 = vunpack.c.h.b16 %v781
        %v1472 = vunpack.c.l.b16 %v782
        %v1473 = vunpack.c.h.b16 %v782
        %v1474 = vunpack.c.l.b16 %v783
        %v1475 = vunpack.c.h.b16 %v783
        %v1476 = vunpack.c.l.b16 %v784
        %v1477 = vunpack.c.h.b16 %v784
        %v1478 = vunpack.c.l.b16 %v785
        %v1479 = vunpack.c.h.b16 %v785
        %v1480 = vunpack.c.l.b16 %v786
        %v1481 = vunpack.c.h.b16 %v786
        %v1482 = vunpack.c.l.b16 %v787
        %v1483 = vunpack.c.h.b16 %v787
        %v1484 = vunpack.c.l.b16 %v788
        %v1485 = vunpack.c.h.b16 %v788
        %v1486 = vunpack.c.l.b16 %v789
        %v1487 = vunpack.c.h.b16 %v789
        %v1488 = vunpack.c.l.b16 %v790
        %v1489 = vunpack.c.h.b16 %v790
        %v1490 = vunpack.c.l.b16 %v791
        %v1491 = vunpack.c.h.b16 %v791
        %v1492 = vunpack.c.l.b16 %v792
        %v1493 = vunpack.c.h.b16 %v792
        %v1494 = vunpack.c.l.b16 %v793
        %v1495 = vunpack.c.h.b16 %v793
        %v1496 = vunpack.c.l.b16 %v794
        %v1497 = vunpack.c.h.b16 %v794
        %v1498 = vunpack.c.l.b16 %v795
        %v1499 = vunpack.c.h.b16 %v795
        %v1500 = vunpack.c.l.b16 %v796
        %v1501 = vunpack.c.h.b16 %v796
        %v1502 = vunpack.c.l.b16 %v797
        %v1503 = vunpack.c.h.b16 %v797
        %v1504 = vunpack.c.l.b16 %v798
        %v1505 = vunpack.c.h.b16 %v798
        %v1506 = vunpack.c.l.b16 %v799
        %v1507 = vunpack.c.h.b16 %v799
        %v1508 = vunpack.c.l.b16 %v800
        %v1509 = vunpack.c.h.b16 %v800
        %v1510 = vunpack.c.l.b16 %v801
        %v1511 = vunpack.c.h.b16 %v801
        %v1512 = vunpack.c.l.b16 %v802
        %v1513 = vunpack.c.h.b16 %v802
        %v1514 = vunpack.c.l.b16 %v803
        %v1515 = vunpack.c.h.b16 %v803
        %v1516 = vunpack.c.l.b16 %v804
        %v1517 = vunpack.c.h.b16 %v804
        %v1518 = vunpack.c.l.b16 %v805
        %v1519 = vunpack.c.h.b16 %v805
        %v1520 = vunpack.c.l.b16 %v806
        %v1521 = vunpack.c.h.b16 %v806
        %v1522 = vunpack.c.l.b16 %v807
        %v1523 = vunpack.c.h.b16 %v807
        %v1524 = vunpack.c.l.b16 %v808
        %v1525 = vunpack.c.h.b16 %v808
        %v1526 = vunpack.c.l.b16 %v809
        %v1527 = vunpack.c.h.b16 %v809
        %v1528 = vunpack.c.l.b16 %v810
        %v1529 = vunpack.c.h.b16 %v810
        %v1530 = vunpack.c.l.b16 %v811
        %v1531 = vunpack.c.h.b16 %v811
        %v1532 = vunpack.c.l.b16 %v812
        %v1533 = vunpack.c.h.b16 %v812
        %v1534 = vunpack.c.l.b16 %v813
        %v1535 = vunpack.c.h.b16 %v813
        %v1536 = vunpack.c.l.b16 %v814
        %v1537 = vunpack.c.h.b16 %v814
        %v1538 = vunpack.c.l.b16 %v815
        %v1539 = vunpack.c.h.b16 %v815
        %v1540 = vunpack.c.l.b16 %v816
        %v1541 = vunpack.c.h.b16 %v816
        %v1542 = vunpack.c.l.b16 %v817
        %v1543 = vunpack.c.h.b16 %v817
        %v1544 = vunpack.c.l.b16 %v818
        %v1545 = vunpack.c.h.b16 %v818
        %v1546 = vunpack.c.l.b16 %v819
        %v1547 = vunpack.c.h.b16 %v819
        %v1548 = vunpack.c.l.b16 %v820
        %v1549 = vunpack.c.h.b16 %v820
        %v1550 = vunpack.c.l.b16 %v821
        %v1551 = vunpack.c.h.b16 %v821
        %v1552 = vunpack.c.l.b16 %v822
        %v1553 = vunpack.c.h.b16 %v822
        %v1554 = vunpack.c.l.b16 %v823
        %v1555 = vunpack.c.h.b16 %v823
        %v1556 = vunpack.c.l.b16 %v824
        %v1557 = vunpack.c.h.b16 %v824
        %v1558 = vunpack.c.l.b16 %v825
        %v1559 = vunpack.c.h.b16 %v825
        %v1560 = vunpack.c.l.b16 %v826
        %v1561 = vunpack.c.h.b16 %v826
        %v1562 = vunpack.c.l.b16 %v827
        %v1563 = vunpack.c.h.b16 %v827
        %v1564 = vunpack.c.l.b16 %v828
        %v1565 = vunpack.c.h.b16 %v828
        %v1566 = vunpack.c.l.b16 %v829
        %v1567 = vunpack.c.h.b16 %v829
        %v1568 = vunpack.c.l.b16 %v830
        %v1569 = vunpack.c.h.b16 %v830
        %v1570 = vunpack.c.l.b16 %v831
        %v1571 = vunpack.c.h.b16 %v831
        %v1572 = vunpack.c.l.b16 %v832
        %v1573 = vunpack.c.h.b16 %v832
        %v1574 = vunpack.c.l.b16 %v833
        %v1575 = vunpack.c.h.b16 %v833
        %v1576 = vunpack.c.l.b16 %v834
        %v1577 = vunpack.c.h.b16 %v834
        %v1578 = vunpack.c.l.b16 %v835
        %v1579 = vunpack.c.h.b16 %v835
        %v1580 = vunpack.c.l.b16 %v836
        %v1581 = vunpack.c.h.b16 %v836
        %v1582 = vunpack.c.l.b16 %v837
        %v1583 = vunpack.c.h.b16 %v837
        %v1584 = vunpack.c.l.b16 %v838
        %v1585 = vunpack.c.h.b16 %v838
        %v1586 = vunpack.c.l.b16 %v839
        %v1587 = vunpack.c.h.b16 %v839
        %v1588 = vunpack.c.l.b16 %v840
        %v1589 = vunpack.c.h.b16 %v840
        %v1590 = vunpack.c.l.b16 %v841
        %v1591 = vunpack.c.h.b16 %v841
        %v1592 = vunpack.c.l.b16 %v842
        %v1593 = vunpack.c.h.b16 %v842
        %v1594 = vunpack.c.l.b16 %v843
        %v1595 = vunpack.c.h.b16 %v843
        %v1596 = vunpack.c.l.b16 %v844
        %v1597 = vunpack.c.h.b16 %v844
        %v1598 = vunpack.c.l.b16 %v845
        %v1599 = vunpack.c.h.b16 %v845
        %v1600 = vunpack.c.l.b16 %v846
        %v1601 = vunpack.c.h.b16 %v846
        %v1602 = vunpack.c.l.b16 %v847
        %v1603 = vunpack.c.h.b16 %v847
        %v1604 = vunpack.c.l.b16 %v848
        %v1605 = vunpack.c.h.b16 %v848
        %v1606 = vunpack.c.l.b16 %v849
        %v1607 = vunpack.c.h.b16 %v849
        %v1608 = vunpack.c.l.b16 %v850
        %v1609 = vunpack.c.h.b16 %v850
        %v1610 = vunpack.c.l.b16 %v851
        %v1611 = vunpack.c.h.b16 %v851
        %v1612 = vunpack.c.l.b16 %v852
        %v1613 = vunpack.c.h.b16 %v852
        %v1614 = vunpack.c.l.b16 %v853
        %v1615 = vunpack.c.h.b16 %v853
        %v1616 = vunpack.c.l.b16 %v854
        %v1617 = vunpack.c.h.b16 %v854
        %v1618 = vunpack.c.l.b16 %v855
        %v1619 = vunpack.c.h.b16 %v855
        %v1620 = vunpack.c.l.b16 %v856
        %v1621 = vunpack.c.h.b16 %v856
        %v1622 = vunpack.c.l.b16 %v857
        %v1623 = vunpack.c.h.b16 %v857
        %v1624 = vunpack.c.l.b16 %v858
        %v1625 = vunpack.c.h.b16 %v858
        %v1626 = vunpack.c.l.b16 %v859
        %v1627 = vunpack.c.h.b16 %v859
        %v1628 = vpack.c.b16 %v1124, %v1116
        %v1629 = vpack.c.b16 %v1125, %v1117
        %v1630 = vpack.c.b16 %v1126, %v1118
        %v1631 = vpack.c.b16 %v1127, %v1119
        %v1632 = vpack.c.b16 %v1128, %v1120
        %v1633 = vpack.c.b16 %v1129, %v1121
        %v1634 = vpack.c.b16 %v1130, %v1122
        %v1635 = vpack.c.b16 %v1131, %v1123
        %v1636 = vpack.c.b16 %v1140, %v1132
        %v1637 = vpack.c.b16 %v1141, %v1133
        %v1638 = vpack.c.b16 %v1142, %v1134
        %v1639 = vpack.c.b16 %v1143, %v1135
        %v1640 = vpack.c.b16 %v1144, %v1136
        %v1641 = vpack.c.b16 %v1145, %v1137
        %v1642 = vpack.c.b16 %v1146, %v1138
        %v1643 = vpack.c.b16 %v1147, %v1139
        %v1644 = vpack.c.b16 %v1156, %v1148
        %v1645 = vpack.c.b16 %v1157, %v1149
        %v1646 = vpack.c.b16 %v1158, %v1150
        %v1647 = vpack.c.b16 %v1159, %v1151
        %v1648 = vpack.c.b16 %v1160, %v1152
        %v1649 = vpack.c.b16 %v1161, %v1153
        %v1650 = vpack.c.b16 %v1162, %v1154
        %v1651 = vpack.c.b16 %v1163, %v1155
        %v1652 = vpack.c.b16 %v1172, %v1164
        %v1653 = vpack.c.b16 %v1173, %v1165
        %v1654 = vpack.c.b16 %v1174, %v1166
        %v1655 = vpack.c.b16 %v1175, %v1167
        %v1656 = vpack.c.b16 %v1176, %v1168
        %v1657 = vpack.c.b16 %v1177, %v1169
        %v1658 = vpack.c.b16 %v1178, %v1170
        %v1659 = vpack.c.b16 %v1179, %v1171
        %v1660 = vpack.c.b16 %v1188, %v1180
        %v1661 = vpack.c.b16 %v1189, %v1181
        %v1662 = vpack.c.b16 %v1190, %v1182
        %v1663 = vpack.c.b16 %v1191, %v1183
        %v1664 = vpack.c.b16 %v1192, %v1184
        %v1665 = vpack.c.b16 %v1193, %v1185
        %v1666 = vpack.c.b16 %v1194, %v1186
        %v1667 = vpack.c.b16 %v1195, %v1187
        %v1668 = vpack.c.b16 %v1204, %v1196
        %v1669 = vpack.c.b16 %v1205, %v1197
        %v1670 = vpack.c.b16 %v1206, %v1198
        %v1671 = vpack.c.b16 %v1207, %v1199
        %v1672 = vpack.c.b16 %v1208, %v1200
        %v1673 = vpack.c.b16 %v1209, %v1201
        %v1674 = vpack.c.b16 %v1210, %v1202
        %v1675 = vpack.c.b16 %v1211, %v1203
        %v1676 = vpack.c.b16 %v1220, %v1212
        %v1677 = vpack.c.b16 %v1221, %v1213
        %v1678 = vpack.c.b16 %v1222, %v1214
        %v1679 = vpack.c.b16 %v1223, %v1215
        %v1680 = vpack.c.b16 %v1224, %v1216
        %v1681 = vpack.c.b16 %v1225, %v1217
        %v1682 = vpack.c.b16 %v1226, %v1218
        %v1683 = vpack.c.b16 %v1227, %v1219
        %v1684 = vpack.c.b16 %v1236, %v1228
        %v1685 = vpack.c.b16 %v1237, %v1229
        %v1686 = vpack.c.b16 %v1238, %v1230
        %v1687 = vpack.c.b16 %v1239, %v1231
        %v1688 = vpack.c.b16 %v1240, %v1232
        %v1689 = vpack.c.b16 %v1241, %v1233
        %v1690 = vpack.c.b16 %v1242, %v1234
        %v1691 = vpack.c.b16 %v1243, %v1235
        %v1692 = vpack.c.b16 %v1252, %v1244
        %v1693 = vpack.c.b16 %v1253, %v1245
        %v1694 = vpack.c.b16 %v1254, %v1246
        %v1695 = vpack.c.b16 %v1255, %v1247
        %v1696 = vpack.c.b16 %v1256, %v1248
        %v1697 = vpack.c.b16 %v1257, %v1249
        %v1698 = vpack.c.b16 %v1258, %v1250
        %v1699 = vpack.c.b16 %v1259, %v1251
        %v1700 = vpack.c.b16 %v1268, %v1260
        %v1701 = vpack.c.b16 %v1269, %v1261
        %v1702 = vpack.c.b16 %v1270, %v1262
        %v1703 = vpack.c.b16 %v1271, %v1263
        %v1704 = vpack.c.b16 %v1272, %v1264
        %v1705 = vpack.c.b16 %v1273, %v1265
        %v1706 = vpack.c.b16 %v1274, %v1266
        %v1707 = vpack.c.b16 %v1275, %v1267
        %v1708 = vpack.c.b16 %v1284, %v1276
        %v1709 = vpack.c.b16 %v1285, %v1277
        %v1710 = vpack.c.b16 %v1286, %v1278
        %v1711 = vpack.c.b16 %v1287, %v1279
        %v1712 = vpack.c.b16 %v1288, %v1280
        %v1713 = vpack.c.b16 %v1289, %v1281
        %v1714 = vpack.c.b16 %v1290, %v1282
        %v1715 = vpack.c.b16 %v1291, %v1283
        %v1716 = vpack.c.b16 %v1300, %v1292
        %v1717 = vpack.c.b16 %v1301, %v1293
        %v1718 = vpack.c.b16 %v1302, %v1294
        %v1719 = vpack.c.b16 %v1303, %v1295
        %v1720 = vpack.c.b16 %v1304, %v1296
        %v1721 = vpack.c.b16 %v1305, %v1297
        %v1722 = vpack.c.b16 %v1306, %v1298
        %v1723 = vpack.c.b16 %v1307, %v1299
        %v1724 = vpack.c.b16 %v1316, %v1308
        %v1725 = vpack.c.b16 %v1317, %v1309
        %v1726 = vpack.c.b16 %v1318, %v1310
        %v1727 = vpack.c.b16 %v1319, %v1311
        %v1728 = vpack.c.b16 %v1320, %v1312
        %v1729 = vpack.c.b16 %v1321, %v1313
        %v1730 = vpack.c.b16 %v1322, %v1314
        %v1731 = vpack.c.b16 %v1323, %v1315
        %v1732 = vpack.c.b16 %v1332, %v1324
        %v1733 = vpack.c.b16 %v1333, %v1325
        %v1734 = vpack.c.b16 %v1334, %v1326
        %v1735 = vpack.c.b16 %v1335, %v1327
        %v1736 = vpack.c.b16 %v1336, %v1328
        %v1737 = vpack.c.b16 %v1337, %v1329
        %v1738 = vpack.c.b16 %v1338, %v1330
        %v1739 = vpack.c.b16 %v1339, %v1331
        %v1740 = vpack.c.b16 %v1348, %v1340
        %v1741 = vpack.c.b16 %v1349, %v1341
        %v1742 = vpack.c.b16 %v1350, %v1342
        %v1743 = vpack.c.b16 %v1351, %v1343
        %v1744 = vpack.c.b16 %v1352, %v1344
        %v1745 = vpack.c.b16 %v1353, %v1345
        %v1746 = vpack.c.b16 %v1354, %v1346
        %v1747 = vpack.c.b16 %v1355, %v1347
        %v1748 = vpack.c.b16 %v1364, %v1356
        %v1749 = vpack.c.b16 %v1365, %v1357
        %v1750 = vpack.c.b16 %v1366, %v1358
        %v1751 = vpack.c.b16 %v1367, %v1359
        %v1752 = vpack.c.b16 %v1368, %v1360
        %v1753 = vpack.c.b16 %v1369, %v1361
        %v1754 = vpack.c.b16 %v1370, %v1362
        %v1755 = vpack.c.b16 %v1371, %v1363
        %v1756 = vpack.c.b16 %v1380, %v1372
        %v1757 = vpack.c.b16 %v1381, %v1373
        %v1758 = vpack.c.b16 %v1382, %v1374
        %v1759 = vpack.c.b16 %v1383, %v1375
        %v1760 = vpack.c.b16 %v1384, %v1376
        %v1761 = vpack.c.b16 %v1385, %v1377
        %v1762 = vpack.c.b16 %v1386, %v1378
        %v1763 = vpack.c.b16 %v1387, %v1379
        %v1764 = vpack.c.b16 %v1396, %v1388
        %v1765 = vpack.c.b16 %v1397, %v1389
        %v1766 = vpack.c.b16 %v1398, %v1390
        %v1767 = vpack.c.b16 %v1399, %v1391
        %v1768 = vpack.c.b16 %v1400, %v1392
        %v1769 = vpack.c.b16 %v1401, %v1393
        %v1770 = vpack.c.b16 %v1402, %v1394
        %v1771 = vpack.c.b16 %v1403, %v1395
        %v1772 = vpack.c.b16 %v1412, %v1404
        %v1773 = vpack.c.b16 %v1413, %v1405
        %v1774 = vpack.c.b16 %v1414, %v1406
        %v1775 = vpack.c.b16 %v1415, %v1407
        %v1776 = vpack.c.b16 %v1416, %v1408
        %v1777 = vpack.c.b16 %v1417, %v1409
        %v1778 = vpack.c.b16 %v1418, %v1410
        %v1779 = vpack.c.b16 %v1419, %v1411
        %v1780 = vpack.c.b16 %v1428, %v1420
        %v1781 = vpack.c.b16 %v1429, %v1421
        %v1782 = vpack.c.b16 %v1430, %v1422
        %v1783 = vpack.c.b16 %v1431, %v1423
        %v1784 = vpack.c.b16 %v1432, %v1424
        %v1785 = vpack.c.b16 %v1433, %v1425
        %v1786 = vpack.c.b16 %v1434, %v1426
        %v1787 = vpack.c.b16 %v1435, %v1427
        %v1788 = vpack.c.b16 %v1444, %v1436
        %v1789 = vpack.c.b16 %v1445, %v1437
        %v1790 = vpack.c.b16 %v1446, %v1438
        %v1791 = vpack.c.b16 %v1447, %v1439
        %v1792 = vpack.c.b16 %v1448, %v1440
        %v1793 = vpack.c.b16 %v1449, %v1441
        %v1794 = vpack.c.b16 %v1450, %v1442
        %v1795 = vpack.c.b16 %v1451, %v1443
        %v1796 = vpack.c.b16 %v1460, %v1452
        %v1797 = vpack.c.b16 %v1461, %v1453
        %v1798 = vpack.c.b16 %v1462, %v1454
        %v1799 = vpack.c.b16 %v1463, %v1455
        %v1800 = vpack.c.b16 %v1464, %v1456
        %v1801 = vpack.c.b16 %v1465, %v1457
        %v1802 = vpack.c.b16 %v1466, %v1458
        %v1803 = vpack.c.b16 %v1467, %v1459
        %v1804 = vpack.c.b16 %v1476, %v1468
        %v1805 = vpack.c.b16 %v1477, %v1469
        %v1806 = vpack.c.b16 %v1478, %v1470
        %v1807 = vpack.c.b16 %v1479, %v1471
        %v1808 = vpack.c.b16 %v1480, %v1472
        %v1809 = vpack.c.b16 %v1481, %v1473
        %v1810 = vpack.c.b16 %v1482, %v1474
        %v1811 = vpack.c.b16 %v1483, %v1475
        %v1812 = vpack.c.b16 %v1492, %v1484
        %v1813 = vpack.c.b16 %v1493, %v1485
        %v1814 = vpack.c.b16 %v1494, %v1486
        %v1815 = vpack.c.b16 %v1495, %v1487
        %v1816 = vpack.c.b16 %v1496, %v1488
        %v1817 = vpack.c.b16 %v1497, %v1489
        %v1818 = vpack.c.b16 %v1498, %v1490
        %v1819 = vpack.c.b16 %v1499, %v1491
        %v1820 = vpack.c.b16 %v1508, %v1500
        %v1821 = vpack.c.b16 %v1509, %v1501
        %v1822 = vpack.c.b16 %v1510, %v1502
        %v1823 = vpack.c.b16 %v1511, %v1503
        %v1824 = vpack.c.b16 %v1512, %v1504
        %v1825 = vpack.c.b16 %v1513, %v1505
        %v1826 = vpack.c.b16 %v1514, %v1506
        %v1827 = vpack.c.b16 %v1515, %v1507
        %v1828 = vpack.c.b16 %v1524, %v1516
        %v1829 = vpack.c.b16 %v1525, %v1517
        %v1830 = vpack.c.b16 %v1526, %v1518
        %v1831 = vpack.c.b16 %v1527, %v1519
        %v1832 = vpack.c.b16 %v1528, %v1520
        %v1833 = vpack.c.b16 %v1529, %v1521
        %v1834 = vpack.c.b16 %v1530, %v1522
        %v1835 = vpack.c.b16 %v1531, %v1523
        %v1836 = vpack.c.b16 %v1540, %v1532
        %v1837 = vpack.c.b16 %v1541, %v1533
        %v1838 = vpack.c.b16 %v1542, %v1534
        %v1839 = vpack.c.b16 %v1543, %v1535
        %v1840 = vpack.c.b16 %v1544, %v1536
        %v1841 = vpack.c.b16 %v1545, %v1537
        %v1842 = vpack.c.b16 %v1546, %v1538
        %v1843 = vpack.c.b16 %v1547, %v1539
        %v1844 = vpack.c.b16 %v1556, %v1548
        %v1845 = vpack.c.b16 %v1557, %v1549
        %v1846 = vpack.c.b16 %v1558, %v1550
        %v1847 = vpack.c.b16 %v1559, %v1551
        %v1848 = vpack.c.b16 %v1560, %v1552
        %v1849 = vpack.c.b16 %v1561, %v1553
        %v1850 = vpack.c.b16 %v1562, %v1554
        %v1851 = vpack.c.b16 %v1563, %v1555
        %v1852 = vpack.c.b16 %v1572, %v1564
        %v1853 = vpack.c.b16 %v1573, %v1565
        %v1854 = vpack.c.b16 %v1574, %v1566
        %v1855 = vpack.c.b16 %v1575, %v1567
        %v1856 = vpack.c.b16 %v1576, %v1568
        %v1857 = vpack.c.b16 %v1577, %v1569
        %v1858 = vpack.c.b16 %v1578, %v1570
        %v1859 = vpack.c.b16 %v1579, %v1571
        %v1860 = vpack.c.b16 %v1588, %v1580
        %v1861 = vpack.c.b16 %v1589, %v1581
        %v1862 = vpack.c.b16 %v1590, %v1582
        %v1863 = vpack.c.b16 %v1591, %v1583
        %v1864 = vpack.c.b16 %v1592, %v1584
        %v1865 = vpack.c.b16 %v1593, %v1585
        %v1866 = vpack.c.b16 %v1594, %v1586
        %v1867 = vpack.c.b16 %v1595, %v1587
        %v1868 = vpack.c.b16 %v1604, %v1596
        %v1869 = vpack.c.b16 %v1605, %v1597
        %v1870 = vpack.c.b16 %v1606, %v1598
        %v1871 = vpack.c.b16 %v1607, %v1599
        %v1872 = vpack.c.b16 %v1608, %v1600
        %v1873 = vpack.c.b16 %v1609, %v1601
        %v1874 = vpack.c.b16 %v1610, %v1602
        %v1875 = vpack.c.b16 %v1611, %v1603
        %v1876 = vpack.c.b16 %v1620, %v1612
        %v1877 = vpack.c.b16 %v1621, %v1613
        %v1878 = vpack.c.b16 %v1622, %v1614
        %v1879 = vpack.c.b16 %v1623, %v1615
        %v1880 = vpack.c.b16 %v1624, %v1616
        %v1881 = vpack.c.b16 %v1625, %v1617
        %v1882 = vpack.c.b16 %v1626, %v1618
        %v1883 = vpack.c.b16 %v1627, %v1619
        %2140 = vmatprep.subr.bf16.mxu0 %v1629
        %2141 = vmatpush1.bf16.msra.mxu0 %v1628
        %2142 = vmatprep.subr.bf16.mxu0 %v1637
        %2143 = vmatpush1.bf16.msra.mxu0 %v1636
        %2144 = vmatprep.subr.bf16.mxu0 %v1645
        %2145 = vmatpush1.bf16.msra.mxu0 %v1644
        %2146 = vmatprep.subr.bf16.mxu0 %v1653
        %2147 = vmatpush1.bf16.msra.mxu0 %v1652
        %2148 = vmatprep.subr.bf16.mxu0 %v1661
        %2149 = vmatpush1.bf16.msra.mxu0 %v1660
        %2150 = vmatprep.subr.bf16.mxu0 %v1669
        %2151 = vmatpush1.bf16.msra.mxu0 %v1668
        %2152 = vmatprep.subr.bf16.mxu0 %v1677
        %2153 = vmatpush1.bf16.msra.mxu0 %v1676
        %2154 = vmatprep.subr.bf16.mxu0 %v1685
        %2155 = vmatpush1.bf16.msra.mxu0 %v1684
        %2156 = vmatprep.subr.bf16.mxu0 %v1693
        %2157 = vmatpush1.bf16.msra.mxu0 %v1692
        %2158 = vmatprep.subr.bf16.mxu0 %v1701
        %2159 = vmatpush1.bf16.msra.mxu0 %v1700
        %2160 = vmatprep.subr.bf16.mxu0 %v1709
        %2161 = vmatpush1.bf16.msra.mxu0 %v1708
        %2162 = vmatprep.subr.bf16.mxu0 %v1717
        %2163 = vmatpush1.bf16.msra.mxu0 %v1716
        %2164 = vmatprep.subr.bf16.mxu0 %v1725
        %2165 = vmatpush1.bf16.msra.mxu0 %v1724
        %2166 = vmatprep.subr.bf16.mxu0 %v1733
        %2167 = vmatpush1.bf16.msra.mxu0 %v1732
        %2168 = vmatprep.subr.bf16.mxu0 %v1741
        %2169 = vmatpush1.bf16.msra.mxu0 %v1740
        %2170 = vmatprep.subr.bf16.mxu0 %v1749
        %2171 = vmatpush1.bf16.msra.mxu0 %v1748
        %2172 = vmatprep.mubr.bf16.mxu0 %v601
        %2173 = vmatmul.mubr.bf16.gmra.mrb[0].mxu0 %v600
        %v2174 = vpop.f32.mrb[0].mxu0
        %v2175 = vadd.f32 0.0, %v2174
        %v2176 = vpop.f32.mrb[0].mxu0
        %v2177 = vadd.f32 0.0, %v2176
        %v2178 = vpop.f32.mrb[0].mxu0
        %v2179 = vpop.f32.mrb[0].mxu0
        %2180 = vdwg.mxu0
        %2181 = vmatprep.subr.bf16.mxu0 %v1757
        %2182 = vmatpush1.bf16.msra.mxu0 %v1756
        %2183 = vmatprep.subr.bf16.mxu0 %v1765
        %2184 = vmatpush1.bf16.msra.mxu0 %v1764
        %2185 = vmatprep.subr.bf16.mxu0 %v1773
        %2186 = vmatpush1.bf16.msra.mxu0 %v1772
        %2187 = vmatprep.subr.bf16.mxu0 %v1781
        %2188 = vmatpush1.bf16.msra.mxu0 %v1780
        %2189 = vmatprep.subr.bf16.mxu0 %v1789
        %2190 = vmatpush1.bf16.msra.mxu0 %v1788
        %2191 = vmatprep.subr.bf16.mxu0 %v1797
        %2192 = vmatpush1.bf16.msra.mxu0 %v1796
        %2193 = vmatprep.subr.bf16.mxu0 %v1805
        %2194 = vmatpush1.bf16.msra.mxu0 %v1804
        %2195 = vmatprep.subr.bf16.mxu0 %v1813
        %2196 = vmatpush1.bf16.msra.mxu0 %v1812
        %2197 = vmatprep.subr.bf16.mxu0 %v1821
        %2198 = vmatpush1.bf16.msra.mxu0 %v1820
        %2199 = vmatprep.subr.bf16.mxu0 %v1829
        %2200 = vmatpush1.bf16.msra.mxu0 %v1828
        %2201 = vmatprep.subr.bf16.mxu0 %v1837
        %2202 = vmatpush1.bf16.msra.mxu0 %v1836
        %2203 = vmatprep.subr.bf16.mxu0 %v1845
        %2204 = vmatpush1.bf16.msra.mxu0 %v1844
        %2205 = vmatprep.subr.bf16.mxu0 %v1853
        %2206 = vmatpush1.bf16.msra.mxu0 %v1852
        %2207 = vmatprep.subr.bf16.mxu0 %v1861
        %2208 = vmatpush1.bf16.msra.mxu0 %v1860
        %2209 = vmatprep.subr.bf16.mxu0 %v1869
        %2210 = vmatpush1.bf16.msra.mxu0 %v1868
        %2211 = vmatprep.subr.bf16.mxu0 %v1877
        %2212 = vmatpush1.bf16.msra.mxu0 %v1876
        %2213 = vmatprep.mubr.bf16.mxu0 %v603
        %2214 = vmatmul.mubr.bf16.gmra.mrb[0].mxu0 %v602
        %v2215 = vpop.f32.mrb[0].mxu0
        %v2216 = vadd.f32 %v2175, %v2215
        %v2217 = vpop.f32.mrb[0].mxu0
        %v2218 = vadd.f32 %v2177, %v2217
        %v2219 = vpop.f32.mrb[0].mxu0
        %v2220 = vpop.f32.mrb[0].mxu0
        %2221 = vdwg.mxu0
        %2222 = vmatprep.subr.bf16.mxu0 %v1631
        %2223 = vmatpush1.bf16.msra.mxu0 %v1630
        %2224 = vmatprep.subr.bf16.mxu0 %v1639
        %2225 = vmatpush1.bf16.msra.mxu0 %v1638
        %2226 = vmatprep.subr.bf16.mxu0 %v1647
        %2227 = vmatpush1.bf16.msra.mxu0 %v1646
        %2228 = vmatprep.subr.bf16.mxu0 %v1655
        %2229 = vmatpush1.bf16.msra.mxu0 %v1654
        %2230 = vmatprep.subr.bf16.mxu0 %v1663
        %2231 = vmatpush1.bf16.msra.mxu0 %v1662
        %2232 = vmatprep.subr.bf16.mxu0 %v1671
        %2233 = vmatpush1.bf16.msra.mxu0 %v1670
        %2234 = vmatprep.subr.bf16.mxu0 %v1679
        %2235 = vmatpush1.bf16.msra.mxu0 %v1678
        %2236 = vmatprep.subr.bf16.mxu0 %v1687
        %2237 = vmatpush1.bf16.msra.mxu0 %v1686
        %2238 = vmatprep.subr.bf16.mxu0 %v1695
        %2239 = vmatpush1.bf16.msra.mxu0 %v1694
        %2240 = vmatprep.subr.bf16.mxu0 %v1703
        %2241 = vmatpush1.bf16.msra.mxu0 %v1702
        %2242 = vmatprep.subr.bf16.mxu0 %v1711
        %2243 = vmatpush1.bf16.msra.mxu0 %v1710
        %2244 = vmatprep.subr.bf16.mxu0 %v1719
        %2245 = vmatpush1.bf16.msra.mxu0 %v1718
        %2246 = vmatprep.subr.bf16.mxu0 %v1727
        %2247 = vmatpush1.bf16.msra.mxu0 %v1726
        %2248 = vmatprep.subr.bf16.mxu0 %v1735
        %2249 = vmatpush1.bf16.msra.mxu0 %v1734
        %2250 = vmatprep.subr.bf16.mxu0 %v1743
        %2251 = vmatpush1.bf16.msra.mxu0 %v1742
        %2252 = vmatprep.subr.bf16.mxu0 %v1751
        %2253 = vmatpush1.bf16.msra.mxu0 %v1750
        %2254 = vmatprep.mubr.bf16.mxu0 %v601
        %2255 = vmatmul.mubr.bf16.gmra.mrb[0].mxu0 %v600
        %v2256 = vpop.f32.mrb[0].mxu0
        %v2257 = vadd.f32 0.0, %v2256
        %v2258 = vpop.f32.mrb[0].mxu0
        %v2259 = vadd.f32 0.0, %v2258
        %v2260 = vpop.f32.mrb[0].mxu0
        %v2261 = vpop.f32.mrb[0].mxu0
        %2262 = vdwg.mxu0
        %2263 = vmatprep.subr.bf16.mxu0 %v1759
        %2264 = vmatpush1.bf16.msra.mxu0 %v1758
        %2265 = vmatprep.subr.bf16.mxu0 %v1767
        %2266 = vmatpush1.bf16.msra.mxu0 %v1766
        %2267 = vmatprep.subr.bf16.mxu0 %v1775
        %2268 = vmatpush1.bf16.msra.mxu0 %v1774
        %2269 = vmatprep.subr.bf16.mxu0 %v1783
        %2270 = vmatpush1.bf16.msra.mxu0 %v1782
        %2271 = vmatprep.subr.bf16.mxu0 %v1791
        %2272 = vmatpush1.bf16.msra.mxu0 %v1790
        %2273 = vmatprep.subr.bf16.mxu0 %v1799
        %2274 = vmatpush1.bf16.msra.mxu0 %v1798
        %2275 = vmatprep.subr.bf16.mxu0 %v1807
        %2276 = vmatpush1.bf16.msra.mxu0 %v1806
        %2277 = vmatprep.subr.bf16.mxu0 %v1815
        %2278 = vmatpush1.bf16.msra.mxu0 %v1814
        %2279 = vmatprep.subr.bf16.mxu0 %v1823
        %2280 = vmatpush1.bf16.msra.mxu0 %v1822
        %2281 = vmatprep.subr.bf16.mxu0 %v1831
        %2282 = vmatpush1.bf16.msra.mxu0 %v1830
        %2283 = vmatprep.subr.bf16.mxu0 %v1839
        %2284 = vmatpush1.bf16.msra.mxu0 %v1838
        %2285 = vmatprep.subr.bf16.mxu0 %v1847
        %2286 = vmatpush1.bf16.msra.mxu0 %v1846
        %2287 = vmatprep.subr.bf16.mxu0 %v1855
        %2288 = vmatpush1.bf16.msra.mxu0 %v1854
        %2289 = vmatprep.subr.bf16.mxu0 %v1863
        %2290 = vmatpush1.bf16.msra.mxu0 %v1862
        %2291 = vmatprep.subr.bf16.mxu0 %v1871
        %2292 = vmatpush1.bf16.msra.mxu0 %v1870
        %2293 = vmatprep.subr.bf16.mxu0 %v1879
        %2294 = vmatpush1.bf16.msra.mxu0 %v1878
        %2295 = vmatprep.mubr.bf16.mxu0 %v603
        %2296 = vmatmul.mubr.bf16.gmra.mrb[0].mxu0 %v602
        %v2297 = vpop.f32.mrb[0].mxu0
        %v2298 = vadd.f32 %v2257, %v2297
        %v2299 = vpop.f32.mrb[0].mxu0
        %v2300 = vadd.f32 %v2259, %v2299
        %v2301 = vpop.f32.mrb[0].mxu0
        %v2302 = vpop.f32.mrb[0].mxu0
        %2303 = vdwg.mxu0
        %2304 = vmatprep.subr.bf16.mxu0 %v1633
        %2305 = vmatpush1.bf16.msra.mxu0 %v1632
        %2306 = vmatprep.subr.bf16.mxu0 %v1641
        %2307 = vmatpush1.bf16.msra.mxu0 %v1640
        %2308 = vmatprep.subr.bf16.mxu0 %v1649
        %2309 = vmatpush1.bf16.msra.mxu0 %v1648
        %2310 = vmatprep.subr.bf16.mxu0 %v1657
        %2311 = vmatpush1.bf16.msra.mxu0 %v1656
        %2312 = vmatprep.subr.bf16.mxu0 %v1665
        %2313 = vmatpush1.bf16.msra.mxu0 %v1664
        %2314 = vmatprep.subr.bf16.mxu0 %v1673
        %2315 = vmatpush1.bf16.msra.mxu0 %v1672
        %2316 = vmatprep.subr.bf16.mxu0 %v1681
        %2317 = vmatpush1.bf16.msra.mxu0 %v1680
        %2318 = vmatprep.subr.bf16.mxu0 %v1689
        %2319 = vmatpush1.bf16.msra.mxu0 %v1688
        %2320 = vmatprep.subr.bf16.mxu0 %v1697
        %2321 = vmatpush1.bf16.msra.mxu0 %v1696
        %2322 = vmatprep.subr.bf16.mxu0 %v1705
        %2323 = vmatpush1.bf16.msra.mxu0 %v1704
        %2324 = vmatprep.subr.bf16.mxu0 %v1713
        %2325 = vmatpush1.bf16.msra.mxu0 %v1712
        %2326 = vmatprep.subr.bf16.mxu0 %v1721
        %2327 = vmatpush1.bf16.msra.mxu0 %v1720
        %2328 = vmatprep.subr.bf16.mxu0 %v1729
        %2329 = vmatpush1.bf16.msra.mxu0 %v1728
        %2330 = vmatprep.subr.bf16.mxu0 %v1737
        %2331 = vmatpush1.bf16.msra.mxu0 %v1736
        %2332 = vmatprep.subr.bf16.mxu0 %v1745
        %2333 = vmatpush1.bf16.msra.mxu0 %v1744
        %2334 = vmatprep.subr.bf16.mxu0 %v1753
        %2335 = vmatpush1.bf16.msra.mxu0 %v1752
        %2336 = vmatprep.mubr.bf16.mxu0 %v601
        %2337 = vmatmul.mubr.bf16.gmra.mrb[0].mxu0 %v600
        %v2338 = vpop.f32.mrb[0].mxu0
        %v2339 = vadd.f32 0.0, %v2338
        %v2340 = vpop.f32.mrb[0].mxu0
        %v2341 = vadd.f32 0.0, %v2340
        %v2342 = vpop.f32.mrb[0].mxu0
        %v2343 = vpop.f32.mrb[0].mxu0
        %2344 = vdwg.mxu0
        %2345 = vmatprep.subr.bf16.mxu0 %v1761
        %2346 = vmatpush1.bf16.msra.mxu0 %v1760
        %2347 = vmatprep.subr.bf16.mxu0 %v1769
        %2348 = vmatpush1.bf16.msra.mxu0 %v1768
        %2349 = vmatprep.subr.bf16.mxu0 %v1777
        %2350 = vmatpush1.bf16.msra.mxu0 %v1776
        %2351 = vmatprep.subr.bf16.mxu0 %v1785
        %2352 = vmatpush1.bf16.msra.mxu0 %v1784
        %2353 = vmatprep.subr.bf16.mxu0 %v1793
        %2354 = vmatpush1.bf16.msra.mxu0 %v1792
        %2355 = vmatprep.subr.bf16.mxu0 %v1801
        %2356 = vmatpush1.bf16.msra.mxu0 %v1800
        %2357 = vmatprep.subr.bf16.mxu0 %v1809
        %2358 = vmatpush1.bf16.msra.mxu0 %v1808
        %2359 = vmatprep.subr.bf16.mxu0 %v1817
        %2360 = vmatpush1.bf16.msra.mxu0 %v1816
        %2361 = vmatprep.subr.bf16.mxu0 %v1825
        %2362 = vmatpush1.bf16.msra.mxu0 %v1824
        %2363 = vmatprep.subr.bf16.mxu0 %v1833
        %2364 = vmatpush1.bf16.msra.mxu0 %v1832
        %2365 = vmatprep.subr.bf16.mxu0 %v1841
        %2366 = vmatpush1.bf16.msra.mxu0 %v1840
        %2367 = vmatprep.subr.bf16.mxu0 %v1849
        %2368 = vmatpush1.bf16.msra.mxu0 %v1848
        %2369 = vmatprep.subr.bf16.mxu0 %v1857
        %2370 = vmatpush1.bf16.msra.mxu0 %v1856
        %2371 = vmatprep.subr.bf16.mxu0 %v1865
        %2372 = vmatpush1.bf16.msra.mxu0 %v1864
        %2373 = vmatprep.subr.bf16.mxu0 %v1873
        %2374 = vmatpush1.bf16.msra.mxu0 %v1872
        %2375 = vmatprep.subr.bf16.mxu0 %v1881
        %2376 = vmatpush1.bf16.msra.mxu0 %v1880
        %2377 = vmatprep.mubr.bf16.mxu0 %v603
        %2378 = vmatmul.mubr.bf16.gmra.mrb[0].mxu0 %v602
        %v2379 = vpop.f32.mrb[0].mxu0
        %v2380 = vadd.f32 %v2339, %v2379
        %v2381 = vpop.f32.mrb[0].mxu0
        %v2382 = vadd.f32 %v2341, %v2381
        %v2383 = vpop.f32.mrb[0].mxu0
        %v2384 = vpop.f32.mrb[0].mxu0
        %2385 = vdwg.mxu0
        %2386 = vmatprep.subr.bf16.mxu0 %v1635
        %2387 = vmatpush1.bf16.msra.mxu0 %v1634
        %2388 = vmatprep.subr.bf16.mxu0 %v1643
        %2389 = vmatpush1.bf16.msra.mxu0 %v1642
        %2390 = vmatprep.subr.bf16.mxu0 %v1651
        %2391 = vmatpush1.bf16.msra.mxu0 %v1650
        %2392 = vmatprep.subr.bf16.mxu0 %v1659
        %2393 = vmatpush1.bf16.msra.mxu0 %v1658
        %2394 = vmatprep.subr.bf16.mxu0 %v1667
        %2395 = vmatpush1.bf16.msra.mxu0 %v1666
        %2396 = vmatprep.subr.bf16.mxu0 %v1675
        %2397 = vmatpush1.bf16.msra.mxu0 %v1674
        %2398 = vmatprep.subr.bf16.mxu0 %v1683
        %2399 = vmatpush1.bf16.msra.mxu0 %v1682
        %2400 = vmatprep.subr.bf16.mxu0 %v1691
        %2401 = vmatpush1.bf16.msra.mxu0 %v1690
        %2402 = vmatprep.subr.bf16.mxu0 %v1699
        %2403 = vmatpush1.bf16.msra.mxu0 %v1698
        %2404 = vmatprep.subr.bf16.mxu0 %v1707
        %2405 = vmatpush1.bf16.msra.mxu0 %v1706
        %2406 = vmatprep.subr.bf16.mxu0 %v1715
        %2407 = vmatpush1.bf16.msra.mxu0 %v1714
        %2408 = vmatprep.subr.bf16.mxu0 %v1723
        %2409 = vmatpush1.bf16.msra.mxu0 %v1722
        %2410 = vmatprep.subr.bf16.mxu0 %v1731
        %2411 = vmatpush1.bf16.msra.mxu0 %v1730
        %2412 = vmatprep.subr.bf16.mxu0 %v1739
        %2413 = vmatpush1.bf16.msra.mxu0 %v1738
        %2414 = vmatprep.subr.bf16.mxu0 %v1747
        %2415 = vmatpush1.bf16.msra.mxu0 %v1746
        %2416 = vmatprep.subr.bf16.mxu0 %v1755
        %2417 = vmatpush1.bf16.msra.mxu0 %v1754
        %2418 = vmatprep.mubr.bf16.mxu0 %v601
        %2419 = vmatmul.mubr.bf16.gmra.mrb[0].mxu0 %v600
        %v2420 = vpop.f32.mrb[0].mxu0
        %v2421 = vadd.f32 0.0, %v2420
        %v2422 = vpop.f32.mrb[0].mxu0
        %v2423 = vadd.f32 0.0, %v2422
        %v2424 = vpop.f32.mrb[0].mxu0
        %v2425 = vpop.f32.mrb[0].mxu0
        %2426 = vdwg.mxu0
        %2427 = vmatprep.subr.bf16.mxu0 %v1763
        %2428 = vmatpush1.bf16.msra.mxu0 %v1762
        %2429 = vmatprep.subr.bf16.mxu0 %v1771
        %2430 = vmatpush1.bf16.msra.mxu0 %v1770
        %2431 = vmatprep.subr.bf16.mxu0 %v1779
        %2432 = vmatpush1.bf16.msra.mxu0 %v1778
        %2433 = vmatprep.subr.bf16.mxu0 %v1787
        %2434 = vmatpush1.bf16.msra.mxu0 %v1786
        %2435 = vmatprep.subr.bf16.mxu0 %v1795
        %2436 = vmatpush1.bf16.msra.mxu0 %v1794
        %2437 = vmatprep.subr.bf16.mxu0 %v1803
        %2438 = vmatpush1.bf16.msra.mxu0 %v1802
        %2439 = vmatprep.subr.bf16.mxu0 %v1811
        %2440 = vmatpush1.bf16.msra.mxu0 %v1810
        %2441 = vmatprep.subr.bf16.mxu0 %v1819
        %2442 = vmatpush1.bf16.msra.mxu0 %v1818
        %2443 = vmatprep.subr.bf16.mxu0 %v1827
        %2444 = vmatpush1.bf16.msra.mxu0 %v1826
        %2445 = vmatprep.subr.bf16.mxu0 %v1835
        %2446 = vmatpush1.bf16.msra.mxu0 %v1834
        %2447 = vmatprep.subr.bf16.mxu0 %v1843
        %2448 = vmatpush1.bf16.msra.mxu0 %v1842
        %2449 = vmatprep.subr.bf16.mxu0 %v1851
        %2450 = vmatpush1.bf16.msra.mxu0 %v1850
        %2451 = vmatprep.subr.bf16.mxu0 %v1859
        %2452 = vmatpush1.bf16.msra.mxu0 %v1858
        %2453 = vmatprep.subr.bf16.mxu0 %v1867
        %2454 = vmatpush1.bf16.msra.mxu0 %v1866
        %2455 = vmatprep.subr.bf16.mxu0 %v1875
        %2456 = vmatpush1.bf16.msra.mxu0 %v1874
        %2457 = vmatprep.subr.bf16.mxu0 %v1883
        %2458 = vmatpush1.bf16.msra.mxu0 %v1882
        %2459 = vmatprep.mubr.bf16.mxu0 %v603
        %2460 = vmatmul.mubr.bf16.gmra.mrb[0].mxu0 %v602
        %v2461 = vpop.f32.mrb[0].mxu0
        %v2462 = vadd.f32 %v2421, %v2461
        %v2463 = vpop.f32.mrb[0].mxu0
        %v2464 = vadd.f32 %v2423, %v2463
        %v2465 = vpop.f32.mrb[0].mxu0
        %v2466 = vpop.f32.mrb[0].mxu0
        %2467 = vdwg.mxu0
        %v2468 = vadd.f32 %v588, %v2216
        %v2469 = vadd.f32 %v589, %v2218
        %v2470 = vadd.f32 %v590, %v2298
        %v2471 = vadd.f32 %v591, %v2300
        %v2472 = vadd.f32 %v592, %v2380
        %v2473 = vadd.f32 %v593, %v2382
        %v2474 = vadd.f32 %v594, %v2462
        %v2475 = vadd.f32 %v595, %v2464
        %2476 = vst [vmem:[#allocation2] sm:$0xff] %v2468
        %2477 = vst [vmem:[#allocation2 + $0x8] sm:$0xff] %v2469
        %2478 = vst [vmem:[#allocation2 + $0x10] sm:$0xff] %v2470
        %2479 = vst [vmem:[#allocation2 + $0x18] sm:$0xff] %v2471
        %2480 = vst [vmem:[#allocation2 + $0x20] sm:$0xff] %v2472
        %2481 = vst [vmem:[#allocation2 + $0x28] sm:$0xff] %v2473
        %2482 = vst [vmem:[#allocation2 + $0x30] sm:$0xff] %v2474
        %2483 = vst [vmem:[#allocation2 + $0x38] sm:$0xff] %v2475
        %p2484 = scmp.eq.s32.totalorder %s38, 3
        // Predicated region
        $region113: #{tpu_custom_call.1} parent=63 // pred_check
          %p2485 = pneg %p2484
        $region114: #{tpu_custom_call.1} parent=63 // pred_check_branch
          %2487 = sbr.rel (%p2485) target = $region116
        $region115: #{tpu_custom_call.1} parent=63 // pred_region
          %v2488 = vld [vmem:[#allocation2] sm:$0xff]
          %v2489 = vld [vmem:[#allocation2 + $0x8] sm:$0xff]
          %v2490 = vld [vmem:[#allocation2 + $0x10] sm:$0xff]
          %v2491 = vld [vmem:[#allocation2 + $0x18] sm:$0xff]
          %v2492 = vld [vmem:[#allocation2 + $0x20] sm:$0xff]
          %v2493 = vld [vmem:[#allocation2 + $0x28] sm:$0xff]
          %v2494 = vld [vmem:[#allocation2 + $0x30] sm:$0xff]
          %v2495 = vld [vmem:[#allocation2 + $0x38] sm:$0xff]
          %v2496 = vld [vmem:[#allocation8] sm:$0xff]
          %v2498 = vlaneseq
          %v2499 = vshrl.u32 %v2498, 7
          %v2500 = vsub.s32 0, %v2499
          %v2501 = vrot.slane %v2496, %v2500
          %v2502 = vlaneseq
          %v2503 = vshrl.u32 %v2502, 7
          %v2504 = vsub.s32 1, %v2503
          %v2505 = vrot.slane %v2496, %v2504
          %v2506 = vlaneseq
          %v2507 = vshrl.u32 %v2506, 7
          %v2508 = vsub.s32 2, %v2507
          %v2509 = vrot.slane %v2496, %v2508
          %v2510 = vlaneseq
          %v2511 = vshrl.u32 %v2510, 7
          %v2512 = vsub.s32 3, %v2511
          %v2513 = vrot.slane %v2496, %v2512
          %v2514 = vlaneseq
          %v2515 = vshrl.u32 %v2514, 7
          %v2516 = vsub.s32 4, %v2515
          %v2517 = vrot.slane %v2496, %v2516
          %v2518 = vlaneseq
          %v2519 = vshrl.u32 %v2518, 7
          %v2520 = vsub.s32 5, %v2519
          %v2521 = vrot.slane %v2496, %v2520
          %v2522 = vlaneseq
          %v2523 = vshrl.u32 %v2522, 7
          %v2524 = vsub.s32 6, %v2523
          %v2525 = vrot.slane %v2496, %v2524
          %v2526 = vlaneseq
          %v2527 = vshrl.u32 %v2526, 7
          %v2528 = vsub.s32 7, %v2527
          %v2529 = vrot.slane %v2496, %v2528
          %v2538 = vadd.f32 %v2488, %v2501
          %v2539 = vadd.f32 %v2489, %v2505
          %v2540 = vadd.f32 %v2490, %v2509
          %v2541 = vadd.f32 %v2491, %v2513
          %v2542 = vadd.f32 %v2492, %v2517
          %v2543 = vadd.f32 %v2493, %v2521
          %v2544 = vadd.f32 %v2494, %v2525
          %v2545 = vadd.f32 %v2495, %v2529
          %v2546 = vmax.f32 %v2538, 0.0
          %v2547 = vmax.f32 %v2539, 0.0
          %v2548 = vmax.f32 %v2540, 0.0
          %v2549 = vmax.f32 %v2541, 0.0
          %v2550 = vmax.f32 %v2542, 0.0
          %v2551 = vmax.f32 %v2543, 0.0
          %v2552 = vmax.f32 %v2544, 0.0
          %v2553 = vmax.f32 %v2545, 0.0
          %v2554 = vpack.c.bf16 %v2546, %v2546
          %v2555 = vpack.c.bf16 %v2547, %v2547
          %v2556 = vpack.c.bf16 %v2548, %v2548
          %v2557 = vpack.c.bf16 %v2549, %v2549
          %v2558 = vpack.c.bf16 %v2550, %v2550
          %v2559 = vpack.c.bf16 %v2551, %v2551
          %v2560 = vpack.c.bf16 %v2552, %v2552
          %v2561 = vpack.c.bf16 %v2553, %v2553
          %v2562 = vld [vmem:[#allocation9] sm:$0xff]
          %v2563 = vld [vmem:[#allocation9 + $0x8] sm:$0xff]
          %v2564 = vld [vmem:[#allocation9 + $0x10] sm:$0xff]
          %v2565 = vld [vmem:[#allocation9 + $0x18] sm:$0xff]
          %v2566 = vld [vmem:[#allocation9 + $0x20] sm:$0xff]
          %v2567 = vld [vmem:[#allocation9 + $0x28] sm:$0xff]
          %v2568 = vld [vmem:[#allocation9 + $0x30] sm:$0xff]
          %v2569 = vld [vmem:[#allocation9 + $0x38] sm:$0xff]
          %v2570 = vld [vmem:[#allocation9 + $0x40] sm:$0xff]
          %v2571 = vld [vmem:[#allocation9 + $0x48] sm:$0xff]
          %v2572 = vld [vmem:[#allocation9 + $0x50] sm:$0xff]
          %v2573 = vld [vmem:[#allocation9 + $0x58] sm:$0xff]
          %v2574 = vld [vmem:[#allocation9 + $0x60] sm:$0xff]
          %v2575 = vld [vmem:[#allocation9 + $0x68] sm:$0xff]
          %v2576 = vld [vmem:[#allocation9 + $0x70] sm:$0xff]
          %v2577 = vld [vmem:[#allocation9 + $0x78] sm:$0xff]
          %v2578 = vld [vmem:[#allocation9 + $0x80] sm:$0xff]
          %v2579 = vld [vmem:[#allocation9 + $0x88] sm:$0xff]
          %v2580 = vld [vmem:[#allocation9 + $0x90] sm:$0xff]
          %v2581 = vld [vmem:[#allocation9 + $0x98] sm:$0xff]
          %v2582 = vld [vmem:[#allocation9 + $0xa0] sm:$0xff]
          %v2583 = vld [vmem:[#allocation9 + $0xa8] sm:$0xff]
          %v2584 = vld [vmem:[#allocation9 + $0xb0] sm:$0xff]
          %v2585 = vld [vmem:[#allocation9 + $0xb8] sm:$0xff]
          %v2586 = vld [vmem:[#allocation9 + $0xc0] sm:$0xff]
          %v2587 = vld [vmem:[#allocation9 + $0xc8] sm:$0xff]
          %v2588 = vld [vmem:[#allocation9 + $0xd0] sm:$0xff]
          %v2589 = vld [vmem:[#allocation9 + $0xd8] sm:$0xff]
          %v2590 = vld [vmem:[#allocation9 + $0xe0] sm:$0xff]
          %v2591 = vld [vmem:[#allocation9 + $0xe8] sm:$0xff]
          %v2592 = vld [vmem:[#allocation9 + $0xf0] sm:$0xff]
          %v2593 = vld [vmem:[#allocation9 + $0xf8] sm:$0xff]
          %v2594 = vld [vmem:[#allocation9 + $0x100] sm:$0xff]
          %v2595 = vld [vmem:[#allocation9 + $0x108] sm:$0xff]
          %v2596 = vld [vmem:[#allocation9 + $0x110] sm:$0xff]
          %v2597 = vld [vmem:[#allocation9 + $0x118] sm:$0xff]
          %v2598 = vld [vmem:[#allocation9 + $0x120] sm:$0xff]
          %v2599 = vld [vmem:[#allocation9 + $0x128] sm:$0xff]
          %v2600 = vld [vmem:[#allocation9 + $0x130] sm:$0xff]
          %v2601 = vld [vmem:[#allocation9 + $0x138] sm:$0xff]
          %v2602 = vld [vmem:[#allocation9 + $0x140] sm:$0xff]
          %v2603 = vld [vmem:[#allocation9 + $0x148] sm:$0xff]
          %v2604 = vld [vmem:[#allocation9 + $0x150] sm:$0xff]
          %v2605 = vld [vmem:[#allocation9 + $0x158] sm:$0xff]
          %v2606 = vld [vmem:[#allocation9 + $0x160] sm:$0xff]
          %v2607 = vld [vmem:[#allocation9 + $0x168] sm:$0xff]
          %v2608 = vld [vmem:[#allocation9 + $0x170] sm:$0xff]
          %v2609 = vld [vmem:[#allocation9 + $0x178] sm:$0xff]
          %v2610 = vld [vmem:[#allocation9 + $0x180] sm:$0xff]
          %v2611 = vld [vmem:[#allocation9 + $0x188] sm:$0xff]
          %v2612 = vld [vmem:[#allocation9 + $0x190] sm:$0xff]
          %v2613 = vld [vmem:[#allocation9 + $0x198] sm:$0xff]
          %v2614 = vld [vmem:[#allocation9 + $0x1a0] sm:$0xff]
          %v2615 = vld [vmem:[#allocation9 + $0x1a8] sm:$0xff]
          %v2616 = vld [vmem:[#allocation9 + $0x1b0] sm:$0xff]
          %v2617 = vld [vmem:[#allocation9 + $0x1b8] sm:$0xff]
          %v2618 = vld [vmem:[#allocation9 + $0x1c0] sm:$0xff]
          %v2619 = vld [vmem:[#allocation9 + $0x1c8] sm:$0xff]
          %v2620 = vld [vmem:[#allocation9 + $0x1d0] sm:$0xff]
          %v2621 = vld [vmem:[#allocation9 + $0x1d8] sm:$0xff]
          %v2622 = vld [vmem:[#allocation9 + $0x1e0] sm:$0xff]
          %v2623 = vld [vmem:[#allocation9 + $0x1e8] sm:$0xff]
          %v2624 = vld [vmem:[#allocation9 + $0x1f0] sm:$0xff]
          %v2625 = vld [vmem:[#allocation9 + $0x1f8] sm:$0xff]
          %v2626 = vld [vmem:[#allocation9 + $0x200] sm:$0xff]
          %v2627 = vld [vmem:[#allocation9 + $0x208] sm:$0xff]
          %v2628 = vld [vmem:[#allocation9 + $0x210] sm:$0xff]
          %v2629 = vld [vmem:[#allocation9 + $0x218] sm:$0xff]
          %v2630 = vld [vmem:[#allocation9 + $0x220] sm:$0xff]
          %v2631 = vld [vmem:[#allocation9 + $0x228] sm:$0xff]
          %v2632 = vld [vmem:[#allocation9 + $0x230] sm:$0xff]
          %v2633 = vld [vmem:[#allocation9 + $0x238] sm:$0xff]
          %v2634 = vld [vmem:[#allocation9 + $0x240] sm:$0xff]
          %v2635 = vld [vmem:[#allocation9 + $0x248] sm:$0xff]
          %v2636 = vld [vmem:[#allocation9 + $0x250] sm:$0xff]
          %v2637 = vld [vmem:[#allocation9 + $0x258] sm:$0xff]
          %v2638 = vld [vmem:[#allocation9 + $0x260] sm:$0xff]
          %v2639 = vld [vmem:[#allocation9 + $0x268] sm:$0xff]
          %v2640 = vld [vmem:[#allocation9 + $0x270] sm:$0xff]
          %v2641 = vld [vmem:[#allocation9 + $0x278] sm:$0xff]
          %v2642 = vld [vmem:[#allocation9 + $0x280] sm:$0xff]
          %v2643 = vld [vmem:[#allocation9 + $0x288] sm:$0xff]
          %v2644 = vld [vmem:[#allocation9 + $0x290] sm:$0xff]
          %v2645 = vld [vmem:[#allocation9 + $0x298] sm:$0xff]
          %v2646 = vld [vmem:[#allocation9 + $0x2a0] sm:$0xff]
          %v2647 = vld [vmem:[#allocation9 + $0x2a8] sm:$0xff]
          %v2648 = vld [vmem:[#allocation9 + $0x2b0] sm:$0xff]
          %v2649 = vld [vmem:[#allocation9 + $0x2b8] sm:$0xff]
          %v2650 = vld [vmem:[#allocation9 + $0x2c0] sm:$0xff]
          %v2651 = vld [vmem:[#allocation9 + $0x2c8] sm:$0xff]
          %v2652 = vld [vmem:[#allocation9 + $0x2d0] sm:$0xff]
          %v2653 = vld [vmem:[#allocation9 + $0x2d8] sm:$0xff]
          %v2654 = vld [vmem:[#allocation9 + $0x2e0] sm:$0xff]
          %v2655 = vld [vmem:[#allocation9 + $0x2e8] sm:$0xff]
          %v2656 = vld [vmem:[#allocation9 + $0x2f0] sm:$0xff]
          %v2657 = vld [vmem:[#allocation9 + $0x2f8] sm:$0xff]
          %v2658 = vld [vmem:[#allocation9 + $0x300] sm:$0xff]
          %v2659 = vld [vmem:[#allocation9 + $0x308] sm:$0xff]
          %v2660 = vld [vmem:[#allocation9 + $0x310] sm:$0xff]
          %v2661 = vld [vmem:[#allocation9 + $0x318] sm:$0xff]
          %v2662 = vld [vmem:[#allocation9 + $0x320] sm:$0xff]
          %v2663 = vld [vmem:[#allocation9 + $0x328] sm:$0xff]
          %v2664 = vld [vmem:[#allocation9 + $0x330] sm:$0xff]
          %v2665 = vld [vmem:[#allocation9 + $0x338] sm:$0xff]
          %v2666 = vld [vmem:[#allocation9 + $0x340] sm:$0xff]
          %v2667 = vld [vmem:[#allocation9 + $0x348] sm:$0xff]
          %v2668 = vld [vmem:[#allocation9 + $0x350] sm:$0xff]
          %v2669 = vld [vmem:[#allocation9 + $0x358] sm:$0xff]
          %v2670 = vld [vmem:[#allocation9 + $0x360] sm:$0xff]
          %v2671 = vld [vmem:[#allocation9 + $0x368] sm:$0xff]
          %v2672 = vld [vmem:[#allocation9 + $0x370] sm:$0xff]
          %v2673 = vld [vmem:[#allocation9 + $0x378] sm:$0xff]
          %v2674 = vld [vmem:[#allocation9 + $0x380] sm:$0xff]
          %v2675 = vld [vmem:[#allocation9 + $0x388] sm:$0xff]
          %v2676 = vld [vmem:[#allocation9 + $0x390] sm:$0xff]
          %v2677 = vld [vmem:[#allocation9 + $0x398] sm:$0xff]
          %v2678 = vld [vmem:[#allocation9 + $0x3a0] sm:$0xff]
          %v2679 = vld [vmem:[#allocation9 + $0x3a8] sm:$0xff]
          %v2680 = vld [vmem:[#allocation9 + $0x3b0] sm:$0xff]
          %v2681 = vld [vmem:[#allocation9 + $0x3b8] sm:$0xff]
          %v2682 = vld [vmem:[#allocation9 + $0x3c0] sm:$0xff]
          %v2683 = vld [vmem:[#allocation9 + $0x3c8] sm:$0xff]
          %v2684 = vld [vmem:[#allocation9 + $0x3d0] sm:$0xff]
          %v2685 = vld [vmem:[#allocation9 + $0x3d8] sm:$0xff]
          %v2686 = vld [vmem:[#allocation9 + $0x3e0] sm:$0xff]
          %v2687 = vld [vmem:[#allocation9 + $0x3e8] sm:$0xff]
          %v2688 = vld [vmem:[#allocation9 + $0x3f0] sm:$0xff]
          %v2689 = vld [vmem:[#allocation9 + $0x3f8] sm:$0xff]
          %v2690 = vld [vmem:[#allocation11] sm:$0x3]
          %v2692 = vlaneseq
          %v2693 = vshrl.u32 %v2692, 7
          %v2694 = vsub.s32 0, %v2693
          %v2695 = vrot.slane %v2690, %v2694
          %v2696 = vlaneseq
          %v2697 = vshrl.u32 %v2696, 7
          %v2698 = vsub.s32 1, %v2697
          %v2699 = vrot.slane %v2690, %v2698
          %v2830 = vunpack.c.l.b16 %v2562
          %v2831 = vunpack.c.h.b16 %v2562
          %v2832 = vunpack.c.l.b16 %v2563
          %v2833 = vunpack.c.h.b16 %v2563
          %v2834 = vunpack.c.l.b16 %v2564
          %v2835 = vunpack.c.h.b16 %v2564
          %v2836 = vunpack.c.l.b16 %v2565
          %v2837 = vunpack.c.h.b16 %v2565
          %v2838 = vunpack.c.l.b16 %v2566
          %v2839 = vunpack.c.h.b16 %v2566
          %v2840 = vunpack.c.l.b16 %v2567
          %v2841 = vunpack.c.h.b16 %v2567
          %v2842 = vunpack.c.l.b16 %v2568
          %v2843 = vunpack.c.h.b16 %v2568
          %v2844 = vunpack.c.l.b16 %v2569
          %v2845 = vunpack.c.h.b16 %v2569
          %v2846 = vunpack.c.l.b16 %v2570
          %v2847 = vunpack.c.h.b16 %v2570
          %v2848 = vunpack.c.l.b16 %v2571
          %v2849 = vunpack.c.h.b16 %v2571
          %v2850 = vunpack.c.l.b16 %v2572
          %v2851 = vunpack.c.h.b16 %v2572
          %v2852 = vunpack.c.l.b16 %v2573
          %v2853 = vunpack.c.h.b16 %v2573
          %v2854 = vunpack.c.l.b16 %v2574
          %v2855 = vunpack.c.h.b16 %v2574
          %v2856 = vunpack.c.l.b16 %v2575
          %v2857 = vunpack.c.h.b16 %v2575
          %v2858 = vunpack.c.l.b16 %v2576
          %v2859 = vunpack.c.h.b16 %v2576
          %v2860 = vunpack.c.l.b16 %v2577
          %v2861 = vunpack.c.h.b16 %v2577
          %v2862 = vunpack.c.l.b16 %v2578
          %v2863 = vunpack.c.h.b16 %v2578
          %v2864 = vunpack.c.l.b16 %v2579
          %v2865 = vunpack.c.h.b16 %v2579
          %v2866 = vunpack.c.l.b16 %v2580
          %v2867 = vunpack.c.h.b16 %v2580
          %v2868 = vunpack.c.l.b16 %v2581
          %v2869 = vunpack.c.h.b16 %v2581
          %v2870 = vunpack.c.l.b16 %v2582
          %v2871 = vunpack.c.h.b16 %v2582
          %v2872 = vunpack.c.l.b16 %v2583
          %v2873 = vunpack.c.h.b16 %v2583
          %v2874 = vunpack.c.l.b16 %v2584
          %v2875 = vunpack.c.h.b16 %v2584
          %v2876 = vunpack.c.l.b16 %v2585
          %v2877 = vunpack.c.h.b16 %v2585
          %v2878 = vunpack.c.l.b16 %v2586
          %v2879 = vunpack.c.h.b16 %v2586
          %v2880 = vunpack.c.l.b16 %v2587
          %v2881 = vunpack.c.h.b16 %v2587
          %v2882 = vunpack.c.l.b16 %v2588
          %v2883 = vunpack.c.h.b16 %v2588
          %v2884 = vunpack.c.l.b16 %v2589
          %v2885 = vunpack.c.h.b16 %v2589
          %v2886 = vunpack.c.l.b16 %v2590
          %v2887 = vunpack.c.h.b16 %v2590
          %v2888 = vunpack.c.l.b16 %v2591
          %v2889 = vunpack.c.h.b16 %v2591
          %v2890 = vunpack.c.l.b16 %v2592
          %v2891 = vunpack.c.h.b16 %v2592
          %v2892 = vunpack.c.l.b16 %v2593
          %v2893 = vunpack.c.h.b16 %v2593
          %v2894 = vunpack.c.l.b16 %v2594
          %v2895 = vunpack.c.h.b16 %v2594
          %v2896 = vunpack.c.l.b16 %v2595
          %v2897 = vunpack.c.h.b16 %v2595
          %v2898 = vunpack.c.l.b16 %v2596
          %v2899 = vunpack.c.h.b16 %v2596
          %v2900 = vunpack.c.l.b16 %v2597
          %v2901 = vunpack.c.h.b16 %v2597
          %v2902 = vunpack.c.l.b16 %v2598
          %v2903 = vunpack.c.h.b16 %v2598
          %v2904 = vunpack.c.l.b16 %v2599
          %v2905 = vunpack.c.h.b16 %v2599
          %v2906 = vunpack.c.l.b16 %v2600
          %v2907 = vunpack.c.h.b16 %v2600
          %v2908 = vunpack.c.l.b16 %v2601
          %v2909 = vunpack.c.h.b16 %v2601
          %v2910 = vunpack.c.l.b16 %v2602
          %v2911 = vunpack.c.h.b16 %v2602
          %v2912 = vunpack.c.l.b16 %v2603
          %v2913 = vunpack.c.h.b16 %v2603
          %v2914 = vunpack.c.l.b16 %v2604
          %v2915 = vunpack.c.h.b16 %v2604
          %v2916 = vunpack.c.l.b16 %v2605
          %v2917 = vunpack.c.h.b16 %v2605
          %v2918 = vunpack.c.l.b16 %v2606
          %v2919 = vunpack.c.h.b16 %v2606
          %v2920 = vunpack.c.l.b16 %v2607
          %v2921 = vunpack.c.h.b16 %v2607
          %v2922 = vunpack.c.l.b16 %v2608
          %v2923 = vunpack.c.h.b16 %v2608
          %v2924 = vunpack.c.l.b16 %v2609
          %v2925 = vunpack.c.h.b16 %v2609
          %v2926 = vunpack.c.l.b16 %v2610
          %v2927 = vunpack.c.h.b16 %v2610
          %v2928 = vunpack.c.l.b16 %v2611
          %v2929 = vunpack.c.h.b16 %v2611
          %v2930 = vunpack.c.l.b16 %v2612
          %v2931 = vunpack.c.h.b16 %v2612
          %v2932 = vunpack.c.l.b16 %v2613
          %v2933 = vunpack.c.h.b16 %v2613
          %v2934 = vunpack.c.l.b16 %v2614
          %v2935 = vunpack.c.h.b16 %v2614
          %v2936 = vunpack.c.l.b16 %v2615
          %v2937 = vunpack.c.h.b16 %v2615
          %v2938 = vunpack.c.l.b16 %v2616
          %v2939 = vunpack.c.h.b16 %v2616
          %v2940 = vunpack.c.l.b16 %v2617
          %v2941 = vunpack.c.h.b16 %v2617
          %v2942 = vunpack.c.l.b16 %v2618
          %v2943 = vunpack.c.h.b16 %v2618
          %v2944 = vunpack.c.l.b16 %v2619
          %v2945 = vunpack.c.h.b16 %v2619
          %v2946 = vunpack.c.l.b16 %v2620
          %v2947 = vunpack.c.h.b16 %v2620
          %v2948 = vunpack.c.l.b16 %v2621
          %v2949 = vunpack.c.h.b16 %v2621
          %v2950 = vunpack.c.l.b16 %v2622
          %v2951 = vunpack.c.h.b16 %v2622
          %v2952 = vunpack.c.l.b16 %v2623
          %v2953 = vunpack.c.h.b16 %v2623
          %v2954 = vunpack.c.l.b16 %v2624
          %v2955 = vunpack.c.h.b16 %v2624
          %v2956 = vunpack.c.l.b16 %v2625
          %v2957 = vunpack.c.h.b16 %v2625
          %v2958 = vunpack.c.l.b16 %v2626
          %v2959 = vunpack.c.h.b16 %v2626
          %v2960 = vunpack.c.l.b16 %v2627
          %v2961 = vunpack.c.h.b16 %v2627
          %v2962 = vunpack.c.l.b16 %v2628
          %v2963 = vunpack.c.h.b16 %v2628
          %v2964 = vunpack.c.l.b16 %v2629
          %v2965 = vunpack.c.h.b16 %v2629
          %v2966 = vunpack.c.l.b16 %v2630
          %v2967 = vunpack.c.h.b16 %v2630
          %v2968 = vunpack.c.l.b16 %v2631
          %v2969 = vunpack.c.h.b16 %v2631
          %v2970 = vunpack.c.l.b16 %v2632
          %v2971 = vunpack.c.h.b16 %v2632
          %v2972 = vunpack.c.l.b16 %v2633
          %v2973 = vunpack.c.h.b16 %v2633
          %v2974 = vunpack.c.l.b16 %v2634
          %v2975 = vunpack.c.h.b16 %v2634
          %v2976 = vunpack.c.l.b16 %v2635
          %v2977 = vunpack.c.h.b16 %v2635
          %v2978 = vunpack.c.l.b16 %v2636
          %v2979 = vunpack.c.h.b16 %v2636
          %v2980 = vunpack.c.l.b16 %v2637
          %v2981 = vunpack.c.h.b16 %v2637
          %v2982 = vunpack.c.l.b16 %v2638
          %v2983 = vunpack.c.h.b16 %v2638
          %v2984 = vunpack.c.l.b16 %v2639
          %v2985 = vunpack.c.h.b16 %v2639
          %v2986 = vunpack.c.l.b16 %v2640
          %v2987 = vunpack.c.h.b16 %v2640
          %v2988 = vunpack.c.l.b16 %v2641
          %v2989 = vunpack.c.h.b16 %v2641
          %v2990 = vunpack.c.l.b16 %v2642
          %v2991 = vunpack.c.h.b16 %v2642
          %v2992 = vunpack.c.l.b16 %v2643
          %v2993 = vunpack.c.h.b16 %v2643
          %v2994 = vunpack.c.l.b16 %v2644
          %v2995 = vunpack.c.h.b16 %v2644
          %v2996 = vunpack.c.l.b16 %v2645
          %v2997 = vunpack.c.h.b16 %v2645
          %v2998 = vunpack.c.l.b16 %v2646
          %v2999 = vunpack.c.h.b16 %v2646
          %v3000 = vunpack.c.l.b16 %v2647
          %v3001 = vunpack.c.h.b16 %v2647
          %v3002 = vunpack.c.l.b16 %v2648
          %v3003 = vunpack.c.h.b16 %v2648
          %v3004 = vunpack.c.l.b16 %v2649
          %v3005 = vunpack.c.h.b16 %v2649
          %v3006 = vunpack.c.l.b16 %v2650
          %v3007 = vunpack.c.h.b16 %v2650
          %v3008 = vunpack.c.l.b16 %v2651
          %v3009 = vunpack.c.h.b16 %v2651
          %v3010 = vunpack.c.l.b16 %v2652
          %v3011 = vunpack.c.h.b16 %v2652
          %v3012 = vunpack.c.l.b16 %v2653
          %v3013 = vunpack.c.h.b16 %v2653
          %v3014 = vunpack.c.l.b16 %v2654
          %v3015 = vunpack.c.h.b16 %v2654
          %v3016 = vunpack.c.l.b16 %v2655
          %v3017 = vunpack.c.h.b16 %v2655
          %v3018 = vunpack.c.l.b16 %v2656
          %v3019 = vunpack.c.h.b16 %v2656
          %v3020 = vunpack.c.l.b16 %v2657
          %v3021 = vunpack.c.h.b16 %v2657
          %v3022 = vunpack.c.l.b16 %v2658
          %v3023 = vunpack.c.h.b16 %v2658
          %v3024 = vunpack.c.l.b16 %v2659
          %v3025 = vunpack.c.h.b16 %v2659
          %v3026 = vunpack.c.l.b16 %v2660
          %v3027 = vunpack.c.h.b16 %v2660
          %v3028 = vunpack.c.l.b16 %v2661
          %v3029 = vunpack.c.h.b16 %v2661
          %v3030 = vunpack.c.l.b16 %v2662
          %v3031 = vunpack.c.h.b16 %v2662
          %v3032 = vunpack.c.l.b16 %v2663
          %v3033 = vunpack.c.h.b16 %v2663
          %v3034 = vunpack.c.l.b16 %v2664
          %v3035 = vunpack.c.h.b16 %v2664
          %v3036 = vunpack.c.l.b16 %v2665
          %v3037 = vunpack.c.h.b16 %v2665
          %v3038 = vunpack.c.l.b16 %v2666
          %v3039 = vunpack.c.h.b16 %v2666
          %v3040 = vunpack.c.l.b16 %v2667
          %v3041 = vunpack.c.h.b16 %v2667
          %v3042 = vunpack.c.l.b16 %v2668
          %v3043 = vunpack.c.h.b16 %v2668
          %v3044 = vunpack.c.l.b16 %v2669
          %v3045 = vunpack.c.h.b16 %v2669
          %v3046 = vunpack.c.l.b16 %v2670
          %v3047 = vunpack.c.h.b16 %v2670
          %v3048 = vunpack.c.l.b16 %v2671
          %v3049 = vunpack.c.h.b16 %v2671
          %v3050 = vunpack.c.l.b16 %v2672
          %v3051 = vunpack.c.h.b16 %v2672
          %v3052 = vunpack.c.l.b16 %v2673
          %v3053 = vunpack.c.h.b16 %v2673
          %v3054 = vunpack.c.l.b16 %v2674
          %v3055 = vunpack.c.h.b16 %v2674
          %v3056 = vunpack.c.l.b16 %v2675
          %v3057 = vunpack.c.h.b16 %v2675
          %v3058 = vunpack.c.l.b16 %v2676
          %v3059 = vunpack.c.h.b16 %v2676
          %v3060 = vunpack.c.l.b16 %v2677
          %v3061 = vunpack.c.h.b16 %v2677
          %v3062 = vunpack.c.l.b16 %v2678
          %v3063 = vunpack.c.h.b16 %v2678
          %v3064 = vunpack.c.l.b16 %v2679
          %v3065 = vunpack.c.h.b16 %v2679
          %v3066 = vunpack.c.l.b16 %v2680
          %v3067 = vunpack.c.h.b16 %v2680
          %v3068 = vunpack.c.l.b16 %v2681
          %v3069 = vunpack.c.h.b16 %v2681
          %v3070 = vunpack.c.l.b16 %v2682
          %v3071 = vunpack.c.h.b16 %v2682
          %v3072 = vunpack.c.l.b16 %v2683
          %v3073 = vunpack.c.h.b16 %v2683
          %v3074 = vunpack.c.l.b16 %v2684
          %v3075 = vunpack.c.h.b16 %v2684
          %v3076 = vunpack.c.l.b16 %v2685
          %v3077 = vunpack.c.h.b16 %v2685
          %v3078 = vunpack.c.l.b16 %v2686
          %v3079 = vunpack.c.h.b16 %v2686
          %v3080 = vunpack.c.l.b16 %v2687
          %v3081 = vunpack.c.h.b16 %v2687
          %v3082 = vunpack.c.l.b16 %v2688
          %v3083 = vunpack.c.h.b16 %v2688
          %v3084 = vunpack.c.l.b16 %v2689
          %v3085 = vunpack.c.h.b16 %v2689
          %v3086 = vpack.c.b16 %v2832, %v2830
          %v3087 = vpack.c.b16 %v2833, %v2831
          %v3088 = vpack.c.b16 %v2836, %v2834
          %v3089 = vpack.c.b16 %v2837, %v2835
          %v3090 = vpack.c.b16 %v2840, %v2838
          %v3091 = vpack.c.b16 %v2841, %v2839
          %v3092 = vpack.c.b16 %v2844, %v2842
          %v3093 = vpack.c.b16 %v2845, %v2843
          %v3094 = vpack.c.b16 %v2848, %v2846
          %v3095 = vpack.c.b16 %v2849, %v2847
          %v3096 = vpack.c.b16 %v2852, %v2850
          %v3097 = vpack.c.b16 %v2853, %v2851
          %v3098 = vpack.c.b16 %v2856, %v2854
          %v3099 = vpack.c.b16 %v2857, %v2855
          %v3100 = vpack.c.b16 %v2860, %v2858
          %v3101 = vpack.c.b16 %v2861, %v2859
          %v3102 = vpack.c.b16 %v2864, %v2862
          %v3103 = vpack.c.b16 %v2865, %v2863
          %v3104 = vpack.c.b16 %v2868, %v2866
          %v3105 = vpack.c.b16 %v2869, %v2867
          %v3106 = vpack.c.b16 %v2872, %v2870
          %v3107 = vpack.c.b16 %v2873, %v2871
          %v3108 = vpack.c.b16 %v2876, %v2874
          %v3109 = vpack.c.b16 %v2877, %v2875
          %v3110 = vpack.c.b16 %v2880, %v2878
          %v3111 = vpack.c.b16 %v2881, %v2879
          %v3112 = vpack.c.b16 %v2884, %v2882
          %v3113 = vpack.c.b16 %v2885, %v2883
          %v3114 = vpack.c.b16 %v2888, %v2886
          %v3115 = vpack.c.b16 %v2889, %v2887
          %v3116 = vpack.c.b16 %v2892, %v2890
          %v3117 = vpack.c.b16 %v2893, %v2891
          %v3118 = vpack.c.b16 %v2896, %v2894
          %v3119 = vpack.c.b16 %v2897, %v2895
          %v3120 = vpack.c.b16 %v2900, %v2898
          %v3121 = vpack.c.b16 %v2901, %v2899
          %v3122 = vpack.c.b16 %v2904, %v2902
          %v3123 = vpack.c.b16 %v2905, %v2903
          %v3124 = vpack.c.b16 %v2908, %v2906
          %v3125 = vpack.c.b16 %v2909, %v2907
          %v3126 = vpack.c.b16 %v2912, %v2910
          %v3127 = vpack.c.b16 %v2913, %v2911
          %v3128 = vpack.c.b16 %v2916, %v2914
          %v3129 = vpack.c.b16 %v2917, %v2915
          %v3130 = vpack.c.b16 %v2920, %v2918
          %v3131 = vpack.c.b16 %v2921, %v2919
          %v3132 = vpack.c.b16 %v2924, %v2922
          %v3133 = vpack.c.b16 %v2925, %v2923
          %v3134 = vpack.c.b16 %v2928, %v2926
          %v3135 = vpack.c.b16 %v2929, %v2927
          %v3136 = vpack.c.b16 %v2932, %v2930
          %v3137 = vpack.c.b16 %v2933, %v2931
          %v3138 = vpack.c.b16 %v2936, %v2934
          %v3139 = vpack.c.b16 %v2937, %v2935
          %v3140 = vpack.c.b16 %v2940, %v2938
          %v3141 = vpack.c.b16 %v2941, %v2939
          %v3142 = vpack.c.b16 %v2944, %v2942
          %v3143 = vpack.c.b16 %v2945, %v2943
          %v3144 = vpack.c.b16 %v2948, %v2946
          %v3145 = vpack.c.b16 %v2949, %v2947
          %v3146 = vpack.c.b16 %v2952, %v2950
          %v3147 = vpack.c.b16 %v2953, %v2951
          %v3148 = vpack.c.b16 %v2956, %v2954
          %v3149 = vpack.c.b16 %v2957, %v2955
          %v3150 = vpack.c.b16 %v2960, %v2958
          %v3151 = vpack.c.b16 %v2961, %v2959
          %v3152 = vpack.c.b16 %v2964, %v2962
          %v3153 = vpack.c.b16 %v2965, %v2963
          %v3154 = vpack.c.b16 %v2968, %v2966
          %v3155 = vpack.c.b16 %v2969, %v2967
          %v3156 = vpack.c.b16 %v2972, %v2970
          %v3157 = vpack.c.b16 %v2973, %v2971
          %v3158 = vpack.c.b16 %v2976, %v2974
          %v3159 = vpack.c.b16 %v2977, %v2975
          %v3160 = vpack.c.b16 %v2980, %v2978
          %v3161 = vpack.c.b16 %v2981, %v2979
          %v3162 = vpack.c.b16 %v2984, %v2982
          %v3163 = vpack.c.b16 %v2985, %v2983
          %v3164 = vpack.c.b16 %v2988, %v2986
          %v3165 = vpack.c.b16 %v2989, %v2987
          %v3166 = vpack.c.b16 %v2992, %v2990
          %v3167 = vpack.c.b16 %v2993, %v2991
          %v3168 = vpack.c.b16 %v2996, %v2994
          %v3169 = vpack.c.b16 %v2997, %v2995
          %v3170 = vpack.c.b16 %v3000, %v2998
          %v3171 = vpack.c.b16 %v3001, %v2999
          %v3172 = vpack.c.b16 %v3004, %v3002
          %v3173 = vpack.c.b16 %v3005, %v3003
          %v3174 = vpack.c.b16 %v3008, %v3006
          %v3175 = vpack.c.b16 %v3009, %v3007
          %v3176 = vpack.c.b16 %v3012, %v3010
          %v3177 = vpack.c.b16 %v3013, %v3011
          %v3178 = vpack.c.b16 %v3016, %v3014
          %v3179 = vpack.c.b16 %v3017, %v3015
          %v3180 = vpack.c.b16 %v3020, %v3018
          %v3181 = vpack.c.b16 %v3021, %v3019
          %v3182 = vpack.c.b16 %v3024, %v3022
          %v3183 = vpack.c.b16 %v3025, %v3023
          %v3184 = vpack.c.b16 %v3028, %v3026
          %v3185 = vpack.c.b16 %v3029, %v3027
          %v3186 = vpack.c.b16 %v3032, %v3030
          %v3187 = vpack.c.b16 %v3033, %v3031
          %v3188 = vpack.c.b16 %v3036, %v3034
          %v3189 = vpack.c.b16 %v3037, %v3035
          %v3190 = vpack.c.b16 %v3040, %v3038
          %v3191 = vpack.c.b16 %v3041, %v3039
          %v3192 = vpack.c.b16 %v3044, %v3042
          %v3193 = vpack.c.b16 %v3045, %v3043
          %v3194 = vpack.c.b16 %v3048, %v3046
          %v3195 = vpack.c.b16 %v3049, %v3047
          %v3196 = vpack.c.b16 %v3052, %v3050
          %v3197 = vpack.c.b16 %v3053, %v3051
          %v3198 = vpack.c.b16 %v3056, %v3054
          %v3199 = vpack.c.b16 %v3057, %v3055
          %v3200 = vpack.c.b16 %v3060, %v3058
          %v3201 = vpack.c.b16 %v3061, %v3059
          %v3202 = vpack.c.b16 %v3064, %v3062
          %v3203 = vpack.c.b16 %v3065, %v3063
          %v3204 = vpack.c.b16 %v3068, %v3066
          %v3205 = vpack.c.b16 %v3069, %v3067
          %v3206 = vpack.c.b16 %v3072, %v3070
          %v3207 = vpack.c.b16 %v3073, %v3071
          %v3208 = vpack.c.b16 %v3076, %v3074
          %v3209 = vpack.c.b16 %v3077, %v3075
          %v3210 = vpack.c.b16 %v3080, %v3078
          %v3211 = vpack.c.b16 %v3081, %v3079
          %v3212 = vpack.c.b16 %v3084, %v3082
          %v3213 = vpack.c.b16 %v3085, %v3083
          %3342 = vmatprep.subr.bf16.mxu0 %v3087
          %3343 = vmatpush1.bf16.msra.mxu0 %v3086
          %3344 = vmatprep.subr.bf16.mxu0 %v3089
          %3345 = vmatpush1.bf16.msra.mxu0 %v3088
          %3346 = vmatprep.subr.bf16.mxu0 %v3091
          %3347 = vmatpush1.bf16.msra.mxu0 %v3090
          %3348 = vmatprep.subr.bf16.mxu0 %v3093
          %3349 = vmatpush1.bf16.msra.mxu0 %v3092
          %3350 = vmatprep.subr.bf16.mxu0 %v3095
          %3351 = vmatpush1.bf16.msra.mxu0 %v3094
          %3352 = vmatprep.subr.bf16.mxu0 %v3097
          %3353 = vmatpush1.bf16.msra.mxu0 %v3096
          %3354 = vmatprep.subr.bf16.mxu0 %v3099
          %3355 = vmatpush1.bf16.msra.mxu0 %v3098
          %3356 = vmatprep.subr.bf16.mxu0 %v3101
          %3357 = vmatpush1.bf16.msra.mxu0 %v3100
          %3358 = vmatprep.subr.bf16.mxu0 %v3103
          %3359 = vmatpush1.bf16.msra.mxu0 %v3102
          %3360 = vmatprep.subr.bf16.mxu0 %v3105
          %3361 = vmatpush1.bf16.msra.mxu0 %v3104
          %3362 = vmatprep.subr.bf16.mxu0 %v3107
          %3363 = vmatpush1.bf16.msra.mxu0 %v3106
          %3364 = vmatprep.subr.bf16.mxu0 %v3109
          %3365 = vmatpush1.bf16.msra.mxu0 %v3108
          %3366 = vmatprep.subr.bf16.mxu0 %v3111
          %3367 = vmatpush1.bf16.msra.mxu0 %v3110
          %3368 = vmatprep.subr.bf16.mxu0 %v3113
          %3369 = vmatpush1.bf16.msra.mxu0 %v3112
          %3370 = vmatprep.subr.bf16.mxu0 %v3115
          %3371 = vmatpush1.bf16.msra.mxu0 %v3114
          %3372 = vmatprep.subr.bf16.mxu0 %v3117
          %3373 = vmatpush1.bf16.msra.mxu0 %v3116
          %3374 = vmatprep.mubr.bf16.mxu0 %v2555
          %3375 = vmatmul.mubr.bf16.gmra.mrb[0].mxu0 %v2554
          %v3376 = vpop.f32.mrb[0].mxu0
          %v3377 = vadd.f32 %v2695, %v3376
          %v3378 = vpop.f32.mrb[0].mxu0
          %v3379 = vadd.f32 %v2699, %v3378
          %v3380 = vpop.f32.mrb[0].mxu0
          %v3381 = vpop.f32.mrb[0].mxu0
          %3382 = vdwg.mxu0
          %3383 = vmatprep.subr.bf16.mxu0 %v3119
          %3384 = vmatpush1.bf16.msra.mxu0 %v3118
          %3385 = vmatprep.subr.bf16.mxu0 %v3121
          %3386 = vmatpush1.bf16.msra.mxu0 %v3120
          %3387 = vmatprep.subr.bf16.mxu0 %v3123
          %3388 = vmatpush1.bf16.msra.mxu0 %v3122
          %3389 = vmatprep.subr.bf16.mxu0 %v3125
          %3390 = vmatpush1.bf16.msra.mxu0 %v3124
          %3391 = vmatprep.subr.bf16.mxu0 %v3127
          %3392 = vmatpush1.bf16.msra.mxu0 %v3126
          %3393 = vmatprep.subr.bf16.mxu0 %v3129
          %3394 = vmatpush1.bf16.msra.mxu0 %v3128
          %3395 = vmatprep.subr.bf16.mxu0 %v3131
          %3396 = vmatpush1.bf16.msra.mxu0 %v3130
          %3397 = vmatprep.subr.bf16.mxu0 %v3133
          %3398 = vmatpush1.bf16.msra.mxu0 %v3132
          %3399 = vmatprep.subr.bf16.mxu0 %v3135
          %3400 = vmatpush1.bf16.msra.mxu0 %v3134
          %3401 = vmatprep.subr.bf16.mxu0 %v3137
          %3402 = vmatpush1.bf16.msra.mxu0 %v3136
          %3403 = vmatprep.subr.bf16.mxu0 %v3139
          %3404 = vmatpush1.bf16.msra.mxu0 %v3138
          %3405 = vmatprep.subr.bf16.mxu0 %v3141
          %3406 = vmatpush1.bf16.msra.mxu0 %v3140
          %3407 = vmatprep.subr.bf16.mxu0 %v3143
          %3408 = vmatpush1.bf16.msra.mxu0 %v3142
          %3409 = vmatprep.subr.bf16.mxu0 %v3145
          %3410 = vmatpush1.bf16.msra.mxu0 %v3144
          %3411 = vmatprep.subr.bf16.mxu0 %v3147
          %3412 = vmatpush1.bf16.msra.mxu0 %v3146
          %3413 = vmatprep.subr.bf16.mxu0 %v3149
          %3414 = vmatpush1.bf16.msra.mxu0 %v3148
          %3415 = vmatprep.mubr.bf16.mxu0 %v2557
          %3416 = vmatmul.mubr.bf16.gmra.mrb[0].mxu0 %v2556
          %v3417 = vpop.f32.mrb[0].mxu0
          %v3418 = vadd.f32 %v3377, %v3417
          %v3419 = vpop.f32.mrb[0].mxu0
          %v3420 = vadd.f32 %v3379, %v3419
          %v3421 = vpop.f32.mrb[0].mxu0
          %v3422 = vpop.f32.mrb[0].mxu0
          %3423 = vdwg.mxu0
          %3424 = vmatprep.subr.bf16.mxu0 %v3151
          %3425 = vmatpush1.bf16.msra.mxu0 %v3150
          %3426 = vmatprep.subr.bf16.mxu0 %v3153
          %3427 = vmatpush1.bf16.msra.mxu0 %v3152
          %3428 = vmatprep.subr.bf16.mxu0 %v3155
          %3429 = vmatpush1.bf16.msra.mxu0 %v3154
          %3430 = vmatprep.subr.bf16.mxu0 %v3157
          %3431 = vmatpush1.bf16.msra.mxu0 %v3156
          %3432 = vmatprep.subr.bf16.mxu0 %v3159
          %3433 = vmatpush1.bf16.msra.mxu0 %v3158
          %3434 = vmatprep.subr.bf16.mxu0 %v3161
          %3435 = vmatpush1.bf16.msra.mxu0 %v3160
          %3436 = vmatprep.subr.bf16.mxu0 %v3163
          %3437 = vmatpush1.bf16.msra.mxu0 %v3162
          %3438 = vmatprep.subr.bf16.mxu0 %v3165
          %3439 = vmatpush1.bf16.msra.mxu0 %v3164
          %3440 = vmatprep.subr.bf16.mxu0 %v3167
          %3441 = vmatpush1.bf16.msra.mxu0 %v3166
          %3442 = vmatprep.subr.bf16.mxu0 %v3169
          %3443 = vmatpush1.bf16.msra.mxu0 %v3168
          %3444 = vmatprep.subr.bf16.mxu0 %v3171
          %3445 = vmatpush1.bf16.msra.mxu0 %v3170
          %3446 = vmatprep.subr.bf16.mxu0 %v3173
          %3447 = vmatpush1.bf16.msra.mxu0 %v3172
          %3448 = vmatprep.subr.bf16.mxu0 %v3175
          %3449 = vmatpush1.bf16.msra.mxu0 %v3174
          %3450 = vmatprep.subr.bf16.mxu0 %v3177
          %3451 = vmatpush1.bf16.msra.mxu0 %v3176
          %3452 = vmatprep.subr.bf16.mxu0 %v3179
          %3453 = vmatpush1.bf16.msra.mxu0 %v3178
          %3454 = vmatprep.subr.bf16.mxu0 %v3181
          %3455 = vmatpush1.bf16.msra.mxu0 %v3180
          %3456 = vmatprep.mubr.bf16.mxu0 %v2559
          %3457 = vmatmul.mubr.bf16.gmra.mrb[0].mxu0 %v2558
          %v3458 = vpop.f32.mrb[0].mxu0
          %v3459 = vadd.f32 %v3418, %v3458
          %v3460 = vpop.f32.mrb[0].mxu0
          %v3461 = vadd.f32 %v3420, %v3460
          %v3462 = vpop.f32.mrb[0].mxu0
          %v3463 = vpop.f32.mrb[0].mxu0
          %3464 = vdwg.mxu0
          %3465 = vmatprep.subr.bf16.mxu0 %v3183
          %3466 = vmatpush1.bf16.msra.mxu0 %v3182
          %3467 = vmatprep.subr.bf16.mxu0 %v3185
          %3468 = vmatpush1.bf16.msra.mxu0 %v3184
          %3469 = vmatprep.subr.bf16.mxu0 %v3187
          %3470 = vmatpush1.bf16.msra.mxu0 %v3186
          %3471 = vmatprep.subr.bf16.mxu0 %v3189
          %3472 = vmatpush1.bf16.msra.mxu0 %v3188
          %3473 = vmatprep.subr.bf16.mxu0 %v3191
          %3474 = vmatpush1.bf16.msra.mxu0 %v3190
          %3475 = vmatprep.subr.bf16.mxu0 %v3193
          %3476 = vmatpush1.bf16.msra.mxu0 %v3192
          %3477 = vmatprep.subr.bf16.mxu0 %v3195
          %3478 = vmatpush1.bf16.msra.mxu0 %v3194
          %3479 = vmatprep.subr.bf16.mxu0 %v3197
          %3480 = vmatpush1.bf16.msra.mxu0 %v3196
          %3481 = vmatprep.subr.bf16.mxu0 %v3199
          %3482 = vmatpush1.bf16.msra.mxu0 %v3198
          %3483 = vmatprep.subr.bf16.mxu0 %v3201
          %3484 = vmatpush1.bf16.msra.mxu0 %v3200
          %3485 = vmatprep.subr.bf16.mxu0 %v3203
          %3486 = vmatpush1.bf16.msra.mxu0 %v3202
          %3487 = vmatprep.subr.bf16.mxu0 %v3205
          %3488 = vmatpush1.bf16.msra.mxu0 %v3204
          %3489 = vmatprep.subr.bf16.mxu0 %v3207
          %3490 = vmatpush1.bf16.msra.mxu0 %v3206
          %3491 = vmatprep.subr.bf16.mxu0 %v3209
          %3492 = vmatpush1.bf16.msra.mxu0 %v3208
          %3493 = vmatprep.subr.bf16.mxu0 %v3211
          %3494 = vmatpush1.bf16.msra.mxu0 %v3210
          %3495 = vmatprep.subr.bf16.mxu0 %v3213
          %3496 = vmatpush1.bf16.msra.mxu0 %v3212
          %3497 = vmatprep.mubr.bf16.mxu0 %v2561
          %3498 = vmatmul.mubr.bf16.gmra.mrb[0].mxu0 %v2560
          %v3499 = vpop.f32.mrb[0].mxu0
          %v3500 = vadd.f32 %v3459, %v3499
          %v3501 = vpop.f32.mrb[0].mxu0
          %v3502 = vadd.f32 %v3461, %v3501
          %v3503 = vpop.f32.mrb[0].mxu0
          %v3504 = vpop.f32.mrb[0].mxu0
          %3505 = vdwg.mxu0
          %v3506 = vmax.f32 %v3500, 0.0
          %v3507 = vmax.f32 %v3502, 0.0
          %v3508 = vpack.c.bf16 %v3506, %v3506
          %v3509 = vpack.c.bf16 %v3507, %v3507
          %v3510 = vld [vmem:[#allocation12] sm:$0xf]
          %v3511 = vld [vmem:[#allocation12 + $0x4] sm:$0xf]
          %v3512 = vld [vmem:[#allocation12 + $0x8] sm:$0xf]
          %v3513 = vld [vmem:[#allocation12 + $0xc] sm:$0xf]
          %v3514 = vld [vmem:[#allocation12 + $0x10] sm:$0xf]
          %v3515 = vld [vmem:[#allocation12 + $0x14] sm:$0xf]
          %v3516 = vld [vmem:[#allocation12 + $0x18] sm:$0xf]
          %v3517 = vld [vmem:[#allocation12 + $0x1c] sm:$0xf]
          %v3518 = vld [vmem:[#allocation12 + $0x20] sm:$0xf]
          %v3519 = vld [vmem:[#allocation12 + $0x24] sm:$0xf]
          %v3520 = vld [vmem:[#allocation12 + $0x28] sm:$0xf]
          %v3521 = vld [vmem:[#allocation12 + $0x2c] sm:$0xf]
          %v3522 = vld [vmem:[#allocation12 + $0x30] sm:$0xf]
          %v3523 = vld [vmem:[#allocation12 + $0x34] sm:$0xf]
          %v3524 = vld [vmem:[#allocation12 + $0x38] sm:$0xf]
          %v3525 = vld [vmem:[#allocation12 + $0x3c] sm:$0xf]
          %v3526 = vld [vmem:[#allocation12 + $0x40] sm:$0xf]
          %v3527 = vld [vmem:[#allocation12 + $0x44] sm:$0xf]
          %v3528 = vld [vmem:[#allocation12 + $0x48] sm:$0xf]
          %v3529 = vld [vmem:[#allocation12 + $0x4c] sm:$0xf]
          %v3530 = vld [vmem:[#allocation12 + $0x50] sm:$0xf]
          %v3531 = vld [vmem:[#allocation12 + $0x54] sm:$0xf]
          %v3532 = vld [vmem:[#allocation12 + $0x58] sm:$0xf]
          %v3533 = vld [vmem:[#allocation12 + $0x5c] sm:$0xf]
          %v3534 = vld [vmem:[#allocation12 + $0x60] sm:$0xf]
          %v3535 = vld [vmem:[#allocation12 + $0x64] sm:$0xf]
          %v3536 = vld [vmem:[#allocation12 + $0x68] sm:$0xf]
          %v3537 = vld [vmem:[#allocation12 + $0x6c] sm:$0xf]
          %v3538 = vld [vmem:[#allocation12 + $0x70] sm:$0xf]
          %v3539 = vld [vmem:[#allocation12 + $0x74] sm:$0xf]
          %v3540 = vld [vmem:[#allocation12 + $0x78] sm:$0xf]
          %v3541 = vld [vmem:[#allocation12 + $0x7c] sm:$0xf]
          %v3542 = vld [vmem:[#allocation14] sm:$0x1]
          %v3544 = vlaneseq
          %v3545 = vshrl.u32 %v3544, 7
          %v3546 = vsub.s32 0, %v3545
          %v3547 = vrot.slane %v3542, %v3546
          %v3581 = vunpack.c.l.b16 %v3510
          %v3582 = vunpack.c.l.b16 %v3511
          %v3583 = vunpack.c.l.b16 %v3512
          %v3584 = vunpack.c.l.b16 %v3513
          %v3585 = vunpack.c.l.b16 %v3514
          %v3586 = vunpack.c.l.b16 %v3515
          %v3587 = vunpack.c.l.b16 %v3516
          %v3588 = vunpack.c.l.b16 %v3517
          %v3589 = vunpack.c.l.b16 %v3518
          %v3590 = vunpack.c.l.b16 %v3519
          %v3591 = vunpack.c.l.b16 %v3520
          %v3592 = vunpack.c.l.b16 %v3521
          %v3593 = vunpack.c.l.b16 %v3522
          %v3594 = vunpack.c.l.b16 %v3523
          %v3595 = vunpack.c.l.b16 %v3524
          %v3596 = vunpack.c.l.b16 %v3525
          %v3597 = vunpack.c.l.b16 %v3526
          %v3598 = vunpack.c.l.b16 %v3527
          %v3599 = vunpack.c.l.b16 %v3528
          %v3600 = vunpack.c.l.b16 %v3529
          %v3601 = vunpack.c.l.b16 %v3530
          %v3602 = vunpack.c.l.b16 %v3531
          %v3603 = vunpack.c.l.b16 %v3532
          %v3604 = vunpack.c.l.b16 %v3533
          %v3605 = vunpack.c.l.b16 %v3534
          %v3606 = vunpack.c.l.b16 %v3535
          %v3607 = vunpack.c.l.b16 %v3536
          %v3608 = vunpack.c.l.b16 %v3537
          %v3609 = vunpack.c.l.b16 %v3538
          %v3610 = vunpack.c.l.b16 %v3539
          %v3611 = vunpack.c.l.b16 %v3540
          %v3612 = vunpack.c.l.b16 %v3541
          %v3613 = vpack.c.b16 %v3582, %v3581
          %v3614 = vpack.c.b16 %v3584, %v3583
          %v3615 = vpack.c.b16 %v3586, %v3585
          %v3616 = vpack.c.b16 %v3588, %v3587
          %v3617 = vpack.c.b16 %v3590, %v3589
          %v3618 = vpack.c.b16 %v3592, %v3591
          %v3619 = vpack.c.b16 %v3594, %v3593
          %v3620 = vpack.c.b16 %v3596, %v3595
          %v3621 = vpack.c.b16 %v3598, %v3597
          %v3622 = vpack.c.b16 %v3600, %v3599
          %v3623 = vpack.c.b16 %v3602, %v3601
          %v3624 = vpack.c.b16 %v3604, %v3603
          %v3625 = vpack.c.b16 %v3606, %v3605
          %v3626 = vpack.c.b16 %v3608, %v3607
          %v3627 = vpack.c.b16 %v3610, %v3609
          %v3628 = vpack.c.b16 %v3612, %v3611
          %3645 = vmatprep.subr.bf16.mxu0 0
          %3646 = vmatpush1.bf16.msra.mxu0 %v3613
          %3647 = vmatprep.subr.bf16.mxu0 0
          %3648 = vmatpush1.bf16.msra.mxu0 %v3614
          %3649 = vmatprep.subr.bf16.mxu0 0
          %3650 = vmatpush1.bf16.msra.mxu0 %v3615
          %3651 = vmatprep.subr.bf16.mxu0 0
          %3652 = vmatpush1.bf16.msra.mxu0 %v3616
          %3653 = vmatprep.subr.bf16.mxu0 0
          %3654 = vmatpush1.bf16.msra.mxu0 %v3617
          %3655 = vmatprep.subr.bf16.mxu0 0
          %3656 = vmatpush1.bf16.msra.mxu0 %v3618
          %3657 = vmatprep.subr.bf16.mxu0 0
          %3658 = vmatpush1.bf16.msra.mxu0 %v3619
          %3659 = vmatprep.subr.bf16.mxu0 0
          %3660 = vmatpush1.bf16.msra.mxu0 %v3620
          %3661 = vmatprep.subr.bf16.mxu0 0
          %3662 = vmatpush1.bf16.msra.mxu0 %v3621
          %3663 = vmatprep.subr.bf16.mxu0 0
          %3664 = vmatpush1.bf16.msra.mxu0 %v3622
          %3665 = vmatprep.subr.bf16.mxu0 0
          %3666 = vmatpush1.bf16.msra.mxu0 %v3623
          %3667 = vmatprep.subr.bf16.mxu0 0
          %3668 = vmatpush1.bf16.msra.mxu0 %v3624
          %3669 = vmatprep.subr.bf16.mxu0 0
          %3670 = vmatpush1.bf16.msra.mxu0 %v3625
          %3671 = vmatprep.subr.bf16.mxu0 0
          %3672 = vmatpush1.bf16.msra.mxu0 %v3626
          %3673 = vmatprep.subr.bf16.mxu0 0
          %3674 = vmatpush1.bf16.msra.mxu0 %v3627
          %3675 = vmatprep.subr.bf16.mxu0 0
          %3676 = vmatpush1.bf16.msra.mxu0 %v3628
          %3677 = vmatprep.mubr.bf16.mxu0 %v3509
          %3678 = vmatmul.mubr.bf16.gmra.mrb[0].mxu0 %v3508
          %v3679 = vpop.f32.mrb[0].mxu0
          %v3680 = vadd.f32 %v3547, %v3679
          %v3681 = vpop.f32.mrb[0].mxu0
          %v3682 = vpop.f32.mrb[0].mxu0
          %v3683 = vpop.f32.mrb[0].mxu0
          %3684 = vdwg.mxu0
          %v3685 = vmax.f32 %v3680, 0.0
          %v3686 = vpack.c.bf16 %v3685, %v3685
          %v3687 = vld [vmem:[#allocation15] sm:$0xf]
          %v3688 = vld [vmem:[#allocation15 + $0x4] sm:$0xf]
          %v3689 = vld [vmem:[#allocation15 + $0x8] sm:$0xf]
          %v3690 = vld [vmem:[#allocation15 + $0xc] sm:$0xf]
          %v3691 = vld [vmem:[#allocation15 + $0x10] sm:$0xf]
          %v3692 = vld [vmem:[#allocation15 + $0x14] sm:$0xf]
          %v3693 = vld [vmem:[#allocation15 + $0x18] sm:$0xf]
          %v3694 = vld [vmem:[#allocation15 + $0x1c] sm:$0xf]
          %v3695 = vld [vmem:[#allocation15 + $0x20] sm:$0xf]
          %v3696 = vld [vmem:[#allocation15 + $0x24] sm:$0xf]
          %v3697 = vld [vmem:[#allocation15 + $0x28] sm:$0xf]
          %v3698 = vld [vmem:[#allocation15 + $0x2c] sm:$0xf]
          %v3699 = vld [vmem:[#allocation15 + $0x30] sm:$0xf]
          %v3700 = vld [vmem:[#allocation15 + $0x34] sm:$0xf]
          %v3701 = vld [vmem:[#allocation15 + $0x38] sm:$0xf]
          %v3702 = vld [vmem:[#allocation15 + $0x3c] sm:$0xf]
          %v3703 = vld [vmem:[#allocation17] sm:$0x1]
          %v3705 = vlaneseq
          %v3706 = vshrl.u32 %v3705, 7
          %v3707 = vsub.s32 0, %v3706
          %v3708 = vrot.slane %v3703, %v3707
          %v3726 = vunpack.c.l.b16 %v3687
          %v3727 = vunpack.c.l.b16 %v3688
          %v3728 = vunpack.c.l.b16 %v3689
          %v3729 = vunpack.c.l.b16 %v3690
          %v3730 = vunpack.c.l.b16 %v3691
          %v3731 = vunpack.c.l.b16 %v3692
          %v3732 = vunpack.c.l.b16 %v3693
          %v3733 = vunpack.c.l.b16 %v3694
          %v3734 = vunpack.c.l.b16 %v3695
          %v3735 = vunpack.c.l.b16 %v3696
          %v3736 = vunpack.c.l.b16 %v3697
          %v3737 = vunpack.c.l.b16 %v3698
          %v3738 = vunpack.c.l.b16 %v3699
          %v3739 = vunpack.c.l.b16 %v3700
          %v3740 = vunpack.c.l.b16 %v3701
          %v3741 = vunpack.c.l.b16 %v3702
          %v3742 = vpack.c.b16 %v3727, %v3726
          %v3743 = vpack.c.b16 %v3729, %v3728
          %v3744 = vpack.c.b16 %v3731, %v3730
          %v3745 = vpack.c.b16 %v3733, %v3732
          %v3746 = vpack.c.b16 %v3735, %v3734
          %v3747 = vpack.c.b16 %v3737, %v3736
          %v3748 = vpack.c.b16 %v3739, %v3738
          %v3749 = vpack.c.b16 %v3741, %v3740
          %3758 = vmatprep.subr.bf16.mxu0 0
          %3759 = vmatpush1.bf16.msra.mxu0 %v3742
          %3760 = vmatprep.subr.bf16.mxu0 0
          %3761 = vmatpush1.bf16.msra.mxu0 %v3743
          %3762 = vmatprep.subr.bf16.mxu0 0
          %3763 = vmatpush1.bf16.msra.mxu0 %v3744
          %3764 = vmatprep.subr.bf16.mxu0 0
          %3765 = vmatpush1.bf16.msra.mxu0 %v3745
          %3766 = vmatprep.subr.bf16.mxu0 0
          %3767 = vmatpush1.bf16.msra.mxu0 %v3746
          %3768 = vmatprep.subr.bf16.mxu0 0
          %3769 = vmatpush1.bf16.msra.mxu0 %v3747
          %3770 = vmatprep.subr.bf16.mxu0 0
          %3771 = vmatpush1.bf16.msra.mxu0 %v3748
          %3772 = vmatprep.subr.bf16.mxu0 0
          %3773 = vmatpush1.bf16.msra.mxu0 %v3749
          %3774 = vmatprep.subr.bf16.mxu0 0
          %3775 = vmatpush1.bf16.msra.mxu0 0
          %3776 = vmatprep.subr.bf16.mxu0 0
          %3777 = vmatpush1.bf16.msra.mxu0 0
          %3778 = vmatprep.subr.bf16.mxu0 0
          %3779 = vmatpush1.bf16.msra.mxu0 0
          %3780 = vmatprep.subr.bf16.mxu0 0
          %3781 = vmatpush1.bf16.msra.mxu0 0
          %3782 = vmatprep.subr.bf16.mxu0 0
          %3783 = vmatpush1.bf16.msra.mxu0 0
          %3784 = vmatprep.subr.bf16.mxu0 0
          %3785 = vmatpush1.bf16.msra.mxu0 0
          %3786 = vmatprep.subr.bf16.mxu0 0
          %3787 = vmatpush1.bf16.msra.mxu0 0
          %3788 = vmatprep.subr.bf16.mxu0 0
          %3789 = vmatpush1.bf16.msra.mxu0 0
          %3790 = vmatprep.mubr.bf16.mxu0 0
          %3791 = vmatmul.mubr.bf16.gmra.mrb[0].mxu0 %v3686
          %v3792 = vpop.f32.mrb[0].mxu0
          %v3793 = vadd.f32 %v3708, %v3792
          %v3794 = vpop.f32.mrb[0].mxu0
          %v3795 = vpop.f32.mrb[0].mxu0
          %v3796 = vpop.f32.mrb[0].mxu0
          %3797 = vdwg.mxu0
          %v3798 = vmax.f32 %v3793, 0.0
          %v3799 = vpack.c.bf16 %v3798, %v3798
          %v3800 = vld [vmem:[#allocation18] sm:$0xf]
          %v3801 = vld [vmem:[#allocation18 + $0x4] sm:$0xf]
          %v3802 = vld [vmem:[#allocation18 + $0x8] sm:$0xf]
          %v3803 = vld [vmem:[#allocation18 + $0xc] sm:$0xf]
          %v3804 = vld [vmem:[#allocation18 + $0x10] sm:$0xf]
          %v3805 = vld [vmem:[#allocation18 + $0x14] sm:$0xf]
          %v3806 = vld [vmem:[#allocation18 + $0x18] sm:$0xf]
          %v3807 = vld [vmem:[#allocation18 + $0x1c] sm:$0xf]
          %v3808 = vld [vmem:[#allocation18 + $0x20] sm:$0xf]
          %v3809 = vld [vmem:[#allocation18 + $0x24] sm:$0xf]
          %v3810 = vld [vmem:[#allocation18 + $0x28] sm:$0xf]
          %v3811 = vld [vmem:[#allocation18 + $0x2c] sm:$0xf]
          %v3812 = vld [vmem:[#allocation18 + $0x30] sm:$0xf]
          %v3813 = vld [vmem:[#allocation18 + $0x34] sm:$0xf]
          %v3814 = vld [vmem:[#allocation18 + $0x38] sm:$0xf]
          %v3815 = vld [vmem:[#allocation18 + $0x3c] sm:$0xf]
          %v3816 = vld [vmem:[#allocation20] sm:$0x1]
          %v3818 = vlaneseq
          %v3819 = vshrl.u32 %v3818, 7
          %v3820 = vsub.s32 0, %v3819
          %v3821 = vrot.slane %v3816, %v3820
          %v3839 = vunpack.c.l.b16 %v3800
          %v3840 = vunpack.c.l.b16 %v3801
          %v3841 = vunpack.c.l.b16 %v3802
          %v3842 = vunpack.c.l.b16 %v3803
          %v3843 = vunpack.c.l.b16 %v3804
          %v3844 = vunpack.c.l.b16 %v3805
          %v3845 = vunpack.c.l.b16 %v3806
          %v3846 = vunpack.c.l.b16 %v3807
          %v3847 = vunpack.c.l.b16 %v3808
          %v3848 = vunpack.c.l.b16 %v3809
          %v3849 = vunpack.c.l.b16 %v3810
          %v3850 = vunpack.c.l.b16 %v3811
          %v3851 = vunpack.c.l.b16 %v3812
          %v3852 = vunpack.c.l.b16 %v3813
          %v3853 = vunpack.c.l.b16 %v3814
          %v3854 = vunpack.c.l.b16 %v3815
          %v3855 = vpack.c.b16 %v3840, %v3839
          %v3856 = vpack.c.b16 %v3842, %v3841
          %v3857 = vpack.c.b16 %v3844, %v3843
          %v3858 = vpack.c.b16 %v3846, %v3845
          %v3859 = vpack.c.b16 %v3848, %v3847
          %v3860 = vpack.c.b16 %v3850, %v3849
          %v3861 = vpack.c.b16 %v3852, %v3851
          %v3862 = vpack.c.b16 %v3854, %v3853
          %3871 = vmatprep.subr.bf16.mxu0 0
          %3872 = vmatpush1.bf16.msra.mxu0 %v3855
          %3873 = vmatprep.subr.bf16.mxu0 0
          %3874 = vmatpush1.bf16.msra.mxu0 %v3856
          %3875 = vmatprep.subr.bf16.mxu0 0
          %3876 = vmatpush1.bf16.msra.mxu0 %v3857
          %3877 = vmatprep.subr.bf16.mxu0 0
          %3878 = vmatpush1.bf16.msra.mxu0 %v3858
          %3879 = vmatprep.subr.bf16.mxu0 0
          %3880 = vmatpush1.bf16.msra.mxu0 %v3859
          %3881 = vmatprep.subr.bf16.mxu0 0
          %3882 = vmatpush1.bf16.msra.mxu0 %v3860
          %3883 = vmatprep.subr.bf16.mxu0 0
          %3884 = vmatpush1.bf16.msra.mxu0 %v3861
          %3885 = vmatprep.subr.bf16.mxu0 0
          %3886 = vmatpush1.bf16.msra.mxu0 %v3862
          %3887 = vmatprep.subr.bf16.mxu0 0
          %3888 = vmatpush1.bf16.msra.mxu0 0
          %3889 = vmatprep.subr.bf16.mxu0 0
          %3890 = vmatpush1.bf16.msra.mxu0 0
          %3891 = vmatprep.subr.bf16.mxu0 0
          %3892 = vmatpush1.bf16.msra.mxu0 0
          %3893 = vmatprep.subr.bf16.mxu0 0
          %3894 = vmatpush1.bf16.msra.mxu0 0
          %3895 = vmatprep.subr.bf16.mxu0 0
          %3896 = vmatpush1.bf16.msra.mxu0 0
          %3897 = vmatprep.subr.bf16.mxu0 0
          %3898 = vmatpush1.bf16.msra.mxu0 0
          %3899 = vmatprep.subr.bf16.mxu0 0
          %3900 = vmatpush1.bf16.msra.mxu0 0
          %3901 = vmatprep.subr.bf16.mxu0 0
          %3902 = vmatpush1.bf16.msra.mxu0 0
          %3903 = vmatprep.mubr.bf16.mxu0 0
          %3904 = vmatmul.mubr.bf16.gmra.mrb[0].mxu0 %v3799
          %v3905 = vpop.f32.mrb[0].mxu0
          %v3906 = vadd.f32 %v3821, %v3905
          %v3907 = vpop.f32.mrb[0].mxu0
          %v3908 = vpop.f32.mrb[0].mxu0
          %v3909 = vpop.f32.mrb[0].mxu0
          %3910 = vdwg.mxu0
          %3911 = vst [vmem:[#allocation21] sm:$0xff] %v3906
        $region116: #{tpu_custom_call.1} parent=63 // pred_fallthru
          _
        // Predicated region
        $region117: #{tpu_custom_call.1} parent=63 // pred_check
          %p3912 = pneg %p306
        $region118: #{tpu_custom_call.1} parent=63 // pred_check_branch
          %3914 = sbr.rel (%p3912) target = $region120
        $region119: #{tpu_custom_call.1} parent=63 // pred_region
          %s3916 = ssub.s32 128, 128
          %3917 = vsyncadd [#allocation5], %s3916
          %s3918 = smul.addr %s37, 128
          %s3919 = scalar_lea.hbm %s11, %s3918
          %s3921 = sshll.u32 [#allocation21], 4
          %s3922 = int_to_ptr.vmem [resolvable:$true] %s3921
          %3924 = dma.vmem_to_hbm [thread:$0]  %s3922, 128, %s3919, [#allocation5]
        $region120: #{tpu_custom_call.1} parent=63 // pred_fallthru
          _
        // Predicated region
        $region121: #{tpu_custom_call.1} parent=63 // pred_check
          %p3925 = pneg %p306
        $region122: #{tpu_custom_call.1} parent=63 // pred_check_branch
          %3927 = sbr.rel (%p3925) target = $region124
        $region123: #{tpu_custom_call.1} parent=63 // pred_region
          %3928 = dma.done [#allocation5], 128
        $region124: #{tpu_custom_call.1} parent=63 // pred_fallthru
          _
      $region64: #{tpu_custom_call.1} parent=5 // pred_fallthru
        _
      %p3929 = scmp.le.s32.totalorder 2, %s28
      // Predicated region
      $region125: #{tpu_custom_call.1} parent=5 // pred_check
        %p3930 = pneg %p3929
      $region126: #{tpu_custom_call.1} parent=5 // pred_check_branch
        %3932 = sbr.rel (%p3930) target = $region128
      $region127: #{tpu_custom_call.1} parent=5 // pred_region
        %s3933 = ssub.s32 %s28, 2
      $region128: #{tpu_custom_call.1} parent=5 // pred_fallthru
        _
    $region6: #{tpu_custom_call.1} parent=1 // loop_footer
      %s32 = sadd.s32 1, %s28
    $region7: #{tpu_custom_call.1} parent=1 // loop_footer_branch
      %27 = sbr.rel target = $region3
    $region8: #{tpu_custom_call.1} parent=1 // loop_exit
      _
    %3934 = vsyncpa [#allocation4], 1
    %s3935 = scalar_lea.sflag [#allocation4], 1
    %3936 = vsyncpa %s3935, 1
    %3937 = vsyncpa [#allocation7], 1
    %s3938 = scalar_lea.sflag [#allocation7], 1
    %3939 = vsyncpa %s3938, 1
    %3940 = vsyncpa [#allocation10], 1
    %3941 = vsyncpa [#allocation13], 1
    %3942 = vsyncpa [#allocation16], 1
    %3943 = vsyncpa [#allocation19], 1
    %3944 = vsyncpa [#allocation5], 1
    %s3945 = scalar_lea.sflag [#allocation5], 1
    %3946 = vsyncpa %s3945, 1

</llo_original>
